<compile_context>
chip_gen: v7x
topology: tpu7x:2x2x1
jax: 0.10.0
libtpu: 0.0.40
codegen_flags: <defaults>
</compile_context>

<pallas_src>
import functools

import jax
import jax.numpy as jnp
from jax.experimental import pallas as pl
from jax.experimental.pallas import tpu as pltpu

EPS = 1e-5
LANE = 128                      # pad matmul output (lane dim) to this multiple
K_TILE_CAP = 2048               # contraction dims above this get K-tiled
K_TILE = 512                    # fallback K tile (only if no nice divisor)
VMEM_BUDGET = 24 * 1024 * 1024  # target double-buffered working set per call
VMEM_LIMIT = 40 * 1024 * 1024   # scoped VMEM limit (safe on v5e/v6e/v7x)


def _round_up(x, m):
    return ((x + m - 1) // m) * m


def _choose_tm(m, bytes_fn, budget=VMEM_BUDGET):
    """Pick a row tile dividing m (padding m if needed) with bytes_fn(tm)<=budget."""
    for t in (1024, 512, 256, 128, 64, 32, 16, 8):
        if m % t == 0 and bytes_fn(t) <= budget:
            return t, m
    if m <= 8 or bytes_fn(m) <= budget:
        return m, m
    for t in (512, 256, 128, 64, 32, 16, 8):      # remainder path: pad M
        if bytes_fn(t) <= budget:
            return t, _round_up(m, t)
    return 8, _round_up(m, 8)


def _pick_tn(p, gm, gk):
    """Lane tile of the matmul output; keep >=2 tiles on a parallel axis when
    the row axis has only one block (v7x megacore)."""
    if p % 512 == 0 and p > 512:
        return 512
    if gm == 1 and gk == 1 and p >= 256 and p % 256 == 0:
        return p // 2
    return p


def _prep_k(a, b):
    """Tile large contraction dims; prefer divisors of K that are multiples of
    128 so the patches matrix is never copied just to be zero-padded."""
    k = a.shape[1]
    if k <= K_TILE_CAP:
        return a, b, k
    for tk in (2048, 1536, 1152, 1024, 768, 640, 576, 512, 384, 256, 128):
        if k % tk == 0:
            return a, b, tk
    k_pad = _round_up(k, K_TILE)
    a = jnp.pad(a, ((0, 0), (0, k_pad - k)))
    b = jnp.pad(b, ((0, k_pad - k), (0, 0)))
    return a, b, K_TILE


# --------------------------------------------------------------------------
# Pallas kernels
# --------------------------------------------------------------------------
def _mm_stats_k1_kernel(a_ref, b_ref, o_ref, s_ref, sq_ref):
    """Single-K-tile: out = A@B (bf16 store) + fused per-tile column stats."""
    out = jnp.dot(a_ref[...], b_ref[...], preferred_element_type=jnp.float32)
    o_ref[...] = out.astype(o_ref.dtype)
    s_ref[...] = jnp.sum(out, axis=0, keepdims=True)[None]
    sq_ref[...] = jnp.sum(out * out, axis=0, keepdims=True)[None]


def _mm_stats_kernel(a_ref, b_ref, o_ref, s_ref, sq_ref, acc_ref):
    """K-tiled: accumulate in f32 VMEM scratch; store bf16 + stats at last K."""
    k = pl.program_id(2)

    @pl.when(k == 0)
    def _():
        acc_ref[...] = jnp.zeros_like(acc_ref)

    acc_ref[...] += jnp.dot(a_ref[...], b_ref[...],
                            preferred_element_type=jnp.float32)

    @pl.when(k == pl.num_programs(2) - 1)
    def _():
        out = acc_ref[...]
        o_ref[...] = out.astype(o_ref.dtype)
        s_ref[...] = jnp.sum(out, axis=0, keepdims=True)[None]
        sq_ref[...] = jnp.sum(out * out, axis=0, keepdims=True)[None]


def _mm_bias_tanh_k1_kernel(a_ref, b_ref, bias_ref, o_ref):
    """Single-K-tile: out = tanh(A@B + bias), stored bf16."""
    out = jnp.dot(a_ref[...], b_ref[...], preferred_element_type=jnp.float32)
    o_ref[...] = jnp.tanh(out + bias_ref[...]).astype(o_ref.dtype)


def _mm_bias_tanh_kernel(a_ref, b_ref, bias_ref, o_ref, acc_ref):
    k = pl.program_id(2)

    @pl.when(k == 0)
    def _():
        acc_ref[...] = jnp.zeros_like(acc_ref)

    acc_ref[...] += jnp.dot(a_ref[...], b_ref[...],
                            preferred_element_type=jnp.float32)

    @pl.when(k == pl.num_programs(2) - 1)
    def _():
        o_ref[...] = jnp.tanh(acc_ref[...] + bias_ref[...]).astype(o_ref.dtype)


def _scale_shift_relu_kernel(x_ref, scale_ref, shift_ref, o_ref):
    """Folded BatchNorm + ReLU: y = max(x*scale + shift, 0).
    f32 math (v5e has no bf16 VALU), bf16 storage."""
    x = x_ref[...].astype(jnp.float32)
    y = x * scale_ref[...] + shift_ref[...]
    o_ref[...] = jnp.maximum(y, 0.0).astype(o_ref.dtype)


# --------------------------------------------------------------------------
# Pallas wrappers
# --------------------------------------------------------------------------
def pallas_matmul_stats(a, b):
    """A(M,K)@B(K,P) bf16->f32-acc->bf16 store, with fused column sum/sumsq.
    P must be a multiple of LANE (caller pads B)."""
    a, b, tk = _prep_k(a, b)
    m, k = a.shape
    p = b.shape[1]
    gk = k // tk
    tn0 = 512 if (p % 512 == 0 and p > 512) else p
    ab, bb = a.dtype.itemsize, b.dtype.itemsize

    def bytes_fn(t):
        dbuf = 2 * (t * tk * ab + tk * tn0 * bb + t * tn0 * 2 + 2 * tn0 * 4)
        return dbuf + (t * tn0 * 4 if gk > 1 else 0)

    tm, m_pad = _choose_tm(m, bytes_fn)
    if m_pad != m:
        a = jnp.pad(a, ((0, m_pad - m), (0, 0)))   # zero rows: stats unaffected
    gm = m_pad // tm
    tn = _pick_tn(p, gm, gk)
    gn = p // tn

    out_shape = (
        jax.ShapeDtypeStruct((m_pad, p), jnp.bfloat16),
        jax.ShapeDtypeStruct((gm, 1, p), jnp.float32),
        jax.ShapeDtypeStruct((gm, 1, p), jnp.float32),
    )
    if gk == 1:
        out, s, sq = pl.pallas_call(
            _mm_stats_k1_kernel,
            out_shape=out_shape,
            grid=(gm, gn),
            in_specs=[
                pl.BlockSpec((tm, tk), lambda i, j: (i, 0)),
                pl.BlockSpec((tk, tn), lambda i, j: (0, j)),
            ],
            out_specs=(
                pl.BlockSpec((tm, tn), lambda i, j: (i, j)),
                pl.BlockSpec((1, 1, tn), lambda i, j: (i, 0, j)),
                pl.BlockSpec((1, 1, tn), lambda i, j: (i, 0, j)),
            ),
            compiler_params=pltpu.CompilerParams(
                dimension_semantics=("parallel", "parallel"),
                vmem_limit_bytes=VMEM_LIMIT),
        )(a, b)
    else:
        out, s, sq = pl.pallas_call(
            _mm_stats_kernel,
            out_shape=out_shape,
            grid=(gm, gn, gk),
            in_specs=[
                pl.BlockSpec((tm, tk), lambda i, j, kk: (i, kk)),
                pl.BlockSpec((tk, tn), lambda i, j, kk: (kk, j)),
            ],
            out_specs=(
                pl.BlockSpec((tm, tn), lambda i, j, kk: (i, j)),
                pl.BlockSpec((1, 1, tn), lambda i, j, kk: (i, 0, j)),
                pl.BlockSpec((1, 1, tn), lambda i, j, kk: (i, 0, j)),
            ),
            scratch_shapes=[pltpu.VMEM((tm, tn), jnp.float32)],
            compiler_params=pltpu.CompilerParams(
                dimension_semantics=("parallel", "parallel", "arbitrary"),
                vmem_limit_bytes=VMEM_LIMIT),
        )(a, b)
    if m_pad != m:
        out = out[:m]
    return out, jnp.sum(s, axis=(0, 1)), jnp.sum(sq, axis=(0, 1))


def pallas_matmul_bias_tanh(a, b, bias_row):
    """tanh(A@B + bias), epilogue fused in the matmul, bf16 output."""
    a, b, tk = _prep_k(a, b)
    m, k = a.shape
    p = b.shape[1]
    gk = k // tk
    tn0 = 512 if (p % 512 == 0 and p > 512) else p
    ab, bb = a.dtype.itemsize, b.dtype.itemsize

    def bytes_fn(t):
        dbuf = 2 * (t * tk * ab + tk * tn0 * bb + t * tn0 * 2 + tn0 * 4)
        return dbuf + (t * tn0 * 4 if gk > 1 else 0)

    tm, m_pad = _choose_tm(m, bytes_fn)
    if m_pad != m:
        a = jnp.pad(a, ((0, m_pad - m), (0, 0)))
    gm = m_pad // tm
    tn = _pick_tn(p, gm, gk)
    gn = p // tn

    if gk == 1:
        out = pl.pallas_call(
            _mm_bias_tanh_k1_kernel,
            out_shape=jax.ShapeDtypeStruct((m_pad, p), jnp.bfloat16),
            grid=(gm, gn),
            in_specs=[
                pl.BlockSpec((tm, tk), lambda i, j: (i, 0)),
                pl.BlockSpec((tk, tn), lambda i, j: (0, j)),
                pl.BlockSpec((1, tn), lambda i, j: (0, j)),
            ],
            out_specs=pl.BlockSpec((tm, tn), lambda i, j: (i, j)),
            compiler_params=pltpu.CompilerParams(
                dimension_semantics=("parallel", "parallel"),
                vmem_limit_bytes=VMEM_LIMIT),
        )(a, b, bias_row)
    else:
        out = pl.pallas_call(
            _mm_bias_tanh_kernel,
            out_shape=jax.ShapeDtypeStruct((m_pad, p), jnp.bfloat16),
            grid=(gm, gn, gk),
            in_specs=[
                pl.BlockSpec((tm, tk), lambda i, j, kk: (i, kk)),
                pl.BlockSpec((tk, tn), lambda i, j, kk: (kk, j)),
                pl.BlockSpec((1, tn), lambda i, j, kk: (0, j)),
            ],
            out_specs=pl.BlockSpec((tm, tn), lambda i, j, kk: (i, j)),
            scratch_shapes=[pltpu.VMEM((tm, tn), jnp.float32)],
            compiler_params=pltpu.CompilerParams(
                dimension_semantics=("parallel", "parallel", "arbitrary"),
                vmem_limit_bytes=VMEM_LIMIT),
        )(a, b, bias_row)
    return out[:m] if m_pad != m else out


def pallas_scale_shift_relu(x, scale, shift, out_dtype=jnp.bfloat16):
    """Per-column y = relu(x*scale + shift) (folded BatchNorm + ReLU)."""
    m, p = x.shape
    xb = x.dtype.itemsize
    ob = jnp.dtype(out_dtype).itemsize

    def bytes_fn(t):
        return 2 * (t * p * (xb + ob) + 2 * p * 4)

    tm, m_pad = _choose_tm(m, bytes_fn)
    if m_pad != m:
        x = jnp.pad(x, ((0, m_pad - m), (0, 0)))
    out = pl.pallas_call(
        _scale_shift_relu_kernel,
        out_shape=jax.ShapeDtypeStruct((m_pad, p), out_dtype),
        grid=(m_pad // tm,),
        in_specs=[
            pl.BlockSpec((tm, p), lambda i: (i, 0)),
            pl.BlockSpec((1, p), lambda i: (0, 0)),
            pl.BlockSpec((1, p), lambda i: (0, 0)),
        ],
        out_specs=pl.BlockSpec((tm, p), lambda i: (i, 0)),
        compiler_params=pltpu.CompilerParams(
            dimension_semantics=("parallel",),
            vmem_limit_bytes=VMEM_LIMIT),
    )(x, scale.reshape(1, p), shift.reshape(1, p))
    return out[:m] if m_pad != m else out


# --------------------------------------------------------------------------
# Sub-pixel decomposition of ConvTranspose2d(5, stride=2, pad=2, out_pad=1):
# output pixel (2m+py, 2k+px) only uses taps kh = py+4-2*dy, kw = px+4-2*dx
# (dy,dx in 0..2) reading x_pad[m+dy, k+dx] of the 1-zero-padded input
# => one 3x3 conv producing 4*Cout phase-interleaved outputs.
# --------------------------------------------------------------------------
def _im2col3x3(a_nhwc):
    """(N,H,W,C) -> (N*H*W, 9*C) patches of the 1-zero-padded input."""
    n, h, w, c = a_nhwc.shape
    z = jnp.pad(a_nhwc, ((0, 0), (1, 1), (1, 1), (0, 0)))
    cols = [z[:, dy:dy + h, dx:dx + w, :] for dy in range(3) for dx in range(3)]
    return jnp.concatenate(cols, axis=-1).reshape(n * h * w, 9 * c)


def _subpixel_weight(w_t, p_out):
    """torch weight (Cin,Cout,5,5) -> (9*Cin, p_out) sub-pixel conv matrix.
    Columns ordered (phase=py*2+px, cout); zero-padded to p_out lanes."""
    cin, cout = w_t.shape[0], w_t.shape[1]
    zero = jnp.zeros((cin, cout), w_t.dtype)
    rows = []
    for dy in range(3):
        for dx in range(3):
            cols = []
            for py in range(2):
                for px in range(2):
                    kh = py + 4 - 2 * dy
                    kw = px + 4 - 2 * dx
                    valid = (0 <= kh < 5) and (0 <= kw < 5)
                    cols.append(w_t[:, :, kh, kw] if valid else zero)
            rows.append(jnp.concatenate(cols, axis=1))       # (Cin, 4*Cout)
    wmat = jnp.concatenate(rows, axis=0)                     # (9*Cin, 4*Cout)
    return jnp.pad(wmat, ((0, 0), (0, p_out - 4 * cout)))


def _pixel_shuffle(flat, n, h, w, cout):
    """(N*H*W, P) pre-shuffle conv output -> (N, 2H, 2W, Cout)."""
    y = flat[:, :4 * cout].reshape(n, h, w, 2, 2, cout)
    y = y.transpose(0, 1, 3, 2, 4, 5)
    return y.reshape(n, 2 * h, 2 * w, cout)


def _bn_scale_shift(ch_sum, ch_sq, count, gamma, beta):
    mean = ch_sum / count
    var = jnp.maximum(ch_sq / count - mean * mean, 0.0)   # biased (train-mode BN)
    scale = gamma * jax.lax.rsqrt(var + EPS)
    shift = beta - mean * scale
    return scale, shift


# --------------------------------------------------------------------------
# Layers
# --------------------------------------------------------------------------
def linear_bn_relu(x, w, gamma, beta):
    """Linear(bias=False) -> BatchNorm1d(training stats) -> ReLU."""
    n = x.shape[0]
    feat = w.shape[1]
    p_out = _round_up(feat, LANE)
    w_p = jnp.pad(w, ((0, 0), (0, p_out - feat)))
    out, s, sq = pallas_matmul_stats(
        x.astype(jnp.bfloat16), w_p.astype(jnp.bfloat16))
    gamma_p = jnp.pad(gamma, (0, p_out - feat))
    beta_p = jnp.pad(beta, (0, p_out - feat))
    scale, shift = _bn_scale_shift(s, sq, n, gamma_p, beta_p)
    act = pallas_scale_shift_relu(out, scale, shift)          # (N, p_out) bf16
    return act[:, :feat]


def dconv_bn_relu(a_nhwc, w_t, gamma, beta):
    """ConvTranspose2d(5,2,2,1,bias=False) -> BatchNorm2d -> ReLU."""
    n, h, w, _ = a_nhwc.shape
    cout = w_t.shape[1]
    p_out = _round_up(4 * cout, LANE)
    patches = _im2col3x3(a_nhwc).astype(jnp.bfloat16)
    wmat = _subpixel_weight(w_t, p_out).astype(jnp.bfloat16)
    raw, s, sq = pallas_matmul_stats(patches, wmat)           # raw (pre-BN) bf16
    ch_sum = s[:4 * cout].reshape(4, cout).sum(axis=0)
    ch_sq = sq[:4 * cout].reshape(4, cout).sum(axis=0)
    scale, shift = _bn_scale_shift(ch_sum, ch_sq, 4 * n * h * w, gamma, beta)
    scale_l = jnp.pad(jnp.tile(scale, 4), (0, p_out - 4 * cout))
    shift_l = jnp.pad(jnp.tile(shift, 4), (0, p_out - 4 * cout))
    act = pallas_scale_shift_relu(raw, scale_l, shift_l)      # lane-dense BN+ReLU
    return _pixel_shuffle(act, n, h, w, cout)                 # (N, 2H, 2W, Cout)


def dconv_bias_tanh(a_nhwc, w_t, bias):
    """Final ConvTranspose2d(dim, 3, bias=True) -> Tanh (fused epilogue)."""
    n, h, w, _ = a_nhwc.shape
    cout = w_t.shape[1]
    p_out = _round_up(4 * cout, LANE)
    patches = _im2col3x3(a_nhwc).astype(jnp.bfloat16)
    wmat = _subpixel_weight(w_t, p_out).astype(jnp.bfloat16)
    bias_row = jnp.pad(jnp.tile(bias, 4), (0, p_out - 4 * cout)).reshape(1, p_out)
    out = pallas_matmul_bias_tanh(patches, wmat, bias_row)    # bf16
    return _pixel_shuffle(out, n, h, w, cout)                 # (N, 2H, 2W, 3)


# --------------------------------------------------------------------------
# Generator
# --------------------------------------------------------------------------
def init_params(key, in_dim, dim):
    ks = jax.random.split(key, 16)
    p = {}
    feat = dim * 8 * 4 * 4
    p["l1_w"] = 0.02 * jax.random.normal(ks[0], (in_dim, feat), jnp.float32)
    p["l1_gamma"] = 1.0 + 0.02 * jax.random.normal(ks[1], (feat,), jnp.float32)
    p["l1_beta"] = jnp.zeros((feat,), jnp.float32)
    chans = [dim * 8, dim * 4, dim * 2, dim, 3]
    for i in range(4):
        cin, cout = chans[i], chans[i + 1]
        p[f"ct{i + 1}_w"] = 0.02 * jax.random.normal(
            ks[2 + 3 * i], (cin, cout, 5, 5), jnp.float32)
        if i < 3:
            p[f"bn{i + 1}_gamma"] = 1.0 + 0.02 * jax.random.normal(
                ks[3 + 3 * i], (cout,), jnp.float32)
            p[f"bn{i + 1}_beta"] = jnp.zeros((cout,), jnp.float32)
    p["ct4_b"] = 0.02 * jax.random.normal(ks[14], (3,), jnp.float32)
    return p


def generator_forward(params, x, dim):
    n = x.shape[0]
    # l1: Linear -> BatchNorm1d -> ReLU
    y = linear_bn_relu(x, params["l1_w"], params["l1_gamma"], params["l1_beta"])
    # view(N, dim*8, 4, 4) (NCHW) then NHWC for the conv pipeline
    y = y.reshape(n, dim * 8, 4, 4).transpose(0, 2, 3, 1)
    # three dconv_bn_relu blocks
    for i in range(3):
        y = dconv_bn_relu(y, params[f"ct{i + 1}_w"],
                          params[f"bn{i + 1}_gamma"], params[f"bn{i + 1}_beta"])
    # final ConvTranspose2d(dim, 3) + bias + tanh, fused in the matmul epilogue
    y = dconv_bias_tanh(y, params["ct4_w"], params["ct4_b"])   # (N, 64, 64, 3)
    return y.transpose(0, 3, 1, 2).astype(jnp.float32)          # (N, 3, 64, 64)


if __name__ == "__main__":
    IN_DIM, DIM, N = 32, 16, 2  # small shapes; output is (N, 3, 64, 64) regardless
    x = jax.random.normal(jax.random.PRNGKey(0), (N, IN_DIM), jnp.float32)
    params = init_params(jax.random.PRNGKey(1), IN_DIM, DIM)

    fwd = jax.jit(functools.partial(generator_forward, dim=DIM))
    out = jax.block_until_ready(fwd(params, x))

    assert out.shape == (N, 3, 64, 64), out.shape
    assert out.dtype == jnp.float32
    assert bool(jnp.all(jnp.isfinite(out)))
    assert bool(jnp.all(jnp.abs(out) <= 1.0 + 1e-6))  # tanh range
    print("KERNEL_OK")
</pallas_src>

<mosaic_0001>
module attributes {stable_mosaic.version = 11 : i64} {
  func.func @_mm_stats_k1_kernel(%arg0: i32, %arg1: i32, %arg2: memref<2x32xbf16, #tpu.memory_space<vmem>>, %arg3: memref<32x512xbf16, #tpu.memory_space<vmem>>, %arg4: memref<2x512xbf16, #tpu.memory_space<vmem>>, %arg5: memref<1x1x512xf32, #tpu.memory_space<vmem>>, %arg6: memref<1x1x512xf32, #tpu.memory_space<vmem>>) attributes {dimension_semantics = [#tpu.dimension_semantics<parallel>, #tpu.dimension_semantics<parallel>], iteration_bounds = array<i64: 1, 4>, scalar_prefetch = 0 : i64, scratch_operands = 0 : i64, tpu.core_type = #tpu.core_type<tc>, window_params = [{transform_indices = @transform_0, window_bounds = array<i64: 2, 32>}, {transform_indices = @transform_1, window_bounds = array<i64: 32, 512>}, {transform_indices = @transform_2, window_bounds = array<i64: 2, 512>}, {transform_indices = @transform_3, window_bounds = array<i64: 1, 1, 512>}, {transform_indices = @transform_4, window_bounds = array<i64: 1, 1, 512>}]} {
    %c0 = arith.constant 0 : index
    %c0_0 = arith.constant 0 : index
    %0 = vector.load %arg2[%c0, %c0_0] : memref<2x32xbf16, #tpu.memory_space<vmem>>, vector<2x32xbf16>
    %c0_1 = arith.constant 0 : index
    %c0_2 = arith.constant 0 : index
    %1 = vector.load %arg3[%c0_1, %c0_2] : memref<32x512xbf16, #tpu.memory_space<vmem>>, vector<32x512xbf16>
    %cst = arith.constant dense<0.000000e+00> : vector<2x512xf32>
    %2 = tpu.matmul %0, %1, %cst {dimension_numbers = #tpu.dot_dimension_numbers<[1], [0], [0], [1], [0, 0, 1, 1], [], []>} : vector<2x32xbf16>, vector<32x512xbf16>, vector<2x512xf32> -> vector<2x512xf32>
    %3 = arith.truncf %2 : vector<2x512xf32> to vector<2x512xbf16>
    %c0_3 = arith.constant 0 : index
    %c0_4 = arith.constant 0 : index
    %4 = vector.load %arg4[%c0_3, %c0_4] : memref<2x512xbf16, #tpu.memory_space<vmem>>, vector<2x512xbf16>
    tpu.vector_store %arg4[%c0_3, %c0_4], %3 {strides = array<i32>} : memref<2x512xbf16, #tpu.memory_space<vmem>>, vector<2x512xbf16>,
    %cst_5 = arith.constant dense<0.000000e+00> : vector<512xf32>
    %5 = vector.multi_reduction <add>, %2, %cst_5 [0] : vector<2x512xf32> to vector<512xf32>
    %6 = vector.shape_cast %5 : vector<512xf32> to vector<1x512xf32>
    %7 = vector.shape_cast %6 : vector<1x512xf32> to vector<1x1x512xf32>
    %c0_6 = arith.constant 0 : index
    %c0_7 = arith.constant 0 : index
    %c0_8 = arith.constant 0 : index
    %8 = vector.load %arg5[%c0_6, %c0_7, %c0_8] : memref<1x1x512xf32, #tpu.memory_space<vmem>>, vector<1x1x512xf32>
    tpu.vector_store %arg5[%c0_6, %c0_7, %c0_8], %7 {strides = array<i32>} : memref<1x1x512xf32, #tpu.memory_space<vmem>>, vector<1x1x512xf32>,
    %9 = arith.mulf %2, %2 : vector<2x512xf32>
    %cst_9 = arith.constant dense<0.000000e+00> : vector<512xf32>
    %10 = vector.multi_reduction <add>, %9, %cst_9 [0] : vector<2x512xf32> to vector<512xf32>
    %11 = vector.shape_cast %10 : vector<512xf32> to vector<1x512xf32>
    %12 = vector.shape_cast %11 : vector<1x512xf32> to vector<1x1x512xf32>
    %c0_10 = arith.constant 0 : index
    %c0_11 = arith.constant 0 : index
    %c0_12 = arith.constant 0 : index
    %13 = vector.load %arg6[%c0_10, %c0_11, %c0_12] : memref<1x1x512xf32, #tpu.memory_space<vmem>>, vector<1x1x512xf32>
    tpu.vector_store %arg6[%c0_10, %c0_11, %c0_12], %12 {strides = array<i32>} : memref<1x1x512xf32, #tpu.memory_space<vmem>>, vector<1x1x512xf32>,
    return
  }
  func.func @transform_0(%arg0: i32, %arg1: i32) -> (i32, i32) {
    %c0_i32 = arith.constant 0 : i32
    %c0_i32_0 = arith.constant 0 : i32
    return %arg0, %c0_i32 : i32, i32
  }
  func.func @transform_1(%arg0: i32, %arg1: i32) -> (i32, i32) {
    %c0_i32 = arith.constant 0 : i32
    %c0_i32_0 = arith.constant 0 : i32
    return %c0_i32, %arg1 : i32, i32
  }
  func.func @transform_2(%arg0: i32, %arg1: i32) -> (i32, i32) {
    %c0_i32 = arith.constant 0 : i32
    return %arg0, %arg1 : i32, i32
  }
  func.func @transform_3(%arg0: i32, %arg1: i32) -> (i32, i32, i32) {
    %c0_i32 = arith.constant 0 : i32
    %c0_i32_0 = arith.constant 0 : i32
    return %arg0, %c0_i32, %arg1 : i32, i32, i32
  }
  func.func @transform_4(%arg0: i32, %arg1: i32) -> (i32, i32, i32) {
    %c0_i32 = arith.constant 0 : i32
    %c0_i32_0 = arith.constant 0 : i32
    return %arg0, %c0_i32, %arg1 : i32, i32, i32
  }
}

module attributes {stable_mosaic.version = 11 : i64} {
  func.func @_scale_shift_relu_kernel(%arg0: i32, %arg1: memref<2x2048xbf16, #tpu.memory_space<vmem>>, %arg2: memref<1x2048xf32, #tpu.memory_space<vmem>>, %arg3: memref<1x2048xf32, #tpu.memory_space<vmem>>, %arg4: memref<2x2048xbf16, #tpu.memory_space<vmem>>) attributes {dimension_semantics = [#tpu.dimension_semantics<parallel>], iteration_bounds = array<i64: 1>, scalar_prefetch = 0 : i64, scratch_operands = 0 : i64, tpu.core_type = #tpu.core_type<tc>, window_params = [{transform_indices = @transform_0, window_bounds = array<i64: 2, 2048>}, {pipeline_mode = #tpu.pipeline_mode<synchronous>, transform_indices = @transform_1, window_bounds = array<i64: 1, 2048>}, {pipeline_mode = #tpu.pipeline_mode<synchronous>, transform_indices = @transform_2, window_bounds = array<i64: 1, 2048>}, {transform_indices = @transform_3, window_bounds = array<i64: 2, 2048>}]} {
    %c0 = arith.constant 0 : index
    %c0_0 = arith.constant 0 : index
    %0 = vector.load %arg1[%c0, %c0_0] : memref<2x2048xbf16, #tpu.memory_space<vmem>>, vector<2x2048xbf16>
    %1 = arith.extf %0 : vector<2x2048xbf16> to vector<2x2048xf32>
    %c0_1 = arith.constant 0 : index
    %c0_2 = arith.constant 0 : index
    %2 = vector.load %arg2[%c0_1, %c0_2] : memref<1x2048xf32, #tpu.memory_space<vmem>>, vector<1x2048xf32>
    %3 = vector.broadcast %2 : vector<1x2048xf32> to vector<2x2048xf32>
    %4 = arith.mulf %1, %3 : vector<2x2048xf32>
    %c0_3 = arith.constant 0 : index
    %c0_4 = arith.constant 0 : index
    %5 = vector.load %arg3[%c0_3, %c0_4] : memref<1x2048xf32, #tpu.memory_space<vmem>>, vector<1x2048xf32>
    %6 = vector.broadcast %5 : vector<1x2048xf32> to vector<2x2048xf32>
    %7 = arith.addf %4, %6 : vector<2x2048xf32>
    %cst = arith.constant 0.000000e+00 : f32
    %8 = vector.broadcast %cst : f32 to vector<2x2048xf32>
    %9 = arith.maximumf %7, %8 : vector<2x2048xf32>
    %10 = arith.truncf %9 : vector<2x2048xf32> to vector<2x2048xbf16>
    %c0_5 = arith.constant 0 : index
    %c0_6 = arith.constant 0 : index
    %11 = vector.load %arg4[%c0_5, %c0_6] : memref<2x2048xbf16, #tpu.memory_space<vmem>>, vector<2x2048xbf16>
    tpu.vector_store %arg4[%c0_5, %c0_6], %10 {strides = array<i32>} : memref<2x2048xbf16, #tpu.memory_space<vmem>>, vector<2x2048xbf16>,
    return
  }
  func.func @transform_0(%arg0: i32) -> (i32, i32) {
    %c0_i32 = arith.constant 0 : i32
    %c0_i32_0 = arith.constant 0 : i32
    return %arg0, %c0_i32 : i32, i32
  }
  func.func @transform_1(%arg0: i32) -> (i32, i32) {
    %c0_i32 = arith.constant 0 : i32
    %c0_i32_0 = arith.constant 0 : i32
    %c0_i32_1 = arith.constant 0 : i32
    return %c0_i32, %c0_i32_0 : i32, i32
  }
  func.func @transform_2(%arg0: i32) -> (i32, i32) {
    %c0_i32 = arith.constant 0 : i32
    %c0_i32_0 = arith.constant 0 : i32
    %c0_i32_1 = arith.constant 0 : i32
    return %c0_i32, %c0_i32_0 : i32, i32
  }
  func.func @transform_3(%arg0: i32) -> (i32, i32) {
    %c0_i32 = arith.constant 0 : i32
    %c0_i32_0 = arith.constant 0 : i32
    return %arg0, %c0_i32 : i32, i32
  }
}

module attributes {stable_mosaic.version = 11 : i64} {
  func.func @_mm_stats_k1_kernel(%arg0: i32, %arg1: i32, %arg2: memref<32x1152xbf16, #tpu.memory_space<vmem>>, %arg3: memref<1152x128xbf16, #tpu.memory_space<vmem>>, %arg4: memref<32x128xbf16, #tpu.memory_space<vmem>>, %arg5: memref<1x1x128xf32, #tpu.memory_space<vmem>>, %arg6: memref<1x1x128xf32, #tpu.memory_space<vmem>>) attributes {dimension_semantics = [#tpu.dimension_semantics<parallel>, #tpu.dimension_semantics<parallel>], iteration_bounds = array<i64: 1, 2>, scalar_prefetch = 0 : i64, scratch_operands = 0 : i64, tpu.core_type = #tpu.core_type<tc>, window_params = [{transform_indices = @transform_0, window_bounds = array<i64: 32, 1152>}, {transform_indices = @transform_1, window_bounds = array<i64: 1152, 128>}, {transform_indices = @transform_2, window_bounds = array<i64: 32, 128>}, {transform_indices = @transform_3, window_bounds = array<i64: 1, 1, 128>}, {transform_indices = @transform_4, window_bounds = array<i64: 1, 1, 128>}]} {
    %c0 = arith.constant 0 : index
    %c0_0 = arith.constant 0 : index
    %0 = vector.load %arg2[%c0, %c0_0] : memref<32x1152xbf16, #tpu.memory_space<vmem>>, vector<32x1152xbf16>
    %c0_1 = arith.constant 0 : index
    %c0_2 = arith.constant 0 : index
    %1 = vector.load %arg3[%c0_1, %c0_2] : memref<1152x128xbf16, #tpu.memory_space<vmem>>, vector<1152x128xbf16>
    %cst = arith.constant dense<0.000000e+00> : vector<32x128xf32>
    %2 = tpu.matmul %0, %1, %cst {dimension_numbers = #tpu.dot_dimension_numbers<[1], [0], [0], [1], [0, 0, 1, 1], [], []>} : vector<32x1152xbf16>, vector<1152x128xbf16>, vector<32x128xf32> -> vector<32x128xf32>
    %3 = arith.truncf %2 : vector<32x128xf32> to vector<32x128xbf16>
    %c0_3 = arith.constant 0 : index
    %c0_4 = arith.constant 0 : index
    %4 = vector.load %arg4[%c0_3, %c0_4] : memref<32x128xbf16, #tpu.memory_space<vmem>>, vector<32x128xbf16>
    tpu.vector_store %arg4[%c0_3, %c0_4], %3 {strides = array<i32>} : memref<32x128xbf16, #tpu.memory_space<vmem>>, vector<32x128xbf16>,
    %cst_5 = arith.constant dense<0.000000e+00> : vector<128xf32>
    %5 = vector.multi_reduction <add>, %2, %cst_5 [0] : vector<32x128xf32> to vector<128xf32>
    %6 = vector.shape_cast %5 : vector<128xf32> to vector<1x128xf32>
    %7 = vector.shape_cast %6 : vector<1x128xf32> to vector<1x1x128xf32>
    %c0_6 = arith.constant 0 : index
    %c0_7 = arith.constant 0 : index
    %c0_8 = arith.constant 0 : index
    %8 = vector.load %arg5[%c0_6, %c0_7, %c0_8] : memref<1x1x128xf32, #tpu.memory_space<vmem>>, vector<1x1x128xf32>
    tpu.vector_store %arg5[%c0_6, %c0_7, %c0_8], %7 {strides = array<i32>} : memref<1x1x128xf32, #tpu.memory_space<vmem>>, vector<1x1x128xf32>,
    %9 = arith.mulf %2, %2 : vector<32x128xf32>
    %cst_9 = arith.constant dense<0.000000e+00> : vector<128xf32>
    %10 = vector.multi_reduction <add>, %9, %cst_9 [0] : vector<32x128xf32> to vector<128xf32>
    %11 = vector.shape_cast %10 : vector<128xf32> to vector<1x128xf32>
    %12 = vector.shape_cast %11 : vector<1x128xf32> to vector<1x1x128xf32>
    %c0_10 = arith.constant 0 : index
    %c0_11 = arith.constant 0 : index
    %c0_12 = arith.constant 0 : index
    %13 = vector.load %arg6[%c0_10, %c0_11, %c0_12] : memref<1x1x128xf32, #tpu.memory_space<vmem>>, vector<1x1x128xf32>
    tpu.vector_store %arg6[%c0_10, %c0_11, %c0_12], %12 {strides = array<i32>} : memref<1x1x128xf32, #tpu.memory_space<vmem>>, vector<1x1x128xf32>,
    return
  }
  func.func @transform_0(%arg0: i32, %arg1: i32) -> (i32, i32) {
    %c0_i32 = arith.constant 0 : i32
    %c0_i32_0 = arith.constant 0 : i32
    return %arg0, %c0_i32 : i32, i32
  }
  func.func @transform_1(%arg0: i32, %arg1: i32) -> (i32, i32) {
    %c0_i32 = arith.constant 0 : i32
    %c0_i32_0 = arith.constant 0 : i32
    return %c0_i32, %arg1 : i32, i32
  }
  func.func @transform_2(%arg0: i32, %arg1: i32) -> (i32, i32) {
    %c0_i32 = arith.constant 0 : i32
    return %arg0, %arg1 : i32, i32
  }
  func.func @transform_3(%arg0: i32, %arg1: i32) -> (i32, i32, i32) {
    %c0_i32 = arith.constant 0 : i32
    %c0_i32_0 = arith.constant 0 : i32
    return %arg0, %c0_i32, %arg1 : i32, i32, i32
  }
  func.func @transform_4(%arg0: i32, %arg1: i32) -> (i32, i32, i32) {
    %c0_i32 = arith.constant 0 : i32
    %c0_i32_0 = arith.constant 0 : i32
    return %arg0, %c0_i32, %arg1 : i32, i32, i32
  }
}

module attributes {stable_mosaic.version = 11 : i64} {
  func.func @_scale_shift_relu_kernel(%arg0: i32, %arg1: memref<32x256xbf16, #tpu.memory_space<vmem>>, %arg2: memref<1x256xf32, #tpu.memory_space<vmem>>, %arg3: memref<1x256xf32, #tpu.memory_space<vmem>>, %arg4: memref<32x256xbf16, #tpu.memory_space<vmem>>) attributes {dimension_semantics = [#tpu.dimension_semantics<parallel>], iteration_bounds = array<i64: 1>, scalar_prefetch = 0 : i64, scratch_operands = 0 : i64, tpu.core_type = #tpu.core_type<tc>, window_params = [{transform_indices = @transform_0, window_bounds = array<i64: 32, 256>}, {pipeline_mode = #tpu.pipeline_mode<synchronous>, transform_indices = @transform_1, window_bounds = array<i64: 1, 256>}, {pipeline_mode = #tpu.pipeline_mode<synchronous>, transform_indices = @transform_2, window_bounds = array<i64: 1, 256>}, {transform_indices = @transform_3, window_bounds = array<i64: 32, 256>}]} {
    %c0 = arith.constant 0 : index
    %c0_0 = arith.constant 0 : index
    %0 = vector.load %arg1[%c0, %c0_0] : memref<32x256xbf16, #tpu.memory_space<vmem>>, vector<32x256xbf16>
    %1 = arith.extf %0 : vector<32x256xbf16> to vector<32x256xf32>
    %c0_1 = arith.constant 0 : index
    %c0_2 = arith.constant 0 : index
    %2 = vector.load %arg2[%c0_1, %c0_2] : memref<1x256xf32, #tpu.memory_space<vmem>>, vector<1x256xf32>
    %3 = vector.broadcast %2 : vector<1x256xf32> to vector<32x256xf32>
    %4 = arith.mulf %1, %3 : vector<32x256xf32>
    %c0_3 = arith.constant 0 : index
    %c0_4 = arith.constant 0 : index
    %5 = vector.load %arg3[%c0_3, %c0_4] : memref<1x256xf32, #tpu.memory_space<vmem>>, vector<1x256xf32>
    %6 = vector.broadcast %5 : vector<1x256xf32> to vector<32x256xf32>
    %7 = arith.addf %4, %6 : vector<32x256xf32>
    %cst = arith.constant 0.000000e+00 : f32
    %8 = vector.broadcast %cst : f32 to vector<32x256xf32>
    %9 = arith.maximumf %7, %8 : vector<32x256xf32>
    %10 = arith.truncf %9 : vector<32x256xf32> to vector<32x256xbf16>
    %c0_5 = arith.constant 0 : index
    %c0_6 = arith.constant 0 : index
    %11 = vector.load %arg4[%c0_5, %c0_6] : memref<32x256xbf16, #tpu.memory_space<vmem>>, vector<32x256xbf16>
    tpu.vector_store %arg4[%c0_5, %c0_6], %10 {strides = array<i32>} : memref<32x256xbf16, #tpu.memory_space<vmem>>, vector<32x256xbf16>,
    return
  }
  func.func @transform_0(%arg0: i32) -> (i32, i32) {
    %c0_i32 = arith.constant 0 : i32
    %c0_i32_0 = arith.constant 0 : i32
    return %arg0, %c0_i32 : i32, i32
  }
  func.func @transform_1(%arg0: i32) -> (i32, i32) {
    %c0_i32 = arith.constant 0 : i32
    %c0_i32_0 = arith.constant 0 : i32
    %c0_i32_1 = arith.constant 0 : i32
    return %c0_i32, %c0_i32_0 : i32, i32
  }
  func.func @transform_2(%arg0: i32) -> (i32, i32) {
    %c0_i32 = arith.constant 0 : i32
    %c0_i32_0 = arith.constant 0 : i32
    %c0_i32_1 = arith.constant 0 : i32
    return %c0_i32, %c0_i32_0 : i32, i32
  }
  func.func @transform_3(%arg0: i32) -> (i32, i32) {
    %c0_i32 = arith.constant 0 : i32
    %c0_i32_0 = arith.constant 0 : i32
    return %arg0, %c0_i32 : i32, i32
  }
}

module attributes {stable_mosaic.version = 11 : i64} {
  func.func @_mm_stats_k1_kernel(%arg0: i32, %arg1: i32, %arg2: memref<128x576xbf16, #tpu.memory_space<vmem>>, %arg3: memref<576x128xbf16, #tpu.memory_space<vmem>>, %arg4: memref<128x128xbf16, #tpu.memory_space<vmem>>, %arg5: memref<1x1x128xf32, #tpu.memory_space<vmem>>, %arg6: memref<1x1x128xf32, #tpu.memory_space<vmem>>) attributes {dimension_semantics = [#tpu.dimension_semantics<parallel>, #tpu.dimension_semantics<parallel>], iteration_bounds = array<i64: 1, 1>, scalar_prefetch = 0 : i64, scratch_operands = 0 : i64, tpu.core_type = #tpu.core_type<tc>, window_params = [{transform_indices = @transform_0, window_bounds = array<i64: 128, 576>}, {transform_indices = @transform_1, window_bounds = array<i64: 576, 128>}, {transform_indices = @transform_2, window_bounds = array<i64: 128, 128>}, {transform_indices = @transform_3, window_bounds = array<i64: 1, 1, 128>}, {transform_indices = @transform_4, window_bounds = array<i64: 1, 1, 128>}]} {
    %c0 = arith.constant 0 : index
    %c0_0 = arith.constant 0 : index
    %0 = vector.load %arg2[%c0, %c0_0] : memref<128x576xbf16, #tpu.memory_space<vmem>>, vector<128x576xbf16>
    %c0_1 = arith.constant 0 : index
    %c0_2 = arith.constant 0 : index
    %1 = vector.load %arg3[%c0_1, %c0_2] : memref<576x128xbf16, #tpu.memory_space<vmem>>, vector<576x128xbf16>
    %cst = arith.constant dense<0.000000e+00> : vector<128x128xf32>
    %2 = tpu.matmul %0, %1, %cst {dimension_numbers = #tpu.dot_dimension_numbers<[1], [0], [0], [1], [0, 0, 1, 1], [], []>} : vector<128x576xbf16>, vector<576x128xbf16>, vector<128x128xf32> -> vector<128x128xf32>
    %3 = arith.truncf %2 : vector<128x128xf32> to vector<128x128xbf16>
    %c0_3 = arith.constant 0 : index
    %c0_4 = arith.constant 0 : index
    %4 = vector.load %arg4[%c0_3, %c0_4] : memref<128x128xbf16, #tpu.memory_space<vmem>>, vector<128x128xbf16>
    tpu.vector_store %arg4[%c0_3, %c0_4], %3 {strides = array<i32>} : memref<128x128xbf16, #tpu.memory_space<vmem>>, vector<128x128xbf16>,
    %cst_5 = arith.constant dense<0.000000e+00> : vector<128xf32>
    %5 = vector.multi_reduction <add>, %2, %cst_5 [0] : vector<128x128xf32> to vector<128xf32>
    %6 = vector.shape_cast %5 : vector<128xf32> to vector<1x128xf32>
    %7 = vector.shape_cast %6 : vector<1x128xf32> to vector<1x1x128xf32>
    %c0_6 = arith.constant 0 : index
    %c0_7 = arith.constant 0 : index
    %c0_8 = arith.constant 0 : index
    %8 = vector.load %arg5[%c0_6, %c0_7, %c0_8] : memref<1x1x128xf32, #tpu.memory_space<vmem>>, vector<1x1x128xf32>
    tpu.vector_store %arg5[%c0_6, %c0_7, %c0_8], %7 {strides = array<i32>} : memref<1x1x128xf32, #tpu.memory_space<vmem>>, vector<1x1x128xf32>,
    %9 = arith.mulf %2, %2 : vector<128x128xf32>
    %cst_9 = arith.constant dense<0.000000e+00> : vector<128xf32>
    %10 = vector.multi_reduction <add>, %9, %cst_9 [0] : vector<128x128xf32> to vector<128xf32>
    %11 = vector.shape_cast %10 : vector<128xf32> to vector<1x128xf32>
    %12 = vector.shape_cast %11 : vector<1x128xf32> to vector<1x1x128xf32>
    %c0_10 = arith.constant 0 : index
    %c0_11 = arith.constant 0 : index
    %c0_12 = arith.constant 0 : index
    %13 = vector.load %arg6[%c0_10, %c0_11, %c0_12] : memref<1x1x128xf32, #tpu.memory_space<vmem>>, vector<1x1x128xf32>
    tpu.vector_store %arg6[%c0_10, %c0_11, %c0_12], %12 {strides = array<i32>} : memref<1x1x128xf32, #tpu.memory_space<vmem>>, vector<1x1x128xf32>,
    return
  }
  func.func @transform_0(%arg0: i32, %arg1: i32) -> (i32, i32) {
    %c0_i32 = arith.constant 0 : i32
    %c0_i32_0 = arith.constant 0 : i32
    return %arg0, %c0_i32 : i32, i32
  }
  func.func @transform_1(%arg0: i32, %arg1: i32) -> (i32, i32) {
    %c0_i32 = arith.constant 0 : i32
    %c0_i32_0 = arith.constant 0 : i32
    return %c0_i32, %arg1 : i32, i32
  }
  func.func @transform_2(%arg0: i32, %arg1: i32) -> (i32, i32) {
    %c0_i32 = arith.constant 0 : i32
    return %arg0, %arg1 : i32, i32
  }
  func.func @transform_3(%arg0: i32, %arg1: i32) -> (i32, i32, i32) {
    %c0_i32 = arith.constant 0 : i32
    %c0_i32_0 = arith.constant 0 : i32
    return %arg0, %c0_i32, %arg1 : i32, i32, i32
  }
  func.func @transform_4(%arg0: i32, %arg1: i32) -> (i32, i32, i32) {
    %c0_i32 = arith.constant 0 : i32
    %c0_i32_0 = arith.constant 0 : i32
    return %arg0, %c0_i32, %arg1 : i32, i32, i32
  }
}

module attributes {stable_mosaic.version = 11 : i64} {
  func.func @_scale_shift_relu_kernel(%arg0: i32, %arg1: memref<128x128xbf16, #tpu.memory_space<vmem>>, %arg2: memref<1x128xf32, #tpu.memory_space<vmem>>, %arg3: memref<1x128xf32, #tpu.memory_space<vmem>>, %arg4: memref<128x128xbf16, #tpu.memory_space<vmem>>) attributes {dimension_semantics = [#tpu.dimension_semantics<parallel>], iteration_bounds = array<i64: 1>, scalar_prefetch = 0 : i64, scratch_operands = 0 : i64, tpu.core_type = #tpu.core_type<tc>, window_params = [{transform_indices = @transform_0, window_bounds = array<i64: 128, 128>}, {pipeline_mode = #tpu.pipeline_mode<synchronous>, transform_indices = @transform_1, window_bounds = array<i64: 1, 128>}, {pipeline_mode = #tpu.pipeline_mode<synchronous>, transform_indices = @transform_2, window_bounds = array<i64: 1, 128>}, {transform_indices = @transform_3, window_bounds = array<i64: 128, 128>}]} {
    %c0 = arith.constant 0 : index
    %c0_0 = arith.constant 0 : index
    %0 = vector.load %arg1[%c0, %c0_0] : memref<128x128xbf16, #tpu.memory_space<vmem>>, vector<128x128xbf16>
    %1 = arith.extf %0 : vector<128x128xbf16> to vector<128x128xf32>
    %c0_1 = arith.constant 0 : index
    %c0_2 = arith.constant 0 : index
    %2 = vector.load %arg2[%c0_1, %c0_2] : memref<1x128xf32, #tpu.memory_space<vmem>>, vector<1x128xf32>
    %3 = vector.broadcast %2 : vector<1x128xf32> to vector<128x128xf32>
    %4 = arith.mulf %1, %3 : vector<128x128xf32>
    %c0_3 = arith.constant 0 : index
    %c0_4 = arith.constant 0 : index
    %5 = vector.load %arg3[%c0_3, %c0_4] : memref<1x128xf32, #tpu.memory_space<vmem>>, vector<1x128xf32>
    %6 = vector.broadcast %5 : vector<1x128xf32> to vector<128x128xf32>
    %7 = arith.addf %4, %6 : vector<128x128xf32>
    %cst = arith.constant 0.000000e+00 : f32
    %8 = vector.broadcast %cst : f32 to vector<128x128xf32>
    %9 = arith.maximumf %7, %8 : vector<128x128xf32>
    %10 = arith.truncf %9 : vector<128x128xf32> to vector<128x128xbf16>
    %c0_5 = arith.constant 0 : index
    %c0_6 = arith.constant 0 : index
    %11 = vector.load %arg4[%c0_5, %c0_6] : memref<128x128xbf16, #tpu.memory_space<vmem>>, vector<128x128xbf16>
    tpu.vector_store %arg4[%c0_5, %c0_6], %10 {strides = array<i32>} : memref<128x128xbf16, #tpu.memory_space<vmem>>, vector<128x128xbf16>,
    return
  }
  func.func @transform_0(%arg0: i32) -> (i32, i32) {
    %c0_i32 = arith.constant 0 : i32
    %c0_i32_0 = arith.constant 0 : i32
    return %arg0, %c0_i32 : i32, i32
  }
  func.func @transform_1(%arg0: i32) -> (i32, i32) {
    %c0_i32 = arith.constant 0 : i32
    %c0_i32_0 = arith.constant 0 : i32
    %c0_i32_1 = arith.constant 0 : i32
    return %c0_i32, %c0_i32_0 : i32, i32
  }
  func.func @transform_2(%arg0: i32) -> (i32, i32) {
    %c0_i32 = arith.constant 0 : i32
    %c0_i32_0 = arith.constant 0 : i32
    %c0_i32_1 = arith.constant 0 : i32
    return %c0_i32, %c0_i32_0 : i32, i32
  }
  func.func @transform_3(%arg0: i32) -> (i32, i32) {
    %c0_i32 = arith.constant 0 : i32
    %c0_i32_0 = arith.constant 0 : i32
    return %arg0, %c0_i32 : i32, i32
  }
}

module attributes {stable_mosaic.version = 11 : i64} {
  func.func @_mm_stats_k1_kernel(%arg0: i32, %arg1: i32, %arg2: memref<512x288xbf16, #tpu.memory_space<vmem>>, %arg3: memref<288x128xbf16, #tpu.memory_space<vmem>>, %arg4: memref<512x128xbf16, #tpu.memory_space<vmem>>, %arg5: memref<1x1x128xf32, #tpu.memory_space<vmem>>, %arg6: memref<1x1x128xf32, #tpu.memory_space<vmem>>) attributes {dimension_semantics = [#tpu.dimension_semantics<parallel>, #tpu.dimension_semantics<parallel>], iteration_bounds = array<i64: 1, 1>, scalar_prefetch = 0 : i64, scratch_operands = 0 : i64, tpu.core_type = #tpu.core_type<tc>, window_params = [{transform_indices = @transform_0, window_bounds = array<i64: 512, 288>}, {transform_indices = @transform_1, window_bounds = array<i64: 288, 128>}, {transform_indices = @transform_2, window_bounds = array<i64: 512, 128>}, {transform_indices = @transform_3, window_bounds = array<i64: 1, 1, 128>}, {transform_indices = @transform_4, window_bounds = array<i64: 1, 1, 128>}]} {
    %c0 = arith.constant 0 : index
    %c0_0 = arith.constant 0 : index
    %0 = vector.load %arg2[%c0, %c0_0] : memref<512x288xbf16, #tpu.memory_space<vmem>>, vector<512x288xbf16>
    %c0_1 = arith.constant 0 : index
    %c0_2 = arith.constant 0 : index
    %1 = vector.load %arg3[%c0_1, %c0_2] : memref<288x128xbf16, #tpu.memory_space<vmem>>, vector<288x128xbf16>
    %cst = arith.constant dense<0.000000e+00> : vector<512x128xf32>
    %2 = tpu.matmul %0, %1, %cst {dimension_numbers = #tpu.dot_dimension_numbers<[1], [0], [0], [1], [0, 0, 1, 1], [], []>} : vector<512x288xbf16>, vector<288x128xbf16>, vector<512x128xf32> -> vector<512x128xf32>
    %3 = arith.truncf %2 : vector<512x128xf32> to vector<512x128xbf16>
    %c0_3 = arith.constant 0 : index
    %c0_4 = arith.constant 0 : index
    %4 = vector.load %arg4[%c0_3, %c0_4] : memref<512x128xbf16, #tpu.memory_space<vmem>>, vector<512x128xbf16>
    tpu.vector_store %arg4[%c0_3, %c0_4], %3 {strides = array<i32>} : memref<512x128xbf16, #tpu.memory_space<vmem>>, vector<512x128xbf16>,
    %cst_5 = arith.constant dense<0.000000e+00> : vector<128xf32>
    %5 = vector.multi_reduction <add>, %2, %cst_5 [0] : vector<512x128xf32> to vector<128xf32>
    %6 = vector.shape_cast %5 : vector<128xf32> to vector<1x128xf32>
    %7 = vector.shape_cast %6 : vector<1x128xf32> to vector<1x1x128xf32>
    %c0_6 = arith.constant 0 : index
    %c0_7 = arith.constant 0 : index
    %c0_8 = arith.constant 0 : index
    %8 = vector.load %arg5[%c0_6, %c0_7, %c0_8] : memref<1x1x128xf32, #tpu.memory_space<vmem>>, vector<1x1x128xf32>
    tpu.vector_store %arg5[%c0_6, %c0_7, %c0_8], %7 {strides = array<i32>} : memref<1x1x128xf32, #tpu.memory_space<vmem>>, vector<1x1x128xf32>,
    %9 = arith.mulf %2, %2 : vector<512x128xf32>
    %cst_9 = arith.constant dense<0.000000e+00> : vector<128xf32>
    %10 = vector.multi_reduction <add>, %9, %cst_9 [0] : vector<512x128xf32> to vector<128xf32>
    %11 = vector.shape_cast %10 : vector<128xf32> to vector<1x128xf32>
    %12 = vector.shape_cast %11 : vector<1x128xf32> to vector<1x1x128xf32>
    %c0_10 = arith.constant 0 : index
    %c0_11 = arith.constant 0 : index
    %c0_12 = arith.constant 0 : index
    %13 = vector.load %arg6[%c0_10, %c0_11, %c0_12] : memref<1x1x128xf32, #tpu.memory_space<vmem>>, vector<1x1x128xf32>
    tpu.vector_store %arg6[%c0_10, %c0_11, %c0_12], %12 {strides = array<i32>} : memref<1x1x128xf32, #tpu.memory_space<vmem>>, vector<1x1x128xf32>,
    return
  }
  func.func @transform_0(%arg0: i32, %arg1: i32) -> (i32, i32) {
    %c0_i32 = arith.constant 0 : i32
    %c0_i32_0 = arith.constant 0 : i32
    return %arg0, %c0_i32 : i32, i32
  }
  func.func @transform_1(%arg0: i32, %arg1: i32) -> (i32, i32) {
    %c0_i32 = arith.constant 0 : i32
    %c0_i32_0 = arith.constant 0 : i32
    return %c0_i32, %arg1 : i32, i32
  }
  func.func @transform_2(%arg0: i32, %arg1: i32) -> (i32, i32) {
    %c0_i32 = arith.constant 0 : i32
    return %arg0, %arg1 : i32, i32
  }
  func.func @transform_3(%arg0: i32, %arg1: i32) -> (i32, i32, i32) {
    %c0_i32 = arith.constant 0 : i32
    %c0_i32_0 = arith.constant 0 : i32
    return %arg0, %c0_i32, %arg1 : i32, i32, i32
  }
  func.func @transform_4(%arg0: i32, %arg1: i32) -> (i32, i32, i32) {
    %c0_i32 = arith.constant 0 : i32
    %c0_i32_0 = arith.constant 0 : i32
    return %arg0, %c0_i32, %arg1 : i32, i32, i32
  }
}

module attributes {stable_mosaic.version = 11 : i64} {
  func.func @_scale_shift_relu_kernel(%arg0: i32, %arg1: memref<512x128xbf16, #tpu.memory_space<vmem>>, %arg2: memref<1x128xf32, #tpu.memory_space<vmem>>, %arg3: memref<1x128xf32, #tpu.memory_space<vmem>>, %arg4: memref<512x128xbf16, #tpu.memory_space<vmem>>) attributes {dimension_semantics = [#tpu.dimension_semantics<parallel>], iteration_bounds = array<i64: 1>, scalar_prefetch = 0 : i64, scratch_operands = 0 : i64, tpu.core_type = #tpu.core_type<tc>, window_params = [{transform_indices = @transform_0, window_bounds = array<i64: 512, 128>}, {pipeline_mode = #tpu.pipeline_mode<synchronous>, transform_indices = @transform_1, window_bounds = array<i64: 1, 128>}, {pipeline_mode = #tpu.pipeline_mode<synchronous>, transform_indices = @transform_2, window_bounds = array<i64: 1, 128>}, {transform_indices = @transform_3, window_bounds = array<i64: 512, 128>}]} {
    %c0 = arith.constant 0 : index
    %c0_0 = arith.constant 0 : index
    %0 = vector.load %arg1[%c0, %c0_0] : memref<512x128xbf16, #tpu.memory_space<vmem>>, vector<512x128xbf16>
    %1 = arith.extf %0 : vector<512x128xbf16> to vector<512x128xf32>
    %c0_1 = arith.constant 0 : index
    %c0_2 = arith.constant 0 : index
    %2 = vector.load %arg2[%c0_1, %c0_2] : memref<1x128xf32, #tpu.memory_space<vmem>>, vector<1x128xf32>
    %3 = vector.broadcast %2 : vector<1x128xf32> to vector<512x128xf32>
    %4 = arith.mulf %1, %3 : vector<512x128xf32>
    %c0_3 = arith.constant 0 : index
    %c0_4 = arith.constant 0 : index
    %5 = vector.load %arg3[%c0_3, %c0_4] : memref<1x128xf32, #tpu.memory_space<vmem>>, vector<1x128xf32>
    %6 = vector.broadcast %5 : vector<1x128xf32> to vector<512x128xf32>
    %7 = arith.addf %4, %6 : vector<512x128xf32>
    %cst = arith.constant 0.000000e+00 : f32
    %8 = vector.broadcast %cst : f32 to vector<512x128xf32>
    %9 = arith.maximumf %7, %8 : vector<512x128xf32>
    %10 = arith.truncf %9 : vector<512x128xf32> to vector<512x128xbf16>
    %c0_5 = arith.constant 0 : index
    %c0_6 = arith.constant 0 : index
    %11 = vector.load %arg4[%c0_5, %c0_6] : memref<512x128xbf16, #tpu.memory_space<vmem>>, vector<512x128xbf16>
    tpu.vector_store %arg4[%c0_5, %c0_6], %10 {strides = array<i32>} : memref<512x128xbf16, #tpu.memory_space<vmem>>, vector<512x128xbf16>,
    return
  }
  func.func @transform_0(%arg0: i32) -> (i32, i32) {
    %c0_i32 = arith.constant 0 : i32
    %c0_i32_0 = arith.constant 0 : i32
    return %arg0, %c0_i32 : i32, i32
  }
  func.func @transform_1(%arg0: i32) -> (i32, i32) {
    %c0_i32 = arith.constant 0 : i32
    %c0_i32_0 = arith.constant 0 : i32
    %c0_i32_1 = arith.constant 0 : i32
    return %c0_i32, %c0_i32_0 : i32, i32
  }
  func.func @transform_2(%arg0: i32) -> (i32, i32) {
    %c0_i32 = arith.constant 0 : i32
    %c0_i32_0 = arith.constant 0 : i32
    %c0_i32_1 = arith.constant 0 : i32
    return %c0_i32, %c0_i32_0 : i32, i32
  }
  func.func @transform_3(%arg0: i32) -> (i32, i32) {
    %c0_i32 = arith.constant 0 : i32
    %c0_i32_0 = arith.constant 0 : i32
    return %arg0, %c0_i32 : i32, i32
  }
}

module attributes {stable_mosaic.version = 11 : i64} {
  func.func @_mm_bias_tanh_k1_kernel(%arg0: i32, %arg1: i32, %arg2: memref<1024x144xbf16, #tpu.memory_space<vmem>>, %arg3: memref<144x128xbf16, #tpu.memory_space<vmem>>, %arg4: memref<1x128xf32, #tpu.memory_space<vmem>>, %arg5: memref<1024x128xbf16, #tpu.memory_space<vmem>>) attributes {dimension_semantics = [#tpu.dimension_semantics<parallel>, #tpu.dimension_semantics<parallel>], iteration_bounds = array<i64: 2, 1>, scalar_prefetch = 0 : i64, scratch_operands = 0 : i64, tpu.core_type = #tpu.core_type<tc>, window_params = [{transform_indices = @transform_0, window_bounds = array<i64: 1024, 144>}, {transform_indices = @transform_1, window_bounds = array<i64: 144, 128>}, {transform_indices = @transform_2, window_bounds = array<i64: 1, 128>}, {transform_indices = @transform_3, window_bounds = array<i64: 1024, 128>}]} {
    %c0 = arith.constant 0 : index
    %c0_0 = arith.constant 0 : index
    %0 = vector.load %arg2[%c0, %c0_0] : memref<1024x144xbf16, #tpu.memory_space<vmem>>, vector<1024x144xbf16>
    %c0_1 = arith.constant 0 : index
    %c0_2 = arith.constant 0 : index
    %1 = vector.load %arg3[%c0_1, %c0_2] : memref<144x128xbf16, #tpu.memory_space<vmem>>, vector<144x128xbf16>
    %cst = arith.constant dense<0.000000e+00> : vector<1024x128xf32>
    %2 = tpu.matmul %0, %1, %cst {dimension_numbers = #tpu.dot_dimension_numbers<[1], [0], [0], [1], [0, 0, 1, 1], [], []>} : vector<1024x144xbf16>, vector<144x128xbf16>, vector<1024x128xf32> -> vector<1024x128xf32>
    %c0_3 = arith.constant 0 : index
    %c0_4 = arith.constant 0 : index
    %3 = vector.load %arg4[%c0_3, %c0_4] : memref<1x128xf32, #tpu.memory_space<vmem>>, vector<1x128xf32>
    %4 = vector.broadcast %3 : vector<1x128xf32> to vector<1024x128xf32>
    %5 = arith.addf %2, %4 : vector<1024x128xf32>
    %6 = math.tanh %5 : vector<1024x128xf32>
    %7 = arith.truncf %6 : vector<1024x128xf32> to vector<1024x128xbf16>
    %c0_5 = arith.constant 0 : index
    %c0_6 = arith.constant 0 : index
    %8 = vector.load %arg5[%c0_5, %c0_6] : memref<1024x128xbf16, #tpu.memory_space<vmem>>, vector<1024x128xbf16>
    tpu.vector_store %arg5[%c0_5, %c0_6], %7 {strides = array<i32>} : memref<1024x128xbf16, #tpu.memory_space<vmem>>, vector<1024x128xbf16>,
    return
  }
  func.func @transform_0(%arg0: i32, %arg1: i32) -> (i32, i32) {
    %c0_i32 = arith.constant 0 : i32
    %c0_i32_0 = arith.constant 0 : i32
    return %arg0, %c0_i32 : i32, i32
  }
  func.func @transform_1(%arg0: i32, %arg1: i32) -> (i32, i32) {
    %c0_i32 = arith.constant 0 : i32
    %c0_i32_0 = arith.constant 0 : i32
    return %c0_i32, %arg1 : i32, i32
  }
  func.func @transform_2(%arg0: i32, %arg1: i32) -> (i32, i32) {
    %c0_i32 = arith.constant 0 : i32
    %c0_i32_0 = arith.constant 0 : i32
    return %c0_i32, %arg1 : i32, i32
  }
  func.func @transform_3(%arg0: i32, %arg1: i32) -> (i32, i32) {
    %c0_i32 = arith.constant 0 : i32
    return %arg0, %arg1 : i32, i32
  }
}

</mosaic_0001>

<llo_original>
// kernel: tile.68
$region0: #{tile.68}
  #allocation2 [shape = 's32[1]{0}', space=sflag, size = 0x4, scoped, tag = 'scoped memory for tile.68']
  %s0 = inlined_call_operand.hbm [shape: f32[3], index: 0, kind: input, shape index: {}]
  %s1 = inlined_call_operand.vmem [shape: f32[4,3], index: 1, kind: output, shape index: {}]
  $region1: #{tile.68} parent=0
    #allocation0 [shape = 'u8[512]{0}', space=vmem, size = 0x400, scoped, tag = 'operand span for operand 0']
    #allocation1 [shape = 's32[1]{0}', space=sflag, size = 0x4, scoped, tag = 'scoped memory for tile.68']
    %2 = vsyncpa [#allocation1], 0
    // Predicated region
    $region2: #{tile.68} parent=1 // pred_check
      _
    $region3: #{tile.68} parent=1 // pred_check_branch
      %4 = sbr.rel (0) target = $region5
    $region4: #{tile.68} parent=1 // pred_region
      %s6 = ssub.s32 16, 16
      %7 = vsyncadd [#allocation1], %s6
      %s9 = sshll.u32 [#allocation0], 4
      %s10 = int_to_ptr.vmem [resolvable:$true] %s9
      %12 = dma.hbm_to_vmem [thread:$0]  %s0, 16, %s10, [#allocation1]
    $region5: #{tile.68} parent=1 // pred_fallthru
      _
    // Predicated region
    $region6: #{tile.68} parent=1 // pred_check
      _
    $region7: #{tile.68} parent=1 // pred_check_branch
      %14 = sbr.rel (0) target = $region9
    $region8: #{tile.68} parent=1 // pred_region
      %15 = dma.done [#allocation1], 16
    $region9: #{tile.68} parent=1 // pred_fallthru
      _
    %v16 = vld [vmem:[#allocation0] ss:$0 sm:$0xff]
    %17 = vst [vmem:[%s1] sm:$0xf] %v16
    %18 = vsyncpa [#allocation1], 1

// kernel: tile.69
$region0: #{tile.69}
  %s0 = inlined_call_operand.vmem [shape: f32[4,3], index: 0, kind: input, shape index: {}]
  %s1 = inlined_call_operand.vmem [shape: f32[12], index: 1, kind: output, shape index: {}]
  $region1: #{tile.69} parent=0
    #allocation0 [shape = 'u8[4096]{0}', space=vmem, size = 0x1000, scoped, tag = 'scoped mem for output reshape']
    #allocation1 [shape = 'u8[4096]{0}', space=vmem, size = 0x1000, scoped, tag = 'scoped mem for input reshape']
    %s3 = sshllo.u32 0, 4
    %v4 = vld [vmem:[%s0] sm:%s3]
    %5 = vst [vmem:[#allocation1] sm:%s3] %v4
    %v6 = vld [vmem:[#allocation1] sm:$0x1]
    %vm7 = vcmask 23552
    %8 = vst.msk [vmem:[#allocation0] sm:$0x1] %vm7, %v6
    %s9 = scalar_lea.vmem [#allocation1], 3
    %v10 = vld [vmem:[%s9] sm:$0x1]
    %11 = vrot.lane.b32.xlu0 %v10, 9
    %v12 = vpop.permute.xlu0 %11
    %vm13 = vcmask 97352
    %14 = vst.msk [vmem:[#allocation0] sm:$0x1] %vm13, %v12
    %s15 = scalar_lea.vmem [#allocation1], 2
    %v16 = vld [vmem:[%s15] sm:$0x1]
    %17 = vrot.lane.b32.xlu0 %v16, 6
    %v18 = vpop.permute.xlu0 %17
    %vm19 = vcmask 72752
    %20 = vst.msk [vmem:[#allocation0] sm:$0x1] %vm19, %v18
    %s21 = scalar_lea.vmem [#allocation1], 1
    %v22 = vld [vmem:[%s21] sm:$0x1]
    %23 = vrot.lane.b32.xlu0 %v22, 3
    %v24 = vpop.permute.xlu0 %23
    %vm25 = vcmask 48152
    %26 = vst.msk [vmem:[#allocation0] sm:$0x1] %vm25, %v24
    %s28 = sshllo.u32 0, 1
    %v30 = vld [vmem:[#allocation0] sm:%s28]
    %s31 = sshllo.u32 0, 1
    %32 = vst [vmem:[%s1] sm:%s31] %v30

// kernel: generator_forward.9
$region0: #{generator_forward.9}
  #allocation0 [shape = 'u32[]', space=smem, size = 0x4, offset = 0x4, fixed_abs, tag = 'smem constant byte address 0x4 - core index']
  #allocation1 [shape = 'u32[144,128]{1,0:T(1,128)}', space=vmem, size = 0x12000, scoped, tag = 'internal scratch']
  %s0 = inlined_call_operand.vmem [shape: bf16[2,32], index: 0, kind: input, shape index: {}]
  %s1 = inlined_call_operand.vmem [shape: bf16[32,2048], index: 1, kind: input, shape index: {}]
  %s2 = inlined_call_operand.vmem [shape: bf16[2,2048], index: 2, kind: output, shape index: {0}]
  %s3 = inlined_call_operand.vmem [shape: f32[1,1,2048], index: 3, kind: output, shape index: {1}]
  %s4 = inlined_call_operand.vmem [shape: f32[1,1,2048], index: 4, kind: output, shape index: {2}]
  %5 = xla_tuple %s2, %s3, %s4
  %s6 = sld [smem:[#allocation0]]
  $region80: #{generator_forward.9} parent=0
    _
  %s8 = ssub.s32 1, %s6
  %s9 = scalar_select 0, %s8, %s6
  $region1: #{generator_forward.9} parent=0
    #allocation2 [shape = 'u8[65536]{0}', space=vmem, size = 0x10000, scoped, tag = 'input window, operand 1']
    loop: start=0, step=1, limit=6
    $region2: #{generator_forward.9} parent=1 // loop_pre_header
      _
    $region3: #{generator_forward.9} parent=1 // loop_header
      %s11 = sphi 0, %s15
      %p12 = scmp.ge.s32.totalorder %s11, 6
      %s18 = sphi 0, %s30
      %s19 = sphi 0, %s26
      %s20 = sphi 0, %s18
      %s21 = sphi 0, %s19
      %s22 = sphi 0, %s20
      %s23 = sphi 0, %s21
      %s33 = sphi 0, %s35
      %s36 = sphi 0, %s33
      %s37 = sphi 0, %s36
      %s53 = sphi 0, %s37
      %s59 = sphi 0, %s61
      %s62 = sphi 0, %s59
      %s63 = sphi 0, %s62
      %s79 = sphi 0, %s63
      %s87 = sphi 0, %s89
      %s90 = sphi 0, %s87
      %s91 = sphi 0, %s90
      %s107 = sphi 0, %s91
      %s115 = sphi 0, %s117
      %s118 = sphi 0, %s115
      %s119 = sphi 0, %s118
      %s135 = sphi 0, %s119
      %s143 = sphi 0, %s145
      %s146 = sphi 0, %s143
      %s147 = sphi 0, %s146
      %s163 = sphi 0, %s147
    $region4: #{generator_forward.9} parent=1 // loop_header_branch
      %14 = sbr.rel (%p12) target = $region8
    $region5: #{generator_forward.9} parent=1 // loop_body
      %s16 = ssub.s32 %s11, 1
      %s17 = ssub.s32 %s11, 2
      %s24 = sadd.s32 1, %s19
      %p25 = scmp.ge.s32.totalorder %s24, 4
      %s26 = scalar_select %p25, 0, %s24
      %s27 = sadd.s32 1, %s18
      %s28 = scalar_select %p25, %s27, %s18
      %p29 = scmp.ge.s32.totalorder %s28, 1
      %s30 = scalar_select %p29, 0, %s28
      %s31 = ssub.s32 %s18, %s30
      %p32 = scmp.eq.s32.totalorder %s31, 0
      %s34 = sadd.s32 %s33, 1
      %s35 = scalar_select %p32, %s33, %s34
      %p38 = pneg %p32
      %p39 = scmp.eq.s32.totalorder %s11, 3
      %p40 = por %p38, %p39
      %p41 = scmp.ne.s32.totalorder %s33, %s36
      %p42 = scmp.eq.s32.totalorder %s11, 0
      %p43 = por %p41, %p42
      %p44 = scmp.ne.s32.totalorder %s33, %s36
      %p45 = scmp.eq.s32.totalorder %s16, 3
      %p46 = por %p44, %p45
      %p47 = scmp.ne.s32.totalorder %s36, %s37
      %p48 = scmp.eq.s32.totalorder %s16, 0
      %p49 = por %p47, %p48
      %p50 = scmp.ne.s32.totalorder %s36, %s37
      %p51 = scmp.eq.s32.totalorder %s17, 3
      %p52 = por %p50, %p51
      %p54 = scmp.ne.s32.totalorder %s37, %s53
      %p55 = scmp.eq.s32.totalorder %s17, 0
      %p56 = por %p54, %p55
      %s57 = ssub.s32 %s19, %s26
      %p58 = scmp.eq.s32.totalorder %s57, 0
      %s60 = sadd.s32 %s59, 1
      %s61 = scalar_select %p58, %s59, %s60
      %p64 = pneg %p58
      %p65 = scmp.eq.s32.totalorder %s11, 3
      %p66 = por %p64, %p65
      %p67 = scmp.ne.s32.totalorder %s59, %s62
      %p68 = scmp.eq.s32.totalorder %s11, 0
      %p69 = por %p67, %p68
      %p70 = scmp.ne.s32.totalorder %s59, %s62
      %p71 = scmp.eq.s32.totalorder %s16, 3
      %p72 = por %p70, %p71
      %p73 = scmp.ne.s32.totalorder %s62, %s63
      %p74 = scmp.eq.s32.totalorder %s16, 0
      %p75 = por %p73, %p74
      %p76 = scmp.ne.s32.totalorder %s62, %s63
      %p77 = scmp.eq.s32.totalorder %s17, 3
      %p78 = por %p76, %p77
      %p80 = scmp.ne.s32.totalorder %s63, %s79
      %p81 = scmp.eq.s32.totalorder %s17, 0
      %p82 = por %p80, %p81
      %s83 = ssub.s32 %s18, %s30
      %s84 = ssub.s32 %s19, %s26
      %s85 = sor.u32 %s83, %s84
      %p86 = scmp.eq.s32.totalorder %s85, 0
      %s88 = sadd.s32 %s87, 1
      %s89 = scalar_select %p86, %s87, %s88
      %p92 = pneg %p86
      %p93 = scmp.eq.s32.totalorder %s11, 3
      %p94 = por %p92, %p93
      %p95 = scmp.ne.s32.totalorder %s87, %s90
      %p96 = scmp.eq.s32.totalorder %s11, 0
      %p97 = por %p95, %p96
      %p98 = scmp.ne.s32.totalorder %s87, %s90
      %p99 = scmp.eq.s32.totalorder %s16, 3
      %p100 = por %p98, %p99
      %p101 = scmp.ne.s32.totalorder %s90, %s91
      %p102 = scmp.eq.s32.totalorder %s16, 0
      %p103 = por %p101, %p102
      %p104 = scmp.ne.s32.totalorder %s90, %s91
      %p105 = scmp.eq.s32.totalorder %s17, 3
      %p106 = por %p104, %p105
      %p108 = scmp.ne.s32.totalorder %s91, %s107
      %p109 = scmp.eq.s32.totalorder %s17, 0
      %p110 = por %p108, %p109
      %s111 = ssub.s32 %s18, %s30
      %s112 = ssub.s32 %s19, %s26
      %s113 = sor.u32 %s111, %s112
      %p114 = scmp.eq.s32.totalorder %s113, 0
      %s116 = sadd.s32 %s115, 1
      %s117 = scalar_select %p114, %s115, %s116
      %p120 = pneg %p114
      %p121 = scmp.eq.s32.totalorder %s11, 3
      %p122 = por %p120, %p121
      %p123 = scmp.ne.s32.totalorder %s115, %s118
      %p124 = scmp.eq.s32.totalorder %s11, 0
      %p125 = por %p123, %p124
      %p126 = scmp.ne.s32.totalorder %s115, %s118
      %p127 = scmp.eq.s32.totalorder %s16, 3
      %p128 = por %p126, %p127
      %p129 = scmp.ne.s32.totalorder %s118, %s119
      %p130 = scmp.eq.s32.totalorder %s16, 0
      %p131 = por %p129, %p130
      %p132 = scmp.ne.s32.totalorder %s118, %s119
      %p133 = scmp.eq.s32.totalorder %s17, 3
      %p134 = por %p132, %p133
      %p136 = scmp.ne.s32.totalorder %s119, %s135
      %p137 = scmp.eq.s32.totalorder %s17, 0
      %p138 = por %p136, %p137
      %s139 = ssub.s32 %s18, %s30
      %s140 = ssub.s32 %s19, %s26
      %s141 = sor.u32 %s139, %s140
      %p142 = scmp.eq.s32.totalorder %s141, 0
      %s144 = sadd.s32 %s143, 1
      %s145 = scalar_select %p142, %s143, %s144
      %p148 = pneg %p142
      %p149 = scmp.eq.s32.totalorder %s11, 3
      %p150 = por %p148, %p149
      %p151 = scmp.ne.s32.totalorder %s143, %s146
      %p152 = scmp.eq.s32.totalorder %s11, 0
      %p153 = por %p151, %p152
      %p154 = scmp.ne.s32.totalorder %s143, %s146
      %p155 = scmp.eq.s32.totalorder %s16, 3
      %p156 = por %p154, %p155
      %p157 = scmp.ne.s32.totalorder %s146, %s147
      %p158 = scmp.eq.s32.totalorder %s16, 0
      %p159 = por %p157, %p158
      %p160 = scmp.ne.s32.totalorder %s146, %s147
      %p161 = scmp.eq.s32.totalorder %s17, 3
      %p162 = por %p160, %p161
      %p164 = scmp.ne.s32.totalorder %s147, %s163
      %p165 = scmp.eq.s32.totalorder %s17, 0
      %p166 = por %p164, %p165
      %p167 = scmp.le.s32.totalorder 1, %s11
      %p168 = scmp.lt.s32.totalorder %s11, 5
      %p169 = pnand %p167, %p168
      %p170 = pneg %p169
      // Predicated region
      $region9: #{generator_forward.9} parent=5 // pred_check
        _
      $region10: #{generator_forward.9} parent=5 // pred_check_branch
        %172 = sbr.rel (%p169) target = $region12
      $region11: #{generator_forward.9} parent=5 // pred_region
        %s173 = ssub.s32 %s11, 1
        // Predicated region
        $region13: #{generator_forward.9} parent=11 // pred_check
          %p174 = pneg %p49
        $region14: #{generator_forward.9} parent=11 // pred_check_branch
          %176 = sbr.rel (%p174) target = $region16
        $region15: #{generator_forward.9} parent=11 // pred_region
          %p177 = scmp.lt.s32.totalorder %s20, 0
          %s178 = scalar_select %p177, %s20, 0
          %s179 = scalar_lea.vmem %s0, %s178
        $region16: #{generator_forward.9} parent=11 // pred_fallthru
          _
      $region12: #{generator_forward.9} parent=5 // pred_fallthru
        _
      %p180 = scmp.lt.s32.totalorder %s11, 4
      // Predicated region
      $region17: #{generator_forward.9} parent=5 // pred_check
        %p181 = pneg %p180
      $region18: #{generator_forward.9} parent=5 // pred_check_branch
        %183 = sbr.rel (%p181) target = $region20
      $region19: #{generator_forward.9} parent=5 // pred_region
        // Predicated region
        $region21: #{generator_forward.9} parent=19 // pred_check
          %p184 = pneg %p69
        $region22: #{generator_forward.9} parent=19 // pred_check_branch
          %186 = sbr.rel (%p184) target = $region24
        $region23: #{generator_forward.9} parent=19 // pred_region
          %s187 = sand.u32 %s59, 1
          %s188 = sand.u32 %s59, 1
          %s189 = smul.addr %s188, 64
          %s190 = scalar_lea.vmem [#allocation2], %s189
          %s191 = smul.u32 4, %s19
          %s192 = smul.addr %s191, 4
          %s193 = scalar_lea.vmem %s1, %s192
          // Predicated region
          $region25: #{generator_forward.9} parent=23 // pred_check
            _
          $region26: #{generator_forward.9} parent=23 // pred_check_branch
            %195 = sbr.rel (0) target = $region28
          $region27: #{generator_forward.9} parent=23 // pred_region
            // Predicated region
            $region29: #{generator_forward.9} parent=27 // pred_check
              _
            $region30: #{generator_forward.9} parent=27 // pred_check_branch
              %197 = sbr.rel (0) target = $region32
            $region31: #{generator_forward.9} parent=27 // pred_region
              loop: start=0, step=1, limit=1
              $region33: #{generator_forward.9} parent=31 // loop_pre_header
                _
              $region34: #{generator_forward.9} parent=31 // loop_header
                %s199 = sphi 0, %s203
                %p200 = scmp.ge.s32.totalorder %s199, 1
                %s204 = sphi %s193, %s193
                %s205 = sphi %s190, %s190
              $region35: #{generator_forward.9} parent=31 // loop_header_branch
                %202 = sbr.rel (%p200) target = $region39
              $region36: #{generator_forward.9} parent=31 // loop_body
                %v206 = vld [vmem:[%s204] sm:$0xff]
                %207 = vst [vmem:[%s205] sm:$0xff] %v206
                %v208 = vld [vmem:[%s204 + $0x8] sm:$0xff]
                %209 = vst [vmem:[%s205 + $0x8] sm:$0xff] %v208
                %v210 = vld [vmem:[%s204 + $0x40] sm:$0xff]
                %211 = vst [vmem:[%s205 + $0x10] sm:$0xff] %v210
                %v212 = vld [vmem:[%s204 + $0x48] sm:$0xff]
                %213 = vst [vmem:[%s205 + $0x18] sm:$0xff] %v212
                %v214 = vld [vmem:[%s204 + $0x80] sm:$0xff]
                %215 = vst [vmem:[%s205 + $0x20] sm:$0xff] %v214
                %v216 = vld [vmem:[%s204 + $0x88] sm:$0xff]
                %217 = vst [vmem:[%s205 + $0x28] sm:$0xff] %v216
                %v218 = vld [vmem:[%s204 + $0xc0] sm:$0xff]
                %219 = vst [vmem:[%s205 + $0x30] sm:$0xff] %v218
                %v220 = vld [vmem:[%s204 + $0xc8] sm:$0xff]
                %221 = vst [vmem:[%s205 + $0x38] sm:$0xff] %v220
              $region37: #{generator_forward.9} parent=31 // loop_footer
                %s203 = sadd.s32 1, %s199
              $region38: #{generator_forward.9} parent=31 // loop_footer_branch
                %198 = sbr.rel target = $region34
              $region39: #{generator_forward.9} parent=31 // loop_exit
                _
            $region32: #{generator_forward.9} parent=27 // pred_fallthru
              _
            // Predicated region
            $region40: #{generator_forward.9} parent=27 // pred_check
              _
            $region41: #{generator_forward.9} parent=27 // pred_check_branch
              %223 = sbr.rel target = $region43
            $region42: #{generator_forward.9} parent=27 // pred_region
              _
            $region43: #{generator_forward.9} parent=27 // pred_fallthru
              _
          $region28: #{generator_forward.9} parent=23 // pred_fallthru
            _
          %224 = vnop
        $region24: #{generator_forward.9} parent=19 // pred_fallthru
          _
      $region20: #{generator_forward.9} parent=5 // pred_fallthru
        _
      %p225 = scmp.le.s32.totalorder 1, %s11
      %p226 = scmp.lt.s32.totalorder %s11, 5
      %p227 = pnand %p225, %p226
      %p228 = pneg %p227
      // Predicated region
      $region44: #{generator_forward.9} parent=5 // pred_check
        _
      $region45: #{generator_forward.9} parent=5 // pred_check_branch
        %230 = sbr.rel (%p227) target = $region47
      $region46: #{generator_forward.9} parent=5 // pred_region
        %s231 = ssub.s32 %s11, 1
        %s232 = sand.u32 %s62, 1
        %s233 = sand.u32 %s62, 1
        %s234 = smul.addr %s233, 64
        %s235 = scalar_lea.vmem [#allocation2], %s234
        // Predicated region
        $region48: #{generator_forward.9} parent=46 // pred_check
          %p236 = pneg %p75
        $region49: #{generator_forward.9} parent=46 // pred_check_branch
          %238 = sbr.rel (%p236) target = $region51
        $region50: #{generator_forward.9} parent=46 // pred_region
          _
        $region51: #{generator_forward.9} parent=46 // pred_fallthru
          _
        %p239 = scmp.lt.s32.totalorder %s20, 0
        %s240 = scalar_select %p239, %s20, 0
        %s241 = scalar_lea.vmem %s0, %s240
        %p242 = pneg %p49
        %p243 = pneg %p46
        %s244 = sand.u32 %s62, 1
        %s245 = sand.u32 %s62, 1
        %s246 = smul.addr %s245, 64
        %s247 = scalar_lea.vmem [#allocation2], %s246
        %p248 = pneg %p75
        %p249 = pneg %p72
        %p250 = pneg %p103
        %p251 = pneg %p100
        %s252 = smul.u32 4, %s21
        %p253 = scmp.lt.s32.totalorder %s20, 0
        %s254 = scalar_select %p253, %s20, 0
        %p255 = scmp.lt.s32.totalorder %s252, 15
        %s256 = scalar_select %p255, %s252, 15
        %s257 = smul.addr %s254, 16
        %s258 = sadd.s32 %s256, %s257
        %s259 = scalar_lea.vmem %s2, %s258
        %p260 = pneg %p131
        %p261 = pneg %p128
        %s262 = smul.u32 4, %s21
        %p263 = scmp.lt.s32.totalorder %s20, 0
        %s264 = scalar_select %p263, %s20, 0
        %p265 = scmp.lt.s32.totalorder %s262, 15
        %s266 = scalar_select %p265, %s262, 15
        %s267 = smul.addr %s264, 16
        %s268 = sadd.s32 %s266, %s267
        %s269 = scalar_lea.vmem %s3, %s268
        %p270 = pneg %p159
        %p271 = pneg %p156
        %s272 = smul.u32 4, %s21
        %p273 = scmp.lt.s32.totalorder %s20, 0
        %s274 = scalar_select %p273, %s20, 0
        %p275 = scmp.lt.s32.totalorder %s272, 15
        %s276 = scalar_select %p275, %s272, 15
        %s277 = smul.addr %s274, 16
        %s278 = sadd.s32 %s276, %s277
        %s279 = scalar_lea.vmem %s4, %s278
        %p280 = scmp.lt.s32.totalorder %s20, 0
        %s281 = scalar_select %p280, %s20, 0
        %s282 = scalar_lea.vmem %s0, %s281
        %s283 = smul.u32 4, %s21
        %s284 = smul.u32 4, %s21
        %p285 = scmp.lt.s32.totalorder %s20, 0
        %s286 = scalar_select %p285, %s20, 0
        %p287 = scmp.lt.s32.totalorder %s284, 15
        %s288 = scalar_select %p287, %s284, 15
        %s289 = smul.addr %s286, 16
        %s290 = sadd.s32 %s288, %s289
        %s291 = scalar_lea.vmem %s2, %s290
        %s292 = smul.u32 4, %s21
        %s293 = smul.u32 4, %s21
        %p294 = scmp.lt.s32.totalorder %s20, 0
        %s295 = scalar_select %p294, %s20, 0
        %p296 = scmp.lt.s32.totalorder %s293, 15
        %s297 = scalar_select %p296, %s293, 15
        %s298 = smul.addr %s295, 16
        %s299 = sadd.s32 %s297, %s298
        %s300 = scalar_lea.vmem %s3, %s299
        %s301 = smul.u32 4, %s21
        %s302 = smul.u32 4, %s21
        %p303 = scmp.lt.s32.totalorder %s20, 0
        %s304 = scalar_select %p303, %s20, 0
        %p305 = scmp.lt.s32.totalorder %s302, 15
        %s306 = scalar_select %p305, %s302, 15
        %s307 = smul.addr %s304, 16
        %s308 = sadd.s32 %s306, %s307
        %s309 = scalar_lea.vmem %s4, %s308
        %s310 = smul.u32 4, %s21
        %v312 = vld [vmem:[%s282] sm:$0x1]
        %v313 = vld [vmem:[%s235] sm:$0xff]
        %v314 = vld [vmem:[%s235 + $0x8] sm:$0xff]
        %v315 = vld [vmem:[%s235 + $0x10] sm:$0xff]
        %v316 = vld [vmem:[%s235 + $0x18] sm:$0xff]
        %v317 = vld [vmem:[%s235 + $0x20] sm:$0xff]
        %v318 = vld [vmem:[%s235 + $0x28] sm:$0xff]
        %v319 = vld [vmem:[%s235 + $0x30] sm:$0xff]
        %v320 = vld [vmem:[%s235 + $0x38] sm:$0xff]
        %v329 = vunpack.c.l.b16 %v313
        %v330 = vunpack.c.h.b16 %v313
        %v331 = vunpack.c.l.b16 %v314
        %v332 = vunpack.c.h.b16 %v314
        %v333 = vunpack.c.l.b16 %v315
        %v334 = vunpack.c.h.b16 %v315
        %v335 = vunpack.c.l.b16 %v316
        %v336 = vunpack.c.h.b16 %v316
        %v337 = vunpack.c.l.b16 %v317
        %v338 = vunpack.c.h.b16 %v317
        %v339 = vunpack.c.l.b16 %v318
        %v340 = vunpack.c.h.b16 %v318
        %v341 = vunpack.c.l.b16 %v319
        %v342 = vunpack.c.h.b16 %v319
        %v343 = vunpack.c.l.b16 %v320
        %v344 = vunpack.c.h.b16 %v320
        %v345 = vpack.c.b16 %v333, %v329
        %v346 = vpack.c.b16 %v334, %v330
        %v347 = vpack.c.b16 %v335, %v331
        %v348 = vpack.c.b16 %v336, %v332
        %v349 = vpack.c.b16 %v341, %v337
        %v350 = vpack.c.b16 %v342, %v338
        %v351 = vpack.c.b16 %v343, %v339
        %v352 = vpack.c.b16 %v344, %v340
        %vm361 = vcmask 261120
        %v363 = vsel %vm361, %v312, 0
        %365 = vmatprep.subr.bf16.mxu0 %v346
        %366 = vmatpush1.bf16.msra.mxu0 %v345
        %367 = vmatprep.subr.bf16.mxu0 %v350
        %368 = vmatpush1.bf16.msra.mxu0 %v349
        %369 = vmatprep.subr.bf16.mxu0 0
        %370 = vmatpush1.bf16.msra.mxu0 0
        %371 = vmatprep.subr.bf16.mxu0 0
        %372 = vmatpush1.bf16.msra.mxu0 0
        %373 = vmatprep.subr.bf16.mxu0 0
        %374 = vmatpush1.bf16.msra.mxu0 0
        %375 = vmatprep.subr.bf16.mxu0 0
        %376 = vmatpush1.bf16.msra.mxu0 0
        %377 = vmatprep.subr.bf16.mxu0 0
        %378 = vmatpush1.bf16.msra.mxu0 0
        %379 = vmatprep.subr.bf16.mxu0 0
        %380 = vmatpush1.bf16.msra.mxu0 0
        %381 = vmatprep.subr.bf16.mxu0 0
        %382 = vmatpush1.bf16.msra.mxu0 0
        %383 = vmatprep.subr.bf16.mxu0 0
        %384 = vmatpush1.bf16.msra.mxu0 0
        %385 = vmatprep.subr.bf16.mxu0 0
        %386 = vmatpush1.bf16.msra.mxu0 0
        %387 = vmatprep.subr.bf16.mxu0 0
        %388 = vmatpush1.bf16.msra.mxu0 0
        %389 = vmatprep.subr.bf16.mxu0 0
        %390 = vmatpush1.bf16.msra.mxu0 0
        %391 = vmatprep.subr.bf16.mxu0 0
        %392 = vmatpush1.bf16.msra.mxu0 0
        %393 = vmatprep.subr.bf16.mxu0 0
        %394 = vmatpush1.bf16.msra.mxu0 0
        %395 = vmatprep.subr.bf16.mxu0 0
        %396 = vmatpush1.bf16.msra.mxu0 0
        %397 = vmatprep.mubr.bf16.mxu0 0
        %398 = vmatmul.mubr.bf16.gmra.mrb[0].mxu0 %v363
        %v399 = vpop.f32.mrb[0].mxu0
        %v400 = vadd.f32 0.0, %v399
        %v401 = vpop.f32.mrb[0].mxu0
        %v402 = vadd.f32 0.0, %v401
        %v403 = vpop.f32.mrb[0].mxu0
        %v404 = vpop.f32.mrb[0].mxu0
        %405 = vdwg.mxu0
        %406 = vmatprep.subr.bf16.mxu0 %v348
        %407 = vmatpush1.bf16.msra.mxu0 %v347
        %408 = vmatprep.subr.bf16.mxu0 %v352
        %409 = vmatpush1.bf16.msra.mxu0 %v351
        %410 = vmatprep.subr.bf16.mxu0 0
        %411 = vmatpush1.bf16.msra.mxu0 0
        %412 = vmatprep.subr.bf16.mxu0 0
        %413 = vmatpush1.bf16.msra.mxu0 0
        %414 = vmatprep.subr.bf16.mxu0 0
        %415 = vmatpush1.bf16.msra.mxu0 0
        %416 = vmatprep.subr.bf16.mxu0 0
        %417 = vmatpush1.bf16.msra.mxu0 0
        %418 = vmatprep.subr.bf16.mxu0 0
        %419 = vmatpush1.bf16.msra.mxu0 0
        %420 = vmatprep.subr.bf16.mxu0 0
        %421 = vmatpush1.bf16.msra.mxu0 0
        %422 = vmatprep.subr.bf16.mxu0 0
        %423 = vmatpush1.bf16.msra.mxu0 0
        %424 = vmatprep.subr.bf16.mxu0 0
        %425 = vmatpush1.bf16.msra.mxu0 0
        %426 = vmatprep.subr.bf16.mxu0 0
        %427 = vmatpush1.bf16.msra.mxu0 0
        %428 = vmatprep.subr.bf16.mxu0 0
        %429 = vmatpush1.bf16.msra.mxu0 0
        %430 = vmatprep.subr.bf16.mxu0 0
        %431 = vmatpush1.bf16.msra.mxu0 0
        %432 = vmatprep.subr.bf16.mxu0 0
        %433 = vmatpush1.bf16.msra.mxu0 0
        %434 = vmatprep.subr.bf16.mxu0 0
        %435 = vmatpush1.bf16.msra.mxu0 0
        %436 = vmatprep.subr.bf16.mxu0 0
        %437 = vmatpush1.bf16.msra.mxu0 0
        %438 = vmatprep.mubr.bf16.mxu0 0
        %439 = vmatmul.mubr.bf16.gmra.mrb[0].mxu0 %v363
        %v440 = vpop.f32.mrb[0].mxu0
        %v441 = vadd.f32 0.0, %v440
        %v442 = vpop.f32.mrb[0].mxu0
        %v443 = vadd.f32 0.0, %v442
        %v444 = vpop.f32.mrb[0].mxu0
        %v445 = vpop.f32.mrb[0].mxu0
        %446 = vdwg.mxu0
        %v447 = vpack.c.bf16 %v400, %v400
        %v448 = vpack.c.bf16 %v402, %v402
        %v449 = vpack.c.bf16 %v441, %v441
        %v450 = vpack.c.bf16 %v443, %v443
        %v455 = vcombine.low %v447, %v448
        %v456 = vcombine.low %v449, %v450
        %v458 = vunpack.c.l.s4 1966171168
        %v459 = vunpack.c.0.s8 %v458
        %v460 = vlaneseq
        %v461 = vshrl.u32 %v460, 7
        %v462 = vsub.s32 %v459, %v461
        %v463 = vrot.slane %v455, %v462
        %v465 = vunpack.c.l.s4 1966171168
        %v466 = vunpack.c.0.s8 %v465
        %v467 = vlaneseq
        %v468 = vshrl.u32 %v467, 7
        %v469 = vsub.s32 %v466, %v468
        %v470 = vrot.slane %v456, %v469
        %v471 = vcombine.low %v463, %v470
        %v473 = vunpack.c.l.s4 1966171168
        %v474 = vunpack.c.0.s8 %v473
        %v475 = vlaneseq
        %v476 = vshrl.u32 %v475, 7
        %v477 = vsub.s32 %v474, %v476
        %v478 = vrot.slane %v471, %v477
        %480 = vst [vmem:[%s291] sm:$0xf] %v478
        %vm481 = vcmask 1041408
        %v482 = vsel %vm481, %v400, 0.0
        %v483 = vrot.slane %v482, 4
        %v484 = vadd.f32 %v482, %v483
        %v485 = vrot.slane %v484, 2
        %v486 = vadd.f32 %v484, %v485
        %v487 = vrot.slane %v486, 1
        %v488 = vadd.f32 %v486, %v487
        %v489 = vsel %vm481, %v402, 0.0
        %v490 = vrot.slane %v489, 4
        %v491 = vadd.f32 %v489, %v490
        %v492 = vrot.slane %v491, 2
        %v493 = vadd.f32 %v491, %v492
        %v494 = vrot.slane %v493, 1
        %v495 = vadd.f32 %v493, %v494
        %v496 = vsel %vm481, %v441, 0.0
        %v497 = vrot.slane %v496, 4
        %v498 = vadd.f32 %v496, %v497
        %v499 = vrot.slane %v498, 2
        %v500 = vadd.f32 %v498, %v499
        %v501 = vrot.slane %v500, 1
        %v502 = vadd.f32 %v500, %v501
        %v503 = vsel %vm481, %v443, 0.0
        %v504 = vrot.slane %v503, 4
        %v505 = vadd.f32 %v503, %v504
        %v506 = vrot.slane %v505, 2
        %v507 = vadd.f32 %v505, %v506
        %v508 = vrot.slane %v507, 1
        %v509 = vadd.f32 %v507, %v508
        %v514 = vcombine.low %v488, %v495
        %v515 = vcombine.low %v502, %v509
        %v517 = vunpack.c.l.s4 1966171168
        %v518 = vunpack.c.0.s8 %v517
        %v519 = vlaneseq
        %v520 = vshrl.u32 %v519, 7
        %v521 = vsub.s32 %v518, %v520
        %v522 = vrot.slane %v514, %v521
        %v524 = vunpack.c.l.s4 1966171168
        %v525 = vunpack.c.0.s8 %v524
        %v526 = vlaneseq
        %v527 = vshrl.u32 %v526, 7
        %v528 = vsub.s32 %v525, %v527
        %v529 = vrot.slane %v515, %v528
        %v530 = vcombine.low %v522, %v529
        %v532 = vunpack.c.l.s4 1966171168
        %v533 = vunpack.c.0.s8 %v532
        %v534 = vlaneseq
        %v535 = vshrl.u32 %v534, 7
        %v536 = vsub.s32 %v533, %v535
        %v537 = vrot.slane %v530, %v536
        %v539 = vlaneseq
        %vm540 = vcmp.ge.s32.totalorder %v539, 0
        %vm541 = vcmp.lt.s32.totalorder %v539, 512
        %vm542 = vmand %vm540, %vm541
        %543 = vst.msk [vmem:[%s300] sm:$0xf] %vm542, %v537
        %v544 = vmul.f32 %v400, %v400
        %v545 = vmul.f32 %v402, %v402
        %v546 = vmul.f32 %v441, %v441
        %v547 = vmul.f32 %v443, %v443
        %v548 = vsel %vm481, %v544, 0.0
        %v549 = vrot.slane %v548, 4
        %v550 = vadd.f32 %v548, %v549
        %v551 = vrot.slane %v550, 2
        %v552 = vadd.f32 %v550, %v551
        %v553 = vrot.slane %v552, 1
        %v554 = vadd.f32 %v552, %v553
        %v555 = vsel %vm481, %v545, 0.0
        %v556 = vrot.slane %v555, 4
        %v557 = vadd.f32 %v555, %v556
        %v558 = vrot.slane %v557, 2
        %v559 = vadd.f32 %v557, %v558
        %v560 = vrot.slane %v559, 1
        %v561 = vadd.f32 %v559, %v560
        %v562 = vsel %vm481, %v546, 0.0
        %v563 = vrot.slane %v562, 4
        %v564 = vadd.f32 %v562, %v563
        %v565 = vrot.slane %v564, 2
        %v566 = vadd.f32 %v564, %v565
        %v567 = vrot.slane %v566, 1
        %v568 = vadd.f32 %v566, %v567
        %v569 = vsel %vm481, %v547, 0.0
        %v570 = vrot.slane %v569, 4
        %v571 = vadd.f32 %v569, %v570
        %v572 = vrot.slane %v571, 2
        %v573 = vadd.f32 %v571, %v572
        %v574 = vrot.slane %v573, 1
        %v575 = vadd.f32 %v573, %v574
        %v580 = vcombine.low %v554, %v561
        %v581 = vcombine.low %v568, %v575
        %v583 = vunpack.c.l.s4 1966171168
        %v584 = vunpack.c.0.s8 %v583
        %v585 = vlaneseq
        %v586 = vshrl.u32 %v585, 7
        %v587 = vsub.s32 %v584, %v586
        %v588 = vrot.slane %v580, %v587
        %v590 = vunpack.c.l.s4 1966171168
        %v591 = vunpack.c.0.s8 %v590
        %v592 = vlaneseq
        %v593 = vshrl.u32 %v592, 7
        %v594 = vsub.s32 %v591, %v593
        %v595 = vrot.slane %v581, %v594
        %v596 = vcombine.low %v588, %v595
        %v598 = vunpack.c.l.s4 1966171168
        %v599 = vunpack.c.0.s8 %v598
        %v600 = vlaneseq
        %v601 = vshrl.u32 %v600, 7
        %v602 = vsub.s32 %v599, %v601
        %v603 = vrot.slane %v596, %v602
        %605 = vst.msk [vmem:[%s309] sm:$0xf] %vm542, %v603
        %s606 = smul.u32 4, %s21
        %p607 = scmp.lt.s32.totalorder %s20, 0
        %s608 = scalar_select %p607, %s20, 0
        %p609 = scmp.lt.s32.totalorder %s606, 15
        %s610 = scalar_select %p609, %s606, 15
        %s611 = smul.addr %s608, 16
        %s612 = sadd.s32 %s610, %s611
        %s613 = scalar_lea.vmem %s2, %s612
        %s614 = smul.u32 4, %s21
        %p615 = scmp.lt.s32.totalorder %s20, 0
        %s616 = scalar_select %p615, %s20, 0
        %p617 = scmp.lt.s32.totalorder %s614, 15
        %s618 = scalar_select %p617, %s614, 15
        %s619 = smul.addr %s616, 16
        %s620 = sadd.s32 %s618, %s619
        %s621 = scalar_lea.vmem %s3, %s620
        %s622 = smul.u32 4, %s21
        %p623 = scmp.lt.s32.totalorder %s20, 0
        %s624 = scalar_select %p623, %s20, 0
        %p625 = scmp.lt.s32.totalorder %s622, 15
        %s626 = scalar_select %p625, %s622, 15
        %s627 = smul.addr %s624, 16
        %s628 = sadd.s32 %s626, %s627
        %s629 = scalar_lea.vmem %s4, %s628
        // Predicated region
        $region52: #{generator_forward.9} parent=46 // pred_check
          %p630 = pneg %p100
        $region53: #{generator_forward.9} parent=46 // pred_check_branch
          %632 = sbr.rel (%p630) target = $region55
        $region54: #{generator_forward.9} parent=46 // pred_region
          %s633 = smul.u32 4, %s21
        $region55: #{generator_forward.9} parent=46 // pred_fallthru
          _
        // Predicated region
        $region56: #{generator_forward.9} parent=46 // pred_check
          %p634 = pneg %p128
        $region57: #{generator_forward.9} parent=46 // pred_check_branch
          %636 = sbr.rel (%p634) target = $region59
        $region58: #{generator_forward.9} parent=46 // pred_region
          %s637 = smul.u32 4, %s21
        $region59: #{generator_forward.9} parent=46 // pred_fallthru
          _
        // Predicated region
        $region60: #{generator_forward.9} parent=46 // pred_check
          %p638 = pneg %p156
        $region61: #{generator_forward.9} parent=46 // pred_check_branch
          %640 = sbr.rel (%p638) target = $region63
        $region62: #{generator_forward.9} parent=46 // pred_region
          %s641 = smul.u32 4, %s21
        $region63: #{generator_forward.9} parent=46 // pred_fallthru
          _
      $region47: #{generator_forward.9} parent=5 // pred_fallthru
        _
      %p642 = scmp.le.s32.totalorder 2, %s11
      // Predicated region
      $region64: #{generator_forward.9} parent=5 // pred_check
        %p643 = pneg %p642
      $region65: #{generator_forward.9} parent=5 // pred_check_branch
        %645 = sbr.rel (%p643) target = $region67
      $region66: #{generator_forward.9} parent=5 // pred_region
        %s646 = ssub.s32 %s11, 2
        // Predicated region
        $region68: #{generator_forward.9} parent=66 // pred_check
          %p647 = pneg %p106
        $region69: #{generator_forward.9} parent=66 // pred_check_branch
          %649 = sbr.rel (%p647) target = $region71
        $region70: #{generator_forward.9} parent=66 // pred_region
          %s650 = smul.u32 4, %s23
          %p651 = scmp.lt.s32.totalorder %s22, 0
          %s652 = scalar_select %p651, %s22, 0
          %p653 = scmp.lt.s32.totalorder %s650, 15
          %s654 = scalar_select %p653, %s650, 15
          %s655 = smul.addr %s652, 16
          %s656 = sadd.s32 %s654, %s655
          %s657 = scalar_lea.vmem %s2, %s656
        $region71: #{generator_forward.9} parent=66 // pred_fallthru
          _
        // Predicated region
        $region72: #{generator_forward.9} parent=66 // pred_check
          %p658 = pneg %p134
        $region73: #{generator_forward.9} parent=66 // pred_check_branch
          %660 = sbr.rel (%p658) target = $region75
        $region74: #{generator_forward.9} parent=66 // pred_region
          %s661 = smul.u32 4, %s23
          %p662 = scmp.lt.s32.totalorder %s22, 0
          %s663 = scalar_select %p662, %s22, 0
          %p664 = scmp.lt.s32.totalorder %s661, 15
          %s665 = scalar_select %p664, %s661, 15
          %s666 = smul.addr %s663, 16
          %s667 = sadd.s32 %s665, %s666
          %s668 = scalar_lea.vmem %s3, %s667
        $region75: #{generator_forward.9} parent=66 // pred_fallthru
          _
        // Predicated region
        $region76: #{generator_forward.9} parent=66 // pred_check
          %p669 = pneg %p162
        $region77: #{generator_forward.9} parent=66 // pred_check_branch
          %671 = sbr.rel (%p669) target = $region79
        $region78: #{generator_forward.9} parent=66 // pred_region
          %s672 = smul.u32 4, %s23
          %p673 = scmp.lt.s32.totalorder %s22, 0
          %s674 = scalar_select %p673, %s22, 0
          %p675 = scmp.lt.s32.totalorder %s672, 15
          %s676 = scalar_select %p675, %s672, 15
          %s677 = smul.addr %s674, 16
          %s678 = sadd.s32 %s676, %s677
          %s679 = scalar_lea.vmem %s4, %s678
        $region79: #{generator_forward.9} parent=66 // pred_fallthru
          _
      $region67: #{generator_forward.9} parent=5 // pred_fallthru
        _
    $region6: #{generator_forward.9} parent=1 // loop_footer
      %s15 = sadd.s32 1, %s11
    $region7: #{generator_forward.9} parent=1 // loop_footer_branch
      %10 = sbr.rel target = $region3
    $region8: #{generator_forward.9} parent=1 // loop_exit
      _

// kernel: generator_forward.10
$region0: #{generator_forward.10}
  #allocation0 [shape = 'u32[]', space=smem, size = 0x4, offset = 0x4, fixed_abs, tag = 'smem constant byte address 0x4 - core index']
  #allocation1 [shape = 'u32[144,128]{1,0:T(1,128)}', space=vmem, size = 0x12000, scoped, tag = 'internal scratch']
  %s0 = inlined_call_operand.vmem [shape: bf16[2,2048], index: 0, kind: input, shape index: {}]
  %s1 = inlined_call_operand.vmem [shape: f32[1,2048], index: 1, kind: input, shape index: {}]
  %s2 = inlined_call_operand.vmem [shape: f32[1,2048], index: 2, kind: input, shape index: {}]
  %s3 = inlined_call_operand.vmem [shape: bf16[2,2048], index: 3, kind: output, shape index: {}]
  %s4 = sld [smem:[#allocation0]]
  $region22: #{generator_forward.10} parent=0
    _
  %s6 = ssub.s32 1, %s4
  %s7 = scalar_select 0, %s6, %s4
  // Predicated region
  $region2: #{generator_forward.10} parent=0 // pred_check
    _
  $region3: #{generator_forward.10} parent=0 // pred_check_branch
    %9 = sbr.rel (0) target = $region5
  $region4: #{generator_forward.10} parent=0 // pred_region
    _
  $region5: #{generator_forward.10} parent=0 // pred_fallthru
    _
  // Predicated region
  $region6: #{generator_forward.10} parent=0 // pred_check
    _
  $region7: #{generator_forward.10} parent=0 // pred_check_branch
    %11 = sbr.rel (0) target = $region9
  $region8: #{generator_forward.10} parent=0 // pred_region
    _
  $region9: #{generator_forward.10} parent=0 // pred_fallthru
    _
  // Predicated region
  $region10: #{generator_forward.10} parent=0 // pred_check
    _
  $region11: #{generator_forward.10} parent=0 // pred_check_branch
    %13 = sbr.rel (0) target = $region13
  $region12: #{generator_forward.10} parent=0 // pred_region
    _
  $region13: #{generator_forward.10} parent=0 // pred_fallthru
    _
  %v14 = vld [vmem:[%s0] sm:$0xff]
  %v15 = vld [vmem:[%s0 + $0x8] sm:$0xff]
  %v16 = vunpack.c.l.bf16 %v14
  %v17 = vunpack.c.h.bf16 %v14
  %v18 = vunpack.c.l.bf16 %v15
  %v19 = vunpack.c.h.bf16 %v15
  %v20 = vld [vmem:[%s1] sm:$0xff]
  %v21 = vld [vmem:[%s1 + $0x8] sm:$0xff]
  %v24 = vlaneseq
  %v25 = vshrl.u32 %v24, 7
  %v26 = vsub.s32 0, %v25
  %v27 = vrot.slane %v20, %v26
  %v28 = vlaneseq
  %v29 = vshrl.u32 %v28, 7
  %v30 = vsub.s32 1, %v29
  %v31 = vrot.slane %v20, %v30
  %v32 = vlaneseq
  %v33 = vshrl.u32 %v32, 7
  %v34 = vsub.s32 2, %v33
  %v35 = vrot.slane %v20, %v34
  %v36 = vlaneseq
  %v37 = vshrl.u32 %v36, 7
  %v38 = vsub.s32 3, %v37
  %v39 = vrot.slane %v20, %v38
  %v40 = vlaneseq
  %v41 = vshrl.u32 %v40, 7
  %v42 = vsub.s32 4, %v41
  %v43 = vrot.slane %v20, %v42
  %v44 = vlaneseq
  %v45 = vshrl.u32 %v44, 7
  %v46 = vsub.s32 5, %v45
  %v47 = vrot.slane %v20, %v46
  %v48 = vlaneseq
  %v49 = vshrl.u32 %v48, 7
  %v50 = vsub.s32 6, %v49
  %v51 = vrot.slane %v20, %v50
  %v52 = vlaneseq
  %v53 = vshrl.u32 %v52, 7
  %v54 = vsub.s32 7, %v53
  %v55 = vrot.slane %v20, %v54
  %v56 = vlaneseq
  %v57 = vshrl.u32 %v56, 7
  %v58 = vsub.s32 0, %v57
  %v59 = vrot.slane %v21, %v58
  %v60 = vlaneseq
  %v61 = vshrl.u32 %v60, 7
  %v62 = vsub.s32 1, %v61
  %v63 = vrot.slane %v21, %v62
  %v64 = vlaneseq
  %v65 = vshrl.u32 %v64, 7
  %v66 = vsub.s32 2, %v65
  %v67 = vrot.slane %v21, %v66
  %v68 = vlaneseq
  %v69 = vshrl.u32 %v68, 7
  %v70 = vsub.s32 3, %v69
  %v71 = vrot.slane %v21, %v70
  %v72 = vlaneseq
  %v73 = vshrl.u32 %v72, 7
  %v74 = vsub.s32 4, %v73
  %v75 = vrot.slane %v21, %v74
  %v76 = vlaneseq
  %v77 = vshrl.u32 %v76, 7
  %v78 = vsub.s32 5, %v77
  %v79 = vrot.slane %v21, %v78
  %v80 = vlaneseq
  %v81 = vshrl.u32 %v80, 7
  %v82 = vsub.s32 6, %v81
  %v83 = vrot.slane %v21, %v82
  %v84 = vlaneseq
  %v85 = vshrl.u32 %v84, 7
  %v86 = vsub.s32 7, %v85
  %v87 = vrot.slane %v21, %v86
  %v88 = vcombine.low %v27, %v31
  %v89 = vcombine.low %v35, %v39
  %v91 = vunpack.c.l.s4 1983009808
  %v92 = vunpack.c.0.s8 %v91
  %v93 = vlaneseq
  %v94 = vshrl.u32 %v93, 7
  %v95 = vsub.s32 %v92, %v94
  %v96 = vrot.slane %v88, %v95
  %v98 = vunpack.c.l.s4 1983009808
  %v99 = vunpack.c.0.s8 %v98
  %v100 = vlaneseq
  %v101 = vshrl.u32 %v100, 7
  %v102 = vsub.s32 %v99, %v101
  %v103 = vrot.slane %v89, %v102
  %v104 = vcombine.low %v96, %v103
  %v105 = vcombine.low %v43, %v47
  %v106 = vcombine.low %v51, %v55
  %v108 = vunpack.c.l.s4 1983009808
  %v109 = vunpack.c.0.s8 %v108
  %v110 = vlaneseq
  %v111 = vshrl.u32 %v110, 7
  %v112 = vsub.s32 %v109, %v111
  %v113 = vrot.slane %v105, %v112
  %v115 = vunpack.c.l.s4 1983009808
  %v116 = vunpack.c.0.s8 %v115
  %v117 = vlaneseq
  %v118 = vshrl.u32 %v117, 7
  %v119 = vsub.s32 %v116, %v118
  %v120 = vrot.slane %v106, %v119
  %v121 = vcombine.low %v113, %v120
  %v122 = vcombine.low %v59, %v63
  %v123 = vcombine.low %v67, %v71
  %v125 = vunpack.c.l.s4 1983009808
  %v126 = vunpack.c.0.s8 %v125
  %v127 = vlaneseq
  %v128 = vshrl.u32 %v127, 7
  %v129 = vsub.s32 %v126, %v128
  %v130 = vrot.slane %v122, %v129
  %v132 = vunpack.c.l.s4 1983009808
  %v133 = vunpack.c.0.s8 %v132
  %v134 = vlaneseq
  %v135 = vshrl.u32 %v134, 7
  %v136 = vsub.s32 %v133, %v135
  %v137 = vrot.slane %v123, %v136
  %v138 = vcombine.low %v130, %v137
  %v139 = vcombine.low %v75, %v79
  %v140 = vcombine.low %v83, %v87
  %v142 = vunpack.c.l.s4 1983009808
  %v143 = vunpack.c.0.s8 %v142
  %v144 = vlaneseq
  %v145 = vshrl.u32 %v144, 7
  %v146 = vsub.s32 %v143, %v145
  %v147 = vrot.slane %v139, %v146
  %v149 = vunpack.c.l.s4 1983009808
  %v150 = vunpack.c.0.s8 %v149
  %v151 = vlaneseq
  %v152 = vshrl.u32 %v151, 7
  %v153 = vsub.s32 %v150, %v152
  %v154 = vrot.slane %v140, %v153
  %v155 = vcombine.low %v147, %v154
  %v160 = vmul.f32 %v16, %v104
  %v161 = vmul.f32 %v17, %v121
  %v162 = vmul.f32 %v18, %v138
  %v163 = vmul.f32 %v19, %v155
  %v164 = vld [vmem:[%s2] sm:$0xff]
  %v165 = vld [vmem:[%s2 + $0x8] sm:$0xff]
  %v168 = vlaneseq
  %v169 = vshrl.u32 %v168, 7
  %v170 = vsub.s32 0, %v169
  %v171 = vrot.slane %v164, %v170
  %v172 = vlaneseq
  %v173 = vshrl.u32 %v172, 7
  %v174 = vsub.s32 1, %v173
  %v175 = vrot.slane %v164, %v174
  %v176 = vlaneseq
  %v177 = vshrl.u32 %v176, 7
  %v178 = vsub.s32 2, %v177
  %v179 = vrot.slane %v164, %v178
  %v180 = vlaneseq
  %v181 = vshrl.u32 %v180, 7
  %v182 = vsub.s32 3, %v181
  %v183 = vrot.slane %v164, %v182
  %v184 = vlaneseq
  %v185 = vshrl.u32 %v184, 7
  %v186 = vsub.s32 4, %v185
  %v187 = vrot.slane %v164, %v186
  %v188 = vlaneseq
  %v189 = vshrl.u32 %v188, 7
  %v190 = vsub.s32 5, %v189
  %v191 = vrot.slane %v164, %v190
  %v192 = vlaneseq
  %v193 = vshrl.u32 %v192, 7
  %v194 = vsub.s32 6, %v193
  %v195 = vrot.slane %v164, %v194
  %v196 = vlaneseq
  %v197 = vshrl.u32 %v196, 7
  %v198 = vsub.s32 7, %v197
  %v199 = vrot.slane %v164, %v198
  %v200 = vlaneseq
  %v201 = vshrl.u32 %v200, 7
  %v202 = vsub.s32 0, %v201
  %v203 = vrot.slane %v165, %v202
  %v204 = vlaneseq
  %v205 = vshrl.u32 %v204, 7
  %v206 = vsub.s32 1, %v205
  %v207 = vrot.slane %v165, %v206
  %v208 = vlaneseq
  %v209 = vshrl.u32 %v208, 7
  %v210 = vsub.s32 2, %v209
  %v211 = vrot.slane %v165, %v210
  %v212 = vlaneseq
  %v213 = vshrl.u32 %v212, 7
  %v214 = vsub.s32 3, %v213
  %v215 = vrot.slane %v165, %v214
  %v216 = vlaneseq
  %v217 = vshrl.u32 %v216, 7
  %v218 = vsub.s32 4, %v217
  %v219 = vrot.slane %v165, %v218
  %v220 = vlaneseq
  %v221 = vshrl.u32 %v220, 7
  %v222 = vsub.s32 5, %v221
  %v223 = vrot.slane %v165, %v222
  %v224 = vlaneseq
  %v225 = vshrl.u32 %v224, 7
  %v226 = vsub.s32 6, %v225
  %v227 = vrot.slane %v165, %v226
  %v228 = vlaneseq
  %v229 = vshrl.u32 %v228, 7
  %v230 = vsub.s32 7, %v229
  %v231 = vrot.slane %v165, %v230
  %v232 = vcombine.low %v171, %v175
  %v233 = vcombine.low %v179, %v183
  %v235 = vunpack.c.l.s4 1983009808
  %v236 = vunpack.c.0.s8 %v235
  %v237 = vlaneseq
  %v238 = vshrl.u32 %v237, 7
  %v239 = vsub.s32 %v236, %v238
  %v240 = vrot.slane %v232, %v239
  %v242 = vunpack.c.l.s4 1983009808
  %v243 = vunpack.c.0.s8 %v242
  %v244 = vlaneseq
  %v245 = vshrl.u32 %v244, 7
  %v246 = vsub.s32 %v243, %v245
  %v247 = vrot.slane %v233, %v246
  %v248 = vcombine.low %v240, %v247
  %v249 = vcombine.low %v187, %v191
  %v250 = vcombine.low %v195, %v199
  %v252 = vunpack.c.l.s4 1983009808
  %v253 = vunpack.c.0.s8 %v252
  %v254 = vlaneseq
  %v255 = vshrl.u32 %v254, 7
  %v256 = vsub.s32 %v253, %v255
  %v257 = vrot.slane %v249, %v256
  %v259 = vunpack.c.l.s4 1983009808
  %v260 = vunpack.c.0.s8 %v259
  %v261 = vlaneseq
  %v262 = vshrl.u32 %v261, 7
  %v263 = vsub.s32 %v260, %v262
  %v264 = vrot.slane %v250, %v263
  %v265 = vcombine.low %v257, %v264
  %v266 = vcombine.low %v203, %v207
  %v267 = vcombine.low %v211, %v215
  %v269 = vunpack.c.l.s4 1983009808
  %v270 = vunpack.c.0.s8 %v269
  %v271 = vlaneseq
  %v272 = vshrl.u32 %v271, 7
  %v273 = vsub.s32 %v270, %v272
  %v274 = vrot.slane %v266, %v273
  %v276 = vunpack.c.l.s4 1983009808
  %v277 = vunpack.c.0.s8 %v276
  %v278 = vlaneseq
  %v279 = vshrl.u32 %v278, 7
  %v280 = vsub.s32 %v277, %v279
  %v281 = vrot.slane %v267, %v280
  %v282 = vcombine.low %v274, %v281
  %v283 = vcombine.low %v219, %v223
  %v284 = vcombine.low %v227, %v231
  %v286 = vunpack.c.l.s4 1983009808
  %v287 = vunpack.c.0.s8 %v286
  %v288 = vlaneseq
  %v289 = vshrl.u32 %v288, 7
  %v290 = vsub.s32 %v287, %v289
  %v291 = vrot.slane %v283, %v290
  %v293 = vunpack.c.l.s4 1983009808
  %v294 = vunpack.c.0.s8 %v293
  %v295 = vlaneseq
  %v296 = vshrl.u32 %v295, 7
  %v297 = vsub.s32 %v294, %v296
  %v298 = vrot.slane %v284, %v297
  %v299 = vcombine.low %v291, %v298
  %v304 = vadd.f32 %v160, %v248
  %v305 = vadd.f32 %v161, %v265
  %v306 = vadd.f32 %v162, %v282
  %v307 = vadd.f32 %v163, %v299
  %v308 = vmax.f32 %v304, 0.0
  %v309 = vmax.f32 %v305, 0.0
  %v310 = vmax.f32 %v306, 0.0
  %v311 = vmax.f32 %v307, 0.0
  %v316 = vcombine.high %v308, %v308
  %v318 = vunpack.c.l.s4 1983009808
  %v319 = vunpack.c.0.s8 %v318
  %v320 = vlaneseq
  %v321 = vshrl.u32 %v320, 7
  %v322 = vsub.s32 %v319, %v321
  %v323 = vrot.slane %v308, %v322
  %v325 = vunpack.c.l.s4 1983009808
  %v326 = vunpack.c.0.s8 %v325
  %v327 = vlaneseq
  %v328 = vshrl.u32 %v327, 7
  %v329 = vsub.s32 %v326, %v328
  %v330 = vrot.slane %v316, %v329
  %v331 = vcombine.high %v323, %v323
  %v332 = vcombine.high %v330, %v330
  %v333 = vcombine.high %v309, %v309
  %v335 = vunpack.c.l.s4 1983009808
  %v336 = vunpack.c.0.s8 %v335
  %v337 = vlaneseq
  %v338 = vshrl.u32 %v337, 7
  %v339 = vsub.s32 %v336, %v338
  %v340 = vrot.slane %v309, %v339
  %v342 = vunpack.c.l.s4 1983009808
  %v343 = vunpack.c.0.s8 %v342
  %v344 = vlaneseq
  %v345 = vshrl.u32 %v344, 7
  %v346 = vsub.s32 %v343, %v345
  %v347 = vrot.slane %v333, %v346
  %v348 = vcombine.high %v340, %v340
  %v349 = vcombine.high %v347, %v347
  %v350 = vcombine.high %v310, %v310
  %v352 = vunpack.c.l.s4 1983009808
  %v353 = vunpack.c.0.s8 %v352
  %v354 = vlaneseq
  %v355 = vshrl.u32 %v354, 7
  %v356 = vsub.s32 %v353, %v355
  %v357 = vrot.slane %v310, %v356
  %v359 = vunpack.c.l.s4 1983009808
  %v360 = vunpack.c.0.s8 %v359
  %v361 = vlaneseq
  %v362 = vshrl.u32 %v361, 7
  %v363 = vsub.s32 %v360, %v362
  %v364 = vrot.slane %v350, %v363
  %v365 = vcombine.high %v357, %v357
  %v366 = vcombine.high %v364, %v364
  %v367 = vcombine.high %v311, %v311
  %v369 = vunpack.c.l.s4 1983009808
  %v370 = vunpack.c.0.s8 %v369
  %v371 = vlaneseq
  %v372 = vshrl.u32 %v371, 7
  %v373 = vsub.s32 %v370, %v372
  %v374 = vrot.slane %v311, %v373
  %v376 = vunpack.c.l.s4 1983009808
  %v377 = vunpack.c.0.s8 %v376
  %v378 = vlaneseq
  %v379 = vshrl.u32 %v378, 7
  %v380 = vsub.s32 %v377, %v379
  %v381 = vrot.slane %v367, %v380
  %v382 = vcombine.high %v374, %v374
  %v383 = vcombine.high %v381, %v381
  %v400 = vpack.c.bf16 %v323, %v323
  %v401 = vpack.c.bf16 %v331, %v331
  %v402 = vpack.c.bf16 %v330, %v330
  %v403 = vpack.c.bf16 %v332, %v332
  %v404 = vpack.c.bf16 %v340, %v340
  %v405 = vpack.c.bf16 %v348, %v348
  %v406 = vpack.c.bf16 %v347, %v347
  %v407 = vpack.c.bf16 %v349, %v349
  %v408 = vpack.c.bf16 %v357, %v357
  %v409 = vpack.c.bf16 %v365, %v365
  %v410 = vpack.c.bf16 %v364, %v364
  %v411 = vpack.c.bf16 %v366, %v366
  %v412 = vpack.c.bf16 %v374, %v374
  %v413 = vpack.c.bf16 %v382, %v382
  %v414 = vpack.c.bf16 %v381, %v381
  %v415 = vpack.c.bf16 %v383, %v383
  %v432 = vcombine.low %v400, %v401
  %v433 = vcombine.low %v402, %v403
  %v434 = vcombine.low %v404, %v405
  %v435 = vcombine.low %v406, %v407
  %v437 = vunpack.c.l.s4 1966171168
  %v438 = vunpack.c.0.s8 %v437
  %v439 = vlaneseq
  %v440 = vshrl.u32 %v439, 7
  %v441 = vsub.s32 %v438, %v440
  %v442 = vrot.slane %v432, %v441
  %v444 = vunpack.c.l.s4 1966171168
  %v445 = vunpack.c.0.s8 %v444
  %v446 = vlaneseq
  %v447 = vshrl.u32 %v446, 7
  %v448 = vsub.s32 %v445, %v447
  %v449 = vrot.slane %v433, %v448
  %v451 = vunpack.c.l.s4 1966171168
  %v452 = vunpack.c.0.s8 %v451
  %v453 = vlaneseq
  %v454 = vshrl.u32 %v453, 7
  %v455 = vsub.s32 %v452, %v454
  %v456 = vrot.slane %v434, %v455
  %v458 = vunpack.c.l.s4 1966171168
  %v459 = vunpack.c.0.s8 %v458
  %v460 = vlaneseq
  %v461 = vshrl.u32 %v460, 7
  %v462 = vsub.s32 %v459, %v461
  %v463 = vrot.slane %v435, %v462
  %v464 = vcombine.low %v442, %v449
  %v465 = vcombine.low %v456, %v463
  %v467 = vunpack.c.l.s4 1966171168
  %v468 = vunpack.c.0.s8 %v467
  %v469 = vlaneseq
  %v470 = vshrl.u32 %v469, 7
  %v471 = vsub.s32 %v468, %v470
  %v472 = vrot.slane %v464, %v471
  %v474 = vunpack.c.l.s4 1966171168
  %v475 = vunpack.c.0.s8 %v474
  %v476 = vlaneseq
  %v477 = vshrl.u32 %v476, 7
  %v478 = vsub.s32 %v475, %v477
  %v479 = vrot.slane %v465, %v478
  %v480 = vcombine.low %v472, %v479
  %v481 = vcombine.low %v408, %v409
  %v482 = vcombine.low %v410, %v411
  %v483 = vcombine.low %v412, %v413
  %v484 = vcombine.low %v414, %v415
  %v486 = vunpack.c.l.s4 1966171168
  %v487 = vunpack.c.0.s8 %v486
  %v488 = vlaneseq
  %v489 = vshrl.u32 %v488, 7
  %v490 = vsub.s32 %v487, %v489
  %v491 = vrot.slane %v481, %v490
  %v493 = vunpack.c.l.s4 1966171168
  %v494 = vunpack.c.0.s8 %v493
  %v495 = vlaneseq
  %v496 = vshrl.u32 %v495, 7
  %v497 = vsub.s32 %v494, %v496
  %v498 = vrot.slane %v482, %v497
  %v500 = vunpack.c.l.s4 1966171168
  %v501 = vunpack.c.0.s8 %v500
  %v502 = vlaneseq
  %v503 = vshrl.u32 %v502, 7
  %v504 = vsub.s32 %v501, %v503
  %v505 = vrot.slane %v483, %v504
  %v507 = vunpack.c.l.s4 1966171168
  %v508 = vunpack.c.0.s8 %v507
  %v509 = vlaneseq
  %v510 = vshrl.u32 %v509, 7
  %v511 = vsub.s32 %v508, %v510
  %v512 = vrot.slane %v484, %v511
  %v513 = vcombine.low %v491, %v498
  %v514 = vcombine.low %v505, %v512
  %v516 = vunpack.c.l.s4 1966171168
  %v517 = vunpack.c.0.s8 %v516
  %v518 = vlaneseq
  %v519 = vshrl.u32 %v518, 7
  %v520 = vsub.s32 %v517, %v519
  %v521 = vrot.slane %v513, %v520
  %v523 = vunpack.c.l.s4 1966171168
  %v524 = vunpack.c.0.s8 %v523
  %v525 = vlaneseq
  %v526 = vshrl.u32 %v525, 7
  %v527 = vsub.s32 %v524, %v526
  %v528 = vrot.slane %v514, %v527
  %v529 = vcombine.low %v521, %v528
  %532 = vst [vmem:[%s3] sm:$0xff] %v480
  %533 = vst [vmem:[%s3 + $0x8] sm:$0xff] %v529
  // Predicated region
  $region14: #{generator_forward.10} parent=0 // pred_check
    _
  $region15: #{generator_forward.10} parent=0 // pred_check_branch
    %535 = sbr.rel (0) target = $region17
  $region16: #{generator_forward.10} parent=0 // pred_region
    _
  $region17: #{generator_forward.10} parent=0 // pred_fallthru
    _
  // Predicated region
  $region18: #{generator_forward.10} parent=0 // pred_check
    _
  $region19: #{generator_forward.10} parent=0 // pred_check_branch
    %537 = sbr.rel (0) target = $region21
  $region20: #{generator_forward.10} parent=0 // pred_region
    _
  $region21: #{generator_forward.10} parent=0 // pred_fallthru
    _

// kernel: tile.43
$region0: #{tile.43}
  #allocation0 [shape = 's32[1]{0}', space=sflag, size = 0x4, scoped, tag = 'scoped memory for tile.43']
  %s0 = inlined_call_operand.vmem [shape: f32[64], index: 0, kind: input, shape index: {}]
  %s1 = inlined_call_operand.vmem [shape: f32[4,64], index: 1, kind: output, shape index: {}]
  // Predicated region
  $region2: #{tile.43} parent=0 // pred_check
    _
  $region3: #{tile.43} parent=0 // pred_check_branch
    %3 = sbr.rel (0) target = $region5
  $region4: #{tile.43} parent=0 // pred_region
    _
  $region5: #{tile.43} parent=0 // pred_fallthru
    _
  %v4 = vld [vmem:[%s0] ss:$0 sm:$0xff]
  %5 = vst [vmem:[%s1] sm:$0xf] %v4

// kernel: generator_forward.12
$region0: #{generator_forward.12}
  #allocation0 [shape = 'u32[]', space=smem, size = 0x4, offset = 0x4, fixed_abs, tag = 'smem constant byte address 0x4 - core index']
  #allocation1 [shape = 'u32[144,128]{1,0:T(1,128)}', space=vmem, size = 0x12000, scoped, tag = 'internal scratch']
  %s0 = inlined_call_operand.vmem [shape: bf16[32,256], index: 0, kind: input, shape index: {}]
  %s1 = inlined_call_operand.vmem [shape: f32[1,256], index: 1, kind: input, shape index: {}]
  %s2 = inlined_call_operand.vmem [shape: f32[1,256], index: 2, kind: input, shape index: {}]
  %s3 = inlined_call_operand.vmem [shape: bf16[32,256], index: 3, kind: output, shape index: {}]
  %s4 = sld [smem:[#allocation0]]
  $region22: #{generator_forward.12} parent=0
    _
  %s6 = ssub.s32 1, %s4
  %s7 = scalar_select 0, %s6, %s4
  // Predicated region
  $region2: #{generator_forward.12} parent=0 // pred_check
    _
  $region3: #{generator_forward.12} parent=0 // pred_check_branch
    %9 = sbr.rel (0) target = $region5
  $region4: #{generator_forward.12} parent=0 // pred_region
    _
  $region5: #{generator_forward.12} parent=0 // pred_fallthru
    _
  // Predicated region
  $region6: #{generator_forward.12} parent=0 // pred_check
    _
  $region7: #{generator_forward.12} parent=0 // pred_check_branch
    %11 = sbr.rel (0) target = $region9
  $region8: #{generator_forward.12} parent=0 // pred_region
    _
  $region9: #{generator_forward.12} parent=0 // pred_fallthru
    _
  // Predicated region
  $region10: #{generator_forward.12} parent=0 // pred_check
    _
  $region11: #{generator_forward.12} parent=0 // pred_check_branch
    %13 = sbr.rel (0) target = $region13
  $region12: #{generator_forward.12} parent=0 // pred_region
    _
  $region13: #{generator_forward.12} parent=0 // pred_fallthru
    _
  %v14 = vld [vmem:[%s0] sm:$0xff]
  %v15 = vld [vmem:[%s0 + $0x8] sm:$0xff]
  %v16 = vld [vmem:[%s0 + $0x10] sm:$0xff]
  %v17 = vld [vmem:[%s0 + $0x18] sm:$0xff]
  %v18 = vunpack.c.l.bf16 %v14
  %v19 = vunpack.c.h.bf16 %v14
  %v20 = vunpack.c.l.bf16 %v15
  %v21 = vunpack.c.h.bf16 %v15
  %v22 = vunpack.c.l.bf16 %v16
  %v23 = vunpack.c.h.bf16 %v16
  %v24 = vunpack.c.l.bf16 %v17
  %v25 = vunpack.c.h.bf16 %v17
  %v26 = vld [vmem:[%s1] sm:$0x3]
  %v28 = vlaneseq
  %v29 = vshrl.u32 %v28, 7
  %v30 = vsub.s32 0, %v29
  %v31 = vrot.slane %v26, %v30
  %v32 = vlaneseq
  %v33 = vshrl.u32 %v32, 7
  %v34 = vsub.s32 1, %v33
  %v35 = vrot.slane %v26, %v34
  %v38 = vmul.f32 %v18, %v31
  %v39 = vmul.f32 %v19, %v35
  %v40 = vmul.f32 %v20, %v31
  %v41 = vmul.f32 %v21, %v35
  %v42 = vmul.f32 %v22, %v31
  %v43 = vmul.f32 %v23, %v35
  %v44 = vmul.f32 %v24, %v31
  %v45 = vmul.f32 %v25, %v35
  %v46 = vld [vmem:[%s2] sm:$0x3]
  %v48 = vlaneseq
  %v49 = vshrl.u32 %v48, 7
  %v50 = vsub.s32 0, %v49
  %v51 = vrot.slane %v46, %v50
  %v52 = vlaneseq
  %v53 = vshrl.u32 %v52, 7
  %v54 = vsub.s32 1, %v53
  %v55 = vrot.slane %v46, %v54
  %v58 = vadd.f32 %v38, %v51
  %v59 = vadd.f32 %v39, %v55
  %v60 = vadd.f32 %v40, %v51
  %v61 = vadd.f32 %v41, %v55
  %v62 = vadd.f32 %v42, %v51
  %v63 = vadd.f32 %v43, %v55
  %v64 = vadd.f32 %v44, %v51
  %v65 = vadd.f32 %v45, %v55
  %v66 = vmax.f32 %v58, 0.0
  %v67 = vmax.f32 %v59, 0.0
  %v68 = vmax.f32 %v60, 0.0
  %v69 = vmax.f32 %v61, 0.0
  %v70 = vmax.f32 %v62, 0.0
  %v71 = vmax.f32 %v63, 0.0
  %v72 = vmax.f32 %v64, 0.0
  %v73 = vmax.f32 %v65, 0.0
  %v74 = vpack.c.bf16 %v68, %v66
  %v75 = vpack.c.bf16 %v69, %v67
  %v76 = vpack.c.bf16 %v72, %v70
  %v77 = vpack.c.bf16 %v73, %v71
  %v82 = vunpack.c.l.b16 %v74
  %v83 = vunpack.c.l.b16 %v75
  %v84 = vunpack.c.h.b16 %v74
  %v85 = vunpack.c.h.b16 %v75
  %v86 = vunpack.c.l.b16 %v76
  %v87 = vunpack.c.l.b16 %v77
  %v88 = vunpack.c.h.b16 %v76
  %v89 = vunpack.c.h.b16 %v77
  %v90 = vpack.c.b16 %v83, %v82
  %v91 = vpack.c.b16 %v85, %v84
  %v92 = vpack.c.b16 %v87, %v86
  %v93 = vpack.c.b16 %v89, %v88
  %98 = vst [vmem:[%s3] sm:$0xff] %v90
  %99 = vst [vmem:[%s3 + $0x8] sm:$0xff] %v91
  %100 = vst [vmem:[%s3 + $0x10] sm:$0xff] %v92
  %101 = vst [vmem:[%s3 + $0x18] sm:$0xff] %v93
  // Predicated region
  $region14: #{generator_forward.12} parent=0 // pred_check
    _
  $region15: #{generator_forward.12} parent=0 // pred_check_branch
    %103 = sbr.rel (0) target = $region17
  $region16: #{generator_forward.12} parent=0 // pred_region
    _
  $region17: #{generator_forward.12} parent=0 // pred_fallthru
    _
  // Predicated region
  $region18: #{generator_forward.12} parent=0 // pred_check
    _
  $region19: #{generator_forward.12} parent=0 // pred_check_branch
    %105 = sbr.rel (0) target = $region21
  $region20: #{generator_forward.12} parent=0 // pred_region
    _
  $region21: #{generator_forward.12} parent=0 // pred_fallthru
    _

// kernel: generator_forward.11
$region0: #{generator_forward.11}
  #allocation0 [shape = 'u32[]', space=smem, size = 0x4, offset = 0x4, fixed_abs, tag = 'smem constant byte address 0x4 - core index']
  #allocation1 [shape = 'u32[144,128]{1,0:T(1,128)}', space=vmem, size = 0x12000, scoped, tag = 'internal scratch']
  %s0 = inlined_call_operand.vmem [shape: bf16[32,1152], index: 0, kind: input, shape index: {}]
  %s1 = inlined_call_operand.vmem [shape: bf16[1152,256], index: 1, kind: input, shape index: {}]
  %s2 = inlined_call_operand.vmem [shape: bf16[32,256], index: 2, kind: output, shape index: {0}]
  %s3 = inlined_call_operand.vmem [shape: f32[1,1,256], index: 3, kind: output, shape index: {1}]
  %s4 = inlined_call_operand.vmem [shape: f32[1,1,256], index: 4, kind: output, shape index: {2}]
  %5 = xla_tuple %s2, %s3, %s4
  %s6 = sld [smem:[#allocation0]]
  $region135: #{generator_forward.11} parent=0
    _
  %s8 = ssub.s32 1, %s6
  %s9 = scalar_select 0, %s8, %s6
  $region1: #{generator_forward.11} parent=0
    #allocation2 [shape = 'u8[589824]{0}', space=vmem, size = 0x90000, scoped, tag = 'input window, operand 1']
    #allocation3 [shape = 'u8[16384]{0}', space=vmem, size = 0x4000, scoped, tag = 'output window, operand 0']
    loop: start=0, step=1, limit=4
    $region2: #{generator_forward.11} parent=1 // loop_pre_header
      _
    $region3: #{generator_forward.11} parent=1 // loop_header
      %s11 = sphi 0, %s15
      %p12 = scmp.ge.s32.totalorder %s11, 4
      %s18 = sphi 0, %s30
      %s19 = sphi 0, %s26
      %s20 = sphi 0, %s18
      %s21 = sphi 0, %s19
      %s22 = sphi 0, %s20
      %s23 = sphi 0, %s21
      %s33 = sphi 0, %s35
      %s36 = sphi 0, %s33
      %s37 = sphi 0, %s36
      %s53 = sphi 0, %s37
      %s59 = sphi 0, %s61
      %s62 = sphi 0, %s59
      %s63 = sphi 0, %s62
      %s79 = sphi 0, %s63
      %s87 = sphi 0, %s89
      %s90 = sphi 0, %s87
      %s91 = sphi 0, %s90
      %s107 = sphi 0, %s91
      %s115 = sphi 0, %s117
      %s118 = sphi 0, %s115
      %s119 = sphi 0, %s118
      %s135 = sphi 0, %s119
      %s143 = sphi 0, %s145
      %s146 = sphi 0, %s143
      %s147 = sphi 0, %s146
      %s163 = sphi 0, %s147
    $region4: #{generator_forward.11} parent=1 // loop_header_branch
      %14 = sbr.rel (%p12) target = $region8
    $region5: #{generator_forward.11} parent=1 // loop_body
      %s16 = ssub.s32 %s11, 1
      %s17 = ssub.s32 %s11, 2
      %s24 = sadd.s32 1, %s19
      %p25 = scmp.ge.s32.totalorder %s24, 2
      %s26 = scalar_select %p25, 0, %s24
      %s27 = sadd.s32 1, %s18
      %s28 = scalar_select %p25, %s27, %s18
      %p29 = scmp.ge.s32.totalorder %s28, 1
      %s30 = scalar_select %p29, 0, %s28
      %s31 = ssub.s32 %s18, %s30
      %p32 = scmp.eq.s32.totalorder %s31, 0
      %s34 = sadd.s32 %s33, 1
      %s35 = scalar_select %p32, %s33, %s34
      %p38 = pneg %p32
      %p39 = scmp.eq.s32.totalorder %s11, 1
      %p40 = por %p38, %p39
      %p41 = scmp.ne.s32.totalorder %s33, %s36
      %p42 = scmp.eq.s32.totalorder %s11, 0
      %p43 = por %p41, %p42
      %p44 = scmp.ne.s32.totalorder %s33, %s36
      %p45 = scmp.eq.s32.totalorder %s16, 1
      %p46 = por %p44, %p45
      %p47 = scmp.ne.s32.totalorder %s36, %s37
      %p48 = scmp.eq.s32.totalorder %s16, 0
      %p49 = por %p47, %p48
      %p50 = scmp.ne.s32.totalorder %s36, %s37
      %p51 = scmp.eq.s32.totalorder %s17, 1
      %p52 = por %p50, %p51
      %p54 = scmp.ne.s32.totalorder %s37, %s53
      %p55 = scmp.eq.s32.totalorder %s17, 0
      %p56 = por %p54, %p55
      %s57 = ssub.s32 %s19, %s26
      %p58 = scmp.eq.s32.totalorder %s57, 0
      %s60 = sadd.s32 %s59, 1
      %s61 = scalar_select %p58, %s59, %s60
      %p64 = pneg %p58
      %p65 = scmp.eq.s32.totalorder %s11, 1
      %p66 = por %p64, %p65
      %p67 = scmp.ne.s32.totalorder %s59, %s62
      %p68 = scmp.eq.s32.totalorder %s11, 0
      %p69 = por %p67, %p68
      %p70 = scmp.ne.s32.totalorder %s59, %s62
      %p71 = scmp.eq.s32.totalorder %s16, 1
      %p72 = por %p70, %p71
      %p73 = scmp.ne.s32.totalorder %s62, %s63
      %p74 = scmp.eq.s32.totalorder %s16, 0
      %p75 = por %p73, %p74
      %p76 = scmp.ne.s32.totalorder %s62, %s63
      %p77 = scmp.eq.s32.totalorder %s17, 1
      %p78 = por %p76, %p77
      %p80 = scmp.ne.s32.totalorder %s63, %s79
      %p81 = scmp.eq.s32.totalorder %s17, 0
      %p82 = por %p80, %p81
      %s83 = ssub.s32 %s18, %s30
      %s84 = ssub.s32 %s19, %s26
      %s85 = sor.u32 %s83, %s84
      %p86 = scmp.eq.s32.totalorder %s85, 0
      %s88 = sadd.s32 %s87, 1
      %s89 = scalar_select %p86, %s87, %s88
      %p92 = pneg %p86
      %p93 = scmp.eq.s32.totalorder %s11, 1
      %p94 = por %p92, %p93
      %p95 = scmp.ne.s32.totalorder %s87, %s90
      %p96 = scmp.eq.s32.totalorder %s11, 0
      %p97 = por %p95, %p96
      %p98 = scmp.ne.s32.totalorder %s87, %s90
      %p99 = scmp.eq.s32.totalorder %s16, 1
      %p100 = por %p98, %p99
      %p101 = scmp.ne.s32.totalorder %s90, %s91
      %p102 = scmp.eq.s32.totalorder %s16, 0
      %p103 = por %p101, %p102
      %p104 = scmp.ne.s32.totalorder %s90, %s91
      %p105 = scmp.eq.s32.totalorder %s17, 1
      %p106 = por %p104, %p105
      %p108 = scmp.ne.s32.totalorder %s91, %s107
      %p109 = scmp.eq.s32.totalorder %s17, 0
      %p110 = por %p108, %p109
      %s111 = ssub.s32 %s18, %s30
      %s112 = ssub.s32 %s19, %s26
      %s113 = sor.u32 %s111, %s112
      %p114 = scmp.eq.s32.totalorder %s113, 0
      %s116 = sadd.s32 %s115, 1
      %s117 = scalar_select %p114, %s115, %s116
      %p120 = pneg %p114
      %p121 = scmp.eq.s32.totalorder %s11, 1
      %p122 = por %p120, %p121
      %p123 = scmp.ne.s32.totalorder %s115, %s118
      %p124 = scmp.eq.s32.totalorder %s11, 0
      %p125 = por %p123, %p124
      %p126 = scmp.ne.s32.totalorder %s115, %s118
      %p127 = scmp.eq.s32.totalorder %s16, 1
      %p128 = por %p126, %p127
      %p129 = scmp.ne.s32.totalorder %s118, %s119
      %p130 = scmp.eq.s32.totalorder %s16, 0
      %p131 = por %p129, %p130
      %p132 = scmp.ne.s32.totalorder %s118, %s119
      %p133 = scmp.eq.s32.totalorder %s17, 1
      %p134 = por %p132, %p133
      %p136 = scmp.ne.s32.totalorder %s119, %s135
      %p137 = scmp.eq.s32.totalorder %s17, 0
      %p138 = por %p136, %p137
      %s139 = ssub.s32 %s18, %s30
      %s140 = ssub.s32 %s19, %s26
      %s141 = sor.u32 %s139, %s140
      %p142 = scmp.eq.s32.totalorder %s141, 0
      %s144 = sadd.s32 %s143, 1
      %s145 = scalar_select %p142, %s143, %s144
      %p148 = pneg %p142
      %p149 = scmp.eq.s32.totalorder %s11, 1
      %p150 = por %p148, %p149
      %p151 = scmp.ne.s32.totalorder %s143, %s146
      %p152 = scmp.eq.s32.totalorder %s11, 0
      %p153 = por %p151, %p152
      %p154 = scmp.ne.s32.totalorder %s143, %s146
      %p155 = scmp.eq.s32.totalorder %s16, 1
      %p156 = por %p154, %p155
      %p157 = scmp.ne.s32.totalorder %s146, %s147
      %p158 = scmp.eq.s32.totalorder %s16, 0
      %p159 = por %p157, %p158
      %p160 = scmp.ne.s32.totalorder %s146, %s147
      %p161 = scmp.eq.s32.totalorder %s17, 1
      %p162 = por %p160, %p161
      %p164 = scmp.ne.s32.totalorder %s147, %s163
      %p165 = scmp.eq.s32.totalorder %s17, 0
      %p166 = por %p164, %p165
      %p167 = scmp.le.s32.totalorder 1, %s11
      %p168 = scmp.lt.s32.totalorder %s11, 3
      %p169 = pnand %p167, %p168
      %p170 = pneg %p169
      // Predicated region
      $region9: #{generator_forward.11} parent=5 // pred_check
        _
      $region10: #{generator_forward.11} parent=5 // pred_check_branch
        %172 = sbr.rel (%p169) target = $region12
      $region11: #{generator_forward.11} parent=5 // pred_region
        %s173 = ssub.s32 %s11, 1
        // Predicated region
        $region13: #{generator_forward.11} parent=11 // pred_check
          %p174 = pneg %p49
        $region14: #{generator_forward.11} parent=11 // pred_check_branch
          %176 = sbr.rel (%p174) target = $region16
        $region15: #{generator_forward.11} parent=11 // pred_region
          %s177 = smul.u32 4, %s20
          %p178 = scmp.lt.s32.totalorder %s177, 3
          %s179 = scalar_select %p178, %s177, 3
          %s180 = smul.addr %s179, 9
          %s181 = smul.addr %s180, 4
          %s182 = scalar_lea.vmem %s0, %s181
          %s183 = smul.u32 4, %s20
        $region16: #{generator_forward.11} parent=11 // pred_fallthru
          _
      $region12: #{generator_forward.11} parent=5 // pred_fallthru
        _
      %p184 = scmp.lt.s32.totalorder %s11, 2
      // Predicated region
      $region17: #{generator_forward.11} parent=5 // pred_check
        %p185 = pneg %p184
      $region18: #{generator_forward.11} parent=5 // pred_check_branch
        %187 = sbr.rel (%p185) target = $region20
      $region19: #{generator_forward.11} parent=5 // pred_region
        // Predicated region
        $region21: #{generator_forward.11} parent=19 // pred_check
          %p188 = pneg %p69
        $region22: #{generator_forward.11} parent=19 // pred_check_branch
          %190 = sbr.rel (%p188) target = $region24
        $region23: #{generator_forward.11} parent=19 // pred_region
          %s191 = sand.u32 %s59, 1
          %s192 = sand.u32 %s59, 1
          %s193 = smul.addr %s192, 576
          %s194 = scalar_lea.vmem [#allocation2], %s193
          %s195 = smul.addr %s19, 4
          %s196 = scalar_lea.vmem %s1, %s195
          // Predicated region
          $region25: #{generator_forward.11} parent=23 // pred_check
            _
          $region26: #{generator_forward.11} parent=23 // pred_check_branch
            %198 = sbr.rel (0) target = $region28
          $region27: #{generator_forward.11} parent=23 // pred_region
            // Predicated region
            $region29: #{generator_forward.11} parent=27 // pred_check
              _
            $region30: #{generator_forward.11} parent=27 // pred_check_branch
              %200 = sbr.rel target = $region32
            $region31: #{generator_forward.11} parent=27 // pred_region
              // Predicated region
              $region44: #{generator_forward.11} parent=31 // pred_check
                _
              $region45: #{generator_forward.11} parent=31 // pred_check_branch
                %501 = sbr.rel (0) target = $region47
              $region46: #{generator_forward.11} parent=31 // pred_region
                loop: start=0, step=1, limit=1
                $region48: #{generator_forward.11} parent=46 // loop_pre_header
                  _
                $region49: #{generator_forward.11} parent=46 // loop_header
                  %s503 = sphi 0, %s507
                  %p504 = scmp.ge.s32.totalorder %s503, 1
                  %s508 = sphi %s196, %s196
                  %s509 = sphi %s194, %s194
                $region50: #{generator_forward.11} parent=46 // loop_header_branch
                  %506 = sbr.rel (%p504) target = $region54
                $region51: #{generator_forward.11} parent=46 // loop_body
                  _
                $region52: #{generator_forward.11} parent=46 // loop_footer
                  %s507 = sadd.s32 1, %s503
                $region53: #{generator_forward.11} parent=46 // loop_footer_branch
                  %502 = sbr.rel target = $region49
                $region54: #{generator_forward.11} parent=46 // loop_exit
                  _
                loop: start=0, step=1, limit=1
                $region55: #{generator_forward.11} parent=46 // loop_pre_header
                  _
                $region56: #{generator_forward.11} parent=46 // loop_header
                  %s512 = sphi 0, %s516
                  %p513 = scmp.ge.s32.totalorder %s512, 1
                  %s517 = sphi %s196, %s196
                  %s518 = sphi %s194, %s194
                $region57: #{generator_forward.11} parent=46 // loop_header_branch
                  %515 = sbr.rel (%p513) target = $region61
                $region58: #{generator_forward.11} parent=46 // loop_body
                  %v519 = vld [vmem:[%s517] sm:$0xf]
                  %520 = vst [vmem:[%s518] sm:$0xf] %v519
                  %v521 = vld [vmem:[%s517 + $0x8] sm:$0xf]
                  %522 = vst [vmem:[%s518 + $0x4] sm:$0xf] %v521
                  %v523 = vld [vmem:[%s517 + $0x10] sm:$0xf]
                  %524 = vst [vmem:[%s518 + $0x8] sm:$0xf] %v523
                  %v525 = vld [vmem:[%s517 + $0x18] sm:$0xf]
                  %526 = vst [vmem:[%s518 + $0xc] sm:$0xf] %v525
                  %v527 = vld [vmem:[%s517 + $0x20] sm:$0xf]
                  %528 = vst [vmem:[%s518 + $0x10] sm:$0xf] %v527
                  %v529 = vld [vmem:[%s517 + $0x28] sm:$0xf]
                  %530 = vst [vmem:[%s518 + $0x14] sm:$0xf] %v529
                  %v531 = vld [vmem:[%s517 + $0x30] sm:$0xf]
                  %532 = vst [vmem:[%s518 + $0x18] sm:$0xf] %v531
                  %v533 = vld [vmem:[%s517 + $0x38] sm:$0xf]
                  %534 = vst [vmem:[%s518 + $0x1c] sm:$0xf] %v533
                  %v535 = vld [vmem:[%s517 + $0x40] sm:$0xf]
                  %536 = vst [vmem:[%s518 + $0x20] sm:$0xf] %v535
                  %v537 = vld [vmem:[%s517 + $0x48] sm:$0xf]
                  %538 = vst [vmem:[%s518 + $0x24] sm:$0xf] %v537
                  %v539 = vld [vmem:[%s517 + $0x50] sm:$0xf]
                  %540 = vst [vmem:[%s518 + $0x28] sm:$0xf] %v539
                  %v541 = vld [vmem:[%s517 + $0x58] sm:$0xf]
                  %542 = vst [vmem:[%s518 + $0x2c] sm:$0xf] %v541
                  %v543 = vld [vmem:[%s517 + $0x60] sm:$0xf]
                  %544 = vst [vmem:[%s518 + $0x30] sm:$0xf] %v543
                  %v545 = vld [vmem:[%s517 + $0x68] sm:$0xf]
                  %546 = vst [vmem:[%s518 + $0x34] sm:$0xf] %v545
                  %v547 = vld [vmem:[%s517 + $0x70] sm:$0xf]
                  %548 = vst [vmem:[%s518 + $0x38] sm:$0xf] %v547
                  %v549 = vld [vmem:[%s517 + $0x78] sm:$0xf]
                  %550 = vst [vmem:[%s518 + $0x3c] sm:$0xf] %v549
                  %v551 = vld [vmem:[%s517 + $0x80] sm:$0xf]
                  %552 = vst [vmem:[%s518 + $0x40] sm:$0xf] %v551
                  %v553 = vld [vmem:[%s517 + $0x88] sm:$0xf]
                  %554 = vst [vmem:[%s518 + $0x44] sm:$0xf] %v553
                  %v555 = vld [vmem:[%s517 + $0x90] sm:$0xf]
                  %556 = vst [vmem:[%s518 + $0x48] sm:$0xf] %v555
                  %v557 = vld [vmem:[%s517 + $0x98] sm:$0xf]
                  %558 = vst [vmem:[%s518 + $0x4c] sm:$0xf] %v557
                  %v559 = vld [vmem:[%s517 + $0xa0] sm:$0xf]
                  %560 = vst [vmem:[%s518 + $0x50] sm:$0xf] %v559
                  %v561 = vld [vmem:[%s517 + $0xa8] sm:$0xf]
                  %562 = vst [vmem:[%s518 + $0x54] sm:$0xf] %v561
                  %v563 = vld [vmem:[%s517 + $0xb0] sm:$0xf]
                  %564 = vst [vmem:[%s518 + $0x58] sm:$0xf] %v563
                  %v565 = vld [vmem:[%s517 + $0xb8] sm:$0xf]
                  %566 = vst [vmem:[%s518 + $0x5c] sm:$0xf] %v565
                  %v567 = vld [vmem:[%s517 + $0xc0] sm:$0xf]
                  %568 = vst [vmem:[%s518 + $0x60] sm:$0xf] %v567
                  %v569 = vld [vmem:[%s517 + $0xc8] sm:$0xf]
                  %570 = vst [vmem:[%s518 + $0x64] sm:$0xf] %v569
                  %v571 = vld [vmem:[%s517 + $0xd0] sm:$0xf]
                  %572 = vst [vmem:[%s518 + $0x68] sm:$0xf] %v571
                  %v573 = vld [vmem:[%s517 + $0xd8] sm:$0xf]
                  %574 = vst [vmem:[%s518 + $0x6c] sm:$0xf] %v573
                  %v575 = vld [vmem:[%s517 + $0xe0] sm:$0xf]
                  %576 = vst [vmem:[%s518 + $0x70] sm:$0xf] %v575
                  %v577 = vld [vmem:[%s517 + $0xe8] sm:$0xf]
                  %578 = vst [vmem:[%s518 + $0x74] sm:$0xf] %v577
                  %v579 = vld [vmem:[%s517 + $0xf0] sm:$0xf]
                  %580 = vst [vmem:[%s518 + $0x78] sm:$0xf] %v579
                  %v581 = vld [vmem:[%s517 + $0xf8] sm:$0xf]
                  %582 = vst [vmem:[%s518 + $0x7c] sm:$0xf] %v581
                  %v583 = vld [vmem:[%s517 + $0x100] sm:$0xf]
                  %584 = vst [vmem:[%s518 + $0x80] sm:$0xf] %v583
                  %v585 = vld [vmem:[%s517 + $0x108] sm:$0xf]
                  %586 = vst [vmem:[%s518 + $0x84] sm:$0xf] %v585
                  %v587 = vld [vmem:[%s517 + $0x110] sm:$0xf]
                  %588 = vst [vmem:[%s518 + $0x88] sm:$0xf] %v587
                  %v589 = vld [vmem:[%s517 + $0x118] sm:$0xf]
                  %590 = vst [vmem:[%s518 + $0x8c] sm:$0xf] %v589
                  %v591 = vld [vmem:[%s517 + $0x120] sm:$0xf]
                  %592 = vst [vmem:[%s518 + $0x90] sm:$0xf] %v591
                  %v593 = vld [vmem:[%s517 + $0x128] sm:$0xf]
                  %594 = vst [vmem:[%s518 + $0x94] sm:$0xf] %v593
                  %v595 = vld [vmem:[%s517 + $0x130] sm:$0xf]
                  %596 = vst [vmem:[%s518 + $0x98] sm:$0xf] %v595
                  %v597 = vld [vmem:[%s517 + $0x138] sm:$0xf]
                  %598 = vst [vmem:[%s518 + $0x9c] sm:$0xf] %v597
                  %v599 = vld [vmem:[%s517 + $0x140] sm:$0xf]
                  %600 = vst [vmem:[%s518 + $0xa0] sm:$0xf] %v599
                  %v601 = vld [vmem:[%s517 + $0x148] sm:$0xf]
                  %602 = vst [vmem:[%s518 + $0xa4] sm:$0xf] %v601
                  %v603 = vld [vmem:[%s517 + $0x150] sm:$0xf]
                  %604 = vst [vmem:[%s518 + $0xa8] sm:$0xf] %v603
                  %v605 = vld [vmem:[%s517 + $0x158] sm:$0xf]
                  %606 = vst [vmem:[%s518 + $0xac] sm:$0xf] %v605
                  %v607 = vld [vmem:[%s517 + $0x160] sm:$0xf]
                  %608 = vst [vmem:[%s518 + $0xb0] sm:$0xf] %v607
                  %v609 = vld [vmem:[%s517 + $0x168] sm:$0xf]
                  %610 = vst [vmem:[%s518 + $0xb4] sm:$0xf] %v609
                  %v611 = vld [vmem:[%s517 + $0x170] sm:$0xf]
                  %612 = vst [vmem:[%s518 + $0xb8] sm:$0xf] %v611
                  %v613 = vld [vmem:[%s517 + $0x178] sm:$0xf]
                  %614 = vst [vmem:[%s518 + $0xbc] sm:$0xf] %v613
                  %v615 = vld [vmem:[%s517 + $0x180] sm:$0xf]
                  %616 = vst [vmem:[%s518 + $0xc0] sm:$0xf] %v615
                  %v617 = vld [vmem:[%s517 + $0x188] sm:$0xf]
                  %618 = vst [vmem:[%s518 + $0xc4] sm:$0xf] %v617
                  %v619 = vld [vmem:[%s517 + $0x190] sm:$0xf]
                  %620 = vst [vmem:[%s518 + $0xc8] sm:$0xf] %v619
                  %v621 = vld [vmem:[%s517 + $0x198] sm:$0xf]
                  %622 = vst [vmem:[%s518 + $0xcc] sm:$0xf] %v621
                  %v623 = vld [vmem:[%s517 + $0x1a0] sm:$0xf]
                  %624 = vst [vmem:[%s518 + $0xd0] sm:$0xf] %v623
                  %v625 = vld [vmem:[%s517 + $0x1a8] sm:$0xf]
                  %626 = vst [vmem:[%s518 + $0xd4] sm:$0xf] %v625
                  %v627 = vld [vmem:[%s517 + $0x1b0] sm:$0xf]
                  %628 = vst [vmem:[%s518 + $0xd8] sm:$0xf] %v627
                  %v629 = vld [vmem:[%s517 + $0x1b8] sm:$0xf]
                  %630 = vst [vmem:[%s518 + $0xdc] sm:$0xf] %v629
                  %v631 = vld [vmem:[%s517 + $0x1c0] sm:$0xf]
                  %632 = vst [vmem:[%s518 + $0xe0] sm:$0xf] %v631
                  %v633 = vld [vmem:[%s517 + $0x1c8] sm:$0xf]
                  %634 = vst [vmem:[%s518 + $0xe4] sm:$0xf] %v633
                  %v635 = vld [vmem:[%s517 + $0x1d0] sm:$0xf]
                  %636 = vst [vmem:[%s518 + $0xe8] sm:$0xf] %v635
                  %v637 = vld [vmem:[%s517 + $0x1d8] sm:$0xf]
                  %638 = vst [vmem:[%s518 + $0xec] sm:$0xf] %v637
                  %v639 = vld [vmem:[%s517 + $0x1e0] sm:$0xf]
                  %640 = vst [vmem:[%s518 + $0xf0] sm:$0xf] %v639
                  %v641 = vld [vmem:[%s517 + $0x1e8] sm:$0xf]
                  %642 = vst [vmem:[%s518 + $0xf4] sm:$0xf] %v641
                  %v643 = vld [vmem:[%s517 + $0x1f0] sm:$0xf]
                  %644 = vst [vmem:[%s518 + $0xf8] sm:$0xf] %v643
                  %v645 = vld [vmem:[%s517 + $0x1f8] sm:$0xf]
                  %646 = vst [vmem:[%s518 + $0xfc] sm:$0xf] %v645
                  %v647 = vld [vmem:[%s517 + $0x200] sm:$0xf]
                  %648 = vst [vmem:[%s518 + $0x100] sm:$0xf] %v647
                  %v649 = vld [vmem:[%s517 + $0x208] sm:$0xf]
                  %650 = vst [vmem:[%s518 + $0x104] sm:$0xf] %v649
                  %v651 = vld [vmem:[%s517 + $0x210] sm:$0xf]
                  %652 = vst [vmem:[%s518 + $0x108] sm:$0xf] %v651
                  %v653 = vld [vmem:[%s517 + $0x218] sm:$0xf]
                  %654 = vst [vmem:[%s518 + $0x10c] sm:$0xf] %v653
                  %v655 = vld [vmem:[%s517 + $0x220] sm:$0xf]
                  %656 = vst [vmem:[%s518 + $0x110] sm:$0xf] %v655
                  %v657 = vld [vmem:[%s517 + $0x228] sm:$0xf]
                  %658 = vst [vmem:[%s518 + $0x114] sm:$0xf] %v657
                  %v659 = vld [vmem:[%s517 + $0x230] sm:$0xf]
                  %660 = vst [vmem:[%s518 + $0x118] sm:$0xf] %v659
                  %v661 = vld [vmem:[%s517 + $0x238] sm:$0xf]
                  %662 = vst [vmem:[%s518 + $0x11c] sm:$0xf] %v661
                  %v663 = vld [vmem:[%s517 + $0x240] sm:$0xf]
                  %664 = vst [vmem:[%s518 + $0x120] sm:$0xf] %v663
                  %v665 = vld [vmem:[%s517 + $0x248] sm:$0xf]
                  %666 = vst [vmem:[%s518 + $0x124] sm:$0xf] %v665
                  %v667 = vld [vmem:[%s517 + $0x250] sm:$0xf]
                  %668 = vst [vmem:[%s518 + $0x128] sm:$0xf] %v667
                  %v669 = vld [vmem:[%s517 + $0x258] sm:$0xf]
                  %670 = vst [vmem:[%s518 + $0x12c] sm:$0xf] %v669
                  %v671 = vld [vmem:[%s517 + $0x260] sm:$0xf]
                  %672 = vst [vmem:[%s518 + $0x130] sm:$0xf] %v671
                  %v673 = vld [vmem:[%s517 + $0x268] sm:$0xf]
                  %674 = vst [vmem:[%s518 + $0x134] sm:$0xf] %v673
                  %v675 = vld [vmem:[%s517 + $0x270] sm:$0xf]
                  %676 = vst [vmem:[%s518 + $0x138] sm:$0xf] %v675
                  %v677 = vld [vmem:[%s517 + $0x278] sm:$0xf]
                  %678 = vst [vmem:[%s518 + $0x13c] sm:$0xf] %v677
                  %v679 = vld [vmem:[%s517 + $0x280] sm:$0xf]
                  %680 = vst [vmem:[%s518 + $0x140] sm:$0xf] %v679
                  %v681 = vld [vmem:[%s517 + $0x288] sm:$0xf]
                  %682 = vst [vmem:[%s518 + $0x144] sm:$0xf] %v681
                  %v683 = vld [vmem:[%s517 + $0x290] sm:$0xf]
                  %684 = vst [vmem:[%s518 + $0x148] sm:$0xf] %v683
                  %v685 = vld [vmem:[%s517 + $0x298] sm:$0xf]
                  %686 = vst [vmem:[%s518 + $0x14c] sm:$0xf] %v685
                  %v687 = vld [vmem:[%s517 + $0x2a0] sm:$0xf]
                  %688 = vst [vmem:[%s518 + $0x150] sm:$0xf] %v687
                  %v689 = vld [vmem:[%s517 + $0x2a8] sm:$0xf]
                  %690 = vst [vmem:[%s518 + $0x154] sm:$0xf] %v689
                  %v691 = vld [vmem:[%s517 + $0x2b0] sm:$0xf]
                  %692 = vst [vmem:[%s518 + $0x158] sm:$0xf] %v691
                  %v693 = vld [vmem:[%s517 + $0x2b8] sm:$0xf]
                  %694 = vst [vmem:[%s518 + $0x15c] sm:$0xf] %v693
                  %v695 = vld [vmem:[%s517 + $0x2c0] sm:$0xf]
                  %696 = vst [vmem:[%s518 + $0x160] sm:$0xf] %v695
                  %v697 = vld [vmem:[%s517 + $0x2c8] sm:$0xf]
                  %698 = vst [vmem:[%s518 + $0x164] sm:$0xf] %v697
                  %v699 = vld [vmem:[%s517 + $0x2d0] sm:$0xf]
                  %700 = vst [vmem:[%s518 + $0x168] sm:$0xf] %v699
                  %v701 = vld [vmem:[%s517 + $0x2d8] sm:$0xf]
                  %702 = vst [vmem:[%s518 + $0x16c] sm:$0xf] %v701
                  %v703 = vld [vmem:[%s517 + $0x2e0] sm:$0xf]
                  %704 = vst [vmem:[%s518 + $0x170] sm:$0xf] %v703
                  %v705 = vld [vmem:[%s517 + $0x2e8] sm:$0xf]
                  %706 = vst [vmem:[%s518 + $0x174] sm:$0xf] %v705
                  %v707 = vld [vmem:[%s517 + $0x2f0] sm:$0xf]
                  %708 = vst [vmem:[%s518 + $0x178] sm:$0xf] %v707
                  %v709 = vld [vmem:[%s517 + $0x2f8] sm:$0xf]
                  %710 = vst [vmem:[%s518 + $0x17c] sm:$0xf] %v709
                  %v711 = vld [vmem:[%s517 + $0x300] sm:$0xf]
                  %712 = vst [vmem:[%s518 + $0x180] sm:$0xf] %v711
                  %v713 = vld [vmem:[%s517 + $0x308] sm:$0xf]
                  %714 = vst [vmem:[%s518 + $0x184] sm:$0xf] %v713
                  %v715 = vld [vmem:[%s517 + $0x310] sm:$0xf]
                  %716 = vst [vmem:[%s518 + $0x188] sm:$0xf] %v715
                  %v717 = vld [vmem:[%s517 + $0x318] sm:$0xf]
                  %718 = vst [vmem:[%s518 + $0x18c] sm:$0xf] %v717
                  %v719 = vld [vmem:[%s517 + $0x320] sm:$0xf]
                  %720 = vst [vmem:[%s518 + $0x190] sm:$0xf] %v719
                  %v721 = vld [vmem:[%s517 + $0x328] sm:$0xf]
                  %722 = vst [vmem:[%s518 + $0x194] sm:$0xf] %v721
                  %v723 = vld [vmem:[%s517 + $0x330] sm:$0xf]
                  %724 = vst [vmem:[%s518 + $0x198] sm:$0xf] %v723
                  %v725 = vld [vmem:[%s517 + $0x338] sm:$0xf]
                  %726 = vst [vmem:[%s518 + $0x19c] sm:$0xf] %v725
                  %v727 = vld [vmem:[%s517 + $0x340] sm:$0xf]
                  %728 = vst [vmem:[%s518 + $0x1a0] sm:$0xf] %v727
                  %v729 = vld [vmem:[%s517 + $0x348] sm:$0xf]
                  %730 = vst [vmem:[%s518 + $0x1a4] sm:$0xf] %v729
                  %v731 = vld [vmem:[%s517 + $0x350] sm:$0xf]
                  %732 = vst [vmem:[%s518 + $0x1a8] sm:$0xf] %v731
                  %v733 = vld [vmem:[%s517 + $0x358] sm:$0xf]
                  %734 = vst [vmem:[%s518 + $0x1ac] sm:$0xf] %v733
                  %v735 = vld [vmem:[%s517 + $0x360] sm:$0xf]
                  %736 = vst [vmem:[%s518 + $0x1b0] sm:$0xf] %v735
                  %v737 = vld [vmem:[%s517 + $0x368] sm:$0xf]
                  %738 = vst [vmem:[%s518 + $0x1b4] sm:$0xf] %v737
                  %v739 = vld [vmem:[%s517 + $0x370] sm:$0xf]
                  %740 = vst [vmem:[%s518 + $0x1b8] sm:$0xf] %v739
                  %v741 = vld [vmem:[%s517 + $0x378] sm:$0xf]
                  %742 = vst [vmem:[%s518 + $0x1bc] sm:$0xf] %v741
                  %v743 = vld [vmem:[%s517 + $0x380] sm:$0xf]
                  %744 = vst [vmem:[%s518 + $0x1c0] sm:$0xf] %v743
                  %v745 = vld [vmem:[%s517 + $0x388] sm:$0xf]
                  %746 = vst [vmem:[%s518 + $0x1c4] sm:$0xf] %v745
                  %v747 = vld [vmem:[%s517 + $0x390] sm:$0xf]
                  %748 = vst [vmem:[%s518 + $0x1c8] sm:$0xf] %v747
                  %v749 = vld [vmem:[%s517 + $0x398] sm:$0xf]
                  %750 = vst [vmem:[%s518 + $0x1cc] sm:$0xf] %v749
                  %v751 = vld [vmem:[%s517 + $0x3a0] sm:$0xf]
                  %752 = vst [vmem:[%s518 + $0x1d0] sm:$0xf] %v751
                  %v753 = vld [vmem:[%s517 + $0x3a8] sm:$0xf]
                  %754 = vst [vmem:[%s518 + $0x1d4] sm:$0xf] %v753
                  %v755 = vld [vmem:[%s517 + $0x3b0] sm:$0xf]
                  %756 = vst [vmem:[%s518 + $0x1d8] sm:$0xf] %v755
                  %v757 = vld [vmem:[%s517 + $0x3b8] sm:$0xf]
                  %758 = vst [vmem:[%s518 + $0x1dc] sm:$0xf] %v757
                  %v759 = vld [vmem:[%s517 + $0x3c0] sm:$0xf]
                  %760 = vst [vmem:[%s518 + $0x1e0] sm:$0xf] %v759
                  %v761 = vld [vmem:[%s517 + $0x3c8] sm:$0xf]
                  %762 = vst [vmem:[%s518 + $0x1e4] sm:$0xf] %v761
                  %v763 = vld [vmem:[%s517 + $0x3d0] sm:$0xf]
                  %764 = vst [vmem:[%s518 + $0x1e8] sm:$0xf] %v763
                  %v765 = vld [vmem:[%s517 + $0x3d8] sm:$0xf]
                  %766 = vst [vmem:[%s518 + $0x1ec] sm:$0xf] %v765
                  %v767 = vld [vmem:[%s517 + $0x3e0] sm:$0xf]
                  %768 = vst [vmem:[%s518 + $0x1f0] sm:$0xf] %v767
                  %v769 = vld [vmem:[%s517 + $0x3e8] sm:$0xf]
                  %770 = vst [vmem:[%s518 + $0x1f4] sm:$0xf] %v769
                  %v771 = vld [vmem:[%s517 + $0x3f0] sm:$0xf]
                  %772 = vst [vmem:[%s518 + $0x1f8] sm:$0xf] %v771
                  %v773 = vld [vmem:[%s517 + $0x3f8] sm:$0xf]
                  %774 = vst [vmem:[%s518 + $0x1fc] sm:$0xf] %v773
                  %v775 = vld [vmem:[%s517 + $0x400] sm:$0xf]
                  %776 = vst [vmem:[%s518 + $0x200] sm:$0xf] %v775
                  %v777 = vld [vmem:[%s517 + $0x408] sm:$0xf]
                  %778 = vst [vmem:[%s518 + $0x204] sm:$0xf] %v777
                  %v779 = vld [vmem:[%s517 + $0x410] sm:$0xf]
                  %780 = vst [vmem:[%s518 + $0x208] sm:$0xf] %v779
                  %v781 = vld [vmem:[%s517 + $0x418] sm:$0xf]
                  %782 = vst [vmem:[%s518 + $0x20c] sm:$0xf] %v781
                  %v783 = vld [vmem:[%s517 + $0x420] sm:$0xf]
                  %784 = vst [vmem:[%s518 + $0x210] sm:$0xf] %v783
                  %v785 = vld [vmem:[%s517 + $0x428] sm:$0xf]
                  %786 = vst [vmem:[%s518 + $0x214] sm:$0xf] %v785
                  %v787 = vld [vmem:[%s517 + $0x430] sm:$0xf]
                  %788 = vst [vmem:[%s518 + $0x218] sm:$0xf] %v787
                  %v789 = vld [vmem:[%s517 + $0x438] sm:$0xf]
                  %790 = vst [vmem:[%s518 + $0x21c] sm:$0xf] %v789
                  %v791 = vld [vmem:[%s517 + $0x440] sm:$0xf]
                  %792 = vst [vmem:[%s518 + $0x220] sm:$0xf] %v791
                  %v793 = vld [vmem:[%s517 + $0x448] sm:$0xf]
                  %794 = vst [vmem:[%s518 + $0x224] sm:$0xf] %v793
                  %v795 = vld [vmem:[%s517 + $0x450] sm:$0xf]
                  %796 = vst [vmem:[%s518 + $0x228] sm:$0xf] %v795
                  %v797 = vld [vmem:[%s517 + $0x458] sm:$0xf]
                  %798 = vst [vmem:[%s518 + $0x22c] sm:$0xf] %v797
                  %v799 = vld [vmem:[%s517 + $0x460] sm:$0xf]
                  %800 = vst [vmem:[%s518 + $0x230] sm:$0xf] %v799
                  %v801 = vld [vmem:[%s517 + $0x468] sm:$0xf]
                  %802 = vst [vmem:[%s518 + $0x234] sm:$0xf] %v801
                  %v803 = vld [vmem:[%s517 + $0x470] sm:$0xf]
                  %804 = vst [vmem:[%s518 + $0x238] sm:$0xf] %v803
                  %v805 = vld [vmem:[%s517 + $0x478] sm:$0xf]
                  %806 = vst [vmem:[%s518 + $0x23c] sm:$0xf] %v805
                $region59: #{generator_forward.11} parent=46 // loop_footer
                  %s516 = sadd.s32 1, %s512
                $region60: #{generator_forward.11} parent=46 // loop_footer_branch
                  %511 = sbr.rel target = $region56
                $region61: #{generator_forward.11} parent=46 // loop_exit
                  _
              $region47: #{generator_forward.11} parent=31 // pred_fallthru
                _
            $region32: #{generator_forward.11} parent=27 // pred_fallthru
              _
            // Predicated region
            $region33: #{generator_forward.11} parent=27 // pred_check
              _
            $region34: #{generator_forward.11} parent=27 // pred_check_branch
              %202 = sbr.rel (0) target = $region36
            $region35: #{generator_forward.11} parent=27 // pred_region
              loop: start=0, step=1, limit=1
              $region37: #{generator_forward.11} parent=35 // loop_pre_header
                _
              $region38: #{generator_forward.11} parent=35 // loop_header
                %s205 = sphi 0, %s209
                %p206 = scmp.ge.s32.totalorder %s205, 1
                %s210 = sphi %s196, %s196
                %s211 = sphi %s194, %s194
              $region39: #{generator_forward.11} parent=35 // loop_header_branch
                %208 = sbr.rel (%p206) target = $region43
              $region40: #{generator_forward.11} parent=35 // loop_body
                %v212 = vld [vmem:[%s210] sm:$0xf]
                %213 = vst [vmem:[%s211] sm:$0xf] %v212
                %v214 = vld [vmem:[%s210 + $0x8] sm:$0xf]
                %215 = vst [vmem:[%s211 + $0x4] sm:$0xf] %v214
                %v216 = vld [vmem:[%s210 + $0x10] sm:$0xf]
                %217 = vst [vmem:[%s211 + $0x8] sm:$0xf] %v216
                %v218 = vld [vmem:[%s210 + $0x18] sm:$0xf]
                %219 = vst [vmem:[%s211 + $0xc] sm:$0xf] %v218
                %v220 = vld [vmem:[%s210 + $0x20] sm:$0xf]
                %221 = vst [vmem:[%s211 + $0x10] sm:$0xf] %v220
                %v222 = vld [vmem:[%s210 + $0x28] sm:$0xf]
                %223 = vst [vmem:[%s211 + $0x14] sm:$0xf] %v222
                %v224 = vld [vmem:[%s210 + $0x30] sm:$0xf]
                %225 = vst [vmem:[%s211 + $0x18] sm:$0xf] %v224
                %v226 = vld [vmem:[%s210 + $0x38] sm:$0xf]
                %227 = vst [vmem:[%s211 + $0x1c] sm:$0xf] %v226
                %v228 = vld [vmem:[%s210 + $0x40] sm:$0xf]
                %229 = vst [vmem:[%s211 + $0x20] sm:$0xf] %v228
                %v230 = vld [vmem:[%s210 + $0x48] sm:$0xf]
                %231 = vst [vmem:[%s211 + $0x24] sm:$0xf] %v230
                %v232 = vld [vmem:[%s210 + $0x50] sm:$0xf]
                %233 = vst [vmem:[%s211 + $0x28] sm:$0xf] %v232
                %v234 = vld [vmem:[%s210 + $0x58] sm:$0xf]
                %235 = vst [vmem:[%s211 + $0x2c] sm:$0xf] %v234
                %v236 = vld [vmem:[%s210 + $0x60] sm:$0xf]
                %237 = vst [vmem:[%s211 + $0x30] sm:$0xf] %v236
                %v238 = vld [vmem:[%s210 + $0x68] sm:$0xf]
                %239 = vst [vmem:[%s211 + $0x34] sm:$0xf] %v238
                %v240 = vld [vmem:[%s210 + $0x70] sm:$0xf]
                %241 = vst [vmem:[%s211 + $0x38] sm:$0xf] %v240
                %v242 = vld [vmem:[%s210 + $0x78] sm:$0xf]
                %243 = vst [vmem:[%s211 + $0x3c] sm:$0xf] %v242
                %v244 = vld [vmem:[%s210 + $0x80] sm:$0xf]
                %245 = vst [vmem:[%s211 + $0x40] sm:$0xf] %v244
                %v246 = vld [vmem:[%s210 + $0x88] sm:$0xf]
                %247 = vst [vmem:[%s211 + $0x44] sm:$0xf] %v246
                %v248 = vld [vmem:[%s210 + $0x90] sm:$0xf]
                %249 = vst [vmem:[%s211 + $0x48] sm:$0xf] %v248
                %v250 = vld [vmem:[%s210 + $0x98] sm:$0xf]
                %251 = vst [vmem:[%s211 + $0x4c] sm:$0xf] %v250
                %v252 = vld [vmem:[%s210 + $0xa0] sm:$0xf]
                %253 = vst [vmem:[%s211 + $0x50] sm:$0xf] %v252
                %v254 = vld [vmem:[%s210 + $0xa8] sm:$0xf]
                %255 = vst [vmem:[%s211 + $0x54] sm:$0xf] %v254
                %v256 = vld [vmem:[%s210 + $0xb0] sm:$0xf]
                %257 = vst [vmem:[%s211 + $0x58] sm:$0xf] %v256
                %v258 = vld [vmem:[%s210 + $0xb8] sm:$0xf]
                %259 = vst [vmem:[%s211 + $0x5c] sm:$0xf] %v258
                %v260 = vld [vmem:[%s210 + $0xc0] sm:$0xf]
                %261 = vst [vmem:[%s211 + $0x60] sm:$0xf] %v260
                %v262 = vld [vmem:[%s210 + $0xc8] sm:$0xf]
                %263 = vst [vmem:[%s211 + $0x64] sm:$0xf] %v262
                %v264 = vld [vmem:[%s210 + $0xd0] sm:$0xf]
                %265 = vst [vmem:[%s211 + $0x68] sm:$0xf] %v264
                %v266 = vld [vmem:[%s210 + $0xd8] sm:$0xf]
                %267 = vst [vmem:[%s211 + $0x6c] sm:$0xf] %v266
                %v268 = vld [vmem:[%s210 + $0xe0] sm:$0xf]
                %269 = vst [vmem:[%s211 + $0x70] sm:$0xf] %v268
                %v270 = vld [vmem:[%s210 + $0xe8] sm:$0xf]
                %271 = vst [vmem:[%s211 + $0x74] sm:$0xf] %v270
                %v272 = vld [vmem:[%s210 + $0xf0] sm:$0xf]
                %273 = vst [vmem:[%s211 + $0x78] sm:$0xf] %v272
                %v274 = vld [vmem:[%s210 + $0xf8] sm:$0xf]
                %275 = vst [vmem:[%s211 + $0x7c] sm:$0xf] %v274
                %v276 = vld [vmem:[%s210 + $0x100] sm:$0xf]
                %277 = vst [vmem:[%s211 + $0x80] sm:$0xf] %v276
                %v278 = vld [vmem:[%s210 + $0x108] sm:$0xf]
                %279 = vst [vmem:[%s211 + $0x84] sm:$0xf] %v278
                %v280 = vld [vmem:[%s210 + $0x110] sm:$0xf]
                %281 = vst [vmem:[%s211 + $0x88] sm:$0xf] %v280
                %v282 = vld [vmem:[%s210 + $0x118] sm:$0xf]
                %283 = vst [vmem:[%s211 + $0x8c] sm:$0xf] %v282
                %v284 = vld [vmem:[%s210 + $0x120] sm:$0xf]
                %285 = vst [vmem:[%s211 + $0x90] sm:$0xf] %v284
                %v286 = vld [vmem:[%s210 + $0x128] sm:$0xf]
                %287 = vst [vmem:[%s211 + $0x94] sm:$0xf] %v286
                %v288 = vld [vmem:[%s210 + $0x130] sm:$0xf]
                %289 = vst [vmem:[%s211 + $0x98] sm:$0xf] %v288
                %v290 = vld [vmem:[%s210 + $0x138] sm:$0xf]
                %291 = vst [vmem:[%s211 + $0x9c] sm:$0xf] %v290
                %v292 = vld [vmem:[%s210 + $0x140] sm:$0xf]
                %293 = vst [vmem:[%s211 + $0xa0] sm:$0xf] %v292
                %v294 = vld [vmem:[%s210 + $0x148] sm:$0xf]
                %295 = vst [vmem:[%s211 + $0xa4] sm:$0xf] %v294
                %v296 = vld [vmem:[%s210 + $0x150] sm:$0xf]
                %297 = vst [vmem:[%s211 + $0xa8] sm:$0xf] %v296
                %v298 = vld [vmem:[%s210 + $0x158] sm:$0xf]
                %299 = vst [vmem:[%s211 + $0xac] sm:$0xf] %v298
                %v300 = vld [vmem:[%s210 + $0x160] sm:$0xf]
                %301 = vst [vmem:[%s211 + $0xb0] sm:$0xf] %v300
                %v302 = vld [vmem:[%s210 + $0x168] sm:$0xf]
                %303 = vst [vmem:[%s211 + $0xb4] sm:$0xf] %v302
                %v304 = vld [vmem:[%s210 + $0x170] sm:$0xf]
                %305 = vst [vmem:[%s211 + $0xb8] sm:$0xf] %v304
                %v306 = vld [vmem:[%s210 + $0x178] sm:$0xf]
                %307 = vst [vmem:[%s211 + $0xbc] sm:$0xf] %v306
                %v308 = vld [vmem:[%s210 + $0x180] sm:$0xf]
                %309 = vst [vmem:[%s211 + $0xc0] sm:$0xf] %v308
                %v310 = vld [vmem:[%s210 + $0x188] sm:$0xf]
                %311 = vst [vmem:[%s211 + $0xc4] sm:$0xf] %v310
                %v312 = vld [vmem:[%s210 + $0x190] sm:$0xf]
                %313 = vst [vmem:[%s211 + $0xc8] sm:$0xf] %v312
                %v314 = vld [vmem:[%s210 + $0x198] sm:$0xf]
                %315 = vst [vmem:[%s211 + $0xcc] sm:$0xf] %v314
                %v316 = vld [vmem:[%s210 + $0x1a0] sm:$0xf]
                %317 = vst [vmem:[%s211 + $0xd0] sm:$0xf] %v316
                %v318 = vld [vmem:[%s210 + $0x1a8] sm:$0xf]
                %319 = vst [vmem:[%s211 + $0xd4] sm:$0xf] %v318
                %v320 = vld [vmem:[%s210 + $0x1b0] sm:$0xf]
                %321 = vst [vmem:[%s211 + $0xd8] sm:$0xf] %v320
                %v322 = vld [vmem:[%s210 + $0x1b8] sm:$0xf]
                %323 = vst [vmem:[%s211 + $0xdc] sm:$0xf] %v322
                %v324 = vld [vmem:[%s210 + $0x1c0] sm:$0xf]
                %325 = vst [vmem:[%s211 + $0xe0] sm:$0xf] %v324
                %v326 = vld [vmem:[%s210 + $0x1c8] sm:$0xf]
                %327 = vst [vmem:[%s211 + $0xe4] sm:$0xf] %v326
                %v328 = vld [vmem:[%s210 + $0x1d0] sm:$0xf]
                %329 = vst [vmem:[%s211 + $0xe8] sm:$0xf] %v328
                %v330 = vld [vmem:[%s210 + $0x1d8] sm:$0xf]
                %331 = vst [vmem:[%s211 + $0xec] sm:$0xf] %v330
                %v332 = vld [vmem:[%s210 + $0x1e0] sm:$0xf]
                %333 = vst [vmem:[%s211 + $0xf0] sm:$0xf] %v332
                %v334 = vld [vmem:[%s210 + $0x1e8] sm:$0xf]
                %335 = vst [vmem:[%s211 + $0xf4] sm:$0xf] %v334
                %v336 = vld [vmem:[%s210 + $0x1f0] sm:$0xf]
                %337 = vst [vmem:[%s211 + $0xf8] sm:$0xf] %v336
                %v338 = vld [vmem:[%s210 + $0x1f8] sm:$0xf]
                %339 = vst [vmem:[%s211 + $0xfc] sm:$0xf] %v338
                %v340 = vld [vmem:[%s210 + $0x200] sm:$0xf]
                %341 = vst [vmem:[%s211 + $0x100] sm:$0xf] %v340
                %v342 = vld [vmem:[%s210 + $0x208] sm:$0xf]
                %343 = vst [vmem:[%s211 + $0x104] sm:$0xf] %v342
                %v344 = vld [vmem:[%s210 + $0x210] sm:$0xf]
                %345 = vst [vmem:[%s211 + $0x108] sm:$0xf] %v344
                %v346 = vld [vmem:[%s210 + $0x218] sm:$0xf]
                %347 = vst [vmem:[%s211 + $0x10c] sm:$0xf] %v346
                %v348 = vld [vmem:[%s210 + $0x220] sm:$0xf]
                %349 = vst [vmem:[%s211 + $0x110] sm:$0xf] %v348
                %v350 = vld [vmem:[%s210 + $0x228] sm:$0xf]
                %351 = vst [vmem:[%s211 + $0x114] sm:$0xf] %v350
                %v352 = vld [vmem:[%s210 + $0x230] sm:$0xf]
                %353 = vst [vmem:[%s211 + $0x118] sm:$0xf] %v352
                %v354 = vld [vmem:[%s210 + $0x238] sm:$0xf]
                %355 = vst [vmem:[%s211 + $0x11c] sm:$0xf] %v354
                %v356 = vld [vmem:[%s210 + $0x240] sm:$0xf]
                %357 = vst [vmem:[%s211 + $0x120] sm:$0xf] %v356
                %v358 = vld [vmem:[%s210 + $0x248] sm:$0xf]
                %359 = vst [vmem:[%s211 + $0x124] sm:$0xf] %v358
                %v360 = vld [vmem:[%s210 + $0x250] sm:$0xf]
                %361 = vst [vmem:[%s211 + $0x128] sm:$0xf] %v360
                %v362 = vld [vmem:[%s210 + $0x258] sm:$0xf]
                %363 = vst [vmem:[%s211 + $0x12c] sm:$0xf] %v362
                %v364 = vld [vmem:[%s210 + $0x260] sm:$0xf]
                %365 = vst [vmem:[%s211 + $0x130] sm:$0xf] %v364
                %v366 = vld [vmem:[%s210 + $0x268] sm:$0xf]
                %367 = vst [vmem:[%s211 + $0x134] sm:$0xf] %v366
                %v368 = vld [vmem:[%s210 + $0x270] sm:$0xf]
                %369 = vst [vmem:[%s211 + $0x138] sm:$0xf] %v368
                %v370 = vld [vmem:[%s210 + $0x278] sm:$0xf]
                %371 = vst [vmem:[%s211 + $0x13c] sm:$0xf] %v370
                %v372 = vld [vmem:[%s210 + $0x280] sm:$0xf]
                %373 = vst [vmem:[%s211 + $0x140] sm:$0xf] %v372
                %v374 = vld [vmem:[%s210 + $0x288] sm:$0xf]
                %375 = vst [vmem:[%s211 + $0x144] sm:$0xf] %v374
                %v376 = vld [vmem:[%s210 + $0x290] sm:$0xf]
                %377 = vst [vmem:[%s211 + $0x148] sm:$0xf] %v376
                %v378 = vld [vmem:[%s210 + $0x298] sm:$0xf]
                %379 = vst [vmem:[%s211 + $0x14c] sm:$0xf] %v378
                %v380 = vld [vmem:[%s210 + $0x2a0] sm:$0xf]
                %381 = vst [vmem:[%s211 + $0x150] sm:$0xf] %v380
                %v382 = vld [vmem:[%s210 + $0x2a8] sm:$0xf]
                %383 = vst [vmem:[%s211 + $0x154] sm:$0xf] %v382
                %v384 = vld [vmem:[%s210 + $0x2b0] sm:$0xf]
                %385 = vst [vmem:[%s211 + $0x158] sm:$0xf] %v384
                %v386 = vld [vmem:[%s210 + $0x2b8] sm:$0xf]
                %387 = vst [vmem:[%s211 + $0x15c] sm:$0xf] %v386
                %v388 = vld [vmem:[%s210 + $0x2c0] sm:$0xf]
                %389 = vst [vmem:[%s211 + $0x160] sm:$0xf] %v388
                %v390 = vld [vmem:[%s210 + $0x2c8] sm:$0xf]
                %391 = vst [vmem:[%s211 + $0x164] sm:$0xf] %v390
                %v392 = vld [vmem:[%s210 + $0x2d0] sm:$0xf]
                %393 = vst [vmem:[%s211 + $0x168] sm:$0xf] %v392
                %v394 = vld [vmem:[%s210 + $0x2d8] sm:$0xf]
                %395 = vst [vmem:[%s211 + $0x16c] sm:$0xf] %v394
                %v396 = vld [vmem:[%s210 + $0x2e0] sm:$0xf]
                %397 = vst [vmem:[%s211 + $0x170] sm:$0xf] %v396
                %v398 = vld [vmem:[%s210 + $0x2e8] sm:$0xf]
                %399 = vst [vmem:[%s211 + $0x174] sm:$0xf] %v398
                %v400 = vld [vmem:[%s210 + $0x2f0] sm:$0xf]
                %401 = vst [vmem:[%s211 + $0x178] sm:$0xf] %v400
                %v402 = vld [vmem:[%s210 + $0x2f8] sm:$0xf]
                %403 = vst [vmem:[%s211 + $0x17c] sm:$0xf] %v402
                %v404 = vld [vmem:[%s210 + $0x300] sm:$0xf]
                %405 = vst [vmem:[%s211 + $0x180] sm:$0xf] %v404
                %v406 = vld [vmem:[%s210 + $0x308] sm:$0xf]
                %407 = vst [vmem:[%s211 + $0x184] sm:$0xf] %v406
                %v408 = vld [vmem:[%s210 + $0x310] sm:$0xf]
                %409 = vst [vmem:[%s211 + $0x188] sm:$0xf] %v408
                %v410 = vld [vmem:[%s210 + $0x318] sm:$0xf]
                %411 = vst [vmem:[%s211 + $0x18c] sm:$0xf] %v410
                %v412 = vld [vmem:[%s210 + $0x320] sm:$0xf]
                %413 = vst [vmem:[%s211 + $0x190] sm:$0xf] %v412
                %v414 = vld [vmem:[%s210 + $0x328] sm:$0xf]
                %415 = vst [vmem:[%s211 + $0x194] sm:$0xf] %v414
                %v416 = vld [vmem:[%s210 + $0x330] sm:$0xf]
                %417 = vst [vmem:[%s211 + $0x198] sm:$0xf] %v416
                %v418 = vld [vmem:[%s210 + $0x338] sm:$0xf]
                %419 = vst [vmem:[%s211 + $0x19c] sm:$0xf] %v418
                %v420 = vld [vmem:[%s210 + $0x340] sm:$0xf]
                %421 = vst [vmem:[%s211 + $0x1a0] sm:$0xf] %v420
                %v422 = vld [vmem:[%s210 + $0x348] sm:$0xf]
                %423 = vst [vmem:[%s211 + $0x1a4] sm:$0xf] %v422
                %v424 = vld [vmem:[%s210 + $0x350] sm:$0xf]
                %425 = vst [vmem:[%s211 + $0x1a8] sm:$0xf] %v424
                %v426 = vld [vmem:[%s210 + $0x358] sm:$0xf]
                %427 = vst [vmem:[%s211 + $0x1ac] sm:$0xf] %v426
                %v428 = vld [vmem:[%s210 + $0x360] sm:$0xf]
                %429 = vst [vmem:[%s211 + $0x1b0] sm:$0xf] %v428
                %v430 = vld [vmem:[%s210 + $0x368] sm:$0xf]
                %431 = vst [vmem:[%s211 + $0x1b4] sm:$0xf] %v430
                %v432 = vld [vmem:[%s210 + $0x370] sm:$0xf]
                %433 = vst [vmem:[%s211 + $0x1b8] sm:$0xf] %v432
                %v434 = vld [vmem:[%s210 + $0x378] sm:$0xf]
                %435 = vst [vmem:[%s211 + $0x1bc] sm:$0xf] %v434
                %v436 = vld [vmem:[%s210 + $0x380] sm:$0xf]
                %437 = vst [vmem:[%s211 + $0x1c0] sm:$0xf] %v436
                %v438 = vld [vmem:[%s210 + $0x388] sm:$0xf]
                %439 = vst [vmem:[%s211 + $0x1c4] sm:$0xf] %v438
                %v440 = vld [vmem:[%s210 + $0x390] sm:$0xf]
                %441 = vst [vmem:[%s211 + $0x1c8] sm:$0xf] %v440
                %v442 = vld [vmem:[%s210 + $0x398] sm:$0xf]
                %443 = vst [vmem:[%s211 + $0x1cc] sm:$0xf] %v442
                %v444 = vld [vmem:[%s210 + $0x3a0] sm:$0xf]
                %445 = vst [vmem:[%s211 + $0x1d0] sm:$0xf] %v444
                %v446 = vld [vmem:[%s210 + $0x3a8] sm:$0xf]
                %447 = vst [vmem:[%s211 + $0x1d4] sm:$0xf] %v446
                %v448 = vld [vmem:[%s210 + $0x3b0] sm:$0xf]
                %449 = vst [vmem:[%s211 + $0x1d8] sm:$0xf] %v448
                %v450 = vld [vmem:[%s210 + $0x3b8] sm:$0xf]
                %451 = vst [vmem:[%s211 + $0x1dc] sm:$0xf] %v450
                %v452 = vld [vmem:[%s210 + $0x3c0] sm:$0xf]
                %453 = vst [vmem:[%s211 + $0x1e0] sm:$0xf] %v452
                %v454 = vld [vmem:[%s210 + $0x3c8] sm:$0xf]
                %455 = vst [vmem:[%s211 + $0x1e4] sm:$0xf] %v454
                %v456 = vld [vmem:[%s210 + $0x3d0] sm:$0xf]
                %457 = vst [vmem:[%s211 + $0x1e8] sm:$0xf] %v456
                %v458 = vld [vmem:[%s210 + $0x3d8] sm:$0xf]
                %459 = vst [vmem:[%s211 + $0x1ec] sm:$0xf] %v458
                %v460 = vld [vmem:[%s210 + $0x3e0] sm:$0xf]
                %461 = vst [vmem:[%s211 + $0x1f0] sm:$0xf] %v460
                %v462 = vld [vmem:[%s210 + $0x3e8] sm:$0xf]
                %463 = vst [vmem:[%s211 + $0x1f4] sm:$0xf] %v462
                %v464 = vld [vmem:[%s210 + $0x3f0] sm:$0xf]
                %465 = vst [vmem:[%s211 + $0x1f8] sm:$0xf] %v464
                %v466 = vld [vmem:[%s210 + $0x3f8] sm:$0xf]
                %467 = vst [vmem:[%s211 + $0x1fc] sm:$0xf] %v466
                %v468 = vld [vmem:[%s210 + $0x400] sm:$0xf]
                %469 = vst [vmem:[%s211 + $0x200] sm:$0xf] %v468
                %v470 = vld [vmem:[%s210 + $0x408] sm:$0xf]
                %471 = vst [vmem:[%s211 + $0x204] sm:$0xf] %v470
                %v472 = vld [vmem:[%s210 + $0x410] sm:$0xf]
                %473 = vst [vmem:[%s211 + $0x208] sm:$0xf] %v472
                %v474 = vld [vmem:[%s210 + $0x418] sm:$0xf]
                %475 = vst [vmem:[%s211 + $0x20c] sm:$0xf] %v474
                %v476 = vld [vmem:[%s210 + $0x420] sm:$0xf]
                %477 = vst [vmem:[%s211 + $0x210] sm:$0xf] %v476
                %v478 = vld [vmem:[%s210 + $0x428] sm:$0xf]
                %479 = vst [vmem:[%s211 + $0x214] sm:$0xf] %v478
                %v480 = vld [vmem:[%s210 + $0x430] sm:$0xf]
                %481 = vst [vmem:[%s211 + $0x218] sm:$0xf] %v480
                %v482 = vld [vmem:[%s210 + $0x438] sm:$0xf]
                %483 = vst [vmem:[%s211 + $0x21c] sm:$0xf] %v482
                %v484 = vld [vmem:[%s210 + $0x440] sm:$0xf]
                %485 = vst [vmem:[%s211 + $0x220] sm:$0xf] %v484
                %v486 = vld [vmem:[%s210 + $0x448] sm:$0xf]
                %487 = vst [vmem:[%s211 + $0x224] sm:$0xf] %v486
                %v488 = vld [vmem:[%s210 + $0x450] sm:$0xf]
                %489 = vst [vmem:[%s211 + $0x228] sm:$0xf] %v488
                %v490 = vld [vmem:[%s210 + $0x458] sm:$0xf]
                %491 = vst [vmem:[%s211 + $0x22c] sm:$0xf] %v490
                %v492 = vld [vmem:[%s210 + $0x460] sm:$0xf]
                %493 = vst [vmem:[%s211 + $0x230] sm:$0xf] %v492
                %v494 = vld [vmem:[%s210 + $0x468] sm:$0xf]
                %495 = vst [vmem:[%s211 + $0x234] sm:$0xf] %v494
                %v496 = vld [vmem:[%s210 + $0x470] sm:$0xf]
                %497 = vst [vmem:[%s211 + $0x238] sm:$0xf] %v496
                %v498 = vld [vmem:[%s210 + $0x478] sm:$0xf]
                %499 = vst [vmem:[%s211 + $0x23c] sm:$0xf] %v498
              $region41: #{generator_forward.11} parent=35 // loop_footer
                %s209 = sadd.s32 1, %s205
              $region42: #{generator_forward.11} parent=35 // loop_footer_branch
                %204 = sbr.rel target = $region38
              $region43: #{generator_forward.11} parent=35 // loop_exit
                _
            $region36: #{generator_forward.11} parent=27 // pred_fallthru
              _
          $region28: #{generator_forward.11} parent=23 // pred_fallthru
            _
          %807 = vnop
        $region24: #{generator_forward.11} parent=19 // pred_fallthru
          _
      $region20: #{generator_forward.11} parent=5 // pred_fallthru
        _
      %p808 = scmp.le.s32.totalorder 1, %s11
      %p809 = scmp.lt.s32.totalorder %s11, 3
      %p810 = pnand %p808, %p809
      %p811 = pneg %p810
      // Predicated region
      $region62: #{generator_forward.11} parent=5 // pred_check
        _
      $region63: #{generator_forward.11} parent=5 // pred_check_branch
        %813 = sbr.rel (%p810) target = $region65
      $region64: #{generator_forward.11} parent=5 // pred_region
        %s814 = ssub.s32 %s11, 1
        %s815 = sand.u32 %s62, 1
        %s816 = sand.u32 %s62, 1
        %s817 = smul.addr %s816, 576
        %s818 = scalar_lea.vmem [#allocation2], %s817
        // Predicated region
        $region66: #{generator_forward.11} parent=64 // pred_check
          %p819 = pneg %p75
        $region67: #{generator_forward.11} parent=64 // pred_check_branch
          %821 = sbr.rel (%p819) target = $region69
        $region68: #{generator_forward.11} parent=64 // pred_region
          _
        $region69: #{generator_forward.11} parent=64 // pred_fallthru
          _
        %s822 = smul.u32 4, %s20
        %p823 = scmp.lt.s32.totalorder %s822, 3
        %s824 = scalar_select %p823, %s822, 3
        %s825 = smul.addr %s824, 9
        %s826 = smul.addr %s825, 4
        %s827 = scalar_lea.vmem %s0, %s826
        %p828 = pneg %p49
        %p829 = pneg %p46
        %s830 = sand.u32 %s62, 1
        %s831 = sand.u32 %s62, 1
        %s832 = smul.addr %s831, 576
        %s833 = scalar_lea.vmem [#allocation2], %s832
        %p834 = pneg %p75
        %p835 = pneg %p72
        %p836 = pneg %p103
        %p837 = pneg %p100
        %s838 = sand.u32 %s90, 1
        %s839 = sand.u32 %s90, 1
        %s840 = smul.addr %s839, 16
        %s841 = scalar_lea.vmem [#allocation3], %s840
        %p842 = pneg %p131
        %p843 = pneg %p128
        %p844 = scmp.lt.s32.totalorder %s20, 0
        %s845 = scalar_select %p844, %s20, 0
        %p846 = scmp.lt.s32.totalorder %s21, 1
        %s847 = scalar_select %p846, %s21, 1
        %s848 = smul.addr %s845, 2
        %s849 = sadd.s32 %s847, %s848
        %s850 = scalar_lea.vmem %s3, %s849
        %p851 = pneg %p159
        %p852 = pneg %p156
        %p853 = scmp.lt.s32.totalorder %s20, 0
        %s854 = scalar_select %p853, %s20, 0
        %p855 = scmp.lt.s32.totalorder %s21, 1
        %s856 = scalar_select %p855, %s21, 1
        %s857 = smul.addr %s854, 2
        %s858 = sadd.s32 %s856, %s857
        %s859 = scalar_lea.vmem %s4, %s858
        %s860 = smul.u32 4, %s20
        %p861 = scmp.lt.s32.totalorder %s860, 3
        %s862 = scalar_select %p861, %s860, 3
        %s863 = smul.addr %s862, 9
        %s864 = smul.addr %s863, 4
        %s865 = scalar_lea.vmem %s0, %s864
        %s866 = smul.u32 4, %s20
        %s867 = smul.u32 4, %s20
        %p868 = scmp.lt.s32.totalorder %s20, 0
        %s869 = scalar_select %p868, %s20, 0
        %p870 = scmp.lt.s32.totalorder %s21, 1
        %s871 = scalar_select %p870, %s21, 1
        %s872 = smul.addr %s869, 2
        %s873 = sadd.s32 %s871, %s872
        %s874 = scalar_lea.vmem %s3, %s873
        %p875 = scmp.lt.s32.totalorder %s20, 0
        %s876 = scalar_select %p875, %s20, 0
        %p877 = scmp.lt.s32.totalorder %s21, 1
        %s878 = scalar_select %p877, %s21, 1
        %s879 = smul.addr %s876, 2
        %s880 = sadd.s32 %s878, %s879
        %s881 = scalar_lea.vmem %s4, %s880
        %v883 = vld [vmem:[%s865] sm:$0xff]
        %v884 = vld [vmem:[%s865 + $0x8] sm:$0xff]
        %v885 = vld [vmem:[%s865 + $0x10] sm:$0xff]
        %v886 = vld [vmem:[%s865 + $0x18] sm:$0xff]
        %v887 = vld [vmem:[%s865 + $0x20] sm:$0xf]
        %v888 = vld [vmem:[%s865 + $0x24] sm:$0xff]
        %v889 = vld [vmem:[%s865 + $0x2c] sm:$0xff]
        %v890 = vld [vmem:[%s865 + $0x34] sm:$0xff]
        %v891 = vld [vmem:[%s865 + $0x3c] sm:$0xff]
        %v892 = vld [vmem:[%s865 + $0x44] sm:$0xf]
        %v893 = vld [vmem:[%s865 + $0x48] sm:$0xff]
        %v894 = vld [vmem:[%s865 + $0x50] sm:$0xff]
        %v895 = vld [vmem:[%s865 + $0x58] sm:$0xff]
        %v896 = vld [vmem:[%s865 + $0x60] sm:$0xff]
        %v897 = vld [vmem:[%s865 + $0x68] sm:$0xf]
        %v898 = vld [vmem:[%s865 + $0x6c] sm:$0xff]
        %v899 = vld [vmem:[%s865 + $0x74] sm:$0xff]
        %v900 = vld [vmem:[%s865 + $0x7c] sm:$0xff]
        %v901 = vld [vmem:[%s865 + $0x84] sm:$0xff]
        %v902 = vld [vmem:[%s865 + $0x8c] sm:$0xf]
        %v903 = vld [vmem:[%s818] sm:$0xf]
        %v904 = vld [vmem:[%s818 + $0x4] sm:$0xf]
        %v905 = vld [vmem:[%s818 + $0x8] sm:$0xf]
        %v906 = vld [vmem:[%s818 + $0xc] sm:$0xf]
        %v907 = vld [vmem:[%s818 + $0x10] sm:$0xf]
        %v908 = vld [vmem:[%s818 + $0x14] sm:$0xf]
        %v909 = vld [vmem:[%s818 + $0x18] sm:$0xf]
        %v910 = vld [vmem:[%s818 + $0x1c] sm:$0xf]
        %v911 = vld [vmem:[%s818 + $0x20] sm:$0xf]
        %v912 = vld [vmem:[%s818 + $0x24] sm:$0xf]
        %v913 = vld [vmem:[%s818 + $0x28] sm:$0xf]
        %v914 = vld [vmem:[%s818 + $0x2c] sm:$0xf]
        %v915 = vld [vmem:[%s818 + $0x30] sm:$0xf]
        %v916 = vld [vmem:[%s818 + $0x34] sm:$0xf]
        %v917 = vld [vmem:[%s818 + $0x38] sm:$0xf]
        %v918 = vld [vmem:[%s818 + $0x3c] sm:$0xf]
        %v919 = vld [vmem:[%s818 + $0x40] sm:$0xf]
        %v920 = vld [vmem:[%s818 + $0x44] sm:$0xf]
        %v921 = vld [vmem:[%s818 + $0x48] sm:$0xf]
        %v922 = vld [vmem:[%s818 + $0x4c] sm:$0xf]
        %v923 = vld [vmem:[%s818 + $0x50] sm:$0xf]
        %v924 = vld [vmem:[%s818 + $0x54] sm:$0xf]
        %v925 = vld [vmem:[%s818 + $0x58] sm:$0xf]
        %v926 = vld [vmem:[%s818 + $0x5c] sm:$0xf]
        %v927 = vld [vmem:[%s818 + $0x60] sm:$0xf]
        %v928 = vld [vmem:[%s818 + $0x64] sm:$0xf]
        %v929 = vld [vmem:[%s818 + $0x68] sm:$0xf]
        %v930 = vld [vmem:[%s818 + $0x6c] sm:$0xf]
        %v931 = vld [vmem:[%s818 + $0x70] sm:$0xf]
        %v932 = vld [vmem:[%s818 + $0x74] sm:$0xf]
        %v933 = vld [vmem:[%s818 + $0x78] sm:$0xf]
        %v934 = vld [vmem:[%s818 + $0x7c] sm:$0xf]
        %v935 = vld [vmem:[%s818 + $0x80] sm:$0xf]
        %v936 = vld [vmem:[%s818 + $0x84] sm:$0xf]
        %v937 = vld [vmem:[%s818 + $0x88] sm:$0xf]
        %v938 = vld [vmem:[%s818 + $0x8c] sm:$0xf]
        %v939 = vld [vmem:[%s818 + $0x90] sm:$0xf]
        %v940 = vld [vmem:[%s818 + $0x94] sm:$0xf]
        %v941 = vld [vmem:[%s818 + $0x98] sm:$0xf]
        %v942 = vld [vmem:[%s818 + $0x9c] sm:$0xf]
        %v943 = vld [vmem:[%s818 + $0xa0] sm:$0xf]
        %v944 = vld [vmem:[%s818 + $0xa4] sm:$0xf]
        %v945 = vld [vmem:[%s818 + $0xa8] sm:$0xf]
        %v946 = vld [vmem:[%s818 + $0xac] sm:$0xf]
        %v947 = vld [vmem:[%s818 + $0xb0] sm:$0xf]
        %v948 = vld [vmem:[%s818 + $0xb4] sm:$0xf]
        %v949 = vld [vmem:[%s818 + $0xb8] sm:$0xf]
        %v950 = vld [vmem:[%s818 + $0xbc] sm:$0xf]
        %v951 = vld [vmem:[%s818 + $0xc0] sm:$0xf]
        %v952 = vld [vmem:[%s818 + $0xc4] sm:$0xf]
        %v953 = vld [vmem:[%s818 + $0xc8] sm:$0xf]
        %v954 = vld [vmem:[%s818 + $0xcc] sm:$0xf]
        %v955 = vld [vmem:[%s818 + $0xd0] sm:$0xf]
        %v956 = vld [vmem:[%s818 + $0xd4] sm:$0xf]
        %v957 = vld [vmem:[%s818 + $0xd8] sm:$0xf]
        %v958 = vld [vmem:[%s818 + $0xdc] sm:$0xf]
        %v959 = vld [vmem:[%s818 + $0xe0] sm:$0xf]
        %v960 = vld [vmem:[%s818 + $0xe4] sm:$0xf]
        %v961 = vld [vmem:[%s818 + $0xe8] sm:$0xf]
        %v962 = vld [vmem:[%s818 + $0xec] sm:$0xf]
        %v963 = vld [vmem:[%s818 + $0xf0] sm:$0xf]
        %v964 = vld [vmem:[%s818 + $0xf4] sm:$0xf]
        %v965 = vld [vmem:[%s818 + $0xf8] sm:$0xf]
        %v966 = vld [vmem:[%s818 + $0xfc] sm:$0xf]
        %v967 = vld [vmem:[%s818 + $0x100] sm:$0xf]
        %v968 = vld [vmem:[%s818 + $0x104] sm:$0xf]
        %v969 = vld [vmem:[%s818 + $0x108] sm:$0xf]
        %v970 = vld [vmem:[%s818 + $0x10c] sm:$0xf]
        %v971 = vld [vmem:[%s818 + $0x110] sm:$0xf]
        %v972 = vld [vmem:[%s818 + $0x114] sm:$0xf]
        %v973 = vld [vmem:[%s818 + $0x118] sm:$0xf]
        %v974 = vld [vmem:[%s818 + $0x11c] sm:$0xf]
        %v975 = vld [vmem:[%s818 + $0x120] sm:$0xf]
        %v976 = vld [vmem:[%s818 + $0x124] sm:$0xf]
        %v977 = vld [vmem:[%s818 + $0x128] sm:$0xf]
        %v978 = vld [vmem:[%s818 + $0x12c] sm:$0xf]
        %v979 = vld [vmem:[%s818 + $0x130] sm:$0xf]
        %v980 = vld [vmem:[%s818 + $0x134] sm:$0xf]
        %v981 = vld [vmem:[%s818 + $0x138] sm:$0xf]
        %v982 = vld [vmem:[%s818 + $0x13c] sm:$0xf]
        %v983 = vld [vmem:[%s818 + $0x140] sm:$0xf]
        %v984 = vld [vmem:[%s818 + $0x144] sm:$0xf]
        %v985 = vld [vmem:[%s818 + $0x148] sm:$0xf]
        %v986 = vld [vmem:[%s818 + $0x14c] sm:$0xf]
        %v987 = vld [vmem:[%s818 + $0x150] sm:$0xf]
        %v988 = vld [vmem:[%s818 + $0x154] sm:$0xf]
        %v989 = vld [vmem:[%s818 + $0x158] sm:$0xf]
        %v990 = vld [vmem:[%s818 + $0x15c] sm:$0xf]
        %v991 = vld [vmem:[%s818 + $0x160] sm:$0xf]
        %v992 = vld [vmem:[%s818 + $0x164] sm:$0xf]
        %v993 = vld [vmem:[%s818 + $0x168] sm:$0xf]
        %v994 = vld [vmem:[%s818 + $0x16c] sm:$0xf]
        %v995 = vld [vmem:[%s818 + $0x170] sm:$0xf]
        %v996 = vld [vmem:[%s818 + $0x174] sm:$0xf]
        %v997 = vld [vmem:[%s818 + $0x178] sm:$0xf]
        %v998 = vld [vmem:[%s818 + $0x17c] sm:$0xf]
        %v999 = vld [vmem:[%s818 + $0x180] sm:$0xf]
        %v1000 = vld [vmem:[%s818 + $0x184] sm:$0xf]
        %v1001 = vld [vmem:[%s818 + $0x188] sm:$0xf]
        %v1002 = vld [vmem:[%s818 + $0x18c] sm:$0xf]
        %v1003 = vld [vmem:[%s818 + $0x190] sm:$0xf]
        %v1004 = vld [vmem:[%s818 + $0x194] sm:$0xf]
        %v1005 = vld [vmem:[%s818 + $0x198] sm:$0xf]
        %v1006 = vld [vmem:[%s818 + $0x19c] sm:$0xf]
        %v1007 = vld [vmem:[%s818 + $0x1a0] sm:$0xf]
        %v1008 = vld [vmem:[%s818 + $0x1a4] sm:$0xf]
        %v1009 = vld [vmem:[%s818 + $0x1a8] sm:$0xf]
        %v1010 = vld [vmem:[%s818 + $0x1ac] sm:$0xf]
        %v1011 = vld [vmem:[%s818 + $0x1b0] sm:$0xf]
        %v1012 = vld [vmem:[%s818 + $0x1b4] sm:$0xf]
        %v1013 = vld [vmem:[%s818 + $0x1b8] sm:$0xf]
        %v1014 = vld [vmem:[%s818 + $0x1bc] sm:$0xf]
        %v1015 = vld [vmem:[%s818 + $0x1c0] sm:$0xf]
        %v1016 = vld [vmem:[%s818 + $0x1c4] sm:$0xf]
        %v1017 = vld [vmem:[%s818 + $0x1c8] sm:$0xf]
        %v1018 = vld [vmem:[%s818 + $0x1cc] sm:$0xf]
        %v1019 = vld [vmem:[%s818 + $0x1d0] sm:$0xf]
        %v1020 = vld [vmem:[%s818 + $0x1d4] sm:$0xf]
        %v1021 = vld [vmem:[%s818 + $0x1d8] sm:$0xf]
        %v1022 = vld [vmem:[%s818 + $0x1dc] sm:$0xf]
        %v1023 = vld [vmem:[%s818 + $0x1e0] sm:$0xf]
        %v1024 = vld [vmem:[%s818 + $0x1e4] sm:$0xf]
        %v1025 = vld [vmem:[%s818 + $0x1e8] sm:$0xf]
        %v1026 = vld [vmem:[%s818 + $0x1ec] sm:$0xf]
        %v1027 = vld [vmem:[%s818 + $0x1f0] sm:$0xf]
        %v1028 = vld [vmem:[%s818 + $0x1f4] sm:$0xf]
        %v1029 = vld [vmem:[%s818 + $0x1f8] sm:$0xf]
        %v1030 = vld [vmem:[%s818 + $0x1fc] sm:$0xf]
        %v1031 = vld [vmem:[%s818 + $0x200] sm:$0xf]
        %v1032 = vld [vmem:[%s818 + $0x204] sm:$0xf]
        %v1033 = vld [vmem:[%s818 + $0x208] sm:$0xf]
        %v1034 = vld [vmem:[%s818 + $0x20c] sm:$0xf]
        %v1035 = vld [vmem:[%s818 + $0x210] sm:$0xf]
        %v1036 = vld [vmem:[%s818 + $0x214] sm:$0xf]
        %v1037 = vld [vmem:[%s818 + $0x218] sm:$0xf]
        %v1038 = vld [vmem:[%s818 + $0x21c] sm:$0xf]
        %v1039 = vld [vmem:[%s818 + $0x220] sm:$0xf]
        %v1040 = vld [vmem:[%s818 + $0x224] sm:$0xf]
        %v1041 = vld [vmem:[%s818 + $0x228] sm:$0xf]
        %v1042 = vld [vmem:[%s818 + $0x22c] sm:$0xf]
        %v1043 = vld [vmem:[%s818 + $0x230] sm:$0xf]
        %v1044 = vld [vmem:[%s818 + $0x234] sm:$0xf]
        %v1045 = vld [vmem:[%s818 + $0x238] sm:$0xf]
        %v1046 = vld [vmem:[%s818 + $0x23c] sm:$0xf]
        %v1067 = vunpack.c.l.b16 %v883
        %v1068 = vunpack.c.h.b16 %v883
        %v1069 = vunpack.c.l.b16 %v884
        %v1070 = vunpack.c.h.b16 %v884
        %v1071 = vunpack.c.l.b16 %v885
        %v1072 = vunpack.c.h.b16 %v885
        %v1073 = vunpack.c.l.b16 %v886
        %v1074 = vunpack.c.h.b16 %v886
        %v1075 = vunpack.c.l.b16 %v887
        %v1076 = vunpack.c.l.b16 %v888
        %v1077 = vunpack.c.h.b16 %v888
        %v1078 = vunpack.c.l.b16 %v889
        %v1079 = vunpack.c.h.b16 %v889
        %v1080 = vunpack.c.l.b16 %v890
        %v1081 = vunpack.c.h.b16 %v890
        %v1082 = vunpack.c.l.b16 %v891
        %v1083 = vunpack.c.h.b16 %v891
        %v1084 = vunpack.c.l.b16 %v892
        %v1085 = vunpack.c.l.b16 %v893
        %v1086 = vunpack.c.h.b16 %v893
        %v1087 = vunpack.c.l.b16 %v894
        %v1088 = vunpack.c.h.b16 %v894
        %v1089 = vunpack.c.l.b16 %v895
        %v1090 = vunpack.c.h.b16 %v895
        %v1091 = vunpack.c.l.b16 %v896
        %v1092 = vunpack.c.h.b16 %v896
        %v1093 = vunpack.c.l.b16 %v897
        %v1094 = vunpack.c.l.b16 %v898
        %v1095 = vunpack.c.h.b16 %v898
        %v1096 = vunpack.c.l.b16 %v899
        %v1097 = vunpack.c.h.b16 %v899
        %v1098 = vunpack.c.l.b16 %v900
        %v1099 = vunpack.c.h.b16 %v900
        %v1100 = vunpack.c.l.b16 %v901
        %v1101 = vunpack.c.h.b16 %v901
        %v1102 = vunpack.c.l.b16 %v902
        %v1103 = vpack.c.b16 %v1076, %v1067
        %v1104 = vpack.c.b16 %v1077, %v1068
        %v1105 = vpack.c.b16 %v1078, %v1069
        %v1106 = vpack.c.b16 %v1079, %v1070
        %v1107 = vpack.c.b16 %v1080, %v1071
        %v1108 = vpack.c.b16 %v1081, %v1072
        %v1109 = vpack.c.b16 %v1082, %v1073
        %v1110 = vpack.c.b16 %v1083, %v1074
        %v1111 = vpack.c.b16 %v1084, %v1075
        %v1112 = vpack.c.b16 %v1094, %v1085
        %v1113 = vpack.c.b16 %v1095, %v1086
        %v1114 = vpack.c.b16 %v1096, %v1087
        %v1115 = vpack.c.b16 %v1097, %v1088
        %v1116 = vpack.c.b16 %v1098, %v1089
        %v1117 = vpack.c.b16 %v1099, %v1090
        %v1118 = vpack.c.b16 %v1100, %v1091
        %v1119 = vpack.c.b16 %v1101, %v1092
        %v1120 = vpack.c.b16 %v1102, %v1093
        %v1283 = vunpack.c.l.b16 %v903
        %v1284 = vunpack.c.l.b16 %v904
        %v1285 = vunpack.c.l.b16 %v905
        %v1286 = vunpack.c.l.b16 %v906
        %v1287 = vunpack.c.l.b16 %v907
        %v1288 = vunpack.c.l.b16 %v908
        %v1289 = vunpack.c.l.b16 %v909
        %v1290 = vunpack.c.l.b16 %v910
        %v1291 = vunpack.c.l.b16 %v911
        %v1292 = vunpack.c.l.b16 %v912
        %v1293 = vunpack.c.l.b16 %v913
        %v1294 = vunpack.c.l.b16 %v914
        %v1295 = vunpack.c.l.b16 %v915
        %v1296 = vunpack.c.l.b16 %v916
        %v1297 = vunpack.c.l.b16 %v917
        %v1298 = vunpack.c.l.b16 %v918
        %v1299 = vunpack.c.l.b16 %v919
        %v1300 = vunpack.c.l.b16 %v920
        %v1301 = vunpack.c.l.b16 %v921
        %v1302 = vunpack.c.l.b16 %v922
        %v1303 = vunpack.c.l.b16 %v923
        %v1304 = vunpack.c.l.b16 %v924
        %v1305 = vunpack.c.l.b16 %v925
        %v1306 = vunpack.c.l.b16 %v926
        %v1307 = vunpack.c.l.b16 %v927
        %v1308 = vunpack.c.l.b16 %v928
        %v1309 = vunpack.c.l.b16 %v929
        %v1310 = vunpack.c.l.b16 %v930
        %v1311 = vunpack.c.l.b16 %v931
        %v1312 = vunpack.c.l.b16 %v932
        %v1313 = vunpack.c.l.b16 %v933
        %v1314 = vunpack.c.l.b16 %v934
        %v1315 = vunpack.c.l.b16 %v935
        %v1316 = vunpack.c.l.b16 %v936
        %v1317 = vunpack.c.l.b16 %v937
        %v1318 = vunpack.c.l.b16 %v938
        %v1319 = vunpack.c.l.b16 %v939
        %v1320 = vunpack.c.l.b16 %v940
        %v1321 = vunpack.c.l.b16 %v941
        %v1322 = vunpack.c.l.b16 %v942
        %v1323 = vunpack.c.l.b16 %v943
        %v1324 = vunpack.c.l.b16 %v944
        %v1325 = vunpack.c.l.b16 %v945
        %v1326 = vunpack.c.l.b16 %v946
        %v1327 = vunpack.c.l.b16 %v947
        %v1328 = vunpack.c.l.b16 %v948
        %v1329 = vunpack.c.l.b16 %v949
        %v1330 = vunpack.c.l.b16 %v950
        %v1331 = vunpack.c.l.b16 %v951
        %v1332 = vunpack.c.l.b16 %v952
        %v1333 = vunpack.c.l.b16 %v953
        %v1334 = vunpack.c.l.b16 %v954
        %v1335 = vunpack.c.l.b16 %v955
        %v1336 = vunpack.c.l.b16 %v956
        %v1337 = vunpack.c.l.b16 %v957
        %v1338 = vunpack.c.l.b16 %v958
        %v1339 = vunpack.c.l.b16 %v959
        %v1340 = vunpack.c.l.b16 %v960
        %v1341 = vunpack.c.l.b16 %v961
        %v1342 = vunpack.c.l.b16 %v962
        %v1343 = vunpack.c.l.b16 %v963
        %v1344 = vunpack.c.l.b16 %v964
        %v1345 = vunpack.c.l.b16 %v965
        %v1346 = vunpack.c.l.b16 %v966
        %v1347 = vunpack.c.l.b16 %v967
        %v1348 = vunpack.c.l.b16 %v968
        %v1349 = vunpack.c.l.b16 %v969
        %v1350 = vunpack.c.l.b16 %v970
        %v1351 = vunpack.c.l.b16 %v971
        %v1352 = vunpack.c.l.b16 %v972
        %v1353 = vunpack.c.l.b16 %v973
        %v1354 = vunpack.c.l.b16 %v974
        %v1355 = vunpack.c.l.b16 %v975
        %v1356 = vunpack.c.l.b16 %v976
        %v1357 = vunpack.c.l.b16 %v977
        %v1358 = vunpack.c.l.b16 %v978
        %v1359 = vunpack.c.l.b16 %v979
        %v1360 = vunpack.c.l.b16 %v980
        %v1361 = vunpack.c.l.b16 %v981
        %v1362 = vunpack.c.l.b16 %v982
        %v1363 = vunpack.c.l.b16 %v983
        %v1364 = vunpack.c.l.b16 %v984
        %v1365 = vunpack.c.l.b16 %v985
        %v1366 = vunpack.c.l.b16 %v986
        %v1367 = vunpack.c.l.b16 %v987
        %v1368 = vunpack.c.l.b16 %v988
        %v1369 = vunpack.c.l.b16 %v989
        %v1370 = vunpack.c.l.b16 %v990
        %v1371 = vunpack.c.l.b16 %v991
        %v1372 = vunpack.c.l.b16 %v992
        %v1373 = vunpack.c.l.b16 %v993
        %v1374 = vunpack.c.l.b16 %v994
        %v1375 = vunpack.c.l.b16 %v995
        %v1376 = vunpack.c.l.b16 %v996
        %v1377 = vunpack.c.l.b16 %v997
        %v1378 = vunpack.c.l.b16 %v998
        %v1379 = vunpack.c.l.b16 %v999
        %v1380 = vunpack.c.l.b16 %v1000
        %v1381 = vunpack.c.l.b16 %v1001
        %v1382 = vunpack.c.l.b16 %v1002
        %v1383 = vunpack.c.l.b16 %v1003
        %v1384 = vunpack.c.l.b16 %v1004
        %v1385 = vunpack.c.l.b16 %v1005
        %v1386 = vunpack.c.l.b16 %v1006
        %v1387 = vunpack.c.l.b16 %v1007
        %v1388 = vunpack.c.l.b16 %v1008
        %v1389 = vunpack.c.l.b16 %v1009
        %v1390 = vunpack.c.l.b16 %v1010
        %v1391 = vunpack.c.l.b16 %v1011
        %v1392 = vunpack.c.l.b16 %v1012
        %v1393 = vunpack.c.l.b16 %v1013
        %v1394 = vunpack.c.l.b16 %v1014
        %v1395 = vunpack.c.l.b16 %v1015
        %v1396 = vunpack.c.l.b16 %v1016
        %v1397 = vunpack.c.l.b16 %v1017
        %v1398 = vunpack.c.l.b16 %v1018
        %v1399 = vunpack.c.l.b16 %v1019
        %v1400 = vunpack.c.l.b16 %v1020
        %v1401 = vunpack.c.l.b16 %v1021
        %v1402 = vunpack.c.l.b16 %v1022
        %v1403 = vunpack.c.l.b16 %v1023
        %v1404 = vunpack.c.l.b16 %v1024
        %v1405 = vunpack.c.l.b16 %v1025
        %v1406 = vunpack.c.l.b16 %v1026
        %v1407 = vunpack.c.l.b16 %v1027
        %v1408 = vunpack.c.l.b16 %v1028
        %v1409 = vunpack.c.l.b16 %v1029
        %v1410 = vunpack.c.l.b16 %v1030
        %v1411 = vunpack.c.l.b16 %v1031
        %v1412 = vunpack.c.l.b16 %v1032
        %v1413 = vunpack.c.l.b16 %v1033
        %v1414 = vunpack.c.l.b16 %v1034
        %v1415 = vunpack.c.l.b16 %v1035
        %v1416 = vunpack.c.l.b16 %v1036
        %v1417 = vunpack.c.l.b16 %v1037
        %v1418 = vunpack.c.l.b16 %v1038
        %v1419 = vunpack.c.l.b16 %v1039
        %v1420 = vunpack.c.l.b16 %v1040
        %v1421 = vunpack.c.l.b16 %v1041
        %v1422 = vunpack.c.l.b16 %v1042
        %v1423 = vunpack.c.l.b16 %v1043
        %v1424 = vunpack.c.l.b16 %v1044
        %v1425 = vunpack.c.l.b16 %v1045
        %v1426 = vunpack.c.l.b16 %v1046
        %v1427 = vpack.c.b16 %v1284, %v1283
        %v1428 = vpack.c.b16 %v1286, %v1285
        %v1429 = vpack.c.b16 %v1288, %v1287
        %v1430 = vpack.c.b16 %v1290, %v1289
        %v1431 = vpack.c.b16 %v1292, %v1291
        %v1432 = vpack.c.b16 %v1294, %v1293
        %v1433 = vpack.c.b16 %v1296, %v1295
        %v1434 = vpack.c.b16 %v1298, %v1297
        %v1435 = vpack.c.b16 %v1300, %v1299
        %v1436 = vpack.c.b16 %v1302, %v1301
        %v1437 = vpack.c.b16 %v1304, %v1303
        %v1438 = vpack.c.b16 %v1306, %v1305
        %v1439 = vpack.c.b16 %v1308, %v1307
        %v1440 = vpack.c.b16 %v1310, %v1309
        %v1441 = vpack.c.b16 %v1312, %v1311
        %v1442 = vpack.c.b16 %v1314, %v1313
        %v1443 = vpack.c.b16 %v1316, %v1315
        %v1444 = vpack.c.b16 %v1318, %v1317
        %v1445 = vpack.c.b16 %v1320, %v1319
        %v1446 = vpack.c.b16 %v1322, %v1321
        %v1447 = vpack.c.b16 %v1324, %v1323
        %v1448 = vpack.c.b16 %v1326, %v1325
        %v1449 = vpack.c.b16 %v1328, %v1327
        %v1450 = vpack.c.b16 %v1330, %v1329
        %v1451 = vpack.c.b16 %v1332, %v1331
        %v1452 = vpack.c.b16 %v1334, %v1333
        %v1453 = vpack.c.b16 %v1336, %v1335
        %v1454 = vpack.c.b16 %v1338, %v1337
        %v1455 = vpack.c.b16 %v1340, %v1339
        %v1456 = vpack.c.b16 %v1342, %v1341
        %v1457 = vpack.c.b16 %v1344, %v1343
        %v1458 = vpack.c.b16 %v1346, %v1345
        %v1459 = vpack.c.b16 %v1348, %v1347
        %v1460 = vpack.c.b16 %v1350, %v1349
        %v1461 = vpack.c.b16 %v1352, %v1351
        %v1462 = vpack.c.b16 %v1354, %v1353
        %v1463 = vpack.c.b16 %v1356, %v1355
        %v1464 = vpack.c.b16 %v1358, %v1357
        %v1465 = vpack.c.b16 %v1360, %v1359
        %v1466 = vpack.c.b16 %v1362, %v1361
        %v1467 = vpack.c.b16 %v1364, %v1363
        %v1468 = vpack.c.b16 %v1366, %v1365
        %v1469 = vpack.c.b16 %v1368, %v1367
        %v1470 = vpack.c.b16 %v1370, %v1369
        %v1471 = vpack.c.b16 %v1372, %v1371
        %v1472 = vpack.c.b16 %v1374, %v1373
        %v1473 = vpack.c.b16 %v1376, %v1375
        %v1474 = vpack.c.b16 %v1378, %v1377
        %v1475 = vpack.c.b16 %v1380, %v1379
        %v1476 = vpack.c.b16 %v1382, %v1381
        %v1477 = vpack.c.b16 %v1384, %v1383
        %v1478 = vpack.c.b16 %v1386, %v1385
        %v1479 = vpack.c.b16 %v1388, %v1387
        %v1480 = vpack.c.b16 %v1390, %v1389
        %v1481 = vpack.c.b16 %v1392, %v1391
        %v1482 = vpack.c.b16 %v1394, %v1393
        %v1483 = vpack.c.b16 %v1396, %v1395
        %v1484 = vpack.c.b16 %v1398, %v1397
        %v1485 = vpack.c.b16 %v1400, %v1399
        %v1486 = vpack.c.b16 %v1402, %v1401
        %v1487 = vpack.c.b16 %v1404, %v1403
        %v1488 = vpack.c.b16 %v1406, %v1405
        %v1489 = vpack.c.b16 %v1408, %v1407
        %v1490 = vpack.c.b16 %v1410, %v1409
        %v1491 = vpack.c.b16 %v1412, %v1411
        %v1492 = vpack.c.b16 %v1414, %v1413
        %v1493 = vpack.c.b16 %v1416, %v1415
        %v1494 = vpack.c.b16 %v1418, %v1417
        %v1495 = vpack.c.b16 %v1420, %v1419
        %v1496 = vpack.c.b16 %v1422, %v1421
        %v1497 = vpack.c.b16 %v1424, %v1423
        %v1498 = vpack.c.b16 %v1426, %v1425
        %1571 = vmatprep.subr.bf16.mxu0 0
        %1572 = vmatpush1.bf16.msra.mxu0 %v1427
        %1573 = vmatprep.subr.bf16.mxu0 0
        %1574 = vmatpush1.bf16.msra.mxu0 %v1428
        %1575 = vmatprep.subr.bf16.mxu0 0
        %1576 = vmatpush1.bf16.msra.mxu0 %v1429
        %1577 = vmatprep.subr.bf16.mxu0 0
        %1578 = vmatpush1.bf16.msra.mxu0 %v1430
        %1579 = vmatprep.subr.bf16.mxu0 0
        %1580 = vmatpush1.bf16.msra.mxu0 %v1431
        %1581 = vmatprep.subr.bf16.mxu0 0
        %1582 = vmatpush1.bf16.msra.mxu0 %v1432
        %1583 = vmatprep.subr.bf16.mxu0 0
        %1584 = vmatpush1.bf16.msra.mxu0 %v1433
        %1585 = vmatprep.subr.bf16.mxu0 0
        %1586 = vmatpush1.bf16.msra.mxu0 %v1434
        %1587 = vmatprep.subr.bf16.mxu0 0
        %1588 = vmatpush1.bf16.msra.mxu0 %v1435
        %1589 = vmatprep.subr.bf16.mxu0 0
        %1590 = vmatpush1.bf16.msra.mxu0 %v1436
        %1591 = vmatprep.subr.bf16.mxu0 0
        %1592 = vmatpush1.bf16.msra.mxu0 %v1437
        %1593 = vmatprep.subr.bf16.mxu0 0
        %1594 = vmatpush1.bf16.msra.mxu0 %v1438
        %1595 = vmatprep.subr.bf16.mxu0 0
        %1596 = vmatpush1.bf16.msra.mxu0 %v1439
        %1597 = vmatprep.subr.bf16.mxu0 0
        %1598 = vmatpush1.bf16.msra.mxu0 %v1440
        %1599 = vmatprep.subr.bf16.mxu0 0
        %1600 = vmatpush1.bf16.msra.mxu0 %v1441
        %1601 = vmatprep.subr.bf16.mxu0 0
        %1602 = vmatpush1.bf16.msra.mxu0 %v1442
        %1603 = vmatprep.mubr.bf16.mxu0 %v1104
        %1604 = vmatmul.mubr.bf16.gmra.mrb[0].mxu0 %v1103
        %v1605 = vpop.f32.mrb[0].mxu0
        %v1606 = vadd.f32 0.0, %v1605
        %v1607 = vpop.f32.mrb[0].mxu0
        %v1608 = vpop.f32.mrb[0].mxu0
        %v1609 = vadd.f32 0.0, %v1608
        %v1610 = vpop.f32.mrb[0].mxu0
        %1611 = vmatprep.mubr.bf16.mxu0 %v1113
        %1612 = vmatmul.mubr.bf16.gmra.mrb[0].mxu0 %v1112
        %v1613 = vpop.f32.mrb[0].mxu0
        %v1614 = vadd.f32 0.0, %v1613
        %v1615 = vpop.f32.mrb[0].mxu0
        %v1616 = vpop.f32.mrb[0].mxu0
        %v1617 = vadd.f32 0.0, %v1616
        %v1618 = vpop.f32.mrb[0].mxu0
        %1619 = vdwg.mxu0
        %1620 = vmatprep.subr.bf16.mxu0 0
        %1621 = vmatpush1.bf16.msra.mxu0 %v1443
        %1622 = vmatprep.subr.bf16.mxu0 0
        %1623 = vmatpush1.bf16.msra.mxu0 %v1444
        %1624 = vmatprep.subr.bf16.mxu0 0
        %1625 = vmatpush1.bf16.msra.mxu0 %v1445
        %1626 = vmatprep.subr.bf16.mxu0 0
        %1627 = vmatpush1.bf16.msra.mxu0 %v1446
        %1628 = vmatprep.subr.bf16.mxu0 0
        %1629 = vmatpush1.bf16.msra.mxu0 %v1447
        %1630 = vmatprep.subr.bf16.mxu0 0
        %1631 = vmatpush1.bf16.msra.mxu0 %v1448
        %1632 = vmatprep.subr.bf16.mxu0 0
        %1633 = vmatpush1.bf16.msra.mxu0 %v1449
        %1634 = vmatprep.subr.bf16.mxu0 0
        %1635 = vmatpush1.bf16.msra.mxu0 %v1450
        %1636 = vmatprep.subr.bf16.mxu0 0
        %1637 = vmatpush1.bf16.msra.mxu0 %v1451
        %1638 = vmatprep.subr.bf16.mxu0 0
        %1639 = vmatpush1.bf16.msra.mxu0 %v1452
        %1640 = vmatprep.subr.bf16.mxu0 0
        %1641 = vmatpush1.bf16.msra.mxu0 %v1453
        %1642 = vmatprep.subr.bf16.mxu0 0
        %1643 = vmatpush1.bf16.msra.mxu0 %v1454
        %1644 = vmatprep.subr.bf16.mxu0 0
        %1645 = vmatpush1.bf16.msra.mxu0 %v1455
        %1646 = vmatprep.subr.bf16.mxu0 0
        %1647 = vmatpush1.bf16.msra.mxu0 %v1456
        %1648 = vmatprep.subr.bf16.mxu0 0
        %1649 = vmatpush1.bf16.msra.mxu0 %v1457
        %1650 = vmatprep.subr.bf16.mxu0 0
        %1651 = vmatpush1.bf16.msra.mxu0 %v1458
        %1652 = vmatprep.mubr.bf16.mxu0 %v1106
        %1653 = vmatmul.mubr.bf16.gmra.mrb[0].mxu0 %v1105
        %v1654 = vpop.f32.mrb[0].mxu0
        %v1655 = vadd.f32 %v1606, %v1654
        %v1656 = vpop.f32.mrb[0].mxu0
        %v1657 = vpop.f32.mrb[0].mxu0
        %v1658 = vadd.f32 %v1609, %v1657
        %v1659 = vpop.f32.mrb[0].mxu0
        %1660 = vmatprep.mubr.bf16.mxu0 %v1115
        %1661 = vmatmul.mubr.bf16.gmra.mrb[0].mxu0 %v1114
        %v1662 = vpop.f32.mrb[0].mxu0
        %v1663 = vadd.f32 %v1614, %v1662
        %v1664 = vpop.f32.mrb[0].mxu0
        %v1665 = vpop.f32.mrb[0].mxu0
        %v1666 = vadd.f32 %v1617, %v1665
        %v1667 = vpop.f32.mrb[0].mxu0
        %1668 = vdwg.mxu0
        %1669 = vmatprep.subr.bf16.mxu0 0
        %1670 = vmatpush1.bf16.msra.mxu0 %v1459
        %1671 = vmatprep.subr.bf16.mxu0 0
        %1672 = vmatpush1.bf16.msra.mxu0 %v1460
        %1673 = vmatprep.subr.bf16.mxu0 0
        %1674 = vmatpush1.bf16.msra.mxu0 %v1461
        %1675 = vmatprep.subr.bf16.mxu0 0
        %1676 = vmatpush1.bf16.msra.mxu0 %v1462
        %1677 = vmatprep.subr.bf16.mxu0 0
        %1678 = vmatpush1.bf16.msra.mxu0 %v1463
        %1679 = vmatprep.subr.bf16.mxu0 0
        %1680 = vmatpush1.bf16.msra.mxu0 %v1464
        %1681 = vmatprep.subr.bf16.mxu0 0
        %1682 = vmatpush1.bf16.msra.mxu0 %v1465
        %1683 = vmatprep.subr.bf16.mxu0 0
        %1684 = vmatpush1.bf16.msra.mxu0 %v1466
        %1685 = vmatprep.subr.bf16.mxu0 0
        %1686 = vmatpush1.bf16.msra.mxu0 %v1467
        %1687 = vmatprep.subr.bf16.mxu0 0
        %1688 = vmatpush1.bf16.msra.mxu0 %v1468
        %1689 = vmatprep.subr.bf16.mxu0 0
        %1690 = vmatpush1.bf16.msra.mxu0 %v1469
        %1691 = vmatprep.subr.bf16.mxu0 0
        %1692 = vmatpush1.bf16.msra.mxu0 %v1470
        %1693 = vmatprep.subr.bf16.mxu0 0
        %1694 = vmatpush1.bf16.msra.mxu0 %v1471
        %1695 = vmatprep.subr.bf16.mxu0 0
        %1696 = vmatpush1.bf16.msra.mxu0 %v1472
        %1697 = vmatprep.subr.bf16.mxu0 0
        %1698 = vmatpush1.bf16.msra.mxu0 %v1473
        %1699 = vmatprep.subr.bf16.mxu0 0
        %1700 = vmatpush1.bf16.msra.mxu0 %v1474
        %1701 = vmatprep.mubr.bf16.mxu0 %v1108
        %1702 = vmatmul.mubr.bf16.gmra.mrb[0].mxu0 %v1107
        %v1703 = vpop.f32.mrb[0].mxu0
        %v1704 = vadd.f32 %v1655, %v1703
        %v1705 = vpop.f32.mrb[0].mxu0
        %v1706 = vpop.f32.mrb[0].mxu0
        %v1707 = vadd.f32 %v1658, %v1706
        %v1708 = vpop.f32.mrb[0].mxu0
        %1709 = vmatprep.mubr.bf16.mxu0 %v1117
        %1710 = vmatmul.mubr.bf16.gmra.mrb[0].mxu0 %v1116
        %v1711 = vpop.f32.mrb[0].mxu0
        %v1712 = vadd.f32 %v1663, %v1711
        %v1713 = vpop.f32.mrb[0].mxu0
        %v1714 = vpop.f32.mrb[0].mxu0
        %v1715 = vadd.f32 %v1666, %v1714
        %v1716 = vpop.f32.mrb[0].mxu0
        %1717 = vdwg.mxu0
        %1718 = vmatprep.subr.bf16.mxu0 0
        %1719 = vmatpush1.bf16.msra.mxu0 %v1475
        %1720 = vmatprep.subr.bf16.mxu0 0
        %1721 = vmatpush1.bf16.msra.mxu0 %v1476
        %1722 = vmatprep.subr.bf16.mxu0 0
        %1723 = vmatpush1.bf16.msra.mxu0 %v1477
        %1724 = vmatprep.subr.bf16.mxu0 0
        %1725 = vmatpush1.bf16.msra.mxu0 %v1478
        %1726 = vmatprep.subr.bf16.mxu0 0
        %1727 = vmatpush1.bf16.msra.mxu0 %v1479
        %1728 = vmatprep.subr.bf16.mxu0 0
        %1729 = vmatpush1.bf16.msra.mxu0 %v1480
        %1730 = vmatprep.subr.bf16.mxu0 0
        %1731 = vmatpush1.bf16.msra.mxu0 %v1481
        %1732 = vmatprep.subr.bf16.mxu0 0
        %1733 = vmatpush1.bf16.msra.mxu0 %v1482
        %1734 = vmatprep.subr.bf16.mxu0 0
        %1735 = vmatpush1.bf16.msra.mxu0 %v1483
        %1736 = vmatprep.subr.bf16.mxu0 0
        %1737 = vmatpush1.bf16.msra.mxu0 %v1484
        %1738 = vmatprep.subr.bf16.mxu0 0
        %1739 = vmatpush1.bf16.msra.mxu0 %v1485
        %1740 = vmatprep.subr.bf16.mxu0 0
        %1741 = vmatpush1.bf16.msra.mxu0 %v1486
        %1742 = vmatprep.subr.bf16.mxu0 0
        %1743 = vmatpush1.bf16.msra.mxu0 %v1487
        %1744 = vmatprep.subr.bf16.mxu0 0
        %1745 = vmatpush1.bf16.msra.mxu0 %v1488
        %1746 = vmatprep.subr.bf16.mxu0 0
        %1747 = vmatpush1.bf16.msra.mxu0 %v1489
        %1748 = vmatprep.subr.bf16.mxu0 0
        %1749 = vmatpush1.bf16.msra.mxu0 %v1490
        %1750 = vmatprep.mubr.bf16.mxu0 %v1110
        %1751 = vmatmul.mubr.bf16.gmra.mrb[0].mxu0 %v1109
        %v1752 = vpop.f32.mrb[0].mxu0
        %v1753 = vadd.f32 %v1704, %v1752
        %v1754 = vpop.f32.mrb[0].mxu0
        %v1755 = vpop.f32.mrb[0].mxu0
        %v1756 = vadd.f32 %v1707, %v1755
        %v1757 = vpop.f32.mrb[0].mxu0
        %1758 = vmatprep.mubr.bf16.mxu0 %v1119
        %1759 = vmatmul.mubr.bf16.gmra.mrb[0].mxu0 %v1118
        %v1760 = vpop.f32.mrb[0].mxu0
        %v1761 = vadd.f32 %v1712, %v1760
        %v1762 = vpop.f32.mrb[0].mxu0
        %v1763 = vpop.f32.mrb[0].mxu0
        %v1764 = vadd.f32 %v1715, %v1763
        %v1765 = vpop.f32.mrb[0].mxu0
        %1766 = vdwg.mxu0
        %1767 = vmatprep.subr.bf16.mxu0 0
        %1768 = vmatpush1.bf16.msra.mxu0 %v1491
        %1769 = vmatprep.subr.bf16.mxu0 0
        %1770 = vmatpush1.bf16.msra.mxu0 %v1492
        %1771 = vmatprep.subr.bf16.mxu0 0
        %1772 = vmatpush1.bf16.msra.mxu0 %v1493
        %1773 = vmatprep.subr.bf16.mxu0 0
        %1774 = vmatpush1.bf16.msra.mxu0 %v1494
        %1775 = vmatprep.subr.bf16.mxu0 0
        %1776 = vmatpush1.bf16.msra.mxu0 %v1495
        %1777 = vmatprep.subr.bf16.mxu0 0
        %1778 = vmatpush1.bf16.msra.mxu0 %v1496
        %1779 = vmatprep.subr.bf16.mxu0 0
        %1780 = vmatpush1.bf16.msra.mxu0 %v1497
        %1781 = vmatprep.subr.bf16.mxu0 0
        %1782 = vmatpush1.bf16.msra.mxu0 %v1498
        %1783 = vmatprep.subr.bf16.mxu0 0
        %1784 = vmatpush1.bf16.msra.mxu0 0
        %1785 = vmatprep.subr.bf16.mxu0 0
        %1786 = vmatpush1.bf16.msra.mxu0 0
        %1787 = vmatprep.subr.bf16.mxu0 0
        %1788 = vmatpush1.bf16.msra.mxu0 0
        %1789 = vmatprep.subr.bf16.mxu0 0
        %1790 = vmatpush1.bf16.msra.mxu0 0
        %1791 = vmatprep.subr.bf16.mxu0 0
        %1792 = vmatpush1.bf16.msra.mxu0 0
        %1793 = vmatprep.subr.bf16.mxu0 0
        %1794 = vmatpush1.bf16.msra.mxu0 0
        %1795 = vmatprep.subr.bf16.mxu0 0
        %1796 = vmatpush1.bf16.msra.mxu0 0
        %1797 = vmatprep.subr.bf16.mxu0 0
        %1798 = vmatpush1.bf16.msra.mxu0 0
        %1799 = vmatprep.mubr.bf16.mxu0 0
        %1800 = vmatmul.mubr.bf16.gmra.mrb[0].mxu0 %v1111
        %v1801 = vpop.f32.mrb[0].mxu0
        %v1802 = vadd.f32 %v1753, %v1801
        %v1803 = vpop.f32.mrb[0].mxu0
        %v1804 = vpop.f32.mrb[0].mxu0
        %v1805 = vadd.f32 %v1756, %v1804
        %v1806 = vpop.f32.mrb[0].mxu0
        %1807 = vmatprep.mubr.bf16.mxu0 0
        %1808 = vmatmul.mubr.bf16.gmra.mrb[0].mxu0 %v1120
        %v1809 = vpop.f32.mrb[0].mxu0
        %v1810 = vadd.f32 %v1761, %v1809
        %v1811 = vpop.f32.mrb[0].mxu0
        %v1812 = vpop.f32.mrb[0].mxu0
        %v1813 = vadd.f32 %v1764, %v1812
        %v1814 = vpop.f32.mrb[0].mxu0
        %1815 = vdwg.mxu0
        %v1816 = vpack.c.bf16 %v1805, %v1802
        %v1817 = vpack.c.bf16 %v1813, %v1810
        %v1820 = vunpack.c.l.b16 %v1816
        %v1821 = vunpack.c.h.b16 %v1816
        %v1822 = vunpack.c.l.b16 %v1817
        %v1823 = vunpack.c.h.b16 %v1817
        %v1824 = vpack.c.b16 %v1820, %v1820
        %v1825 = vpack.c.b16 %v1821, %v1821
        %v1826 = vpack.c.b16 %v1822, %v1822
        %v1827 = vpack.c.b16 %v1823, %v1823
        %1832 = vst [vmem:[%s841] sm:$0xf] %v1824
        %1833 = vst [vmem:[%s841 + $0x4] sm:$0xf] %v1825
        %1834 = vst [vmem:[%s841 + $0x8] sm:$0xf] %v1826
        %1835 = vst [vmem:[%s841 + $0xc] sm:$0xf] %v1827
        %v1836 = vadd.f32 %v1802, %v1805
        %v1837 = vadd.f32 %v1836, %v1810
        %v1838 = vadd.f32 %v1837, %v1813
        %v1839 = vrot.slane %v1838, 4
        %v1840 = vadd.f32 %v1838, %v1839
        %v1841 = vrot.slane %v1840, 2
        %v1842 = vadd.f32 %v1840, %v1841
        %v1843 = vrot.slane %v1842, 1
        %v1844 = vadd.f32 %v1842, %v1843
        %1845 = vst [vmem:[%s874] sm:$0x1] %v1844
        %v1846 = vmul.f32 %v1802, %v1802
        %v1847 = vmul.f32 %v1805, %v1805
        %v1848 = vmul.f32 %v1810, %v1810
        %v1849 = vmul.f32 %v1813, %v1813
        %v1850 = vadd.f32 %v1846, %v1847
        %v1851 = vadd.f32 %v1850, %v1848
        %v1852 = vadd.f32 %v1851, %v1849
        %v1853 = vrot.slane %v1852, 4
        %v1854 = vadd.f32 %v1852, %v1853
        %v1855 = vrot.slane %v1854, 2
        %v1856 = vadd.f32 %v1854, %v1855
        %v1857 = vrot.slane %v1856, 1
        %v1858 = vadd.f32 %v1856, %v1857
        %1859 = vst [vmem:[%s881] sm:$0x1] %v1858
        %s1860 = sand.u32 %s90, 1
        %s1861 = sand.u32 %s90, 1
        %s1862 = smul.addr %s1861, 16
        %s1863 = scalar_lea.vmem [#allocation3], %s1862
        %p1864 = scmp.lt.s32.totalorder %s20, 0
        %s1865 = scalar_select %p1864, %s20, 0
        %p1866 = scmp.lt.s32.totalorder %s21, 1
        %s1867 = scalar_select %p1866, %s21, 1
        %s1868 = smul.addr %s1865, 2
        %s1869 = sadd.s32 %s1867, %s1868
        %s1870 = scalar_lea.vmem %s3, %s1869
        %p1871 = scmp.lt.s32.totalorder %s20, 0
        %s1872 = scalar_select %p1871, %s20, 0
        %p1873 = scmp.lt.s32.totalorder %s21, 1
        %s1874 = scalar_select %p1873, %s21, 1
        %s1875 = smul.addr %s1872, 2
        %s1876 = sadd.s32 %s1874, %s1875
        %s1877 = scalar_lea.vmem %s4, %s1876
        // Predicated region
        $region70: #{generator_forward.11} parent=64 // pred_check
          %p1878 = pneg %p100
        $region71: #{generator_forward.11} parent=64 // pred_check_branch
          %1880 = sbr.rel (%p1878) target = $region73
        $region72: #{generator_forward.11} parent=64 // pred_region
          %s1881 = smul.u32 4, %s20
          %s1882 = smul.addr %s1881, 2
          %s1883 = sadd.s32 %s21, %s1882
          %s1884 = smul.addr %s1883, 4
          %s1885 = scalar_lea.vmem %s2, %s1884
          // Predicated region
          $region74: #{generator_forward.11} parent=72 // pred_check
            _
          $region75: #{generator_forward.11} parent=72 // pred_check_branch
            %1887 = sbr.rel (0) target = $region77
          $region76: #{generator_forward.11} parent=72 // pred_region
            // Predicated region
            $region78: #{generator_forward.11} parent=76 // pred_check
              _
            $region79: #{generator_forward.11} parent=76 // pred_check_branch
              %1889 = sbr.rel target = $region81
            $region80: #{generator_forward.11} parent=76 // pred_region
              // Predicated region
              $region93: #{generator_forward.11} parent=80 // pred_check
                _
              $region94: #{generator_forward.11} parent=80 // pred_check_branch
                %1910 = sbr.rel (0) target = $region96
              $region95: #{generator_forward.11} parent=80 // pred_region
                loop: start=0, step=1, limit=1
                $region97: #{generator_forward.11} parent=95 // loop_pre_header
                  _
                $region98: #{generator_forward.11} parent=95 // loop_header
                  %s1912 = sphi 0, %s1916
                  %p1913 = scmp.ge.s32.totalorder %s1912, 1
                  %s1917 = sphi %s1863, %s1863
                  %s1918 = sphi %s1885, %s1885
                $region99: #{generator_forward.11} parent=95 // loop_header_branch
                  %1915 = sbr.rel (%p1913) target = $region103
                $region100: #{generator_forward.11} parent=95 // loop_body
                  _
                $region101: #{generator_forward.11} parent=95 // loop_footer
                  %s1916 = sadd.s32 1, %s1912
                $region102: #{generator_forward.11} parent=95 // loop_footer_branch
                  %1911 = sbr.rel target = $region98
                $region103: #{generator_forward.11} parent=95 // loop_exit
                  _
                loop: start=0, step=1, limit=1
                $region104: #{generator_forward.11} parent=95 // loop_pre_header
                  _
                $region105: #{generator_forward.11} parent=95 // loop_header
                  %s1921 = sphi 0, %s1925
                  %p1922 = scmp.ge.s32.totalorder %s1921, 1
                  %s1926 = sphi %s1863, %s1863
                  %s1927 = sphi %s1885, %s1885
                $region106: #{generator_forward.11} parent=95 // loop_header_branch
                  %1924 = sbr.rel (%p1922) target = $region110
                $region107: #{generator_forward.11} parent=95 // loop_body
                  %v1928 = vld [vmem:[%s1926] sm:$0xf]
                  %1929 = vst [vmem:[%s1927] sm:$0xf] %v1928
                  %v1930 = vld [vmem:[%s1926 + $0x4] sm:$0xf]
                  %1931 = vst [vmem:[%s1927 + $0x8] sm:$0xf] %v1930
                  %v1932 = vld [vmem:[%s1926 + $0x8] sm:$0xf]
                  %1933 = vst [vmem:[%s1927 + $0x10] sm:$0xf] %v1932
                  %v1934 = vld [vmem:[%s1926 + $0xc] sm:$0xf]
                  %1935 = vst [vmem:[%s1927 + $0x18] sm:$0xf] %v1934
                $region108: #{generator_forward.11} parent=95 // loop_footer
                  %s1925 = sadd.s32 1, %s1921
                $region109: #{generator_forward.11} parent=95 // loop_footer_branch
                  %1920 = sbr.rel target = $region105
                $region110: #{generator_forward.11} parent=95 // loop_exit
                  _
              $region96: #{generator_forward.11} parent=80 // pred_fallthru
                _
            $region81: #{generator_forward.11} parent=76 // pred_fallthru
              _
            // Predicated region
            $region82: #{generator_forward.11} parent=76 // pred_check
              _
            $region83: #{generator_forward.11} parent=76 // pred_check_branch
              %1891 = sbr.rel (0) target = $region85
            $region84: #{generator_forward.11} parent=76 // pred_region
              loop: start=0, step=1, limit=1
              $region86: #{generator_forward.11} parent=84 // loop_pre_header
                _
              $region87: #{generator_forward.11} parent=84 // loop_header
                %s1894 = sphi 0, %s1898
                %p1895 = scmp.ge.s32.totalorder %s1894, 1
                %s1899 = sphi %s1863, %s1863
                %s1900 = sphi %s1885, %s1885
              $region88: #{generator_forward.11} parent=84 // loop_header_branch
                %1897 = sbr.rel (%p1895) target = $region92
              $region89: #{generator_forward.11} parent=84 // loop_body
                %v1901 = vld [vmem:[%s1899] sm:$0xf]
                %1902 = vst [vmem:[%s1900] sm:$0xf] %v1901
                %v1903 = vld [vmem:[%s1899 + $0x4] sm:$0xf]
                %1904 = vst [vmem:[%s1900 + $0x8] sm:$0xf] %v1903
                %v1905 = vld [vmem:[%s1899 + $0x8] sm:$0xf]
                %1906 = vst [vmem:[%s1900 + $0x10] sm:$0xf] %v1905
                %v1907 = vld [vmem:[%s1899 + $0xc] sm:$0xf]
                %1908 = vst [vmem:[%s1900 + $0x18] sm:$0xf] %v1907
              $region90: #{generator_forward.11} parent=84 // loop_footer
                %s1898 = sadd.s32 1, %s1894
              $region91: #{generator_forward.11} parent=84 // loop_footer_branch
                %1893 = sbr.rel target = $region87
              $region92: #{generator_forward.11} parent=84 // loop_exit
                _
            $region85: #{generator_forward.11} parent=76 // pred_fallthru
              _
          $region77: #{generator_forward.11} parent=72 // pred_fallthru
            _
          %1936 = vnop
        $region73: #{generator_forward.11} parent=64 // pred_fallthru
          _
        // Predicated region
        $region111: #{generator_forward.11} parent=64 // pred_check
          %p1937 = pneg %p128
        $region112: #{generator_forward.11} parent=64 // pred_check_branch
          %1939 = sbr.rel (%p1937) target = $region114
        $region113: #{generator_forward.11} parent=64 // pred_region
          _
        $region114: #{generator_forward.11} parent=64 // pred_fallthru
          _
        // Predicated region
        $region115: #{generator_forward.11} parent=64 // pred_check
          %p1940 = pneg %p156
        $region116: #{generator_forward.11} parent=64 // pred_check_branch
          %1942 = sbr.rel (%p1940) target = $region118
        $region117: #{generator_forward.11} parent=64 // pred_region
          _
        $region118: #{generator_forward.11} parent=64 // pred_fallthru
          _
      $region65: #{generator_forward.11} parent=5 // pred_fallthru
        _
      %p1943 = scmp.le.s32.totalorder 2, %s11
      // Predicated region
      $region119: #{generator_forward.11} parent=5 // pred_check
        %p1944 = pneg %p1943
      $region120: #{generator_forward.11} parent=5 // pred_check_branch
        %1946 = sbr.rel (%p1944) target = $region122
      $region121: #{generator_forward.11} parent=5 // pred_region
        %s1947 = ssub.s32 %s11, 2
        // Predicated region
        $region123: #{generator_forward.11} parent=121 // pred_check
          %p1948 = pneg %p106
        $region124: #{generator_forward.11} parent=121 // pred_check_branch
          %1950 = sbr.rel (%p1948) target = $region126
        $region125: #{generator_forward.11} parent=121 // pred_region
          %s1951 = sand.u32 %s91, 1
          %s1952 = sand.u32 %s91, 1
          %s1953 = smul.addr %s1952, 16
          %s1954 = scalar_lea.vmem [#allocation3], %s1953
        $region126: #{generator_forward.11} parent=121 // pred_fallthru
          _
        // Predicated region
        $region127: #{generator_forward.11} parent=121 // pred_check
          %p1955 = pneg %p134
        $region128: #{generator_forward.11} parent=121 // pred_check_branch
          %1957 = sbr.rel (%p1955) target = $region130
        $region129: #{generator_forward.11} parent=121 // pred_region
          %p1958 = scmp.lt.s32.totalorder %s22, 0
          %s1959 = scalar_select %p1958, %s22, 0
          %p1960 = scmp.lt.s32.totalorder %s23, 1
          %s1961 = scalar_select %p1960, %s23, 1
          %s1962 = smul.addr %s1959, 2
          %s1963 = sadd.s32 %s1961, %s1962
          %s1964 = scalar_lea.vmem %s3, %s1963
        $region130: #{generator_forward.11} parent=121 // pred_fallthru
          _
        // Predicated region
        $region131: #{generator_forward.11} parent=121 // pred_check
          %p1965 = pneg %p162
        $region132: #{generator_forward.11} parent=121 // pred_check_branch
          %1967 = sbr.rel (%p1965) target = $region134
        $region133: #{generator_forward.11} parent=121 // pred_region
          %p1968 = scmp.lt.s32.totalorder %s22, 0
          %s1969 = scalar_select %p1968, %s22, 0
          %p1970 = scmp.lt.s32.totalorder %s23, 1
          %s1971 = scalar_select %p1970, %s23, 1
          %s1972 = smul.addr %s1969, 2
          %s1973 = sadd.s32 %s1971, %s1972
          %s1974 = scalar_lea.vmem %s4, %s1973
        $region134: #{generator_forward.11} parent=121 // pred_fallthru
          _
      $region122: #{generator_forward.11} parent=5 // pred_fallthru
        _
    $region6: #{generator_forward.11} parent=1 // loop_footer
      %s15 = sadd.s32 1, %s11
    $region7: #{generator_forward.11} parent=1 // loop_footer_branch
      %10 = sbr.rel target = $region3
    $region8: #{generator_forward.11} parent=1 // loop_exit
      _

// kernel: tile.53
$region0: #{tile.53}
  #allocation0 [shape = 's32[1]{0}', space=sflag, size = 0x4, scoped, tag = 'scoped memory for tile.53']
  %s0 = inlined_call_operand.vmem [shape: f32[32], index: 0, kind: input, shape index: {}]
  %s1 = inlined_call_operand.vmem [shape: f32[4,32], index: 1, kind: output, shape index: {}]
  // Predicated region
  $region2: #{tile.53} parent=0 // pred_check
    _
  $region3: #{tile.53} parent=0 // pred_check_branch
    %3 = sbr.rel (0) target = $region5
  $region4: #{tile.53} parent=0 // pred_region
    _
  $region5: #{tile.53} parent=0 // pred_fallthru
    _
  %v4 = vld [vmem:[%s0] ss:$0 sm:$0xff]
  %5 = vst [vmem:[%s1] sm:$0xf] %v4

// kernel: generator_forward.13
$region0: #{generator_forward.13}
  #allocation0 [shape = 'u32[]', space=smem, size = 0x4, offset = 0x4, fixed_abs, tag = 'smem constant byte address 0x4 - core index']
  #allocation1 [shape = 'u32[144,128]{1,0:T(1,128)}', space=vmem, size = 0x12000, scoped, tag = 'internal scratch']
  %s0 = inlined_call_operand.vmem [shape: bf16[128,576], index: 0, kind: input, shape index: {}]
  %s1 = inlined_call_operand.vmem [shape: bf16[576,128], index: 1, kind: input, shape index: {}]
  %s2 = inlined_call_operand.vmem [shape: bf16[128,128], index: 2, kind: output, shape index: {0}]
  %s3 = inlined_call_operand.vmem [shape: f32[1,1,128], index: 3, kind: output, shape index: {1}]
  %s4 = inlined_call_operand.vmem [shape: f32[1,1,128], index: 4, kind: output, shape index: {2}]
  %5 = xla_tuple %s2, %s3, %s4
  %s6 = sld [smem:[#allocation0]]
  $region34: #{generator_forward.13} parent=0
    _
  %s8 = ssub.s32 1, %s6
  %s9 = scalar_select 0, %s8, %s6
  // Predicated region
  $region2: #{generator_forward.13} parent=0 // pred_check
    _
  $region3: #{generator_forward.13} parent=0 // pred_check_branch
    %11 = sbr.rel (0) target = $region5
  $region4: #{generator_forward.13} parent=0 // pred_region
    _
  $region5: #{generator_forward.13} parent=0 // pred_fallthru
    _
  // Predicated region
  $region6: #{generator_forward.13} parent=0 // pred_check
    _
  $region7: #{generator_forward.13} parent=0 // pred_check_branch
    %13 = sbr.rel (0) target = $region9
  $region8: #{generator_forward.13} parent=0 // pred_region
    _
  $region9: #{generator_forward.13} parent=0 // pred_fallthru
    _
  %v15 = vld [vmem:[%s0] sm:$0xff]
  %v16 = vld [vmem:[%s0 + $0x8] sm:$0xff]
  %v17 = vld [vmem:[%s0 + $0x10] sm:$0xf]
  %v18 = vld [vmem:[%s0 + $0x14] sm:$0xff]
  %v19 = vld [vmem:[%s0 + $0x1c] sm:$0xff]
  %v20 = vld [vmem:[%s0 + $0x24] sm:$0xf]
  %v21 = vld [vmem:[%s0 + $0x28] sm:$0xff]
  %v22 = vld [vmem:[%s0 + $0x30] sm:$0xff]
  %v23 = vld [vmem:[%s0 + $0x38] sm:$0xf]
  %v24 = vld [vmem:[%s0 + $0x3c] sm:$0xff]
  %v25 = vld [vmem:[%s0 + $0x44] sm:$0xff]
  %v26 = vld [vmem:[%s0 + $0x4c] sm:$0xf]
  %v27 = vld [vmem:[%s0 + $0x50] sm:$0xff]
  %v28 = vld [vmem:[%s0 + $0x58] sm:$0xff]
  %v29 = vld [vmem:[%s0 + $0x60] sm:$0xf]
  %v30 = vld [vmem:[%s0 + $0x64] sm:$0xff]
  %v31 = vld [vmem:[%s0 + $0x6c] sm:$0xff]
  %v32 = vld [vmem:[%s0 + $0x74] sm:$0xf]
  %v33 = vld [vmem:[%s0 + $0x78] sm:$0xff]
  %v34 = vld [vmem:[%s0 + $0x80] sm:$0xff]
  %v35 = vld [vmem:[%s0 + $0x88] sm:$0xf]
  %v36 = vld [vmem:[%s0 + $0x8c] sm:$0xff]
  %v37 = vld [vmem:[%s0 + $0x94] sm:$0xff]
  %v38 = vld [vmem:[%s0 + $0x9c] sm:$0xf]
  %v39 = vld [vmem:[%s0 + $0xa0] sm:$0xff]
  %v40 = vld [vmem:[%s0 + $0xa8] sm:$0xff]
  %v41 = vld [vmem:[%s0 + $0xb0] sm:$0xf]
  %v42 = vld [vmem:[%s0 + $0xb4] sm:$0xff]
  %v43 = vld [vmem:[%s0 + $0xbc] sm:$0xff]
  %v44 = vld [vmem:[%s0 + $0xc4] sm:$0xf]
  %v45 = vld [vmem:[%s0 + $0xc8] sm:$0xff]
  %v46 = vld [vmem:[%s0 + $0xd0] sm:$0xff]
  %v47 = vld [vmem:[%s0 + $0xd8] sm:$0xf]
  %v48 = vld [vmem:[%s0 + $0xdc] sm:$0xff]
  %v49 = vld [vmem:[%s0 + $0xe4] sm:$0xff]
  %v50 = vld [vmem:[%s0 + $0xec] sm:$0xf]
  %v51 = vld [vmem:[%s0 + $0xf0] sm:$0xff]
  %v52 = vld [vmem:[%s0 + $0xf8] sm:$0xff]
  %v53 = vld [vmem:[%s0 + $0x100] sm:$0xf]
  %v54 = vld [vmem:[%s0 + $0x104] sm:$0xff]
  %v55 = vld [vmem:[%s0 + $0x10c] sm:$0xff]
  %v56 = vld [vmem:[%s0 + $0x114] sm:$0xf]
  %v57 = vld [vmem:[%s0 + $0x118] sm:$0xff]
  %v58 = vld [vmem:[%s0 + $0x120] sm:$0xff]
  %v59 = vld [vmem:[%s0 + $0x128] sm:$0xf]
  %v60 = vld [vmem:[%s0 + $0x12c] sm:$0xff]
  %v61 = vld [vmem:[%s0 + $0x134] sm:$0xff]
  %v62 = vld [vmem:[%s0 + $0x13c] sm:$0xf]
  %v63 = vld [vmem:[%s1] sm:$0xf]
  %v64 = vld [vmem:[%s1 + $0x4] sm:$0xf]
  %v65 = vld [vmem:[%s1 + $0x8] sm:$0xf]
  %v66 = vld [vmem:[%s1 + $0xc] sm:$0xf]
  %v67 = vld [vmem:[%s1 + $0x10] sm:$0xf]
  %v68 = vld [vmem:[%s1 + $0x14] sm:$0xf]
  %v69 = vld [vmem:[%s1 + $0x18] sm:$0xf]
  %v70 = vld [vmem:[%s1 + $0x1c] sm:$0xf]
  %v71 = vld [vmem:[%s1 + $0x20] sm:$0xf]
  %v72 = vld [vmem:[%s1 + $0x24] sm:$0xf]
  %v73 = vld [vmem:[%s1 + $0x28] sm:$0xf]
  %v74 = vld [vmem:[%s1 + $0x2c] sm:$0xf]
  %v75 = vld [vmem:[%s1 + $0x30] sm:$0xf]
  %v76 = vld [vmem:[%s1 + $0x34] sm:$0xf]
  %v77 = vld [vmem:[%s1 + $0x38] sm:$0xf]
  %v78 = vld [vmem:[%s1 + $0x3c] sm:$0xf]
  %v79 = vld [vmem:[%s1 + $0x40] sm:$0xf]
  %v80 = vld [vmem:[%s1 + $0x44] sm:$0xf]
  %v81 = vld [vmem:[%s1 + $0x48] sm:$0xf]
  %v82 = vld [vmem:[%s1 + $0x4c] sm:$0xf]
  %v83 = vld [vmem:[%s1 + $0x50] sm:$0xf]
  %v84 = vld [vmem:[%s1 + $0x54] sm:$0xf]
  %v85 = vld [vmem:[%s1 + $0x58] sm:$0xf]
  %v86 = vld [vmem:[%s1 + $0x5c] sm:$0xf]
  %v87 = vld [vmem:[%s1 + $0x60] sm:$0xf]
  %v88 = vld [vmem:[%s1 + $0x64] sm:$0xf]
  %v89 = vld [vmem:[%s1 + $0x68] sm:$0xf]
  %v90 = vld [vmem:[%s1 + $0x6c] sm:$0xf]
  %v91 = vld [vmem:[%s1 + $0x70] sm:$0xf]
  %v92 = vld [vmem:[%s1 + $0x74] sm:$0xf]
  %v93 = vld [vmem:[%s1 + $0x78] sm:$0xf]
  %v94 = vld [vmem:[%s1 + $0x7c] sm:$0xf]
  %v95 = vld [vmem:[%s1 + $0x80] sm:$0xf]
  %v96 = vld [vmem:[%s1 + $0x84] sm:$0xf]
  %v97 = vld [vmem:[%s1 + $0x88] sm:$0xf]
  %v98 = vld [vmem:[%s1 + $0x8c] sm:$0xf]
  %v99 = vld [vmem:[%s1 + $0x90] sm:$0xf]
  %v100 = vld [vmem:[%s1 + $0x94] sm:$0xf]
  %v101 = vld [vmem:[%s1 + $0x98] sm:$0xf]
  %v102 = vld [vmem:[%s1 + $0x9c] sm:$0xf]
  %v103 = vld [vmem:[%s1 + $0xa0] sm:$0xf]
  %v104 = vld [vmem:[%s1 + $0xa4] sm:$0xf]
  %v105 = vld [vmem:[%s1 + $0xa8] sm:$0xf]
  %v106 = vld [vmem:[%s1 + $0xac] sm:$0xf]
  %v107 = vld [vmem:[%s1 + $0xb0] sm:$0xf]
  %v108 = vld [vmem:[%s1 + $0xb4] sm:$0xf]
  %v109 = vld [vmem:[%s1 + $0xb8] sm:$0xf]
  %v110 = vld [vmem:[%s1 + $0xbc] sm:$0xf]
  %v111 = vld [vmem:[%s1 + $0xc0] sm:$0xf]
  %v112 = vld [vmem:[%s1 + $0xc4] sm:$0xf]
  %v113 = vld [vmem:[%s1 + $0xc8] sm:$0xf]
  %v114 = vld [vmem:[%s1 + $0xcc] sm:$0xf]
  %v115 = vld [vmem:[%s1 + $0xd0] sm:$0xf]
  %v116 = vld [vmem:[%s1 + $0xd4] sm:$0xf]
  %v117 = vld [vmem:[%s1 + $0xd8] sm:$0xf]
  %v118 = vld [vmem:[%s1 + $0xdc] sm:$0xf]
  %v119 = vld [vmem:[%s1 + $0xe0] sm:$0xf]
  %v120 = vld [vmem:[%s1 + $0xe4] sm:$0xf]
  %v121 = vld [vmem:[%s1 + $0xe8] sm:$0xf]
  %v122 = vld [vmem:[%s1 + $0xec] sm:$0xf]
  %v123 = vld [vmem:[%s1 + $0xf0] sm:$0xf]
  %v124 = vld [vmem:[%s1 + $0xf4] sm:$0xf]
  %v125 = vld [vmem:[%s1 + $0xf8] sm:$0xf]
  %v126 = vld [vmem:[%s1 + $0xfc] sm:$0xf]
  %v127 = vld [vmem:[%s1 + $0x100] sm:$0xf]
  %v128 = vld [vmem:[%s1 + $0x104] sm:$0xf]
  %v129 = vld [vmem:[%s1 + $0x108] sm:$0xf]
  %v130 = vld [vmem:[%s1 + $0x10c] sm:$0xf]
  %v131 = vld [vmem:[%s1 + $0x110] sm:$0xf]
  %v132 = vld [vmem:[%s1 + $0x114] sm:$0xf]
  %v133 = vld [vmem:[%s1 + $0x118] sm:$0xf]
  %v134 = vld [vmem:[%s1 + $0x11c] sm:$0xf]
  %v183 = vunpack.c.l.b16 %v15
  %v184 = vunpack.c.h.b16 %v15
  %v185 = vunpack.c.l.b16 %v16
  %v186 = vunpack.c.h.b16 %v16
  %v187 = vunpack.c.l.b16 %v17
  %v188 = vunpack.c.l.b16 %v18
  %v189 = vunpack.c.h.b16 %v18
  %v190 = vunpack.c.l.b16 %v19
  %v191 = vunpack.c.h.b16 %v19
  %v192 = vunpack.c.l.b16 %v20
  %v193 = vunpack.c.l.b16 %v21
  %v194 = vunpack.c.h.b16 %v21
  %v195 = vunpack.c.l.b16 %v22
  %v196 = vunpack.c.h.b16 %v22
  %v197 = vunpack.c.l.b16 %v23
  %v198 = vunpack.c.l.b16 %v24
  %v199 = vunpack.c.h.b16 %v24
  %v200 = vunpack.c.l.b16 %v25
  %v201 = vunpack.c.h.b16 %v25
  %v202 = vunpack.c.l.b16 %v26
  %v203 = vunpack.c.l.b16 %v27
  %v204 = vunpack.c.h.b16 %v27
  %v205 = vunpack.c.l.b16 %v28
  %v206 = vunpack.c.h.b16 %v28
  %v207 = vunpack.c.l.b16 %v29
  %v208 = vunpack.c.l.b16 %v30
  %v209 = vunpack.c.h.b16 %v30
  %v210 = vunpack.c.l.b16 %v31
  %v211 = vunpack.c.h.b16 %v31
  %v212 = vunpack.c.l.b16 %v32
  %v213 = vunpack.c.l.b16 %v33
  %v214 = vunpack.c.h.b16 %v33
  %v215 = vunpack.c.l.b16 %v34
  %v216 = vunpack.c.h.b16 %v34
  %v217 = vunpack.c.l.b16 %v35
  %v218 = vunpack.c.l.b16 %v36
  %v219 = vunpack.c.h.b16 %v36
  %v220 = vunpack.c.l.b16 %v37
  %v221 = vunpack.c.h.b16 %v37
  %v222 = vunpack.c.l.b16 %v38
  %v223 = vunpack.c.l.b16 %v39
  %v224 = vunpack.c.h.b16 %v39
  %v225 = vunpack.c.l.b16 %v40
  %v226 = vunpack.c.h.b16 %v40
  %v227 = vunpack.c.l.b16 %v41
  %v228 = vunpack.c.l.b16 %v42
  %v229 = vunpack.c.h.b16 %v42
  %v230 = vunpack.c.l.b16 %v43
  %v231 = vunpack.c.h.b16 %v43
  %v232 = vunpack.c.l.b16 %v44
  %v233 = vunpack.c.l.b16 %v45
  %v234 = vunpack.c.h.b16 %v45
  %v235 = vunpack.c.l.b16 %v46
  %v236 = vunpack.c.h.b16 %v46
  %v237 = vunpack.c.l.b16 %v47
  %v238 = vunpack.c.l.b16 %v48
  %v239 = vunpack.c.h.b16 %v48
  %v240 = vunpack.c.l.b16 %v49
  %v241 = vunpack.c.h.b16 %v49
  %v242 = vunpack.c.l.b16 %v50
  %v243 = vunpack.c.l.b16 %v51
  %v244 = vunpack.c.h.b16 %v51
  %v245 = vunpack.c.l.b16 %v52
  %v246 = vunpack.c.h.b16 %v52
  %v247 = vunpack.c.l.b16 %v53
  %v248 = vunpack.c.l.b16 %v54
  %v249 = vunpack.c.h.b16 %v54
  %v250 = vunpack.c.l.b16 %v55
  %v251 = vunpack.c.h.b16 %v55
  %v252 = vunpack.c.l.b16 %v56
  %v253 = vunpack.c.l.b16 %v57
  %v254 = vunpack.c.h.b16 %v57
  %v255 = vunpack.c.l.b16 %v58
  %v256 = vunpack.c.h.b16 %v58
  %v257 = vunpack.c.l.b16 %v59
  %v258 = vunpack.c.l.b16 %v60
  %v259 = vunpack.c.h.b16 %v60
  %v260 = vunpack.c.l.b16 %v61
  %v261 = vunpack.c.h.b16 %v61
  %v262 = vunpack.c.l.b16 %v62
  %v263 = vpack.c.b16 %v188, %v183
  %v264 = vpack.c.b16 %v189, %v184
  %v265 = vpack.c.b16 %v190, %v185
  %v266 = vpack.c.b16 %v191, %v186
  %v267 = vpack.c.b16 %v192, %v187
  %v268 = vpack.c.b16 %v198, %v193
  %v269 = vpack.c.b16 %v199, %v194
  %v270 = vpack.c.b16 %v200, %v195
  %v271 = vpack.c.b16 %v201, %v196
  %v272 = vpack.c.b16 %v202, %v197
  %v273 = vpack.c.b16 %v208, %v203
  %v274 = vpack.c.b16 %v209, %v204
  %v275 = vpack.c.b16 %v210, %v205
  %v276 = vpack.c.b16 %v211, %v206
  %v277 = vpack.c.b16 %v212, %v207
  %v278 = vpack.c.b16 %v218, %v213
  %v279 = vpack.c.b16 %v219, %v214
  %v280 = vpack.c.b16 %v220, %v215
  %v281 = vpack.c.b16 %v221, %v216
  %v282 = vpack.c.b16 %v222, %v217
  %v283 = vpack.c.b16 %v228, %v223
  %v284 = vpack.c.b16 %v229, %v224
  %v285 = vpack.c.b16 %v230, %v225
  %v286 = vpack.c.b16 %v231, %v226
  %v287 = vpack.c.b16 %v232, %v227
  %v288 = vpack.c.b16 %v238, %v233
  %v289 = vpack.c.b16 %v239, %v234
  %v290 = vpack.c.b16 %v240, %v235
  %v291 = vpack.c.b16 %v241, %v236
  %v292 = vpack.c.b16 %v242, %v237
  %v293 = vpack.c.b16 %v248, %v243
  %v294 = vpack.c.b16 %v249, %v244
  %v295 = vpack.c.b16 %v250, %v245
  %v296 = vpack.c.b16 %v251, %v246
  %v297 = vpack.c.b16 %v252, %v247
  %v298 = vpack.c.b16 %v258, %v253
  %v299 = vpack.c.b16 %v259, %v254
  %v300 = vpack.c.b16 %v260, %v255
  %v301 = vpack.c.b16 %v261, %v256
  %v302 = vpack.c.b16 %v262, %v257
  %v407 = vunpack.c.l.b16 %v63
  %v408 = vunpack.c.l.b16 %v64
  %v409 = vunpack.c.l.b16 %v65
  %v410 = vunpack.c.l.b16 %v66
  %v411 = vunpack.c.l.b16 %v67
  %v412 = vunpack.c.l.b16 %v68
  %v413 = vunpack.c.l.b16 %v69
  %v414 = vunpack.c.l.b16 %v70
  %v415 = vunpack.c.l.b16 %v71
  %v416 = vunpack.c.l.b16 %v72
  %v417 = vunpack.c.l.b16 %v73
  %v418 = vunpack.c.l.b16 %v74
  %v419 = vunpack.c.l.b16 %v75
  %v420 = vunpack.c.l.b16 %v76
  %v421 = vunpack.c.l.b16 %v77
  %v422 = vunpack.c.l.b16 %v78
  %v423 = vunpack.c.l.b16 %v79
  %v424 = vunpack.c.l.b16 %v80
  %v425 = vunpack.c.l.b16 %v81
  %v426 = vunpack.c.l.b16 %v82
  %v427 = vunpack.c.l.b16 %v83
  %v428 = vunpack.c.l.b16 %v84
  %v429 = vunpack.c.l.b16 %v85
  %v430 = vunpack.c.l.b16 %v86
  %v431 = vunpack.c.l.b16 %v87
  %v432 = vunpack.c.l.b16 %v88
  %v433 = vunpack.c.l.b16 %v89
  %v434 = vunpack.c.l.b16 %v90
  %v435 = vunpack.c.l.b16 %v91
  %v436 = vunpack.c.l.b16 %v92
  %v437 = vunpack.c.l.b16 %v93
  %v438 = vunpack.c.l.b16 %v94
  %v439 = vunpack.c.l.b16 %v95
  %v440 = vunpack.c.l.b16 %v96
  %v441 = vunpack.c.l.b16 %v97
  %v442 = vunpack.c.l.b16 %v98
  %v443 = vunpack.c.l.b16 %v99
  %v444 = vunpack.c.l.b16 %v100
  %v445 = vunpack.c.l.b16 %v101
  %v446 = vunpack.c.l.b16 %v102
  %v447 = vunpack.c.l.b16 %v103
  %v448 = vunpack.c.l.b16 %v104
  %v449 = vunpack.c.l.b16 %v105
  %v450 = vunpack.c.l.b16 %v106
  %v451 = vunpack.c.l.b16 %v107
  %v452 = vunpack.c.l.b16 %v108
  %v453 = vunpack.c.l.b16 %v109
  %v454 = vunpack.c.l.b16 %v110
  %v455 = vunpack.c.l.b16 %v111
  %v456 = vunpack.c.l.b16 %v112
  %v457 = vunpack.c.l.b16 %v113
  %v458 = vunpack.c.l.b16 %v114
  %v459 = vunpack.c.l.b16 %v115
  %v460 = vunpack.c.l.b16 %v116
  %v461 = vunpack.c.l.b16 %v117
  %v462 = vunpack.c.l.b16 %v118
  %v463 = vunpack.c.l.b16 %v119
  %v464 = vunpack.c.l.b16 %v120
  %v465 = vunpack.c.l.b16 %v121
  %v466 = vunpack.c.l.b16 %v122
  %v467 = vunpack.c.l.b16 %v123
  %v468 = vunpack.c.l.b16 %v124
  %v469 = vunpack.c.l.b16 %v125
  %v470 = vunpack.c.l.b16 %v126
  %v471 = vunpack.c.l.b16 %v127
  %v472 = vunpack.c.l.b16 %v128
  %v473 = vunpack.c.l.b16 %v129
  %v474 = vunpack.c.l.b16 %v130
  %v475 = vunpack.c.l.b16 %v131
  %v476 = vunpack.c.l.b16 %v132
  %v477 = vunpack.c.l.b16 %v133
  %v478 = vunpack.c.l.b16 %v134
  %v479 = vpack.c.b16 %v408, %v407
  %v480 = vpack.c.b16 %v410, %v409
  %v481 = vpack.c.b16 %v412, %v411
  %v482 = vpack.c.b16 %v414, %v413
  %v483 = vpack.c.b16 %v416, %v415
  %v484 = vpack.c.b16 %v418, %v417
  %v485 = vpack.c.b16 %v420, %v419
  %v486 = vpack.c.b16 %v422, %v421
  %v487 = vpack.c.b16 %v424, %v423
  %v488 = vpack.c.b16 %v426, %v425
  %v489 = vpack.c.b16 %v428, %v427
  %v490 = vpack.c.b16 %v430, %v429
  %v491 = vpack.c.b16 %v432, %v431
  %v492 = vpack.c.b16 %v434, %v433
  %v493 = vpack.c.b16 %v436, %v435
  %v494 = vpack.c.b16 %v438, %v437
  %v495 = vpack.c.b16 %v440, %v439
  %v496 = vpack.c.b16 %v442, %v441
  %v497 = vpack.c.b16 %v444, %v443
  %v498 = vpack.c.b16 %v446, %v445
  %v499 = vpack.c.b16 %v448, %v447
  %v500 = vpack.c.b16 %v450, %v449
  %v501 = vpack.c.b16 %v452, %v451
  %v502 = vpack.c.b16 %v454, %v453
  %v503 = vpack.c.b16 %v456, %v455
  %v504 = vpack.c.b16 %v458, %v457
  %v505 = vpack.c.b16 %v460, %v459
  %v506 = vpack.c.b16 %v462, %v461
  %v507 = vpack.c.b16 %v464, %v463
  %v508 = vpack.c.b16 %v466, %v465
  %v509 = vpack.c.b16 %v468, %v467
  %v510 = vpack.c.b16 %v470, %v469
  %v511 = vpack.c.b16 %v472, %v471
  %v512 = vpack.c.b16 %v474, %v473
  %v513 = vpack.c.b16 %v476, %v475
  %v514 = vpack.c.b16 %v478, %v477
  %vm551 = vcmask 523264
  %v553 = vsel %vm551, %v267, 0
  %v556 = vsel %vm551, %v272, 0
  %v559 = vsel %vm551, %v277, 0
  %v562 = vsel %vm551, %v282, 0
  %v565 = vsel %vm551, %v287, 0
  %v568 = vsel %vm551, %v292, 0
  %v571 = vsel %vm551, %v297, 0
  %v574 = vsel %vm551, %v302, 0
  %576 = vmatprep.subr.bf16.mxu0 0
  %577 = vmatpush1.bf16.msra.mxu0 %v479
  %578 = vmatprep.subr.bf16.mxu0 0
  %579 = vmatpush1.bf16.msra.mxu0 %v480
  %580 = vmatprep.subr.bf16.mxu0 0
  %581 = vmatpush1.bf16.msra.mxu0 %v481
  %582 = vmatprep.subr.bf16.mxu0 0
  %583 = vmatpush1.bf16.msra.mxu0 %v482
  %584 = vmatprep.subr.bf16.mxu0 0
  %585 = vmatpush1.bf16.msra.mxu0 %v483
  %586 = vmatprep.subr.bf16.mxu0 0
  %587 = vmatpush1.bf16.msra.mxu0 %v484
  %588 = vmatprep.subr.bf16.mxu0 0
  %589 = vmatpush1.bf16.msra.mxu0 %v485
  %590 = vmatprep.subr.bf16.mxu0 0
  %591 = vmatpush1.bf16.msra.mxu0 %v486
  %592 = vmatprep.subr.bf16.mxu0 0
  %593 = vmatpush1.bf16.msra.mxu0 %v487
  %594 = vmatprep.subr.bf16.mxu0 0
  %595 = vmatpush1.bf16.msra.mxu0 %v488
  %596 = vmatprep.subr.bf16.mxu0 0
  %597 = vmatpush1.bf16.msra.mxu0 %v489
  %598 = vmatprep.subr.bf16.mxu0 0
  %599 = vmatpush1.bf16.msra.mxu0 %v490
  %600 = vmatprep.subr.bf16.mxu0 0
  %601 = vmatpush1.bf16.msra.mxu0 %v491
  %602 = vmatprep.subr.bf16.mxu0 0
  %603 = vmatpush1.bf16.msra.mxu0 %v492
  %604 = vmatprep.subr.bf16.mxu0 0
  %605 = vmatpush1.bf16.msra.mxu0 %v493
  %606 = vmatprep.subr.bf16.mxu0 0
  %607 = vmatpush1.bf16.msra.mxu0 %v494
  %608 = vmatprep.mubr.bf16.mxu0 %v264
  %609 = vmatmul.mubr.bf16.gmra.mrb[0].mxu0 %v263
  %v610 = vpop.f32.mrb[0].mxu0
  %v611 = vadd.f32 0.0, %v610
  %v612 = vpop.f32.mrb[0].mxu0
  %v613 = vpop.f32.mrb[0].mxu0
  %v614 = vadd.f32 0.0, %v613
  %v615 = vpop.f32.mrb[0].mxu0
  %616 = vmatprep.mubr.bf16.mxu0 %v269
  %617 = vmatmul.mubr.bf16.gmra.mrb[0].mxu0 %v268
  %v618 = vpop.f32.mrb[0].mxu0
  %v619 = vadd.f32 0.0, %v618
  %v620 = vpop.f32.mrb[0].mxu0
  %v621 = vpop.f32.mrb[0].mxu0
  %v622 = vadd.f32 0.0, %v621
  %v623 = vpop.f32.mrb[0].mxu0
  %624 = vmatprep.mubr.bf16.mxu0 %v274
  %625 = vmatmul.mubr.bf16.gmra.mrb[0].mxu0 %v273
  %v626 = vpop.f32.mrb[0].mxu0
  %v627 = vadd.f32 0.0, %v626
  %v628 = vpop.f32.mrb[0].mxu0
  %v629 = vpop.f32.mrb[0].mxu0
  %v630 = vadd.f32 0.0, %v629
  %v631 = vpop.f32.mrb[0].mxu0
  %632 = vmatprep.mubr.bf16.mxu0 %v279
  %633 = vmatmul.mubr.bf16.gmra.mrb[0].mxu0 %v278
  %v634 = vpop.f32.mrb[0].mxu0
  %v635 = vadd.f32 0.0, %v634
  %v636 = vpop.f32.mrb[0].mxu0
  %v637 = vpop.f32.mrb[0].mxu0
  %v638 = vadd.f32 0.0, %v637
  %v639 = vpop.f32.mrb[0].mxu0
  %640 = vmatprep.mubr.bf16.mxu0 %v284
  %641 = vmatmul.mubr.bf16.gmra.mrb[0].mxu0 %v283
  %v642 = vpop.f32.mrb[0].mxu0
  %v643 = vadd.f32 0.0, %v642
  %v644 = vpop.f32.mrb[0].mxu0
  %v645 = vpop.f32.mrb[0].mxu0
  %v646 = vadd.f32 0.0, %v645
  %v647 = vpop.f32.mrb[0].mxu0
  %648 = vmatprep.mubr.bf16.mxu0 %v289
  %649 = vmatmul.mubr.bf16.gmra.mrb[0].mxu0 %v288
  %v650 = vpop.f32.mrb[0].mxu0
  %v651 = vadd.f32 0.0, %v650
  %v652 = vpop.f32.mrb[0].mxu0
  %v653 = vpop.f32.mrb[0].mxu0
  %v654 = vadd.f32 0.0, %v653
  %v655 = vpop.f32.mrb[0].mxu0
  %656 = vmatprep.mubr.bf16.mxu0 %v294
  %657 = vmatmul.mubr.bf16.gmra.mrb[0].mxu0 %v293
  %v658 = vpop.f32.mrb[0].mxu0
  %v659 = vadd.f32 0.0, %v658
  %v660 = vpop.f32.mrb[0].mxu0
  %v661 = vpop.f32.mrb[0].mxu0
  %v662 = vadd.f32 0.0, %v661
  %v663 = vpop.f32.mrb[0].mxu0
  %664 = vmatprep.mubr.bf16.mxu0 %v299
  %665 = vmatmul.mubr.bf16.gmra.mrb[0].mxu0 %v298
  %v666 = vpop.f32.mrb[0].mxu0
  %v667 = vadd.f32 0.0, %v666
  %v668 = vpop.f32.mrb[0].mxu0
  %v669 = vpop.f32.mrb[0].mxu0
  %v670 = vadd.f32 0.0, %v669
  %v671 = vpop.f32.mrb[0].mxu0
  %672 = vdwg.mxu0
  %673 = vmatprep.subr.bf16.mxu0 0
  %674 = vmatpush1.bf16.msra.mxu0 %v495
  %675 = vmatprep.subr.bf16.mxu0 0
  %676 = vmatpush1.bf16.msra.mxu0 %v496
  %677 = vmatprep.subr.bf16.mxu0 0
  %678 = vmatpush1.bf16.msra.mxu0 %v497
  %679 = vmatprep.subr.bf16.mxu0 0
  %680 = vmatpush1.bf16.msra.mxu0 %v498
  %681 = vmatprep.subr.bf16.mxu0 0
  %682 = vmatpush1.bf16.msra.mxu0 %v499
  %683 = vmatprep.subr.bf16.mxu0 0
  %684 = vmatpush1.bf16.msra.mxu0 %v500
  %685 = vmatprep.subr.bf16.mxu0 0
  %686 = vmatpush1.bf16.msra.mxu0 %v501
  %687 = vmatprep.subr.bf16.mxu0 0
  %688 = vmatpush1.bf16.msra.mxu0 %v502
  %689 = vmatprep.subr.bf16.mxu0 0
  %690 = vmatpush1.bf16.msra.mxu0 %v503
  %691 = vmatprep.subr.bf16.mxu0 0
  %692 = vmatpush1.bf16.msra.mxu0 %v504
  %693 = vmatprep.subr.bf16.mxu0 0
  %694 = vmatpush1.bf16.msra.mxu0 %v505
  %695 = vmatprep.subr.bf16.mxu0 0
  %696 = vmatpush1.bf16.msra.mxu0 %v506
  %697 = vmatprep.subr.bf16.mxu0 0
  %698 = vmatpush1.bf16.msra.mxu0 %v507
  %699 = vmatprep.subr.bf16.mxu0 0
  %700 = vmatpush1.bf16.msra.mxu0 %v508
  %701 = vmatprep.subr.bf16.mxu0 0
  %702 = vmatpush1.bf16.msra.mxu0 %v509
  %703 = vmatprep.subr.bf16.mxu0 0
  %704 = vmatpush1.bf16.msra.mxu0 %v510
  %705 = vmatprep.mubr.bf16.mxu0 %v266
  %706 = vmatmul.mubr.bf16.gmra.mrb[0].mxu0 %v265
  %v707 = vpop.f32.mrb[0].mxu0
  %v708 = vadd.f32 %v611, %v707
  %v709 = vpop.f32.mrb[0].mxu0
  %v710 = vpop.f32.mrb[0].mxu0
  %v711 = vadd.f32 %v614, %v710
  %v712 = vpop.f32.mrb[0].mxu0
  %713 = vmatprep.mubr.bf16.mxu0 %v271
  %714 = vmatmul.mubr.bf16.gmra.mrb[0].mxu0 %v270
  %v715 = vpop.f32.mrb[0].mxu0
  %v716 = vadd.f32 %v619, %v715
  %v717 = vpop.f32.mrb[0].mxu0
  %v718 = vpop.f32.mrb[0].mxu0
  %v719 = vadd.f32 %v622, %v718
  %v720 = vpop.f32.mrb[0].mxu0
  %721 = vmatprep.mubr.bf16.mxu0 %v276
  %722 = vmatmul.mubr.bf16.gmra.mrb[0].mxu0 %v275
  %v723 = vpop.f32.mrb[0].mxu0
  %v724 = vadd.f32 %v627, %v723
  %v725 = vpop.f32.mrb[0].mxu0
  %v726 = vpop.f32.mrb[0].mxu0
  %v727 = vadd.f32 %v630, %v726
  %v728 = vpop.f32.mrb[0].mxu0
  %729 = vmatprep.mubr.bf16.mxu0 %v281
  %730 = vmatmul.mubr.bf16.gmra.mrb[0].mxu0 %v280
  %v731 = vpop.f32.mrb[0].mxu0
  %v732 = vadd.f32 %v635, %v731
  %v733 = vpop.f32.mrb[0].mxu0
  %v734 = vpop.f32.mrb[0].mxu0
  %v735 = vadd.f32 %v638, %v734
  %v736 = vpop.f32.mrb[0].mxu0
  %737 = vmatprep.mubr.bf16.mxu0 %v286
  %738 = vmatmul.mubr.bf16.gmra.mrb[0].mxu0 %v285
  %v739 = vpop.f32.mrb[0].mxu0
  %v740 = vadd.f32 %v643, %v739
  %v741 = vpop.f32.mrb[0].mxu0
  %v742 = vpop.f32.mrb[0].mxu0
  %v743 = vadd.f32 %v646, %v742
  %v744 = vpop.f32.mrb[0].mxu0
  %745 = vmatprep.mubr.bf16.mxu0 %v291
  %746 = vmatmul.mubr.bf16.gmra.mrb[0].mxu0 %v290
  %v747 = vpop.f32.mrb[0].mxu0
  %v748 = vadd.f32 %v651, %v747
  %v749 = vpop.f32.mrb[0].mxu0
  %v750 = vpop.f32.mrb[0].mxu0
  %v751 = vadd.f32 %v654, %v750
  %v752 = vpop.f32.mrb[0].mxu0
  %753 = vmatprep.mubr.bf16.mxu0 %v296
  %754 = vmatmul.mubr.bf16.gmra.mrb[0].mxu0 %v295
  %v755 = vpop.f32.mrb[0].mxu0
  %v756 = vadd.f32 %v659, %v755
  %v757 = vpop.f32.mrb[0].mxu0
  %v758 = vpop.f32.mrb[0].mxu0
  %v759 = vadd.f32 %v662, %v758
  %v760 = vpop.f32.mrb[0].mxu0
  %761 = vmatprep.mubr.bf16.mxu0 %v301
  %762 = vmatmul.mubr.bf16.gmra.mrb[0].mxu0 %v300
  %v763 = vpop.f32.mrb[0].mxu0
  %v764 = vadd.f32 %v667, %v763
  %v765 = vpop.f32.mrb[0].mxu0
  %v766 = vpop.f32.mrb[0].mxu0
  %v767 = vadd.f32 %v670, %v766
  %v768 = vpop.f32.mrb[0].mxu0
  %769 = vdwg.mxu0
  %770 = vmatprep.subr.bf16.mxu0 0
  %771 = vmatpush1.bf16.msra.mxu0 %v511
  %772 = vmatprep.subr.bf16.mxu0 0
  %773 = vmatpush1.bf16.msra.mxu0 %v512
  %774 = vmatprep.subr.bf16.mxu0 0
  %775 = vmatpush1.bf16.msra.mxu0 %v513
  %776 = vmatprep.subr.bf16.mxu0 0
  %777 = vmatpush1.bf16.msra.mxu0 %v514
  %778 = vmatprep.subr.bf16.mxu0 0
  %779 = vmatpush1.bf16.msra.mxu0 0
  %780 = vmatprep.subr.bf16.mxu0 0
  %781 = vmatpush1.bf16.msra.mxu0 0
  %782 = vmatprep.subr.bf16.mxu0 0
  %783 = vmatpush1.bf16.msra.mxu0 0
  %784 = vmatprep.subr.bf16.mxu0 0
  %785 = vmatpush1.bf16.msra.mxu0 0
  %786 = vmatprep.subr.bf16.mxu0 0
  %787 = vmatpush1.bf16.msra.mxu0 0
  %788 = vmatprep.subr.bf16.mxu0 0
  %789 = vmatpush1.bf16.msra.mxu0 0
  %790 = vmatprep.subr.bf16.mxu0 0
  %791 = vmatpush1.bf16.msra.mxu0 0
  %792 = vmatprep.subr.bf16.mxu0 0
  %793 = vmatpush1.bf16.msra.mxu0 0
  %794 = vmatprep.subr.bf16.mxu0 0
  %795 = vmatpush1.bf16.msra.mxu0 0
  %796 = vmatprep.subr.bf16.mxu0 0
  %797 = vmatpush1.bf16.msra.mxu0 0
  %798 = vmatprep.subr.bf16.mxu0 0
  %799 = vmatpush1.bf16.msra.mxu0 0
  %800 = vmatprep.subr.bf16.mxu0 0
  %801 = vmatpush1.bf16.msra.mxu0 0
  %802 = vmatprep.mubr.bf16.mxu0 0
  %803 = vmatmul.mubr.bf16.gmra.mrb[0].mxu0 %v553
  %v804 = vpop.f32.mrb[0].mxu0
  %v805 = vadd.f32 %v708, %v804
  %v806 = vpop.f32.mrb[0].mxu0
  %v807 = vpop.f32.mrb[0].mxu0
  %v808 = vadd.f32 %v711, %v807
  %v809 = vpop.f32.mrb[0].mxu0
  %810 = vmatprep.mubr.bf16.mxu0 0
  %811 = vmatmul.mubr.bf16.gmra.mrb[0].mxu0 %v556
  %v812 = vpop.f32.mrb[0].mxu0
  %v813 = vadd.f32 %v716, %v812
  %v814 = vpop.f32.mrb[0].mxu0
  %v815 = vpop.f32.mrb[0].mxu0
  %v816 = vadd.f32 %v719, %v815
  %v817 = vpop.f32.mrb[0].mxu0
  %818 = vmatprep.mubr.bf16.mxu0 0
  %819 = vmatmul.mubr.bf16.gmra.mrb[0].mxu0 %v559
  %v820 = vpop.f32.mrb[0].mxu0
  %v821 = vadd.f32 %v724, %v820
  %v822 = vpop.f32.mrb[0].mxu0
  %v823 = vpop.f32.mrb[0].mxu0
  %v824 = vadd.f32 %v727, %v823
  %v825 = vpop.f32.mrb[0].mxu0
  %826 = vmatprep.mubr.bf16.mxu0 0
  %827 = vmatmul.mubr.bf16.gmra.mrb[0].mxu0 %v562
  %v828 = vpop.f32.mrb[0].mxu0
  %v829 = vadd.f32 %v732, %v828
  %v830 = vpop.f32.mrb[0].mxu0
  %v831 = vpop.f32.mrb[0].mxu0
  %v832 = vadd.f32 %v735, %v831
  %v833 = vpop.f32.mrb[0].mxu0
  %834 = vmatprep.mubr.bf16.mxu0 0
  %835 = vmatmul.mubr.bf16.gmra.mrb[0].mxu0 %v565
  %v836 = vpop.f32.mrb[0].mxu0
  %v837 = vadd.f32 %v740, %v836
  %v838 = vpop.f32.mrb[0].mxu0
  %v839 = vpop.f32.mrb[0].mxu0
  %v840 = vadd.f32 %v743, %v839
  %v841 = vpop.f32.mrb[0].mxu0
  %842 = vmatprep.mubr.bf16.mxu0 0
  %843 = vmatmul.mubr.bf16.gmra.mrb[0].mxu0 %v568
  %v844 = vpop.f32.mrb[0].mxu0
  %v845 = vadd.f32 %v748, %v844
  %v846 = vpop.f32.mrb[0].mxu0
  %v847 = vpop.f32.mrb[0].mxu0
  %v848 = vadd.f32 %v751, %v847
  %v849 = vpop.f32.mrb[0].mxu0
  %850 = vmatprep.mubr.bf16.mxu0 0
  %851 = vmatmul.mubr.bf16.gmra.mrb[0].mxu0 %v571
  %v852 = vpop.f32.mrb[0].mxu0
  %v853 = vadd.f32 %v756, %v852
  %v854 = vpop.f32.mrb[0].mxu0
  %v855 = vpop.f32.mrb[0].mxu0
  %v856 = vadd.f32 %v759, %v855
  %v857 = vpop.f32.mrb[0].mxu0
  %858 = vmatprep.mubr.bf16.mxu0 0
  %859 = vmatmul.mubr.bf16.gmra.mrb[0].mxu0 %v574
  %v860 = vpop.f32.mrb[0].mxu0
  %v861 = vadd.f32 %v764, %v860
  %v862 = vpop.f32.mrb[0].mxu0
  %v863 = vpop.f32.mrb[0].mxu0
  %v864 = vadd.f32 %v767, %v863
  %v865 = vpop.f32.mrb[0].mxu0
  %866 = vdwg.mxu0
  %v867 = vpack.c.bf16 %v808, %v805
  %v868 = vpack.c.bf16 %v816, %v813
  %v869 = vpack.c.bf16 %v824, %v821
  %v870 = vpack.c.bf16 %v832, %v829
  %v871 = vpack.c.bf16 %v840, %v837
  %v872 = vpack.c.bf16 %v848, %v845
  %v873 = vpack.c.bf16 %v856, %v853
  %v874 = vpack.c.bf16 %v864, %v861
  %v883 = vunpack.c.l.b16 %v867
  %v884 = vunpack.c.h.b16 %v867
  %v885 = vunpack.c.l.b16 %v868
  %v886 = vunpack.c.h.b16 %v868
  %v887 = vunpack.c.l.b16 %v869
  %v888 = vunpack.c.h.b16 %v869
  %v889 = vunpack.c.l.b16 %v870
  %v890 = vunpack.c.h.b16 %v870
  %v891 = vunpack.c.l.b16 %v871
  %v892 = vunpack.c.h.b16 %v871
  %v893 = vunpack.c.l.b16 %v872
  %v894 = vunpack.c.h.b16 %v872
  %v895 = vunpack.c.l.b16 %v873
  %v896 = vunpack.c.h.b16 %v873
  %v897 = vunpack.c.l.b16 %v874
  %v898 = vunpack.c.h.b16 %v874
  %v899 = vpack.c.b16 %v883, %v883
  %v900 = vpack.c.b16 %v884, %v884
  %v901 = vpack.c.b16 %v885, %v885
  %v902 = vpack.c.b16 %v886, %v886
  %v903 = vpack.c.b16 %v887, %v887
  %v904 = vpack.c.b16 %v888, %v888
  %v905 = vpack.c.b16 %v889, %v889
  %v906 = vpack.c.b16 %v890, %v890
  %v907 = vpack.c.b16 %v891, %v891
  %v908 = vpack.c.b16 %v892, %v892
  %v909 = vpack.c.b16 %v893, %v893
  %v910 = vpack.c.b16 %v894, %v894
  %v911 = vpack.c.b16 %v895, %v895
  %v912 = vpack.c.b16 %v896, %v896
  %v913 = vpack.c.b16 %v897, %v897
  %v914 = vpack.c.b16 %v898, %v898
  %931 = vst [vmem:[%s2] sm:$0xf] %v899
  %932 = vst [vmem:[%s2 + $0x4] sm:$0xf] %v900
  %933 = vst [vmem:[%s2 + $0x8] sm:$0xf] %v901
  %934 = vst [vmem:[%s2 + $0xc] sm:$0xf] %v902
  %935 = vst [vmem:[%s2 + $0x10] sm:$0xf] %v903
  %936 = vst [vmem:[%s2 + $0x14] sm:$0xf] %v904
  %937 = vst [vmem:[%s2 + $0x18] sm:$0xf] %v905
  %938 = vst [vmem:[%s2 + $0x1c] sm:$0xf] %v906
  %939 = vst [vmem:[%s2 + $0x20] sm:$0xf] %v907
  %940 = vst [vmem:[%s2 + $0x24] sm:$0xf] %v908
  %941 = vst [vmem:[%s2 + $0x28] sm:$0xf] %v909
  %942 = vst [vmem:[%s2 + $0x2c] sm:$0xf] %v910
  %943 = vst [vmem:[%s2 + $0x30] sm:$0xf] %v911
  %944 = vst [vmem:[%s2 + $0x34] sm:$0xf] %v912
  %945 = vst [vmem:[%s2 + $0x38] sm:$0xf] %v913
  %946 = vst [vmem:[%s2 + $0x3c] sm:$0xf] %v914
  %v947 = vadd.f32 %v805, %v808
  %v948 = vadd.f32 %v947, %v813
  %v949 = vadd.f32 %v948, %v816
  %v950 = vadd.f32 %v949, %v821
  %v951 = vadd.f32 %v950, %v824
  %v952 = vadd.f32 %v951, %v829
  %v953 = vadd.f32 %v952, %v832
  %v954 = vadd.f32 %v953, %v837
  %v955 = vadd.f32 %v954, %v840
  %v956 = vadd.f32 %v955, %v845
  %v957 = vadd.f32 %v956, %v848
  %v958 = vadd.f32 %v957, %v853
  %v959 = vadd.f32 %v958, %v856
  %v960 = vadd.f32 %v959, %v861
  %v961 = vadd.f32 %v960, %v864
  %v962 = vrot.slane %v961, 4
  %v963 = vadd.f32 %v961, %v962
  %v964 = vrot.slane %v963, 2
  %v965 = vadd.f32 %v963, %v964
  %v966 = vrot.slane %v965, 1
  %v967 = vadd.f32 %v965, %v966
  %968 = vst [vmem:[%s3] sm:$0x1] %v967
  %v969 = vmul.f32 %v805, %v805
  %v970 = vmul.f32 %v808, %v808
  %v971 = vmul.f32 %v813, %v813
  %v972 = vmul.f32 %v816, %v816
  %v973 = vmul.f32 %v821, %v821
  %v974 = vmul.f32 %v824, %v824
  %v975 = vmul.f32 %v829, %v829
  %v976 = vmul.f32 %v832, %v832
  %v977 = vmul.f32 %v837, %v837
  %v978 = vmul.f32 %v840, %v840
  %v979 = vmul.f32 %v845, %v845
  %v980 = vmul.f32 %v848, %v848
  %v981 = vmul.f32 %v853, %v853
  %v982 = vmul.f32 %v856, %v856
  %v983 = vmul.f32 %v861, %v861
  %v984 = vmul.f32 %v864, %v864
  %v985 = vadd.f32 %v969, %v970
  %v986 = vadd.f32 %v985, %v971
  %v987 = vadd.f32 %v986, %v972
  %v988 = vadd.f32 %v987, %v973
  %v989 = vadd.f32 %v988, %v974
  %v990 = vadd.f32 %v989, %v975
  %v991 = vadd.f32 %v990, %v976
  %v992 = vadd.f32 %v991, %v977
  %v993 = vadd.f32 %v992, %v978
  %v994 = vadd.f32 %v993, %v979
  %v995 = vadd.f32 %v994, %v980
  %v996 = vadd.f32 %v995, %v981
  %v997 = vadd.f32 %v996, %v982
  %v998 = vadd.f32 %v997, %v983
  %v999 = vadd.f32 %v998, %v984
  %v1000 = vrot.slane %v999, 4
  %v1001 = vadd.f32 %v999, %v1000
  %v1002 = vrot.slane %v1001, 2
  %v1003 = vadd.f32 %v1001, %v1002
  %v1004 = vrot.slane %v1003, 1
  %v1005 = vadd.f32 %v1003, %v1004
  %1006 = vst [vmem:[%s4] sm:$0x1] %v1005
  // Predicated region
  $region10: #{generator_forward.13} parent=0 // pred_check
    _
  $region11: #{generator_forward.13} parent=0 // pred_check_branch
    %1008 = sbr.rel (0) target = $region13
  $region12: #{generator_forward.13} parent=0 // pred_region
    _
  $region13: #{generator_forward.13} parent=0 // pred_fallthru
    _
  // Predicated region
  $region14: #{generator_forward.13} parent=0 // pred_check
    _
  $region15: #{generator_forward.13} parent=0 // pred_check_branch
    %1010 = sbr.rel (0) target = $region17
  $region16: #{generator_forward.13} parent=0 // pred_region
    _
  $region17: #{generator_forward.13} parent=0 // pred_fallthru
    _
  // Predicated region
  $region18: #{generator_forward.13} parent=0 // pred_check
    _
  $region19: #{generator_forward.13} parent=0 // pred_check_branch
    %1012 = sbr.rel (0) target = $region21
  $region20: #{generator_forward.13} parent=0 // pred_region
    _
  $region21: #{generator_forward.13} parent=0 // pred_fallthru
    _
  // Predicated region
  $region22: #{generator_forward.13} parent=0 // pred_check
    _
  $region23: #{generator_forward.13} parent=0 // pred_check_branch
    %1014 = sbr.rel (0) target = $region25
  $region24: #{generator_forward.13} parent=0 // pred_region
    _
  $region25: #{generator_forward.13} parent=0 // pred_fallthru
    _
  // Predicated region
  $region26: #{generator_forward.13} parent=0 // pred_check
    _
  $region27: #{generator_forward.13} parent=0 // pred_check_branch
    %1016 = sbr.rel (0) target = $region29
  $region28: #{generator_forward.13} parent=0 // pred_region
    _
  $region29: #{generator_forward.13} parent=0 // pred_fallthru
    _
  // Predicated region
  $region30: #{generator_forward.13} parent=0 // pred_check
    _
  $region31: #{generator_forward.13} parent=0 // pred_check_branch
    %1018 = sbr.rel (0) target = $region33
  $region32: #{generator_forward.13} parent=0 // pred_region
    _
  $region33: #{generator_forward.13} parent=0 // pred_fallthru
    _

// kernel: generator_forward.14
$region0: #{generator_forward.14}
  #allocation0 [shape = 'u32[]', space=smem, size = 0x4, offset = 0x4, fixed_abs, tag = 'smem constant byte address 0x4 - core index']
  #allocation1 [shape = 'u32[144,128]{1,0:T(1,128)}', space=vmem, size = 0x12000, scoped, tag = 'internal scratch']
  %s0 = inlined_call_operand.vmem [shape: bf16[128,128], index: 0, kind: input, shape index: {}]
  %s1 = inlined_call_operand.vmem [shape: f32[1,128], index: 1, kind: input, shape index: {}]
  %s2 = inlined_call_operand.vmem [shape: f32[1,128], index: 2, kind: input, shape index: {}]
  %s3 = inlined_call_operand.vmem [shape: bf16[128,128], index: 3, kind: output, shape index: {}]
  %s4 = sld [smem:[#allocation0]]
  $region22: #{generator_forward.14} parent=0
    _
  %s6 = ssub.s32 1, %s4
  %s7 = scalar_select 0, %s6, %s4
  // Predicated region
  $region2: #{generator_forward.14} parent=0 // pred_check
    _
  $region3: #{generator_forward.14} parent=0 // pred_check_branch
    %9 = sbr.rel (0) target = $region5
  $region4: #{generator_forward.14} parent=0 // pred_region
    _
  $region5: #{generator_forward.14} parent=0 // pred_fallthru
    _
  // Predicated region
  $region6: #{generator_forward.14} parent=0 // pred_check
    _
  $region7: #{generator_forward.14} parent=0 // pred_check_branch
    %11 = sbr.rel (0) target = $region9
  $region8: #{generator_forward.14} parent=0 // pred_region
    _
  $region9: #{generator_forward.14} parent=0 // pred_fallthru
    _
  // Predicated region
  $region10: #{generator_forward.14} parent=0 // pred_check
    _
  $region11: #{generator_forward.14} parent=0 // pred_check_branch
    %13 = sbr.rel (0) target = $region13
  $region12: #{generator_forward.14} parent=0 // pred_region
    _
  $region13: #{generator_forward.14} parent=0 // pred_fallthru
    _
  %v14 = vld [vmem:[%s0] sm:$0xf]
  %v15 = vld [vmem:[%s0 + $0x4] sm:$0xf]
  %v16 = vld [vmem:[%s0 + $0x8] sm:$0xf]
  %v17 = vld [vmem:[%s0 + $0xc] sm:$0xf]
  %v18 = vld [vmem:[%s0 + $0x10] sm:$0xf]
  %v19 = vld [vmem:[%s0 + $0x14] sm:$0xf]
  %v20 = vld [vmem:[%s0 + $0x18] sm:$0xf]
  %v21 = vld [vmem:[%s0 + $0x1c] sm:$0xf]
  %v22 = vld [vmem:[%s0 + $0x20] sm:$0xf]
  %v23 = vld [vmem:[%s0 + $0x24] sm:$0xf]
  %v24 = vld [vmem:[%s0 + $0x28] sm:$0xf]
  %v25 = vld [vmem:[%s0 + $0x2c] sm:$0xf]
  %v26 = vld [vmem:[%s0 + $0x30] sm:$0xf]
  %v27 = vld [vmem:[%s0 + $0x34] sm:$0xf]
  %v28 = vld [vmem:[%s0 + $0x38] sm:$0xf]
  %v29 = vld [vmem:[%s0 + $0x3c] sm:$0xf]
  %v30 = vunpack.c.l.bf16 %v14
  %v31 = vunpack.c.l.bf16 %v15
  %v32 = vunpack.c.l.bf16 %v16
  %v33 = vunpack.c.l.bf16 %v17
  %v34 = vunpack.c.l.bf16 %v18
  %v35 = vunpack.c.l.bf16 %v19
  %v36 = vunpack.c.l.bf16 %v20
  %v37 = vunpack.c.l.bf16 %v21
  %v38 = vunpack.c.l.bf16 %v22
  %v39 = vunpack.c.l.bf16 %v23
  %v40 = vunpack.c.l.bf16 %v24
  %v41 = vunpack.c.l.bf16 %v25
  %v42 = vunpack.c.l.bf16 %v26
  %v43 = vunpack.c.l.bf16 %v27
  %v44 = vunpack.c.l.bf16 %v28
  %v45 = vunpack.c.l.bf16 %v29
  %v46 = vld [vmem:[%s1] sm:$0x1]
  %v48 = vlaneseq
  %v49 = vshrl.u32 %v48, 7
  %v50 = vsub.s32 0, %v49
  %v51 = vrot.slane %v46, %v50
  %v53 = vmul.f32 %v30, %v51
  %v54 = vmul.f32 %v31, %v51
  %v55 = vmul.f32 %v32, %v51
  %v56 = vmul.f32 %v33, %v51
  %v57 = vmul.f32 %v34, %v51
  %v58 = vmul.f32 %v35, %v51
  %v59 = vmul.f32 %v36, %v51
  %v60 = vmul.f32 %v37, %v51
  %v61 = vmul.f32 %v38, %v51
  %v62 = vmul.f32 %v39, %v51
  %v63 = vmul.f32 %v40, %v51
  %v64 = vmul.f32 %v41, %v51
  %v65 = vmul.f32 %v42, %v51
  %v66 = vmul.f32 %v43, %v51
  %v67 = vmul.f32 %v44, %v51
  %v68 = vmul.f32 %v45, %v51
  %v69 = vld [vmem:[%s2] sm:$0x1]
  %v71 = vlaneseq
  %v72 = vshrl.u32 %v71, 7
  %v73 = vsub.s32 0, %v72
  %v74 = vrot.slane %v69, %v73
  %v76 = vadd.f32 %v53, %v74
  %v77 = vadd.f32 %v54, %v74
  %v78 = vadd.f32 %v55, %v74
  %v79 = vadd.f32 %v56, %v74
  %v80 = vadd.f32 %v57, %v74
  %v81 = vadd.f32 %v58, %v74
  %v82 = vadd.f32 %v59, %v74
  %v83 = vadd.f32 %v60, %v74
  %v84 = vadd.f32 %v61, %v74
  %v85 = vadd.f32 %v62, %v74
  %v86 = vadd.f32 %v63, %v74
  %v87 = vadd.f32 %v64, %v74
  %v88 = vadd.f32 %v65, %v74
  %v89 = vadd.f32 %v66, %v74
  %v90 = vadd.f32 %v67, %v74
  %v91 = vadd.f32 %v68, %v74
  %v92 = vmax.f32 %v76, 0.0
  %v93 = vmax.f32 %v77, 0.0
  %v94 = vmax.f32 %v78, 0.0
  %v95 = vmax.f32 %v79, 0.0
  %v96 = vmax.f32 %v80, 0.0
  %v97 = vmax.f32 %v81, 0.0
  %v98 = vmax.f32 %v82, 0.0
  %v99 = vmax.f32 %v83, 0.0
  %v100 = vmax.f32 %v84, 0.0
  %v101 = vmax.f32 %v85, 0.0
  %v102 = vmax.f32 %v86, 0.0
  %v103 = vmax.f32 %v87, 0.0
  %v104 = vmax.f32 %v88, 0.0
  %v105 = vmax.f32 %v89, 0.0
  %v106 = vmax.f32 %v90, 0.0
  %v107 = vmax.f32 %v91, 0.0
  %v108 = vpack.c.bf16 %v93, %v92
  %v109 = vpack.c.bf16 %v95, %v94
  %v110 = vpack.c.bf16 %v97, %v96
  %v111 = vpack.c.bf16 %v99, %v98
  %v112 = vpack.c.bf16 %v101, %v100
  %v113 = vpack.c.bf16 %v103, %v102
  %v114 = vpack.c.bf16 %v105, %v104
  %v115 = vpack.c.bf16 %v107, %v106
  %v124 = vunpack.c.l.b16 %v108
  %v125 = vunpack.c.h.b16 %v108
  %v126 = vunpack.c.l.b16 %v109
  %v127 = vunpack.c.h.b16 %v109
  %v128 = vunpack.c.l.b16 %v110
  %v129 = vunpack.c.h.b16 %v110
  %v130 = vunpack.c.l.b16 %v111
  %v131 = vunpack.c.h.b16 %v111
  %v132 = vunpack.c.l.b16 %v112
  %v133 = vunpack.c.h.b16 %v112
  %v134 = vunpack.c.l.b16 %v113
  %v135 = vunpack.c.h.b16 %v113
  %v136 = vunpack.c.l.b16 %v114
  %v137 = vunpack.c.h.b16 %v114
  %v138 = vunpack.c.l.b16 %v115
  %v139 = vunpack.c.h.b16 %v115
  %v140 = vpack.c.b16 %v124, %v124
  %v141 = vpack.c.b16 %v125, %v125
  %v142 = vpack.c.b16 %v126, %v126
  %v143 = vpack.c.b16 %v127, %v127
  %v144 = vpack.c.b16 %v128, %v128
  %v145 = vpack.c.b16 %v129, %v129
  %v146 = vpack.c.b16 %v130, %v130
  %v147 = vpack.c.b16 %v131, %v131
  %v148 = vpack.c.b16 %v132, %v132
  %v149 = vpack.c.b16 %v133, %v133
  %v150 = vpack.c.b16 %v134, %v134
  %v151 = vpack.c.b16 %v135, %v135
  %v152 = vpack.c.b16 %v136, %v136
  %v153 = vpack.c.b16 %v137, %v137
  %v154 = vpack.c.b16 %v138, %v138
  %v155 = vpack.c.b16 %v139, %v139
  %172 = vst [vmem:[%s3] sm:$0xf] %v140
  %173 = vst [vmem:[%s3 + $0x4] sm:$0xf] %v141
  %174 = vst [vmem:[%s3 + $0x8] sm:$0xf] %v142
  %175 = vst [vmem:[%s3 + $0xc] sm:$0xf] %v143
  %176 = vst [vmem:[%s3 + $0x10] sm:$0xf] %v144
  %177 = vst [vmem:[%s3 + $0x14] sm:$0xf] %v145
  %178 = vst [vmem:[%s3 + $0x18] sm:$0xf] %v146
  %179 = vst [vmem:[%s3 + $0x1c] sm:$0xf] %v147
  %180 = vst [vmem:[%s3 + $0x20] sm:$0xf] %v148
  %181 = vst [vmem:[%s3 + $0x24] sm:$0xf] %v149
  %182 = vst [vmem:[%s3 + $0x28] sm:$0xf] %v150
  %183 = vst [vmem:[%s3 + $0x2c] sm:$0xf] %v151
  %184 = vst [vmem:[%s3 + $0x30] sm:$0xf] %v152
  %185 = vst [vmem:[%s3 + $0x34] sm:$0xf] %v153
  %186 = vst [vmem:[%s3 + $0x38] sm:$0xf] %v154
  %187 = vst [vmem:[%s3 + $0x3c] sm:$0xf] %v155
  // Predicated region
  $region14: #{generator_forward.14} parent=0 // pred_check
    _
  $region15: #{generator_forward.14} parent=0 // pred_check_branch
    %189 = sbr.rel (0) target = $region17
  $region16: #{generator_forward.14} parent=0 // pred_region
    _
  $region17: #{generator_forward.14} parent=0 // pred_fallthru
    _
  // Predicated region
  $region18: #{generator_forward.14} parent=0 // pred_check
    _
  $region19: #{generator_forward.14} parent=0 // pred_check_branch
    %191 = sbr.rel (0) target = $region21
  $region20: #{generator_forward.14} parent=0 // pred_region
    _
  $region21: #{generator_forward.14} parent=0 // pred_fallthru
    _

// kernel: generator_forward.15
$region0: #{generator_forward.15}
  #allocation0 [shape = 'u32[]', space=smem, size = 0x4, offset = 0x4, fixed_abs, tag = 'smem constant byte address 0x4 - core index']
  #allocation1 [shape = 'u32[144,128]{1,0:T(1,128)}', space=vmem, size = 0x12000, scoped, tag = 'internal scratch']
  %s0 = inlined_call_operand.vmem [shape: bf16[512,288], index: 0, kind: input, shape index: {}]
  %s1 = inlined_call_operand.vmem [shape: bf16[288,128], index: 1, kind: input, shape index: {}]
  %s2 = inlined_call_operand.vmem [shape: bf16[512,128], index: 2, kind: output, shape index: {0}]
  %s3 = inlined_call_operand.vmem [shape: f32[1,1,128], index: 3, kind: output, shape index: {1}]
  %s4 = inlined_call_operand.vmem [shape: f32[1,1,128], index: 4, kind: output, shape index: {2}]
  %5 = xla_tuple %s2, %s3, %s4
  %s6 = sld [smem:[#allocation0]]
  $region34: #{generator_forward.15} parent=0
    _
  %s8 = ssub.s32 1, %s6
  %s9 = scalar_select 0, %s8, %s6
  // Predicated region
  $region2: #{generator_forward.15} parent=0 // pred_check
    _
  $region3: #{generator_forward.15} parent=0 // pred_check_branch
    %11 = sbr.rel (0) target = $region5
  $region4: #{generator_forward.15} parent=0 // pred_region
    _
  $region5: #{generator_forward.15} parent=0 // pred_fallthru
    _
  // Predicated region
  $region6: #{generator_forward.15} parent=0 // pred_check
    _
  $region7: #{generator_forward.15} parent=0 // pred_check_branch
    %13 = sbr.rel (0) target = $region9
  $region8: #{generator_forward.15} parent=0 // pred_region
    _
  $region9: #{generator_forward.15} parent=0 // pred_fallthru
    _
  %v15 = vld [vmem:[%s0] sm:$0xff]
  %v16 = vld [vmem:[%s0 + $0x8] sm:$0xf]
  %v17 = vld [vmem:[%s0 + $0xc] sm:$0xff]
  %v18 = vld [vmem:[%s0 + $0x14] sm:$0xf]
  %v19 = vld [vmem:[%s0 + $0x18] sm:$0xff]
  %v20 = vld [vmem:[%s0 + $0x20] sm:$0xf]
  %v21 = vld [vmem:[%s0 + $0x24] sm:$0xff]
  %v22 = vld [vmem:[%s0 + $0x2c] sm:$0xf]
  %v23 = vld [vmem:[%s0 + $0x30] sm:$0xff]
  %v24 = vld [vmem:[%s0 + $0x38] sm:$0xf]
  %v25 = vld [vmem:[%s0 + $0x3c] sm:$0xff]
  %v26 = vld [vmem:[%s0 + $0x44] sm:$0xf]
  %v27 = vld [vmem:[%s0 + $0x48] sm:$0xff]
  %v28 = vld [vmem:[%s0 + $0x50] sm:$0xf]
  %v29 = vld [vmem:[%s0 + $0x54] sm:$0xff]
  %v30 = vld [vmem:[%s0 + $0x5c] sm:$0xf]
  %v31 = vld [vmem:[%s0 + $0x60] sm:$0xff]
  %v32 = vld [vmem:[%s0 + $0x68] sm:$0xf]
  %v33 = vld [vmem:[%s0 + $0x6c] sm:$0xff]
  %v34 = vld [vmem:[%s0 + $0x74] sm:$0xf]
  %v35 = vld [vmem:[%s0 + $0x78] sm:$0xff]
  %v36 = vld [vmem:[%s0 + $0x80] sm:$0xf]
  %v37 = vld [vmem:[%s0 + $0x84] sm:$0xff]
  %v38 = vld [vmem:[%s0 + $0x8c] sm:$0xf]
  %v39 = vld [vmem:[%s0 + $0x90] sm:$0xff]
  %v40 = vld [vmem:[%s0 + $0x98] sm:$0xf]
  %v41 = vld [vmem:[%s0 + $0x9c] sm:$0xff]
  %v42 = vld [vmem:[%s0 + $0xa4] sm:$0xf]
  %v43 = vld [vmem:[%s0 + $0xa8] sm:$0xff]
  %v44 = vld [vmem:[%s0 + $0xb0] sm:$0xf]
  %v45 = vld [vmem:[%s0 + $0xb4] sm:$0xff]
  %v46 = vld [vmem:[%s0 + $0xbc] sm:$0xf]
  %v47 = vld [vmem:[%s0 + $0xc0] sm:$0xff]
  %v48 = vld [vmem:[%s0 + $0xc8] sm:$0xf]
  %v49 = vld [vmem:[%s0 + $0xcc] sm:$0xff]
  %v50 = vld [vmem:[%s0 + $0xd4] sm:$0xf]
  %v51 = vld [vmem:[%s0 + $0xd8] sm:$0xff]
  %v52 = vld [vmem:[%s0 + $0xe0] sm:$0xf]
  %v53 = vld [vmem:[%s0 + $0xe4] sm:$0xff]
  %v54 = vld [vmem:[%s0 + $0xec] sm:$0xf]
  %v55 = vld [vmem:[%s0 + $0xf0] sm:$0xff]
  %v56 = vld [vmem:[%s0 + $0xf8] sm:$0xf]
  %v57 = vld [vmem:[%s0 + $0xfc] sm:$0xff]
  %v58 = vld [vmem:[%s0 + $0x104] sm:$0xf]
  %v59 = vld [vmem:[%s0 + $0x108] sm:$0xff]
  %v60 = vld [vmem:[%s0 + $0x110] sm:$0xf]
  %v61 = vld [vmem:[%s0 + $0x114] sm:$0xff]
  %v62 = vld [vmem:[%s0 + $0x11c] sm:$0xf]
  %v63 = vld [vmem:[%s0 + $0x120] sm:$0xff]
  %v64 = vld [vmem:[%s0 + $0x128] sm:$0xf]
  %v65 = vld [vmem:[%s0 + $0x12c] sm:$0xff]
  %v66 = vld [vmem:[%s0 + $0x134] sm:$0xf]
  %v67 = vld [vmem:[%s0 + $0x138] sm:$0xff]
  %v68 = vld [vmem:[%s0 + $0x140] sm:$0xf]
  %v69 = vld [vmem:[%s0 + $0x144] sm:$0xff]
  %v70 = vld [vmem:[%s0 + $0x14c] sm:$0xf]
  %v71 = vld [vmem:[%s0 + $0x150] sm:$0xff]
  %v72 = vld [vmem:[%s0 + $0x158] sm:$0xf]
  %v73 = vld [vmem:[%s0 + $0x15c] sm:$0xff]
  %v74 = vld [vmem:[%s0 + $0x164] sm:$0xf]
  %v75 = vld [vmem:[%s0 + $0x168] sm:$0xff]
  %v76 = vld [vmem:[%s0 + $0x170] sm:$0xf]
  %v77 = vld [vmem:[%s0 + $0x174] sm:$0xff]
  %v78 = vld [vmem:[%s0 + $0x17c] sm:$0xf]
  %v79 = vld [vmem:[%s0 + $0x180] sm:$0xff]
  %v80 = vld [vmem:[%s0 + $0x188] sm:$0xf]
  %v81 = vld [vmem:[%s0 + $0x18c] sm:$0xff]
  %v82 = vld [vmem:[%s0 + $0x194] sm:$0xf]
  %v83 = vld [vmem:[%s0 + $0x198] sm:$0xff]
  %v84 = vld [vmem:[%s0 + $0x1a0] sm:$0xf]
  %v85 = vld [vmem:[%s0 + $0x1a4] sm:$0xff]
  %v86 = vld [vmem:[%s0 + $0x1ac] sm:$0xf]
  %v87 = vld [vmem:[%s0 + $0x1b0] sm:$0xff]
  %v88 = vld [vmem:[%s0 + $0x1b8] sm:$0xf]
  %v89 = vld [vmem:[%s0 + $0x1bc] sm:$0xff]
  %v90 = vld [vmem:[%s0 + $0x1c4] sm:$0xf]
  %v91 = vld [vmem:[%s0 + $0x1c8] sm:$0xff]
  %v92 = vld [vmem:[%s0 + $0x1d0] sm:$0xf]
  %v93 = vld [vmem:[%s0 + $0x1d4] sm:$0xff]
  %v94 = vld [vmem:[%s0 + $0x1dc] sm:$0xf]
  %v95 = vld [vmem:[%s0 + $0x1e0] sm:$0xff]
  %v96 = vld [vmem:[%s0 + $0x1e8] sm:$0xf]
  %v97 = vld [vmem:[%s0 + $0x1ec] sm:$0xff]
  %v98 = vld [vmem:[%s0 + $0x1f4] sm:$0xf]
  %v99 = vld [vmem:[%s0 + $0x1f8] sm:$0xff]
  %v100 = vld [vmem:[%s0 + $0x200] sm:$0xf]
  %v101 = vld [vmem:[%s0 + $0x204] sm:$0xff]
  %v102 = vld [vmem:[%s0 + $0x20c] sm:$0xf]
  %v103 = vld [vmem:[%s0 + $0x210] sm:$0xff]
  %v104 = vld [vmem:[%s0 + $0x218] sm:$0xf]
  %v105 = vld [vmem:[%s0 + $0x21c] sm:$0xff]
  %v106 = vld [vmem:[%s0 + $0x224] sm:$0xf]
  %v107 = vld [vmem:[%s0 + $0x228] sm:$0xff]
  %v108 = vld [vmem:[%s0 + $0x230] sm:$0xf]
  %v109 = vld [vmem:[%s0 + $0x234] sm:$0xff]
  %v110 = vld [vmem:[%s0 + $0x23c] sm:$0xf]
  %v111 = vld [vmem:[%s0 + $0x240] sm:$0xff]
  %v112 = vld [vmem:[%s0 + $0x248] sm:$0xf]
  %v113 = vld [vmem:[%s0 + $0x24c] sm:$0xff]
  %v114 = vld [vmem:[%s0 + $0x254] sm:$0xf]
  %v115 = vld [vmem:[%s0 + $0x258] sm:$0xff]
  %v116 = vld [vmem:[%s0 + $0x260] sm:$0xf]
  %v117 = vld [vmem:[%s0 + $0x264] sm:$0xff]
  %v118 = vld [vmem:[%s0 + $0x26c] sm:$0xf]
  %v119 = vld [vmem:[%s0 + $0x270] sm:$0xff]
  %v120 = vld [vmem:[%s0 + $0x278] sm:$0xf]
  %v121 = vld [vmem:[%s0 + $0x27c] sm:$0xff]
  %v122 = vld [vmem:[%s0 + $0x284] sm:$0xf]
  %v123 = vld [vmem:[%s0 + $0x288] sm:$0xff]
  %v124 = vld [vmem:[%s0 + $0x290] sm:$0xf]
  %v125 = vld [vmem:[%s0 + $0x294] sm:$0xff]
  %v126 = vld [vmem:[%s0 + $0x29c] sm:$0xf]
  %v127 = vld [vmem:[%s0 + $0x2a0] sm:$0xff]
  %v128 = vld [vmem:[%s0 + $0x2a8] sm:$0xf]
  %v129 = vld [vmem:[%s0 + $0x2ac] sm:$0xff]
  %v130 = vld [vmem:[%s0 + $0x2b4] sm:$0xf]
  %v131 = vld [vmem:[%s0 + $0x2b8] sm:$0xff]
  %v132 = vld [vmem:[%s0 + $0x2c0] sm:$0xf]
  %v133 = vld [vmem:[%s0 + $0x2c4] sm:$0xff]
  %v134 = vld [vmem:[%s0 + $0x2cc] sm:$0xf]
  %v135 = vld [vmem:[%s0 + $0x2d0] sm:$0xff]
  %v136 = vld [vmem:[%s0 + $0x2d8] sm:$0xf]
  %v137 = vld [vmem:[%s0 + $0x2dc] sm:$0xff]
  %v138 = vld [vmem:[%s0 + $0x2e4] sm:$0xf]
  %v139 = vld [vmem:[%s0 + $0x2e8] sm:$0xff]
  %v140 = vld [vmem:[%s0 + $0x2f0] sm:$0xf]
  %v141 = vld [vmem:[%s0 + $0x2f4] sm:$0xff]
  %v142 = vld [vmem:[%s0 + $0x2fc] sm:$0xf]
  %v143 = vld [vmem:[%s1] sm:$0xf]
  %v144 = vld [vmem:[%s1 + $0x4] sm:$0xf]
  %v145 = vld [vmem:[%s1 + $0x8] sm:$0xf]
  %v146 = vld [vmem:[%s1 + $0xc] sm:$0xf]
  %v147 = vld [vmem:[%s1 + $0x10] sm:$0xf]
  %v148 = vld [vmem:[%s1 + $0x14] sm:$0xf]
  %v149 = vld [vmem:[%s1 + $0x18] sm:$0xf]
  %v150 = vld [vmem:[%s1 + $0x1c] sm:$0xf]
  %v151 = vld [vmem:[%s1 + $0x20] sm:$0xf]
  %v152 = vld [vmem:[%s1 + $0x24] sm:$0xf]
  %v153 = vld [vmem:[%s1 + $0x28] sm:$0xf]
  %v154 = vld [vmem:[%s1 + $0x2c] sm:$0xf]
  %v155 = vld [vmem:[%s1 + $0x30] sm:$0xf]
  %v156 = vld [vmem:[%s1 + $0x34] sm:$0xf]
  %v157 = vld [vmem:[%s1 + $0x38] sm:$0xf]
  %v158 = vld [vmem:[%s1 + $0x3c] sm:$0xf]
  %v159 = vld [vmem:[%s1 + $0x40] sm:$0xf]
  %v160 = vld [vmem:[%s1 + $0x44] sm:$0xf]
  %v161 = vld [vmem:[%s1 + $0x48] sm:$0xf]
  %v162 = vld [vmem:[%s1 + $0x4c] sm:$0xf]
  %v163 = vld [vmem:[%s1 + $0x50] sm:$0xf]
  %v164 = vld [vmem:[%s1 + $0x54] sm:$0xf]
  %v165 = vld [vmem:[%s1 + $0x58] sm:$0xf]
  %v166 = vld [vmem:[%s1 + $0x5c] sm:$0xf]
  %v167 = vld [vmem:[%s1 + $0x60] sm:$0xf]
  %v168 = vld [vmem:[%s1 + $0x64] sm:$0xf]
  %v169 = vld [vmem:[%s1 + $0x68] sm:$0xf]
  %v170 = vld [vmem:[%s1 + $0x6c] sm:$0xf]
  %v171 = vld [vmem:[%s1 + $0x70] sm:$0xf]
  %v172 = vld [vmem:[%s1 + $0x74] sm:$0xf]
  %v173 = vld [vmem:[%s1 + $0x78] sm:$0xf]
  %v174 = vld [vmem:[%s1 + $0x7c] sm:$0xf]
  %v175 = vld [vmem:[%s1 + $0x80] sm:$0xf]
  %v176 = vld [vmem:[%s1 + $0x84] sm:$0xf]
  %v177 = vld [vmem:[%s1 + $0x88] sm:$0xf]
  %v178 = vld [vmem:[%s1 + $0x8c] sm:$0xf]
  %v307 = vunpack.c.l.b16 %v15
  %v308 = vunpack.c.h.b16 %v15
  %v309 = vunpack.c.l.b16 %v16
  %v310 = vunpack.c.l.b16 %v17
  %v311 = vunpack.c.h.b16 %v17
  %v312 = vunpack.c.l.b16 %v18
  %v313 = vunpack.c.l.b16 %v19
  %v314 = vunpack.c.h.b16 %v19
  %v315 = vunpack.c.l.b16 %v20
  %v316 = vunpack.c.l.b16 %v21
  %v317 = vunpack.c.h.b16 %v21
  %v318 = vunpack.c.l.b16 %v22
  %v319 = vunpack.c.l.b16 %v23
  %v320 = vunpack.c.h.b16 %v23
  %v321 = vunpack.c.l.b16 %v24
  %v322 = vunpack.c.l.b16 %v25
  %v323 = vunpack.c.h.b16 %v25
  %v324 = vunpack.c.l.b16 %v26
  %v325 = vunpack.c.l.b16 %v27
  %v326 = vunpack.c.h.b16 %v27
  %v327 = vunpack.c.l.b16 %v28
  %v328 = vunpack.c.l.b16 %v29
  %v329 = vunpack.c.h.b16 %v29
  %v330 = vunpack.c.l.b16 %v30
  %v331 = vunpack.c.l.b16 %v31
  %v332 = vunpack.c.h.b16 %v31
  %v333 = vunpack.c.l.b16 %v32
  %v334 = vunpack.c.l.b16 %v33
  %v335 = vunpack.c.h.b16 %v33
  %v336 = vunpack.c.l.b16 %v34
  %v337 = vunpack.c.l.b16 %v35
  %v338 = vunpack.c.h.b16 %v35
  %v339 = vunpack.c.l.b16 %v36
  %v340 = vunpack.c.l.b16 %v37
  %v341 = vunpack.c.h.b16 %v37
  %v342 = vunpack.c.l.b16 %v38
  %v343 = vunpack.c.l.b16 %v39
  %v344 = vunpack.c.h.b16 %v39
  %v345 = vunpack.c.l.b16 %v40
  %v346 = vunpack.c.l.b16 %v41
  %v347 = vunpack.c.h.b16 %v41
  %v348 = vunpack.c.l.b16 %v42
  %v349 = vunpack.c.l.b16 %v43
  %v350 = vunpack.c.h.b16 %v43
  %v351 = vunpack.c.l.b16 %v44
  %v352 = vunpack.c.l.b16 %v45
  %v353 = vunpack.c.h.b16 %v45
  %v354 = vunpack.c.l.b16 %v46
  %v355 = vunpack.c.l.b16 %v47
  %v356 = vunpack.c.h.b16 %v47
  %v357 = vunpack.c.l.b16 %v48
  %v358 = vunpack.c.l.b16 %v49
  %v359 = vunpack.c.h.b16 %v49
  %v360 = vunpack.c.l.b16 %v50
  %v361 = vunpack.c.l.b16 %v51
  %v362 = vunpack.c.h.b16 %v51
  %v363 = vunpack.c.l.b16 %v52
  %v364 = vunpack.c.l.b16 %v53
  %v365 = vunpack.c.h.b16 %v53
  %v366 = vunpack.c.l.b16 %v54
  %v367 = vunpack.c.l.b16 %v55
  %v368 = vunpack.c.h.b16 %v55
  %v369 = vunpack.c.l.b16 %v56
  %v370 = vunpack.c.l.b16 %v57
  %v371 = vunpack.c.h.b16 %v57
  %v372 = vunpack.c.l.b16 %v58
  %v373 = vunpack.c.l.b16 %v59
  %v374 = vunpack.c.h.b16 %v59
  %v375 = vunpack.c.l.b16 %v60
  %v376 = vunpack.c.l.b16 %v61
  %v377 = vunpack.c.h.b16 %v61
  %v378 = vunpack.c.l.b16 %v62
  %v379 = vunpack.c.l.b16 %v63
  %v380 = vunpack.c.h.b16 %v63
  %v381 = vunpack.c.l.b16 %v64
  %v382 = vunpack.c.l.b16 %v65
  %v383 = vunpack.c.h.b16 %v65
  %v384 = vunpack.c.l.b16 %v66
  %v385 = vunpack.c.l.b16 %v67
  %v386 = vunpack.c.h.b16 %v67
  %v387 = vunpack.c.l.b16 %v68
  %v388 = vunpack.c.l.b16 %v69
  %v389 = vunpack.c.h.b16 %v69
  %v390 = vunpack.c.l.b16 %v70
  %v391 = vunpack.c.l.b16 %v71
  %v392 = vunpack.c.h.b16 %v71
  %v393 = vunpack.c.l.b16 %v72
  %v394 = vunpack.c.l.b16 %v73
  %v395 = vunpack.c.h.b16 %v73
  %v396 = vunpack.c.l.b16 %v74
  %v397 = vunpack.c.l.b16 %v75
  %v398 = vunpack.c.h.b16 %v75
  %v399 = vunpack.c.l.b16 %v76
  %v400 = vunpack.c.l.b16 %v77
  %v401 = vunpack.c.h.b16 %v77
  %v402 = vunpack.c.l.b16 %v78
  %v403 = vunpack.c.l.b16 %v79
  %v404 = vunpack.c.h.b16 %v79
  %v405 = vunpack.c.l.b16 %v80
  %v406 = vunpack.c.l.b16 %v81
  %v407 = vunpack.c.h.b16 %v81
  %v408 = vunpack.c.l.b16 %v82
  %v409 = vunpack.c.l.b16 %v83
  %v410 = vunpack.c.h.b16 %v83
  %v411 = vunpack.c.l.b16 %v84
  %v412 = vunpack.c.l.b16 %v85
  %v413 = vunpack.c.h.b16 %v85
  %v414 = vunpack.c.l.b16 %v86
  %v415 = vunpack.c.l.b16 %v87
  %v416 = vunpack.c.h.b16 %v87
  %v417 = vunpack.c.l.b16 %v88
  %v418 = vunpack.c.l.b16 %v89
  %v419 = vunpack.c.h.b16 %v89
  %v420 = vunpack.c.l.b16 %v90
  %v421 = vunpack.c.l.b16 %v91
  %v422 = vunpack.c.h.b16 %v91
  %v423 = vunpack.c.l.b16 %v92
  %v424 = vunpack.c.l.b16 %v93
  %v425 = vunpack.c.h.b16 %v93
  %v426 = vunpack.c.l.b16 %v94
  %v427 = vunpack.c.l.b16 %v95
  %v428 = vunpack.c.h.b16 %v95
  %v429 = vunpack.c.l.b16 %v96
  %v430 = vunpack.c.l.b16 %v97
  %v431 = vunpack.c.h.b16 %v97
  %v432 = vunpack.c.l.b16 %v98
  %v433 = vunpack.c.l.b16 %v99
  %v434 = vunpack.c.h.b16 %v99
  %v435 = vunpack.c.l.b16 %v100
  %v436 = vunpack.c.l.b16 %v101
  %v437 = vunpack.c.h.b16 %v101
  %v438 = vunpack.c.l.b16 %v102
  %v439 = vunpack.c.l.b16 %v103
  %v440 = vunpack.c.h.b16 %v103
  %v441 = vunpack.c.l.b16 %v104
  %v442 = vunpack.c.l.b16 %v105
  %v443 = vunpack.c.h.b16 %v105
  %v444 = vunpack.c.l.b16 %v106
  %v445 = vunpack.c.l.b16 %v107
  %v446 = vunpack.c.h.b16 %v107
  %v447 = vunpack.c.l.b16 %v108
  %v448 = vunpack.c.l.b16 %v109
  %v449 = vunpack.c.h.b16 %v109
  %v450 = vunpack.c.l.b16 %v110
  %v451 = vunpack.c.l.b16 %v111
  %v452 = vunpack.c.h.b16 %v111
  %v453 = vunpack.c.l.b16 %v112
  %v454 = vunpack.c.l.b16 %v113
  %v455 = vunpack.c.h.b16 %v113
  %v456 = vunpack.c.l.b16 %v114
  %v457 = vunpack.c.l.b16 %v115
  %v458 = vunpack.c.h.b16 %v115
  %v459 = vunpack.c.l.b16 %v116
  %v460 = vunpack.c.l.b16 %v117
  %v461 = vunpack.c.h.b16 %v117
  %v462 = vunpack.c.l.b16 %v118
  %v463 = vunpack.c.l.b16 %v119
  %v464 = vunpack.c.h.b16 %v119
  %v465 = vunpack.c.l.b16 %v120
  %v466 = vunpack.c.l.b16 %v121
  %v467 = vunpack.c.h.b16 %v121
  %v468 = vunpack.c.l.b16 %v122
  %v469 = vunpack.c.l.b16 %v123
  %v470 = vunpack.c.h.b16 %v123
  %v471 = vunpack.c.l.b16 %v124
  %v472 = vunpack.c.l.b16 %v125
  %v473 = vunpack.c.h.b16 %v125
  %v474 = vunpack.c.l.b16 %v126
  %v475 = vunpack.c.l.b16 %v127
  %v476 = vunpack.c.h.b16 %v127
  %v477 = vunpack.c.l.b16 %v128
  %v478 = vunpack.c.l.b16 %v129
  %v479 = vunpack.c.h.b16 %v129
  %v480 = vunpack.c.l.b16 %v130
  %v481 = vunpack.c.l.b16 %v131
  %v482 = vunpack.c.h.b16 %v131
  %v483 = vunpack.c.l.b16 %v132
  %v484 = vunpack.c.l.b16 %v133
  %v485 = vunpack.c.h.b16 %v133
  %v486 = vunpack.c.l.b16 %v134
  %v487 = vunpack.c.l.b16 %v135
  %v488 = vunpack.c.h.b16 %v135
  %v489 = vunpack.c.l.b16 %v136
  %v490 = vunpack.c.l.b16 %v137
  %v491 = vunpack.c.h.b16 %v137
  %v492 = vunpack.c.l.b16 %v138
  %v493 = vunpack.c.l.b16 %v139
  %v494 = vunpack.c.h.b16 %v139
  %v495 = vunpack.c.l.b16 %v140
  %v496 = vunpack.c.l.b16 %v141
  %v497 = vunpack.c.h.b16 %v141
  %v498 = vunpack.c.l.b16 %v142
  %v499 = vpack.c.b16 %v310, %v307
  %v500 = vpack.c.b16 %v311, %v308
  %v501 = vpack.c.b16 %v312, %v309
  %v502 = vpack.c.b16 %v316, %v313
  %v503 = vpack.c.b16 %v317, %v314
  %v504 = vpack.c.b16 %v318, %v315
  %v505 = vpack.c.b16 %v322, %v319
  %v506 = vpack.c.b16 %v323, %v320
  %v507 = vpack.c.b16 %v324, %v321
  %v508 = vpack.c.b16 %v328, %v325
  %v509 = vpack.c.b16 %v329, %v326
  %v510 = vpack.c.b16 %v330, %v327
  %v511 = vpack.c.b16 %v334, %v331
  %v512 = vpack.c.b16 %v335, %v332
  %v513 = vpack.c.b16 %v336, %v333
  %v514 = vpack.c.b16 %v340, %v337
  %v515 = vpack.c.b16 %v341, %v338
  %v516 = vpack.c.b16 %v342, %v339
  %v517 = vpack.c.b16 %v346, %v343
  %v518 = vpack.c.b16 %v347, %v344
  %v519 = vpack.c.b16 %v348, %v345
  %v520 = vpack.c.b16 %v352, %v349
  %v521 = vpack.c.b16 %v353, %v350
  %v522 = vpack.c.b16 %v354, %v351
  %v523 = vpack.c.b16 %v358, %v355
  %v524 = vpack.c.b16 %v359, %v356
  %v525 = vpack.c.b16 %v360, %v357
  %v526 = vpack.c.b16 %v364, %v361
  %v527 = vpack.c.b16 %v365, %v362
  %v528 = vpack.c.b16 %v366, %v363
  %v529 = vpack.c.b16 %v370, %v367
  %v530 = vpack.c.b16 %v371, %v368
  %v531 = vpack.c.b16 %v372, %v369
  %v532 = vpack.c.b16 %v376, %v373
  %v533 = vpack.c.b16 %v377, %v374
  %v534 = vpack.c.b16 %v378, %v375
  %v535 = vpack.c.b16 %v382, %v379
  %v536 = vpack.c.b16 %v383, %v380
  %v537 = vpack.c.b16 %v384, %v381
  %v538 = vpack.c.b16 %v388, %v385
  %v539 = vpack.c.b16 %v389, %v386
  %v540 = vpack.c.b16 %v390, %v387
  %v541 = vpack.c.b16 %v394, %v391
  %v542 = vpack.c.b16 %v395, %v392
  %v543 = vpack.c.b16 %v396, %v393
  %v544 = vpack.c.b16 %v400, %v397
  %v545 = vpack.c.b16 %v401, %v398
  %v546 = vpack.c.b16 %v402, %v399
  %v547 = vpack.c.b16 %v406, %v403
  %v548 = vpack.c.b16 %v407, %v404
  %v549 = vpack.c.b16 %v408, %v405
  %v550 = vpack.c.b16 %v412, %v409
  %v551 = vpack.c.b16 %v413, %v410
  %v552 = vpack.c.b16 %v414, %v411
  %v553 = vpack.c.b16 %v418, %v415
  %v554 = vpack.c.b16 %v419, %v416
  %v555 = vpack.c.b16 %v420, %v417
  %v556 = vpack.c.b16 %v424, %v421
  %v557 = vpack.c.b16 %v425, %v422
  %v558 = vpack.c.b16 %v426, %v423
  %v559 = vpack.c.b16 %v430, %v427
  %v560 = vpack.c.b16 %v431, %v428
  %v561 = vpack.c.b16 %v432, %v429
  %v562 = vpack.c.b16 %v436, %v433
  %v563 = vpack.c.b16 %v437, %v434
  %v564 = vpack.c.b16 %v438, %v435
  %v565 = vpack.c.b16 %v442, %v439
  %v566 = vpack.c.b16 %v443, %v440
  %v567 = vpack.c.b16 %v444, %v441
  %v568 = vpack.c.b16 %v448, %v445
  %v569 = vpack.c.b16 %v449, %v446
  %v570 = vpack.c.b16 %v450, %v447
  %v571 = vpack.c.b16 %v454, %v451
  %v572 = vpack.c.b16 %v455, %v452
  %v573 = vpack.c.b16 %v456, %v453
  %v574 = vpack.c.b16 %v460, %v457
  %v575 = vpack.c.b16 %v461, %v458
  %v576 = vpack.c.b16 %v462, %v459
  %v577 = vpack.c.b16 %v466, %v463
  %v578 = vpack.c.b16 %v467, %v464
  %v579 = vpack.c.b16 %v468, %v465
  %v580 = vpack.c.b16 %v472, %v469
  %v581 = vpack.c.b16 %v473, %v470
  %v582 = vpack.c.b16 %v474, %v471
  %v583 = vpack.c.b16 %v478, %v475
  %v584 = vpack.c.b16 %v479, %v476
  %v585 = vpack.c.b16 %v480, %v477
  %v586 = vpack.c.b16 %v484, %v481
  %v587 = vpack.c.b16 %v485, %v482
  %v588 = vpack.c.b16 %v486, %v483
  %v589 = vpack.c.b16 %v490, %v487
  %v590 = vpack.c.b16 %v491, %v488
  %v591 = vpack.c.b16 %v492, %v489
  %v592 = vpack.c.b16 %v496, %v493
  %v593 = vpack.c.b16 %v497, %v494
  %v594 = vpack.c.b16 %v498, %v495
  %v695 = vunpack.c.l.b16 %v143
  %v696 = vunpack.c.l.b16 %v144
  %v697 = vunpack.c.l.b16 %v145
  %v698 = vunpack.c.l.b16 %v146
  %v699 = vunpack.c.l.b16 %v147
  %v700 = vunpack.c.l.b16 %v148
  %v701 = vunpack.c.l.b16 %v149
  %v702 = vunpack.c.l.b16 %v150
  %v703 = vunpack.c.l.b16 %v151
  %v704 = vunpack.c.l.b16 %v152
  %v705 = vunpack.c.l.b16 %v153
  %v706 = vunpack.c.l.b16 %v154
  %v707 = vunpack.c.l.b16 %v155
  %v708 = vunpack.c.l.b16 %v156
  %v709 = vunpack.c.l.b16 %v157
  %v710 = vunpack.c.l.b16 %v158
  %v711 = vunpack.c.l.b16 %v159
  %v712 = vunpack.c.l.b16 %v160
  %v713 = vunpack.c.l.b16 %v161
  %v714 = vunpack.c.l.b16 %v162
  %v715 = vunpack.c.l.b16 %v163
  %v716 = vunpack.c.l.b16 %v164
  %v717 = vunpack.c.l.b16 %v165
  %v718 = vunpack.c.l.b16 %v166
  %v719 = vunpack.c.l.b16 %v167
  %v720 = vunpack.c.l.b16 %v168
  %v721 = vunpack.c.l.b16 %v169
  %v722 = vunpack.c.l.b16 %v170
  %v723 = vunpack.c.l.b16 %v171
  %v724 = vunpack.c.l.b16 %v172
  %v725 = vunpack.c.l.b16 %v173
  %v726 = vunpack.c.l.b16 %v174
  %v727 = vunpack.c.l.b16 %v175
  %v728 = vunpack.c.l.b16 %v176
  %v729 = vunpack.c.l.b16 %v177
  %v730 = vunpack.c.l.b16 %v178
  %v731 = vpack.c.b16 %v696, %v695
  %v732 = vpack.c.b16 %v698, %v697
  %v733 = vpack.c.b16 %v700, %v699
  %v734 = vpack.c.b16 %v702, %v701
  %v735 = vpack.c.b16 %v704, %v703
  %v736 = vpack.c.b16 %v706, %v705
  %v737 = vpack.c.b16 %v708, %v707
  %v738 = vpack.c.b16 %v710, %v709
  %v739 = vpack.c.b16 %v712, %v711
  %v740 = vpack.c.b16 %v714, %v713
  %v741 = vpack.c.b16 %v716, %v715
  %v742 = vpack.c.b16 %v718, %v717
  %v743 = vpack.c.b16 %v720, %v719
  %v744 = vpack.c.b16 %v722, %v721
  %v745 = vpack.c.b16 %v724, %v723
  %v746 = vpack.c.b16 %v726, %v725
  %v747 = vpack.c.b16 %v728, %v727
  %v748 = vpack.c.b16 %v730, %v729
  %vm767 = vcmask 261120
  %v769 = vsel %vm767, %v501, 0
  %v772 = vsel %vm767, %v504, 0
  %v775 = vsel %vm767, %v507, 0
  %v778 = vsel %vm767, %v510, 0
  %v781 = vsel %vm767, %v513, 0
  %v784 = vsel %vm767, %v516, 0
  %v787 = vsel %vm767, %v519, 0
  %v790 = vsel %vm767, %v522, 0
  %v793 = vsel %vm767, %v525, 0
  %v796 = vsel %vm767, %v528, 0
  %v799 = vsel %vm767, %v531, 0
  %v802 = vsel %vm767, %v534, 0
  %v805 = vsel %vm767, %v537, 0
  %v808 = vsel %vm767, %v540, 0
  %v811 = vsel %vm767, %v543, 0
  %v814 = vsel %vm767, %v546, 0
  %v817 = vsel %vm767, %v549, 0
  %v820 = vsel %vm767, %v552, 0
  %v823 = vsel %vm767, %v555, 0
  %v826 = vsel %vm767, %v558, 0
  %v829 = vsel %vm767, %v561, 0
  %v832 = vsel %vm767, %v564, 0
  %v835 = vsel %vm767, %v567, 0
  %v838 = vsel %vm767, %v570, 0
  %v841 = vsel %vm767, %v573, 0
  %v844 = vsel %vm767, %v576, 0
  %v847 = vsel %vm767, %v579, 0
  %v850 = vsel %vm767, %v582, 0
  %v853 = vsel %vm767, %v585, 0
  %v856 = vsel %vm767, %v588, 0
  %v859 = vsel %vm767, %v591, 0
  %v862 = vsel %vm767, %v594, 0
  %864 = vmatprep.subr.bf16.mxu0 0
  %865 = vmatpush1.bf16.msra.mxu0 %v731
  %866 = vmatprep.subr.bf16.mxu0 0
  %867 = vmatpush1.bf16.msra.mxu0 %v732
  %868 = vmatprep.subr.bf16.mxu0 0
  %869 = vmatpush1.bf16.msra.mxu0 %v733
  %870 = vmatprep.subr.bf16.mxu0 0
  %871 = vmatpush1.bf16.msra.mxu0 %v734
  %872 = vmatprep.subr.bf16.mxu0 0
  %873 = vmatpush1.bf16.msra.mxu0 %v735
  %874 = vmatprep.subr.bf16.mxu0 0
  %875 = vmatpush1.bf16.msra.mxu0 %v736
  %876 = vmatprep.subr.bf16.mxu0 0
  %877 = vmatpush1.bf16.msra.mxu0 %v737
  %878 = vmatprep.subr.bf16.mxu0 0
  %879 = vmatpush1.bf16.msra.mxu0 %v738
  %880 = vmatprep.subr.bf16.mxu0 0
  %881 = vmatpush1.bf16.msra.mxu0 %v739
  %882 = vmatprep.subr.bf16.mxu0 0
  %883 = vmatpush1.bf16.msra.mxu0 %v740
  %884 = vmatprep.subr.bf16.mxu0 0
  %885 = vmatpush1.bf16.msra.mxu0 %v741
  %886 = vmatprep.subr.bf16.mxu0 0
  %887 = vmatpush1.bf16.msra.mxu0 %v742
  %888 = vmatprep.subr.bf16.mxu0 0
  %889 = vmatpush1.bf16.msra.mxu0 %v743
  %890 = vmatprep.subr.bf16.mxu0 0
  %891 = vmatpush1.bf16.msra.mxu0 %v744
  %892 = vmatprep.subr.bf16.mxu0 0
  %893 = vmatpush1.bf16.msra.mxu0 %v745
  %894 = vmatprep.subr.bf16.mxu0 0
  %895 = vmatpush1.bf16.msra.mxu0 %v746
  %896 = vmatprep.mubr.bf16.mxu0 %v500
  %897 = vmatmul.mubr.bf16.gmra.mrb[0].mxu0 %v499
  %v898 = vpop.f32.mrb[0].mxu0
  %v899 = vadd.f32 0.0, %v898
  %v900 = vpop.f32.mrb[0].mxu0
  %v901 = vpop.f32.mrb[0].mxu0
  %v902 = vadd.f32 0.0, %v901
  %v903 = vpop.f32.mrb[0].mxu0
  %904 = vmatprep.mubr.bf16.mxu0 %v503
  %905 = vmatmul.mubr.bf16.gmra.mrb[0].mxu0 %v502
  %v906 = vpop.f32.mrb[0].mxu0
  %v907 = vadd.f32 0.0, %v906
  %v908 = vpop.f32.mrb[0].mxu0
  %v909 = vpop.f32.mrb[0].mxu0
  %v910 = vadd.f32 0.0, %v909
  %v911 = vpop.f32.mrb[0].mxu0
  %912 = vmatprep.mubr.bf16.mxu0 %v506
  %913 = vmatmul.mubr.bf16.gmra.mrb[0].mxu0 %v505
  %v914 = vpop.f32.mrb[0].mxu0
  %v915 = vadd.f32 0.0, %v914
  %v916 = vpop.f32.mrb[0].mxu0
  %v917 = vpop.f32.mrb[0].mxu0
  %v918 = vadd.f32 0.0, %v917
  %v919 = vpop.f32.mrb[0].mxu0
  %920 = vmatprep.mubr.bf16.mxu0 %v509
  %921 = vmatmul.mubr.bf16.gmra.mrb[0].mxu0 %v508
  %v922 = vpop.f32.mrb[0].mxu0
  %v923 = vadd.f32 0.0, %v922
  %v924 = vpop.f32.mrb[0].mxu0
  %v925 = vpop.f32.mrb[0].mxu0
  %v926 = vadd.f32 0.0, %v925
  %v927 = vpop.f32.mrb[0].mxu0
  %928 = vmatprep.mubr.bf16.mxu0 %v512
  %929 = vmatmul.mubr.bf16.gmra.mrb[0].mxu0 %v511
  %v930 = vpop.f32.mrb[0].mxu0
  %v931 = vadd.f32 0.0, %v930
  %v932 = vpop.f32.mrb[0].mxu0
  %v933 = vpop.f32.mrb[0].mxu0
  %v934 = vadd.f32 0.0, %v933
  %v935 = vpop.f32.mrb[0].mxu0
  %936 = vmatprep.mubr.bf16.mxu0 %v515
  %937 = vmatmul.mubr.bf16.gmra.mrb[0].mxu0 %v514
  %v938 = vpop.f32.mrb[0].mxu0
  %v939 = vadd.f32 0.0, %v938
  %v940 = vpop.f32.mrb[0].mxu0
  %v941 = vpop.f32.mrb[0].mxu0
  %v942 = vadd.f32 0.0, %v941
  %v943 = vpop.f32.mrb[0].mxu0
  %944 = vmatprep.mubr.bf16.mxu0 %v518
  %945 = vmatmul.mubr.bf16.gmra.mrb[0].mxu0 %v517
  %v946 = vpop.f32.mrb[0].mxu0
  %v947 = vadd.f32 0.0, %v946
  %v948 = vpop.f32.mrb[0].mxu0
  %v949 = vpop.f32.mrb[0].mxu0
  %v950 = vadd.f32 0.0, %v949
  %v951 = vpop.f32.mrb[0].mxu0
  %952 = vmatprep.mubr.bf16.mxu0 %v521
  %953 = vmatmul.mubr.bf16.gmra.mrb[0].mxu0 %v520
  %v954 = vpop.f32.mrb[0].mxu0
  %v955 = vadd.f32 0.0, %v954
  %v956 = vpop.f32.mrb[0].mxu0
  %v957 = vpop.f32.mrb[0].mxu0
  %v958 = vadd.f32 0.0, %v957
  %v959 = vpop.f32.mrb[0].mxu0
  %960 = vmatprep.mubr.bf16.mxu0 %v524
  %961 = vmatmul.mubr.bf16.gmra.mrb[0].mxu0 %v523
  %v962 = vpop.f32.mrb[0].mxu0
  %v963 = vadd.f32 0.0, %v962
  %v964 = vpop.f32.mrb[0].mxu0
  %v965 = vpop.f32.mrb[0].mxu0
  %v966 = vadd.f32 0.0, %v965
  %v967 = vpop.f32.mrb[0].mxu0
  %968 = vmatprep.mubr.bf16.mxu0 %v527
  %969 = vmatmul.mubr.bf16.gmra.mrb[0].mxu0 %v526
  %v970 = vpop.f32.mrb[0].mxu0
  %v971 = vadd.f32 0.0, %v970
  %v972 = vpop.f32.mrb[0].mxu0
  %v973 = vpop.f32.mrb[0].mxu0
  %v974 = vadd.f32 0.0, %v973
  %v975 = vpop.f32.mrb[0].mxu0
  %976 = vmatprep.mubr.bf16.mxu0 %v530
  %977 = vmatmul.mubr.bf16.gmra.mrb[0].mxu0 %v529
  %v978 = vpop.f32.mrb[0].mxu0
  %v979 = vadd.f32 0.0, %v978
  %v980 = vpop.f32.mrb[0].mxu0
  %v981 = vpop.f32.mrb[0].mxu0
  %v982 = vadd.f32 0.0, %v981
  %v983 = vpop.f32.mrb[0].mxu0
  %984 = vmatprep.mubr.bf16.mxu0 %v533
  %985 = vmatmul.mubr.bf16.gmra.mrb[0].mxu0 %v532
  %v986 = vpop.f32.mrb[0].mxu0
  %v987 = vadd.f32 0.0, %v986
  %v988 = vpop.f32.mrb[0].mxu0
  %v989 = vpop.f32.mrb[0].mxu0
  %v990 = vadd.f32 0.0, %v989
  %v991 = vpop.f32.mrb[0].mxu0
  %992 = vmatprep.mubr.bf16.mxu0 %v536
  %993 = vmatmul.mubr.bf16.gmra.mrb[0].mxu0 %v535
  %v994 = vpop.f32.mrb[0].mxu0
  %v995 = vadd.f32 0.0, %v994
  %v996 = vpop.f32.mrb[0].mxu0
  %v997 = vpop.f32.mrb[0].mxu0
  %v998 = vadd.f32 0.0, %v997
  %v999 = vpop.f32.mrb[0].mxu0
  %1000 = vmatprep.mubr.bf16.mxu0 %v539
  %1001 = vmatmul.mubr.bf16.gmra.mrb[0].mxu0 %v538
  %v1002 = vpop.f32.mrb[0].mxu0
  %v1003 = vadd.f32 0.0, %v1002
  %v1004 = vpop.f32.mrb[0].mxu0
  %v1005 = vpop.f32.mrb[0].mxu0
  %v1006 = vadd.f32 0.0, %v1005
  %v1007 = vpop.f32.mrb[0].mxu0
  %1008 = vmatprep.mubr.bf16.mxu0 %v542
  %1009 = vmatmul.mubr.bf16.gmra.mrb[0].mxu0 %v541
  %v1010 = vpop.f32.mrb[0].mxu0
  %v1011 = vadd.f32 0.0, %v1010
  %v1012 = vpop.f32.mrb[0].mxu0
  %v1013 = vpop.f32.mrb[0].mxu0
  %v1014 = vadd.f32 0.0, %v1013
  %v1015 = vpop.f32.mrb[0].mxu0
  %1016 = vmatprep.mubr.bf16.mxu0 %v545
  %1017 = vmatmul.mubr.bf16.gmra.mrb[0].mxu0 %v544
  %v1018 = vpop.f32.mrb[0].mxu0
  %v1019 = vadd.f32 0.0, %v1018
  %v1020 = vpop.f32.mrb[0].mxu0
  %v1021 = vpop.f32.mrb[0].mxu0
  %v1022 = vadd.f32 0.0, %v1021
  %v1023 = vpop.f32.mrb[0].mxu0
  %1024 = vmatprep.mubr.bf16.mxu0 %v548
  %1025 = vmatmul.mubr.bf16.gmra.mrb[0].mxu0 %v547
  %v1026 = vpop.f32.mrb[0].mxu0
  %v1027 = vadd.f32 0.0, %v1026
  %v1028 = vpop.f32.mrb[0].mxu0
  %v1029 = vpop.f32.mrb[0].mxu0
  %v1030 = vadd.f32 0.0, %v1029
  %v1031 = vpop.f32.mrb[0].mxu0
  %1032 = vmatprep.mubr.bf16.mxu0 %v551
  %1033 = vmatmul.mubr.bf16.gmra.mrb[0].mxu0 %v550
  %v1034 = vpop.f32.mrb[0].mxu0
  %v1035 = vadd.f32 0.0, %v1034
  %v1036 = vpop.f32.mrb[0].mxu0
  %v1037 = vpop.f32.mrb[0].mxu0
  %v1038 = vadd.f32 0.0, %v1037
  %v1039 = vpop.f32.mrb[0].mxu0
  %1040 = vmatprep.mubr.bf16.mxu0 %v554
  %1041 = vmatmul.mubr.bf16.gmra.mrb[0].mxu0 %v553
  %v1042 = vpop.f32.mrb[0].mxu0
  %v1043 = vadd.f32 0.0, %v1042
  %v1044 = vpop.f32.mrb[0].mxu0
  %v1045 = vpop.f32.mrb[0].mxu0
  %v1046 = vadd.f32 0.0, %v1045
  %v1047 = vpop.f32.mrb[0].mxu0
  %1048 = vmatprep.mubr.bf16.mxu0 %v557
  %1049 = vmatmul.mubr.bf16.gmra.mrb[0].mxu0 %v556
  %v1050 = vpop.f32.mrb[0].mxu0
  %v1051 = vadd.f32 0.0, %v1050
  %v1052 = vpop.f32.mrb[0].mxu0
  %v1053 = vpop.f32.mrb[0].mxu0
  %v1054 = vadd.f32 0.0, %v1053
  %v1055 = vpop.f32.mrb[0].mxu0
  %1056 = vmatprep.mubr.bf16.mxu0 %v560
  %1057 = vmatmul.mubr.bf16.gmra.mrb[0].mxu0 %v559
  %v1058 = vpop.f32.mrb[0].mxu0
  %v1059 = vadd.f32 0.0, %v1058
  %v1060 = vpop.f32.mrb[0].mxu0
  %v1061 = vpop.f32.mrb[0].mxu0
  %v1062 = vadd.f32 0.0, %v1061
  %v1063 = vpop.f32.mrb[0].mxu0
  %1064 = vmatprep.mubr.bf16.mxu0 %v563
  %1065 = vmatmul.mubr.bf16.gmra.mrb[0].mxu0 %v562
  %v1066 = vpop.f32.mrb[0].mxu0
  %v1067 = vadd.f32 0.0, %v1066
  %v1068 = vpop.f32.mrb[0].mxu0
  %v1069 = vpop.f32.mrb[0].mxu0
  %v1070 = vadd.f32 0.0, %v1069
  %v1071 = vpop.f32.mrb[0].mxu0
  %1072 = vmatprep.mubr.bf16.mxu0 %v566
  %1073 = vmatmul.mubr.bf16.gmra.mrb[0].mxu0 %v565
  %v1074 = vpop.f32.mrb[0].mxu0
  %v1075 = vadd.f32 0.0, %v1074
  %v1076 = vpop.f32.mrb[0].mxu0
  %v1077 = vpop.f32.mrb[0].mxu0
  %v1078 = vadd.f32 0.0, %v1077
  %v1079 = vpop.f32.mrb[0].mxu0
  %1080 = vmatprep.mubr.bf16.mxu0 %v569
  %1081 = vmatmul.mubr.bf16.gmra.mrb[0].mxu0 %v568
  %v1082 = vpop.f32.mrb[0].mxu0
  %v1083 = vadd.f32 0.0, %v1082
  %v1084 = vpop.f32.mrb[0].mxu0
  %v1085 = vpop.f32.mrb[0].mxu0
  %v1086 = vadd.f32 0.0, %v1085
  %v1087 = vpop.f32.mrb[0].mxu0
  %1088 = vmatprep.mubr.bf16.mxu0 %v572
  %1089 = vmatmul.mubr.bf16.gmra.mrb[0].mxu0 %v571
  %v1090 = vpop.f32.mrb[0].mxu0
  %v1091 = vadd.f32 0.0, %v1090
  %v1092 = vpop.f32.mrb[0].mxu0
  %v1093 = vpop.f32.mrb[0].mxu0
  %v1094 = vadd.f32 0.0, %v1093
  %v1095 = vpop.f32.mrb[0].mxu0
  %1096 = vmatprep.mubr.bf16.mxu0 %v575
  %1097 = vmatmul.mubr.bf16.gmra.mrb[0].mxu0 %v574
  %v1098 = vpop.f32.mrb[0].mxu0
  %v1099 = vadd.f32 0.0, %v1098
  %v1100 = vpop.f32.mrb[0].mxu0
  %v1101 = vpop.f32.mrb[0].mxu0
  %v1102 = vadd.f32 0.0, %v1101
  %v1103 = vpop.f32.mrb[0].mxu0
  %1104 = vmatprep.mubr.bf16.mxu0 %v578
  %1105 = vmatmul.mubr.bf16.gmra.mrb[0].mxu0 %v577
  %v1106 = vpop.f32.mrb[0].mxu0
  %v1107 = vadd.f32 0.0, %v1106
  %v1108 = vpop.f32.mrb[0].mxu0
  %v1109 = vpop.f32.mrb[0].mxu0
  %v1110 = vadd.f32 0.0, %v1109
  %v1111 = vpop.f32.mrb[0].mxu0
  %1112 = vmatprep.mubr.bf16.mxu0 %v581
  %1113 = vmatmul.mubr.bf16.gmra.mrb[0].mxu0 %v580
  %v1114 = vpop.f32.mrb[0].mxu0
  %v1115 = vadd.f32 0.0, %v1114
  %v1116 = vpop.f32.mrb[0].mxu0
  %v1117 = vpop.f32.mrb[0].mxu0
  %v1118 = vadd.f32 0.0, %v1117
  %v1119 = vpop.f32.mrb[0].mxu0
  %1120 = vmatprep.mubr.bf16.mxu0 %v584
  %1121 = vmatmul.mubr.bf16.gmra.mrb[0].mxu0 %v583
  %v1122 = vpop.f32.mrb[0].mxu0
  %v1123 = vadd.f32 0.0, %v1122
  %v1124 = vpop.f32.mrb[0].mxu0
  %v1125 = vpop.f32.mrb[0].mxu0
  %v1126 = vadd.f32 0.0, %v1125
  %v1127 = vpop.f32.mrb[0].mxu0
  %1128 = vmatprep.mubr.bf16.mxu0 %v587
  %1129 = vmatmul.mubr.bf16.gmra.mrb[0].mxu0 %v586
  %v1130 = vpop.f32.mrb[0].mxu0
  %v1131 = vadd.f32 0.0, %v1130
  %v1132 = vpop.f32.mrb[0].mxu0
  %v1133 = vpop.f32.mrb[0].mxu0
  %v1134 = vadd.f32 0.0, %v1133
  %v1135 = vpop.f32.mrb[0].mxu0
  %1136 = vmatprep.mubr.bf16.mxu0 %v590
  %1137 = vmatmul.mubr.bf16.gmra.mrb[0].mxu0 %v589
  %v1138 = vpop.f32.mrb[0].mxu0
  %v1139 = vadd.f32 0.0, %v1138
  %v1140 = vpop.f32.mrb[0].mxu0
  %v1141 = vpop.f32.mrb[0].mxu0
  %v1142 = vadd.f32 0.0, %v1141
  %v1143 = vpop.f32.mrb[0].mxu0
  %1144 = vmatprep.mubr.bf16.mxu0 %v593
  %1145 = vmatmul.mubr.bf16.gmra.mrb[0].mxu0 %v592
  %v1146 = vpop.f32.mrb[0].mxu0
  %v1147 = vadd.f32 0.0, %v1146
  %v1148 = vpop.f32.mrb[0].mxu0
  %v1149 = vpop.f32.mrb[0].mxu0
  %v1150 = vadd.f32 0.0, %v1149
  %v1151 = vpop.f32.mrb[0].mxu0
  %1152 = vdwg.mxu0
  %1153 = vmatprep.subr.bf16.mxu0 0
  %1154 = vmatpush1.bf16.msra.mxu0 %v747
  %1155 = vmatprep.subr.bf16.mxu0 0
  %1156 = vmatpush1.bf16.msra.mxu0 %v748
  %1157 = vmatprep.subr.bf16.mxu0 0
  %1158 = vmatpush1.bf16.msra.mxu0 0
  %1159 = vmatprep.subr.bf16.mxu0 0
  %1160 = vmatpush1.bf16.msra.mxu0 0
  %1161 = vmatprep.subr.bf16.mxu0 0
  %1162 = vmatpush1.bf16.msra.mxu0 0
  %1163 = vmatprep.subr.bf16.mxu0 0
  %1164 = vmatpush1.bf16.msra.mxu0 0
  %1165 = vmatprep.subr.bf16.mxu0 0
  %1166 = vmatpush1.bf16.msra.mxu0 0
  %1167 = vmatprep.subr.bf16.mxu0 0
  %1168 = vmatpush1.bf16.msra.mxu0 0
  %1169 = vmatprep.subr.bf16.mxu0 0
  %1170 = vmatpush1.bf16.msra.mxu0 0
  %1171 = vmatprep.subr.bf16.mxu0 0
  %1172 = vmatpush1.bf16.msra.mxu0 0
  %1173 = vmatprep.subr.bf16.mxu0 0
  %1174 = vmatpush1.bf16.msra.mxu0 0
  %1175 = vmatprep.subr.bf16.mxu0 0
  %1176 = vmatpush1.bf16.msra.mxu0 0
  %1177 = vmatprep.subr.bf16.mxu0 0
  %1178 = vmatpush1.bf16.msra.mxu0 0
  %1179 = vmatprep.subr.bf16.mxu0 0
  %1180 = vmatpush1.bf16.msra.mxu0 0
  %1181 = vmatprep.subr.bf16.mxu0 0
  %1182 = vmatpush1.bf16.msra.mxu0 0
  %1183 = vmatprep.subr.bf16.mxu0 0
  %1184 = vmatpush1.bf16.msra.mxu0 0
  %1185 = vmatprep.mubr.bf16.mxu0 0
  %1186 = vmatmul.mubr.bf16.gmra.mrb[0].mxu0 %v769
  %v1187 = vpop.f32.mrb[0].mxu0
  %v1188 = vadd.f32 %v899, %v1187
  %v1189 = vpop.f32.mrb[0].mxu0
  %v1190 = vpop.f32.mrb[0].mxu0
  %v1191 = vadd.f32 %v902, %v1190
  %v1192 = vpop.f32.mrb[0].mxu0
  %1193 = vmatprep.mubr.bf16.mxu0 0
  %1194 = vmatmul.mubr.bf16.gmra.mrb[0].mxu0 %v772
  %v1195 = vpop.f32.mrb[0].mxu0
  %v1196 = vadd.f32 %v907, %v1195
  %v1197 = vpop.f32.mrb[0].mxu0
  %v1198 = vpop.f32.mrb[0].mxu0
  %v1199 = vadd.f32 %v910, %v1198
  %v1200 = vpop.f32.mrb[0].mxu0
  %1201 = vmatprep.mubr.bf16.mxu0 0
  %1202 = vmatmul.mubr.bf16.gmra.mrb[0].mxu0 %v775
  %v1203 = vpop.f32.mrb[0].mxu0
  %v1204 = vadd.f32 %v915, %v1203
  %v1205 = vpop.f32.mrb[0].mxu0
  %v1206 = vpop.f32.mrb[0].mxu0
  %v1207 = vadd.f32 %v918, %v1206
  %v1208 = vpop.f32.mrb[0].mxu0
  %1209 = vmatprep.mubr.bf16.mxu0 0
  %1210 = vmatmul.mubr.bf16.gmra.mrb[0].mxu0 %v778
  %v1211 = vpop.f32.mrb[0].mxu0
  %v1212 = vadd.f32 %v923, %v1211
  %v1213 = vpop.f32.mrb[0].mxu0
  %v1214 = vpop.f32.mrb[0].mxu0
  %v1215 = vadd.f32 %v926, %v1214
  %v1216 = vpop.f32.mrb[0].mxu0
  %1217 = vmatprep.mubr.bf16.mxu0 0
  %1218 = vmatmul.mubr.bf16.gmra.mrb[0].mxu0 %v781
  %v1219 = vpop.f32.mrb[0].mxu0
  %v1220 = vadd.f32 %v931, %v1219
  %v1221 = vpop.f32.mrb[0].mxu0
  %v1222 = vpop.f32.mrb[0].mxu0
  %v1223 = vadd.f32 %v934, %v1222
  %v1224 = vpop.f32.mrb[0].mxu0
  %1225 = vmatprep.mubr.bf16.mxu0 0
  %1226 = vmatmul.mubr.bf16.gmra.mrb[0].mxu0 %v784
  %v1227 = vpop.f32.mrb[0].mxu0
  %v1228 = vadd.f32 %v939, %v1227
  %v1229 = vpop.f32.mrb[0].mxu0
  %v1230 = vpop.f32.mrb[0].mxu0
  %v1231 = vadd.f32 %v942, %v1230
  %v1232 = vpop.f32.mrb[0].mxu0
  %1233 = vmatprep.mubr.bf16.mxu0 0
  %1234 = vmatmul.mubr.bf16.gmra.mrb[0].mxu0 %v787
  %v1235 = vpop.f32.mrb[0].mxu0
  %v1236 = vadd.f32 %v947, %v1235
  %v1237 = vpop.f32.mrb[0].mxu0
  %v1238 = vpop.f32.mrb[0].mxu0
  %v1239 = vadd.f32 %v950, %v1238
  %v1240 = vpop.f32.mrb[0].mxu0
  %1241 = vmatprep.mubr.bf16.mxu0 0
  %1242 = vmatmul.mubr.bf16.gmra.mrb[0].mxu0 %v790
  %v1243 = vpop.f32.mrb[0].mxu0
  %v1244 = vadd.f32 %v955, %v1243
  %v1245 = vpop.f32.mrb[0].mxu0
  %v1246 = vpop.f32.mrb[0].mxu0
  %v1247 = vadd.f32 %v958, %v1246
  %v1248 = vpop.f32.mrb[0].mxu0
  %1249 = vmatprep.mubr.bf16.mxu0 0
  %1250 = vmatmul.mubr.bf16.gmra.mrb[0].mxu0 %v793
  %v1251 = vpop.f32.mrb[0].mxu0
  %v1252 = vadd.f32 %v963, %v1251
  %v1253 = vpop.f32.mrb[0].mxu0
  %v1254 = vpop.f32.mrb[0].mxu0
  %v1255 = vadd.f32 %v966, %v1254
  %v1256 = vpop.f32.mrb[0].mxu0
  %1257 = vmatprep.mubr.bf16.mxu0 0
  %1258 = vmatmul.mubr.bf16.gmra.mrb[0].mxu0 %v796
  %v1259 = vpop.f32.mrb[0].mxu0
  %v1260 = vadd.f32 %v971, %v1259
  %v1261 = vpop.f32.mrb[0].mxu0
  %v1262 = vpop.f32.mrb[0].mxu0
  %v1263 = vadd.f32 %v974, %v1262
  %v1264 = vpop.f32.mrb[0].mxu0
  %1265 = vmatprep.mubr.bf16.mxu0 0
  %1266 = vmatmul.mubr.bf16.gmra.mrb[0].mxu0 %v799
  %v1267 = vpop.f32.mrb[0].mxu0
  %v1268 = vadd.f32 %v979, %v1267
  %v1269 = vpop.f32.mrb[0].mxu0
  %v1270 = vpop.f32.mrb[0].mxu0
  %v1271 = vadd.f32 %v982, %v1270
  %v1272 = vpop.f32.mrb[0].mxu0
  %1273 = vmatprep.mubr.bf16.mxu0 0
  %1274 = vmatmul.mubr.bf16.gmra.mrb[0].mxu0 %v802
  %v1275 = vpop.f32.mrb[0].mxu0
  %v1276 = vadd.f32 %v987, %v1275
  %v1277 = vpop.f32.mrb[0].mxu0
  %v1278 = vpop.f32.mrb[0].mxu0
  %v1279 = vadd.f32 %v990, %v1278
  %v1280 = vpop.f32.mrb[0].mxu0
  %1281 = vmatprep.mubr.bf16.mxu0 0
  %1282 = vmatmul.mubr.bf16.gmra.mrb[0].mxu0 %v805
  %v1283 = vpop.f32.mrb[0].mxu0
  %v1284 = vadd.f32 %v995, %v1283
  %v1285 = vpop.f32.mrb[0].mxu0
  %v1286 = vpop.f32.mrb[0].mxu0
  %v1287 = vadd.f32 %v998, %v1286
  %v1288 = vpop.f32.mrb[0].mxu0
  %1289 = vmatprep.mubr.bf16.mxu0 0
  %1290 = vmatmul.mubr.bf16.gmra.mrb[0].mxu0 %v808
  %v1291 = vpop.f32.mrb[0].mxu0
  %v1292 = vadd.f32 %v1003, %v1291
  %v1293 = vpop.f32.mrb[0].mxu0
  %v1294 = vpop.f32.mrb[0].mxu0
  %v1295 = vadd.f32 %v1006, %v1294
  %v1296 = vpop.f32.mrb[0].mxu0
  %1297 = vmatprep.mubr.bf16.mxu0 0
  %1298 = vmatmul.mubr.bf16.gmra.mrb[0].mxu0 %v811
  %v1299 = vpop.f32.mrb[0].mxu0
  %v1300 = vadd.f32 %v1011, %v1299
  %v1301 = vpop.f32.mrb[0].mxu0
  %v1302 = vpop.f32.mrb[0].mxu0
  %v1303 = vadd.f32 %v1014, %v1302
  %v1304 = vpop.f32.mrb[0].mxu0
  %1305 = vmatprep.mubr.bf16.mxu0 0
  %1306 = vmatmul.mubr.bf16.gmra.mrb[0].mxu0 %v814
  %v1307 = vpop.f32.mrb[0].mxu0
  %v1308 = vadd.f32 %v1019, %v1307
  %v1309 = vpop.f32.mrb[0].mxu0
  %v1310 = vpop.f32.mrb[0].mxu0
  %v1311 = vadd.f32 %v1022, %v1310
  %v1312 = vpop.f32.mrb[0].mxu0
  %1313 = vmatprep.mubr.bf16.mxu0 0
  %1314 = vmatmul.mubr.bf16.gmra.mrb[0].mxu0 %v817
  %v1315 = vpop.f32.mrb[0].mxu0
  %v1316 = vadd.f32 %v1027, %v1315
  %v1317 = vpop.f32.mrb[0].mxu0
  %v1318 = vpop.f32.mrb[0].mxu0
  %v1319 = vadd.f32 %v1030, %v1318
  %v1320 = vpop.f32.mrb[0].mxu0
  %1321 = vmatprep.mubr.bf16.mxu0 0
  %1322 = vmatmul.mubr.bf16.gmra.mrb[0].mxu0 %v820
  %v1323 = vpop.f32.mrb[0].mxu0
  %v1324 = vadd.f32 %v1035, %v1323
  %v1325 = vpop.f32.mrb[0].mxu0
  %v1326 = vpop.f32.mrb[0].mxu0
  %v1327 = vadd.f32 %v1038, %v1326
  %v1328 = vpop.f32.mrb[0].mxu0
  %1329 = vmatprep.mubr.bf16.mxu0 0
  %1330 = vmatmul.mubr.bf16.gmra.mrb[0].mxu0 %v823
  %v1331 = vpop.f32.mrb[0].mxu0
  %v1332 = vadd.f32 %v1043, %v1331
  %v1333 = vpop.f32.mrb[0].mxu0
  %v1334 = vpop.f32.mrb[0].mxu0
  %v1335 = vadd.f32 %v1046, %v1334
  %v1336 = vpop.f32.mrb[0].mxu0
  %1337 = vmatprep.mubr.bf16.mxu0 0
  %1338 = vmatmul.mubr.bf16.gmra.mrb[0].mxu0 %v826
  %v1339 = vpop.f32.mrb[0].mxu0
  %v1340 = vadd.f32 %v1051, %v1339
  %v1341 = vpop.f32.mrb[0].mxu0
  %v1342 = vpop.f32.mrb[0].mxu0
  %v1343 = vadd.f32 %v1054, %v1342
  %v1344 = vpop.f32.mrb[0].mxu0
  %1345 = vmatprep.mubr.bf16.mxu0 0
  %1346 = vmatmul.mubr.bf16.gmra.mrb[0].mxu0 %v829
  %v1347 = vpop.f32.mrb[0].mxu0
  %v1348 = vadd.f32 %v1059, %v1347
  %v1349 = vpop.f32.mrb[0].mxu0
  %v1350 = vpop.f32.mrb[0].mxu0
  %v1351 = vadd.f32 %v1062, %v1350
  %v1352 = vpop.f32.mrb[0].mxu0
  %1353 = vmatprep.mubr.bf16.mxu0 0
  %1354 = vmatmul.mubr.bf16.gmra.mrb[0].mxu0 %v832
  %v1355 = vpop.f32.mrb[0].mxu0
  %v1356 = vadd.f32 %v1067, %v1355
  %v1357 = vpop.f32.mrb[0].mxu0
  %v1358 = vpop.f32.mrb[0].mxu0
  %v1359 = vadd.f32 %v1070, %v1358
  %v1360 = vpop.f32.mrb[0].mxu0
  %1361 = vmatprep.mubr.bf16.mxu0 0
  %1362 = vmatmul.mubr.bf16.gmra.mrb[0].mxu0 %v835
  %v1363 = vpop.f32.mrb[0].mxu0
  %v1364 = vadd.f32 %v1075, %v1363
  %v1365 = vpop.f32.mrb[0].mxu0
  %v1366 = vpop.f32.mrb[0].mxu0
  %v1367 = vadd.f32 %v1078, %v1366
  %v1368 = vpop.f32.mrb[0].mxu0
  %1369 = vmatprep.mubr.bf16.mxu0 0
  %1370 = vmatmul.mubr.bf16.gmra.mrb[0].mxu0 %v838
  %v1371 = vpop.f32.mrb[0].mxu0
  %v1372 = vadd.f32 %v1083, %v1371
  %v1373 = vpop.f32.mrb[0].mxu0
  %v1374 = vpop.f32.mrb[0].mxu0
  %v1375 = vadd.f32 %v1086, %v1374
  %v1376 = vpop.f32.mrb[0].mxu0
  %1377 = vmatprep.mubr.bf16.mxu0 0
  %1378 = vmatmul.mubr.bf16.gmra.mrb[0].mxu0 %v841
  %v1379 = vpop.f32.mrb[0].mxu0
  %v1380 = vadd.f32 %v1091, %v1379
  %v1381 = vpop.f32.mrb[0].mxu0
  %v1382 = vpop.f32.mrb[0].mxu0
  %v1383 = vadd.f32 %v1094, %v1382
  %v1384 = vpop.f32.mrb[0].mxu0
  %1385 = vmatprep.mubr.bf16.mxu0 0
  %1386 = vmatmul.mubr.bf16.gmra.mrb[0].mxu0 %v844
  %v1387 = vpop.f32.mrb[0].mxu0
  %v1388 = vadd.f32 %v1099, %v1387
  %v1389 = vpop.f32.mrb[0].mxu0
  %v1390 = vpop.f32.mrb[0].mxu0
  %v1391 = vadd.f32 %v1102, %v1390
  %v1392 = vpop.f32.mrb[0].mxu0
  %1393 = vmatprep.mubr.bf16.mxu0 0
  %1394 = vmatmul.mubr.bf16.gmra.mrb[0].mxu0 %v847
  %v1395 = vpop.f32.mrb[0].mxu0
  %v1396 = vadd.f32 %v1107, %v1395
  %v1397 = vpop.f32.mrb[0].mxu0
  %v1398 = vpop.f32.mrb[0].mxu0
  %v1399 = vadd.f32 %v1110, %v1398
  %v1400 = vpop.f32.mrb[0].mxu0
  %1401 = vmatprep.mubr.bf16.mxu0 0
  %1402 = vmatmul.mubr.bf16.gmra.mrb[0].mxu0 %v850
  %v1403 = vpop.f32.mrb[0].mxu0
  %v1404 = vadd.f32 %v1115, %v1403
  %v1405 = vpop.f32.mrb[0].mxu0
  %v1406 = vpop.f32.mrb[0].mxu0
  %v1407 = vadd.f32 %v1118, %v1406
  %v1408 = vpop.f32.mrb[0].mxu0
  %1409 = vmatprep.mubr.bf16.mxu0 0
  %1410 = vmatmul.mubr.bf16.gmra.mrb[0].mxu0 %v853
  %v1411 = vpop.f32.mrb[0].mxu0
  %v1412 = vadd.f32 %v1123, %v1411
  %v1413 = vpop.f32.mrb[0].mxu0
  %v1414 = vpop.f32.mrb[0].mxu0
  %v1415 = vadd.f32 %v1126, %v1414
  %v1416 = vpop.f32.mrb[0].mxu0
  %1417 = vmatprep.mubr.bf16.mxu0 0
  %1418 = vmatmul.mubr.bf16.gmra.mrb[0].mxu0 %v856
  %v1419 = vpop.f32.mrb[0].mxu0
  %v1420 = vadd.f32 %v1131, %v1419
  %v1421 = vpop.f32.mrb[0].mxu0
  %v1422 = vpop.f32.mrb[0].mxu0
  %v1423 = vadd.f32 %v1134, %v1422
  %v1424 = vpop.f32.mrb[0].mxu0
  %1425 = vmatprep.mubr.bf16.mxu0 0
  %1426 = vmatmul.mubr.bf16.gmra.mrb[0].mxu0 %v859
  %v1427 = vpop.f32.mrb[0].mxu0
  %v1428 = vadd.f32 %v1139, %v1427
  %v1429 = vpop.f32.mrb[0].mxu0
  %v1430 = vpop.f32.mrb[0].mxu0
  %v1431 = vadd.f32 %v1142, %v1430
  %v1432 = vpop.f32.mrb[0].mxu0
  %1433 = vmatprep.mubr.bf16.mxu0 0
  %1434 = vmatmul.mubr.bf16.gmra.mrb[0].mxu0 %v862
  %v1435 = vpop.f32.mrb[0].mxu0
  %v1436 = vadd.f32 %v1147, %v1435
  %v1437 = vpop.f32.mrb[0].mxu0
  %v1438 = vpop.f32.mrb[0].mxu0
  %v1439 = vadd.f32 %v1150, %v1438
  %v1440 = vpop.f32.mrb[0].mxu0
  %1441 = vdwg.mxu0
  %v1442 = vpack.c.bf16 %v1191, %v1188
  %v1443 = vpack.c.bf16 %v1199, %v1196
  %v1444 = vpack.c.bf16 %v1207, %v1204
  %v1445 = vpack.c.bf16 %v1215, %v1212
  %v1446 = vpack.c.bf16 %v1223, %v1220
  %v1447 = vpack.c.bf16 %v1231, %v1228
  %v1448 = vpack.c.bf16 %v1239, %v1236
  %v1449 = vpack.c.bf16 %v1247, %v1244
  %v1450 = vpack.c.bf16 %v1255, %v1252
  %v1451 = vpack.c.bf16 %v1263, %v1260
  %v1452 = vpack.c.bf16 %v1271, %v1268
  %v1453 = vpack.c.bf16 %v1279, %v1276
  %v1454 = vpack.c.bf16 %v1287, %v1284
  %v1455 = vpack.c.bf16 %v1295, %v1292
  %v1456 = vpack.c.bf16 %v1303, %v1300
  %v1457 = vpack.c.bf16 %v1311, %v1308
  %v1458 = vpack.c.bf16 %v1319, %v1316
  %v1459 = vpack.c.bf16 %v1327, %v1324
  %v1460 = vpack.c.bf16 %v1335, %v1332
  %v1461 = vpack.c.bf16 %v1343, %v1340
  %v1462 = vpack.c.bf16 %v1351, %v1348
  %v1463 = vpack.c.bf16 %v1359, %v1356
  %v1464 = vpack.c.bf16 %v1367, %v1364
  %v1465 = vpack.c.bf16 %v1375, %v1372
  %v1466 = vpack.c.bf16 %v1383, %v1380
  %v1467 = vpack.c.bf16 %v1391, %v1388
  %v1468 = vpack.c.bf16 %v1399, %v1396
  %v1469 = vpack.c.bf16 %v1407, %v1404
  %v1470 = vpack.c.bf16 %v1415, %v1412
  %v1471 = vpack.c.bf16 %v1423, %v1420
  %v1472 = vpack.c.bf16 %v1431, %v1428
  %v1473 = vpack.c.bf16 %v1439, %v1436
  %v1506 = vunpack.c.l.b16 %v1442
  %v1507 = vunpack.c.h.b16 %v1442
  %v1508 = vunpack.c.l.b16 %v1443
  %v1509 = vunpack.c.h.b16 %v1443
  %v1510 = vunpack.c.l.b16 %v1444
  %v1511 = vunpack.c.h.b16 %v1444
  %v1512 = vunpack.c.l.b16 %v1445
  %v1513 = vunpack.c.h.b16 %v1445
  %v1514 = vunpack.c.l.b16 %v1446
  %v1515 = vunpack.c.h.b16 %v1446
  %v1516 = vunpack.c.l.b16 %v1447
  %v1517 = vunpack.c.h.b16 %v1447
  %v1518 = vunpack.c.l.b16 %v1448
  %v1519 = vunpack.c.h.b16 %v1448
  %v1520 = vunpack.c.l.b16 %v1449
  %v1521 = vunpack.c.h.b16 %v1449
  %v1522 = vunpack.c.l.b16 %v1450
  %v1523 = vunpack.c.h.b16 %v1450
  %v1524 = vunpack.c.l.b16 %v1451
  %v1525 = vunpack.c.h.b16 %v1451
  %v1526 = vunpack.c.l.b16 %v1452
  %v1527 = vunpack.c.h.b16 %v1452
  %v1528 = vunpack.c.l.b16 %v1453
  %v1529 = vunpack.c.h.b16 %v1453
  %v1530 = vunpack.c.l.b16 %v1454
  %v1531 = vunpack.c.h.b16 %v1454
  %v1532 = vunpack.c.l.b16 %v1455
  %v1533 = vunpack.c.h.b16 %v1455
  %v1534 = vunpack.c.l.b16 %v1456
  %v1535 = vunpack.c.h.b16 %v1456
  %v1536 = vunpack.c.l.b16 %v1457
  %v1537 = vunpack.c.h.b16 %v1457
  %v1538 = vunpack.c.l.b16 %v1458
  %v1539 = vunpack.c.h.b16 %v1458
  %v1540 = vunpack.c.l.b16 %v1459
  %v1541 = vunpack.c.h.b16 %v1459
  %v1542 = vunpack.c.l.b16 %v1460
  %v1543 = vunpack.c.h.b16 %v1460
  %v1544 = vunpack.c.l.b16 %v1461
  %v1545 = vunpack.c.h.b16 %v1461
  %v1546 = vunpack.c.l.b16 %v1462
  %v1547 = vunpack.c.h.b16 %v1462
  %v1548 = vunpack.c.l.b16 %v1463
  %v1549 = vunpack.c.h.b16 %v1463
  %v1550 = vunpack.c.l.b16 %v1464
  %v1551 = vunpack.c.h.b16 %v1464
  %v1552 = vunpack.c.l.b16 %v1465
  %v1553 = vunpack.c.h.b16 %v1465
  %v1554 = vunpack.c.l.b16 %v1466
  %v1555 = vunpack.c.h.b16 %v1466
  %v1556 = vunpack.c.l.b16 %v1467
  %v1557 = vunpack.c.h.b16 %v1467
  %v1558 = vunpack.c.l.b16 %v1468
  %v1559 = vunpack.c.h.b16 %v1468
  %v1560 = vunpack.c.l.b16 %v1469
  %v1561 = vunpack.c.h.b16 %v1469
  %v1562 = vunpack.c.l.b16 %v1470
  %v1563 = vunpack.c.h.b16 %v1470
  %v1564 = vunpack.c.l.b16 %v1471
  %v1565 = vunpack.c.h.b16 %v1471
  %v1566 = vunpack.c.l.b16 %v1472
  %v1567 = vunpack.c.h.b16 %v1472
  %v1568 = vunpack.c.l.b16 %v1473
  %v1569 = vunpack.c.h.b16 %v1473
  %v1570 = vpack.c.b16 %v1506, %v1506
  %v1571 = vpack.c.b16 %v1507, %v1507
  %v1572 = vpack.c.b16 %v1508, %v1508
  %v1573 = vpack.c.b16 %v1509, %v1509
  %v1574 = vpack.c.b16 %v1510, %v1510
  %v1575 = vpack.c.b16 %v1511, %v1511
  %v1576 = vpack.c.b16 %v1512, %v1512
  %v1577 = vpack.c.b16 %v1513, %v1513
  %v1578 = vpack.c.b16 %v1514, %v1514
  %v1579 = vpack.c.b16 %v1515, %v1515
  %v1580 = vpack.c.b16 %v1516, %v1516
  %v1581 = vpack.c.b16 %v1517, %v1517
  %v1582 = vpack.c.b16 %v1518, %v1518
  %v1583 = vpack.c.b16 %v1519, %v1519
  %v1584 = vpack.c.b16 %v1520, %v1520
  %v1585 = vpack.c.b16 %v1521, %v1521
  %v1586 = vpack.c.b16 %v1522, %v1522
  %v1587 = vpack.c.b16 %v1523, %v1523
  %v1588 = vpack.c.b16 %v1524, %v1524
  %v1589 = vpack.c.b16 %v1525, %v1525
  %v1590 = vpack.c.b16 %v1526, %v1526
  %v1591 = vpack.c.b16 %v1527, %v1527
  %v1592 = vpack.c.b16 %v1528, %v1528
  %v1593 = vpack.c.b16 %v1529, %v1529
  %v1594 = vpack.c.b16 %v1530, %v1530
  %v1595 = vpack.c.b16 %v1531, %v1531
  %v1596 = vpack.c.b16 %v1532, %v1532
  %v1597 = vpack.c.b16 %v1533, %v1533
  %v1598 = vpack.c.b16 %v1534, %v1534
  %v1599 = vpack.c.b16 %v1535, %v1535
  %v1600 = vpack.c.b16 %v1536, %v1536
  %v1601 = vpack.c.b16 %v1537, %v1537
  %v1602 = vpack.c.b16 %v1538, %v1538
  %v1603 = vpack.c.b16 %v1539, %v1539
  %v1604 = vpack.c.b16 %v1540, %v1540
  %v1605 = vpack.c.b16 %v1541, %v1541
  %v1606 = vpack.c.b16 %v1542, %v1542
  %v1607 = vpack.c.b16 %v1543, %v1543
  %v1608 = vpack.c.b16 %v1544, %v1544
  %v1609 = vpack.c.b16 %v1545, %v1545
  %v1610 = vpack.c.b16 %v1546, %v1546
  %v1611 = vpack.c.b16 %v1547, %v1547
  %v1612 = vpack.c.b16 %v1548, %v1548
  %v1613 = vpack.c.b16 %v1549, %v1549
  %v1614 = vpack.c.b16 %v1550, %v1550
  %v1615 = vpack.c.b16 %v1551, %v1551
  %v1616 = vpack.c.b16 %v1552, %v1552
  %v1617 = vpack.c.b16 %v1553, %v1553
  %v1618 = vpack.c.b16 %v1554, %v1554
  %v1619 = vpack.c.b16 %v1555, %v1555
  %v1620 = vpack.c.b16 %v1556, %v1556
  %v1621 = vpack.c.b16 %v1557, %v1557
  %v1622 = vpack.c.b16 %v1558, %v1558
  %v1623 = vpack.c.b16 %v1559, %v1559
  %v1624 = vpack.c.b16 %v1560, %v1560
  %v1625 = vpack.c.b16 %v1561, %v1561
  %v1626 = vpack.c.b16 %v1562, %v1562
  %v1627 = vpack.c.b16 %v1563, %v1563
  %v1628 = vpack.c.b16 %v1564, %v1564
  %v1629 = vpack.c.b16 %v1565, %v1565
  %v1630 = vpack.c.b16 %v1566, %v1566
  %v1631 = vpack.c.b16 %v1567, %v1567
  %v1632 = vpack.c.b16 %v1568, %v1568
  %v1633 = vpack.c.b16 %v1569, %v1569
  %1698 = vst [vmem:[%s2] sm:$0xf] %v1570
  %1699 = vst [vmem:[%s2 + $0x4] sm:$0xf] %v1571
  %1700 = vst [vmem:[%s2 + $0x8] sm:$0xf] %v1572
  %1701 = vst [vmem:[%s2 + $0xc] sm:$0xf] %v1573
  %1702 = vst [vmem:[%s2 + $0x10] sm:$0xf] %v1574
  %1703 = vst [vmem:[%s2 + $0x14] sm:$0xf] %v1575
  %1704 = vst [vmem:[%s2 + $0x18] sm:$0xf] %v1576
  %1705 = vst [vmem:[%s2 + $0x1c] sm:$0xf] %v1577
  %1706 = vst [vmem:[%s2 + $0x20] sm:$0xf] %v1578
  %1707 = vst [vmem:[%s2 + $0x24] sm:$0xf] %v1579
  %1708 = vst [vmem:[%s2 + $0x28] sm:$0xf] %v1580
  %1709 = vst [vmem:[%s2 + $0x2c] sm:$0xf] %v1581
  %1710 = vst [vmem:[%s2 + $0x30] sm:$0xf] %v1582
  %1711 = vst [vmem:[%s2 + $0x34] sm:$0xf] %v1583
  %1712 = vst [vmem:[%s2 + $0x38] sm:$0xf] %v1584
  %1713 = vst [vmem:[%s2 + $0x3c] sm:$0xf] %v1585
  %1714 = vst [vmem:[%s2 + $0x40] sm:$0xf] %v1586
  %1715 = vst [vmem:[%s2 + $0x44] sm:$0xf] %v1587
  %1716 = vst [vmem:[%s2 + $0x48] sm:$0xf] %v1588
  %1717 = vst [vmem:[%s2 + $0x4c] sm:$0xf] %v1589
  %1718 = vst [vmem:[%s2 + $0x50] sm:$0xf] %v1590
  %1719 = vst [vmem:[%s2 + $0x54] sm:$0xf] %v1591
  %1720 = vst [vmem:[%s2 + $0x58] sm:$0xf] %v1592
  %1721 = vst [vmem:[%s2 + $0x5c] sm:$0xf] %v1593
  %1722 = vst [vmem:[%s2 + $0x60] sm:$0xf] %v1594
  %1723 = vst [vmem:[%s2 + $0x64] sm:$0xf] %v1595
  %1724 = vst [vmem:[%s2 + $0x68] sm:$0xf] %v1596
  %1725 = vst [vmem:[%s2 + $0x6c] sm:$0xf] %v1597
  %1726 = vst [vmem:[%s2 + $0x70] sm:$0xf] %v1598
  %1727 = vst [vmem:[%s2 + $0x74] sm:$0xf] %v1599
  %1728 = vst [vmem:[%s2 + $0x78] sm:$0xf] %v1600
  %1729 = vst [vmem:[%s2 + $0x7c] sm:$0xf] %v1601
  %1730 = vst [vmem:[%s2 + $0x80] sm:$0xf] %v1602
  %1731 = vst [vmem:[%s2 + $0x84] sm:$0xf] %v1603
  %1732 = vst [vmem:[%s2 + $0x88] sm:$0xf] %v1604
  %1733 = vst [vmem:[%s2 + $0x8c] sm:$0xf] %v1605
  %1734 = vst [vmem:[%s2 + $0x90] sm:$0xf] %v1606
  %1735 = vst [vmem:[%s2 + $0x94] sm:$0xf] %v1607
  %1736 = vst [vmem:[%s2 + $0x98] sm:$0xf] %v1608
  %1737 = vst [vmem:[%s2 + $0x9c] sm:$0xf] %v1609
  %1738 = vst [vmem:[%s2 + $0xa0] sm:$0xf] %v1610
  %1739 = vst [vmem:[%s2 + $0xa4] sm:$0xf] %v1611
  %1740 = vst [vmem:[%s2 + $0xa8] sm:$0xf] %v1612
  %1741 = vst [vmem:[%s2 + $0xac] sm:$0xf] %v1613
  %1742 = vst [vmem:[%s2 + $0xb0] sm:$0xf] %v1614
  %1743 = vst [vmem:[%s2 + $0xb4] sm:$0xf] %v1615
  %1744 = vst [vmem:[%s2 + $0xb8] sm:$0xf] %v1616
  %1745 = vst [vmem:[%s2 + $0xbc] sm:$0xf] %v1617
  %1746 = vst [vmem:[%s2 + $0xc0] sm:$0xf] %v1618
  %1747 = vst [vmem:[%s2 + $0xc4] sm:$0xf] %v1619
  %1748 = vst [vmem:[%s2 + $0xc8] sm:$0xf] %v1620
  %1749 = vst [vmem:[%s2 + $0xcc] sm:$0xf] %v1621
  %1750 = vst [vmem:[%s2 + $0xd0] sm:$0xf] %v1622
  %1751 = vst [vmem:[%s2 + $0xd4] sm:$0xf] %v1623
  %1752 = vst [vmem:[%s2 + $0xd8] sm:$0xf] %v1624
  %1753 = vst [vmem:[%s2 + $0xdc] sm:$0xf] %v1625
  %1754 = vst [vmem:[%s2 + $0xe0] sm:$0xf] %v1626
  %1755 = vst [vmem:[%s2 + $0xe4] sm:$0xf] %v1627
  %1756 = vst [vmem:[%s2 + $0xe8] sm:$0xf] %v1628
  %1757 = vst [vmem:[%s2 + $0xec] sm:$0xf] %v1629
  %1758 = vst [vmem:[%s2 + $0xf0] sm:$0xf] %v1630
  %1759 = vst [vmem:[%s2 + $0xf4] sm:$0xf] %v1631
  %1760 = vst [vmem:[%s2 + $0xf8] sm:$0xf] %v1632
  %1761 = vst [vmem:[%s2 + $0xfc] sm:$0xf] %v1633
  %v1762 = vadd.f32 %v1188, %v1191
  %v1763 = vadd.f32 %v1762, %v1196
  %v1764 = vadd.f32 %v1763, %v1199
  %v1765 = vadd.f32 %v1764, %v1204
  %v1766 = vadd.f32 %v1765, %v1207
  %v1767 = vadd.f32 %v1766, %v1212
  %v1768 = vadd.f32 %v1767, %v1215
  %v1769 = vadd.f32 %v1768, %v1220
  %v1770 = vadd.f32 %v1769, %v1223
  %v1771 = vadd.f32 %v1770, %v1228
  %v1772 = vadd.f32 %v1771, %v1231
  %v1773 = vadd.f32 %v1772, %v1236
  %v1774 = vadd.f32 %v1773, %v1239
  %v1775 = vadd.f32 %v1774, %v1244
  %v1776 = vadd.f32 %v1775, %v1247
  %v1777 = vadd.f32 %v1776, %v1252
  %v1778 = vadd.f32 %v1777, %v1255
  %v1779 = vadd.f32 %v1778, %v1260
  %v1780 = vadd.f32 %v1779, %v1263
  %v1781 = vadd.f32 %v1780, %v1268
  %v1782 = vadd.f32 %v1781, %v1271
  %v1783 = vadd.f32 %v1782, %v1276
  %v1784 = vadd.f32 %v1783, %v1279
  %v1785 = vadd.f32 %v1784, %v1284
  %v1786 = vadd.f32 %v1785, %v1287
  %v1787 = vadd.f32 %v1786, %v1292
  %v1788 = vadd.f32 %v1787, %v1295
  %v1789 = vadd.f32 %v1788, %v1300
  %v1790 = vadd.f32 %v1789, %v1303
  %v1791 = vadd.f32 %v1790, %v1308
  %v1792 = vadd.f32 %v1791, %v1311
  %v1793 = vadd.f32 %v1792, %v1316
  %v1794 = vadd.f32 %v1793, %v1319
  %v1795 = vadd.f32 %v1794, %v1324
  %v1796 = vadd.f32 %v1795, %v1327
  %v1797 = vadd.f32 %v1796, %v1332
  %v1798 = vadd.f32 %v1797, %v1335
  %v1799 = vadd.f32 %v1798, %v1340
  %v1800 = vadd.f32 %v1799, %v1343
  %v1801 = vadd.f32 %v1800, %v1348
  %v1802 = vadd.f32 %v1801, %v1351
  %v1803 = vadd.f32 %v1802, %v1356
  %v1804 = vadd.f32 %v1803, %v1359
  %v1805 = vadd.f32 %v1804, %v1364
  %v1806 = vadd.f32 %v1805, %v1367
  %v1807 = vadd.f32 %v1806, %v1372
  %v1808 = vadd.f32 %v1807, %v1375
  %v1809 = vadd.f32 %v1808, %v1380
  %v1810 = vadd.f32 %v1809, %v1383
  %v1811 = vadd.f32 %v1810, %v1388
  %v1812 = vadd.f32 %v1811, %v1391
  %v1813 = vadd.f32 %v1812, %v1396
  %v1814 = vadd.f32 %v1813, %v1399
  %v1815 = vadd.f32 %v1814, %v1404
  %v1816 = vadd.f32 %v1815, %v1407
  %v1817 = vadd.f32 %v1816, %v1412
  %v1818 = vadd.f32 %v1817, %v1415
  %v1819 = vadd.f32 %v1818, %v1420
  %v1820 = vadd.f32 %v1819, %v1423
  %v1821 = vadd.f32 %v1820, %v1428
  %v1822 = vadd.f32 %v1821, %v1431
  %v1823 = vadd.f32 %v1822, %v1436
  %v1824 = vadd.f32 %v1823, %v1439
  %v1825 = vrot.slane %v1824, 4
  %v1826 = vadd.f32 %v1824, %v1825
  %v1827 = vrot.slane %v1826, 2
  %v1828 = vadd.f32 %v1826, %v1827
  %v1829 = vrot.slane %v1828, 1
  %v1830 = vadd.f32 %v1828, %v1829
  %1831 = vst [vmem:[%s3] sm:$0x1] %v1830
  %v1832 = vmul.f32 %v1188, %v1188
  %v1833 = vmul.f32 %v1191, %v1191
  %v1834 = vmul.f32 %v1196, %v1196
  %v1835 = vmul.f32 %v1199, %v1199
  %v1836 = vmul.f32 %v1204, %v1204
  %v1837 = vmul.f32 %v1207, %v1207
  %v1838 = vmul.f32 %v1212, %v1212
  %v1839 = vmul.f32 %v1215, %v1215
  %v1840 = vmul.f32 %v1220, %v1220
  %v1841 = vmul.f32 %v1223, %v1223
  %v1842 = vmul.f32 %v1228, %v1228
  %v1843 = vmul.f32 %v1231, %v1231
  %v1844 = vmul.f32 %v1236, %v1236
  %v1845 = vmul.f32 %v1239, %v1239
  %v1846 = vmul.f32 %v1244, %v1244
  %v1847 = vmul.f32 %v1247, %v1247
  %v1848 = vmul.f32 %v1252, %v1252
  %v1849 = vmul.f32 %v1255, %v1255
  %v1850 = vmul.f32 %v1260, %v1260
  %v1851 = vmul.f32 %v1263, %v1263
  %v1852 = vmul.f32 %v1268, %v1268
  %v1853 = vmul.f32 %v1271, %v1271
  %v1854 = vmul.f32 %v1276, %v1276
  %v1855 = vmul.f32 %v1279, %v1279
  %v1856 = vmul.f32 %v1284, %v1284
  %v1857 = vmul.f32 %v1287, %v1287
  %v1858 = vmul.f32 %v1292, %v1292
  %v1859 = vmul.f32 %v1295, %v1295
  %v1860 = vmul.f32 %v1300, %v1300
  %v1861 = vmul.f32 %v1303, %v1303
  %v1862 = vmul.f32 %v1308, %v1308
  %v1863 = vmul.f32 %v1311, %v1311
  %v1864 = vmul.f32 %v1316, %v1316
  %v1865 = vmul.f32 %v1319, %v1319
  %v1866 = vmul.f32 %v1324, %v1324
  %v1867 = vmul.f32 %v1327, %v1327
  %v1868 = vmul.f32 %v1332, %v1332
  %v1869 = vmul.f32 %v1335, %v1335
  %v1870 = vmul.f32 %v1340, %v1340
  %v1871 = vmul.f32 %v1343, %v1343
  %v1872 = vmul.f32 %v1348, %v1348
  %v1873 = vmul.f32 %v1351, %v1351
  %v1874 = vmul.f32 %v1356, %v1356
  %v1875 = vmul.f32 %v1359, %v1359
  %v1876 = vmul.f32 %v1364, %v1364
  %v1877 = vmul.f32 %v1367, %v1367
  %v1878 = vmul.f32 %v1372, %v1372
  %v1879 = vmul.f32 %v1375, %v1375
  %v1880 = vmul.f32 %v1380, %v1380
  %v1881 = vmul.f32 %v1383, %v1383
  %v1882 = vmul.f32 %v1388, %v1388
  %v1883 = vmul.f32 %v1391, %v1391
  %v1884 = vmul.f32 %v1396, %v1396
  %v1885 = vmul.f32 %v1399, %v1399
  %v1886 = vmul.f32 %v1404, %v1404
  %v1887 = vmul.f32 %v1407, %v1407
  %v1888 = vmul.f32 %v1412, %v1412
  %v1889 = vmul.f32 %v1415, %v1415
  %v1890 = vmul.f32 %v1420, %v1420
  %v1891 = vmul.f32 %v1423, %v1423
  %v1892 = vmul.f32 %v1428, %v1428
  %v1893 = vmul.f32 %v1431, %v1431
  %v1894 = vmul.f32 %v1436, %v1436
  %v1895 = vmul.f32 %v1439, %v1439
  %v1896 = vadd.f32 %v1832, %v1833
  %v1897 = vadd.f32 %v1896, %v1834
  %v1898 = vadd.f32 %v1897, %v1835
  %v1899 = vadd.f32 %v1898, %v1836
  %v1900 = vadd.f32 %v1899, %v1837
  %v1901 = vadd.f32 %v1900, %v1838
  %v1902 = vadd.f32 %v1901, %v1839
  %v1903 = vadd.f32 %v1902, %v1840
  %v1904 = vadd.f32 %v1903, %v1841
  %v1905 = vadd.f32 %v1904, %v1842
  %v1906 = vadd.f32 %v1905, %v1843
  %v1907 = vadd.f32 %v1906, %v1844
  %v1908 = vadd.f32 %v1907, %v1845
  %v1909 = vadd.f32 %v1908, %v1846
  %v1910 = vadd.f32 %v1909, %v1847
  %v1911 = vadd.f32 %v1910, %v1848
  %v1912 = vadd.f32 %v1911, %v1849
  %v1913 = vadd.f32 %v1912, %v1850
  %v1914 = vadd.f32 %v1913, %v1851
  %v1915 = vadd.f32 %v1914, %v1852
  %v1916 = vadd.f32 %v1915, %v1853
  %v1917 = vadd.f32 %v1916, %v1854
  %v1918 = vadd.f32 %v1917, %v1855
  %v1919 = vadd.f32 %v1918, %v1856
  %v1920 = vadd.f32 %v1919, %v1857
  %v1921 = vadd.f32 %v1920, %v1858
  %v1922 = vadd.f32 %v1921, %v1859
  %v1923 = vadd.f32 %v1922, %v1860
  %v1924 = vadd.f32 %v1923, %v1861
  %v1925 = vadd.f32 %v1924, %v1862
  %v1926 = vadd.f32 %v1925, %v1863
  %v1927 = vadd.f32 %v1926, %v1864
  %v1928 = vadd.f32 %v1927, %v1865
  %v1929 = vadd.f32 %v1928, %v1866
  %v1930 = vadd.f32 %v1929, %v1867
  %v1931 = vadd.f32 %v1930, %v1868
  %v1932 = vadd.f32 %v1931, %v1869
  %v1933 = vadd.f32 %v1932, %v1870
  %v1934 = vadd.f32 %v1933, %v1871
  %v1935 = vadd.f32 %v1934, %v1872
  %v1936 = vadd.f32 %v1935, %v1873
  %v1937 = vadd.f32 %v1936, %v1874
  %v1938 = vadd.f32 %v1937, %v1875
  %v1939 = vadd.f32 %v1938, %v1876
  %v1940 = vadd.f32 %v1939, %v1877
  %v1941 = vadd.f32 %v1940, %v1878
  %v1942 = vadd.f32 %v1941, %v1879
  %v1943 = vadd.f32 %v1942, %v1880
  %v1944 = vadd.f32 %v1943, %v1881
  %v1945 = vadd.f32 %v1944, %v1882
  %v1946 = vadd.f32 %v1945, %v1883
  %v1947 = vadd.f32 %v1946, %v1884
  %v1948 = vadd.f32 %v1947, %v1885
  %v1949 = vadd.f32 %v1948, %v1886
  %v1950 = vadd.f32 %v1949, %v1887
  %v1951 = vadd.f32 %v1950, %v1888
  %v1952 = vadd.f32 %v1951, %v1889
  %v1953 = vadd.f32 %v1952, %v1890
  %v1954 = vadd.f32 %v1953, %v1891
  %v1955 = vadd.f32 %v1954, %v1892
  %v1956 = vadd.f32 %v1955, %v1893
  %v1957 = vadd.f32 %v1956, %v1894
  %v1958 = vadd.f32 %v1957, %v1895
  %v1959 = vrot.slane %v1958, 4
  %v1960 = vadd.f32 %v1958, %v1959
  %v1961 = vrot.slane %v1960, 2
  %v1962 = vadd.f32 %v1960, %v1961
  %v1963 = vrot.slane %v1962, 1
  %v1964 = vadd.f32 %v1962, %v1963
  %1965 = vst [vmem:[%s4] sm:$0x1] %v1964
  // Predicated region
  $region10: #{generator_forward.15} parent=0 // pred_check
    _
  $region11: #{generator_forward.15} parent=0 // pred_check_branch
    %1967 = sbr.rel (0) target = $region13
  $region12: #{generator_forward.15} parent=0 // pred_region
    _
  $region13: #{generator_forward.15} parent=0 // pred_fallthru
    _
  // Predicated region
  $region14: #{generator_forward.15} parent=0 // pred_check
    _
  $region15: #{generator_forward.15} parent=0 // pred_check_branch
    %1969 = sbr.rel (0) target = $region17
  $region16: #{generator_forward.15} parent=0 // pred_region
    _
  $region17: #{generator_forward.15} parent=0 // pred_fallthru
    _
  // Predicated region
  $region18: #{generator_forward.15} parent=0 // pred_check
    _
  $region19: #{generator_forward.15} parent=0 // pred_check_branch
    %1971 = sbr.rel (0) target = $region21
  $region20: #{generator_forward.15} parent=0 // pred_region
    _
  $region21: #{generator_forward.15} parent=0 // pred_fallthru
    _
  // Predicated region
  $region22: #{generator_forward.15} parent=0 // pred_check
    _
  $region23: #{generator_forward.15} parent=0 // pred_check_branch
    %1973 = sbr.rel (0) target = $region25
  $region24: #{generator_forward.15} parent=0 // pred_region
    _
  $region25: #{generator_forward.15} parent=0 // pred_fallthru
    _
  // Predicated region
  $region26: #{generator_forward.15} parent=0 // pred_check
    _
  $region27: #{generator_forward.15} parent=0 // pred_check_branch
    %1975 = sbr.rel (0) target = $region29
  $region28: #{generator_forward.15} parent=0 // pred_region
    _
  $region29: #{generator_forward.15} parent=0 // pred_fallthru
    _
  // Predicated region
  $region30: #{generator_forward.15} parent=0 // pred_check
    _
  $region31: #{generator_forward.15} parent=0 // pred_check_branch
    %1977 = sbr.rel (0) target = $region33
  $region32: #{generator_forward.15} parent=0 // pred_region
    _
  $region33: #{generator_forward.15} parent=0 // pred_fallthru
    _

// kernel: tile.63
$region0: #{tile.63}
  #allocation0 [shape = 's32[1]{0}', space=sflag, size = 0x4, scoped, tag = 'scoped memory for tile.63']
  %s0 = inlined_call_operand.vmem [shape: f32[16], index: 0, kind: input, shape index: {}]
  %s1 = inlined_call_operand.vmem [shape: f32[4,16], index: 1, kind: output, shape index: {}]
  // Predicated region
  $region2: #{tile.63} parent=0 // pred_check
    _
  $region3: #{tile.63} parent=0 // pred_check_branch
    %3 = sbr.rel (0) target = $region5
  $region4: #{tile.63} parent=0 // pred_region
    _
  $region5: #{tile.63} parent=0 // pred_fallthru
    _
  %v4 = vld [vmem:[%s0] ss:$0 sm:$0xff]
  %5 = vst [vmem:[%s1] sm:$0xf] %v4

// kernel: tile.64
$region0: #{tile.64}
  %s0 = inlined_call_operand.vmem [shape: f32[4,16], index: 0, kind: input, shape index: {}]
  %s1 = inlined_call_operand.vmem [shape: f32[64], index: 1, kind: output, shape index: {}]
  $region1: #{tile.64} parent=0
    #allocation0 [shape = 'u8[4096]{0}', space=vmem, size = 0x1000, scoped, tag = 'scoped mem for output reshape']
    #allocation1 [shape = 'u8[4096]{0}', space=vmem, size = 0x1000, scoped, tag = 'scoped mem for input reshape']
    %s3 = sshllo.u32 0, 4
    %v4 = vld [vmem:[%s0] sm:%s3]
    %5 = vst [vmem:[#allocation1] sm:%s3] %v4
    %v6 = vld [vmem:[#allocation1] sm:$0x1]
    %vm7 = vcmask 130048
    %8 = vst.msk [vmem:[#allocation0] sm:$0x1] %vm7, %v6
    %s9 = scalar_lea.vmem [#allocation1], 3
    %v10 = vld [vmem:[%s9] sm:$0x1]
    %11 = vrot.lane.b32.xlu0 %v10, 48
    %v12 = vpop.permute.xlu0 %11
    %vm13 = vcmask 523648
    %14 = vst.msk [vmem:[#allocation0] sm:$0x1] %vm13, %v12
    %s15 = scalar_lea.vmem [#allocation1], 2
    %v16 = vld [vmem:[%s15] sm:$0x1]
    %17 = vrot.lane.b32.xlu0 %v16, 32
    %v18 = vpop.permute.xlu0 %17
    %vm19 = vcmask 392448
    %20 = vst.msk [vmem:[#allocation0] sm:$0x1] %vm19, %v18
    %s21 = scalar_lea.vmem [#allocation1], 1
    %v22 = vld [vmem:[%s21] sm:$0x1]
    %23 = vrot.lane.b32.xlu0 %v22, 16
    %v24 = vpop.permute.xlu0 %23
    %vm25 = vcmask 261248
    %26 = vst.msk [vmem:[#allocation0] sm:$0x1] %vm25, %v24
    %s28 = sshllo.u32 0, 1
    %v30 = vld [vmem:[#allocation0] sm:%s28]
    %s31 = sshllo.u32 0, 1
    %32 = vst [vmem:[%s1] sm:%s31] %v30

// kernel: generator_forward.16
$region0: #{generator_forward.16}
  #allocation0 [shape = 'u32[]', space=smem, size = 0x4, offset = 0x4, fixed_abs, tag = 'smem constant byte address 0x4 - core index']
  #allocation1 [shape = 'u32[144,128]{1,0:T(1,128)}', space=vmem, size = 0x12000, scoped, tag = 'internal scratch']
  %s0 = inlined_call_operand.vmem [shape: bf16[512,128], index: 0, kind: input, shape index: {}]
  %s1 = inlined_call_operand.vmem [shape: f32[1,128], index: 1, kind: input, shape index: {}]
  %s2 = inlined_call_operand.vmem [shape: f32[1,128], index: 2, kind: input, shape index: {}]
  %s3 = inlined_call_operand.vmem [shape: bf16[512,128], index: 3, kind: output, shape index: {}]
  %s4 = sld [smem:[#allocation0]]
  $region22: #{generator_forward.16} parent=0
    _
  %s6 = ssub.s32 1, %s4
  %s7 = scalar_select 0, %s6, %s4
  // Predicated region
  $region2: #{generator_forward.16} parent=0 // pred_check
    _
  $region3: #{generator_forward.16} parent=0 // pred_check_branch
    %9 = sbr.rel (0) target = $region5
  $region4: #{generator_forward.16} parent=0 // pred_region
    _
  $region5: #{generator_forward.16} parent=0 // pred_fallthru
    _
  // Predicated region
  $region6: #{generator_forward.16} parent=0 // pred_check
    _
  $region7: #{generator_forward.16} parent=0 // pred_check_branch
    %11 = sbr.rel (0) target = $region9
  $region8: #{generator_forward.16} parent=0 // pred_region
    _
  $region9: #{generator_forward.16} parent=0 // pred_fallthru
    _
  // Predicated region
  $region10: #{generator_forward.16} parent=0 // pred_check
    _
  $region11: #{generator_forward.16} parent=0 // pred_check_branch
    %13 = sbr.rel (0) target = $region13
  $region12: #{generator_forward.16} parent=0 // pred_region
    _
  $region13: #{generator_forward.16} parent=0 // pred_fallthru
    _
  %v14 = vld [vmem:[%s0] sm:$0xf]
  %v15 = vld [vmem:[%s0 + $0x4] sm:$0xf]
  %v16 = vld [vmem:[%s0 + $0x8] sm:$0xf]
  %v17 = vld [vmem:[%s0 + $0xc] sm:$0xf]
  %v18 = vld [vmem:[%s0 + $0x10] sm:$0xf]
  %v19 = vld [vmem:[%s0 + $0x14] sm:$0xf]
  %v20 = vld [vmem:[%s0 + $0x18] sm:$0xf]
  %v21 = vld [vmem:[%s0 + $0x1c] sm:$0xf]
  %v22 = vld [vmem:[%s0 + $0x20] sm:$0xf]
  %v23 = vld [vmem:[%s0 + $0x24] sm:$0xf]
  %v24 = vld [vmem:[%s0 + $0x28] sm:$0xf]
  %v25 = vld [vmem:[%s0 + $0x2c] sm:$0xf]
  %v26 = vld [vmem:[%s0 + $0x30] sm:$0xf]
  %v27 = vld [vmem:[%s0 + $0x34] sm:$0xf]
  %v28 = vld [vmem:[%s0 + $0x38] sm:$0xf]
  %v29 = vld [vmem:[%s0 + $0x3c] sm:$0xf]
  %v30 = vld [vmem:[%s0 + $0x40] sm:$0xf]
  %v31 = vld [vmem:[%s0 + $0x44] sm:$0xf]
  %v32 = vld [vmem:[%s0 + $0x48] sm:$0xf]
  %v33 = vld [vmem:[%s0 + $0x4c] sm:$0xf]
  %v34 = vld [vmem:[%s0 + $0x50] sm:$0xf]
  %v35 = vld [vmem:[%s0 + $0x54] sm:$0xf]
  %v36 = vld [vmem:[%s0 + $0x58] sm:$0xf]
  %v37 = vld [vmem:[%s0 + $0x5c] sm:$0xf]
  %v38 = vld [vmem:[%s0 + $0x60] sm:$0xf]
  %v39 = vld [vmem:[%s0 + $0x64] sm:$0xf]
  %v40 = vld [vmem:[%s0 + $0x68] sm:$0xf]
  %v41 = vld [vmem:[%s0 + $0x6c] sm:$0xf]
  %v42 = vld [vmem:[%s0 + $0x70] sm:$0xf]
  %v43 = vld [vmem:[%s0 + $0x74] sm:$0xf]
  %v44 = vld [vmem:[%s0 + $0x78] sm:$0xf]
  %v45 = vld [vmem:[%s0 + $0x7c] sm:$0xf]
  %v46 = vld [vmem:[%s0 + $0x80] sm:$0xf]
  %v47 = vld [vmem:[%s0 + $0x84] sm:$0xf]
  %v48 = vld [vmem:[%s0 + $0x88] sm:$0xf]
  %v49 = vld [vmem:[%s0 + $0x8c] sm:$0xf]
  %v50 = vld [vmem:[%s0 + $0x90] sm:$0xf]
  %v51 = vld [vmem:[%s0 + $0x94] sm:$0xf]
  %v52 = vld [vmem:[%s0 + $0x98] sm:$0xf]
  %v53 = vld [vmem:[%s0 + $0x9c] sm:$0xf]
  %v54 = vld [vmem:[%s0 + $0xa0] sm:$0xf]
  %v55 = vld [vmem:[%s0 + $0xa4] sm:$0xf]
  %v56 = vld [vmem:[%s0 + $0xa8] sm:$0xf]
  %v57 = vld [vmem:[%s0 + $0xac] sm:$0xf]
  %v58 = vld [vmem:[%s0 + $0xb0] sm:$0xf]
  %v59 = vld [vmem:[%s0 + $0xb4] sm:$0xf]
  %v60 = vld [vmem:[%s0 + $0xb8] sm:$0xf]
  %v61 = vld [vmem:[%s0 + $0xbc] sm:$0xf]
  %v62 = vld [vmem:[%s0 + $0xc0] sm:$0xf]
  %v63 = vld [vmem:[%s0 + $0xc4] sm:$0xf]
  %v64 = vld [vmem:[%s0 + $0xc8] sm:$0xf]
  %v65 = vld [vmem:[%s0 + $0xcc] sm:$0xf]
  %v66 = vld [vmem:[%s0 + $0xd0] sm:$0xf]
  %v67 = vld [vmem:[%s0 + $0xd4] sm:$0xf]
  %v68 = vld [vmem:[%s0 + $0xd8] sm:$0xf]
  %v69 = vld [vmem:[%s0 + $0xdc] sm:$0xf]
  %v70 = vld [vmem:[%s0 + $0xe0] sm:$0xf]
  %v71 = vld [vmem:[%s0 + $0xe4] sm:$0xf]
  %v72 = vld [vmem:[%s0 + $0xe8] sm:$0xf]
  %v73 = vld [vmem:[%s0 + $0xec] sm:$0xf]
  %v74 = vld [vmem:[%s0 + $0xf0] sm:$0xf]
  %v75 = vld [vmem:[%s0 + $0xf4] sm:$0xf]
  %v76 = vld [vmem:[%s0 + $0xf8] sm:$0xf]
  %v77 = vld [vmem:[%s0 + $0xfc] sm:$0xf]
  %v78 = vunpack.c.l.bf16 %v14
  %v79 = vunpack.c.l.bf16 %v15
  %v80 = vunpack.c.l.bf16 %v16
  %v81 = vunpack.c.l.bf16 %v17
  %v82 = vunpack.c.l.bf16 %v18
  %v83 = vunpack.c.l.bf16 %v19
  %v84 = vunpack.c.l.bf16 %v20
  %v85 = vunpack.c.l.bf16 %v21
  %v86 = vunpack.c.l.bf16 %v22
  %v87 = vunpack.c.l.bf16 %v23
  %v88 = vunpack.c.l.bf16 %v24
  %v89 = vunpack.c.l.bf16 %v25
  %v90 = vunpack.c.l.bf16 %v26
  %v91 = vunpack.c.l.bf16 %v27
  %v92 = vunpack.c.l.bf16 %v28
  %v93 = vunpack.c.l.bf16 %v29
  %v94 = vunpack.c.l.bf16 %v30
  %v95 = vunpack.c.l.bf16 %v31
  %v96 = vunpack.c.l.bf16 %v32
  %v97 = vunpack.c.l.bf16 %v33
  %v98 = vunpack.c.l.bf16 %v34
  %v99 = vunpack.c.l.bf16 %v35
  %v100 = vunpack.c.l.bf16 %v36
  %v101 = vunpack.c.l.bf16 %v37
  %v102 = vunpack.c.l.bf16 %v38
  %v103 = vunpack.c.l.bf16 %v39
  %v104 = vunpack.c.l.bf16 %v40
  %v105 = vunpack.c.l.bf16 %v41
  %v106 = vunpack.c.l.bf16 %v42
  %v107 = vunpack.c.l.bf16 %v43
  %v108 = vunpack.c.l.bf16 %v44
  %v109 = vunpack.c.l.bf16 %v45
  %v110 = vunpack.c.l.bf16 %v46
  %v111 = vunpack.c.l.bf16 %v47
  %v112 = vunpack.c.l.bf16 %v48
  %v113 = vunpack.c.l.bf16 %v49
  %v114 = vunpack.c.l.bf16 %v50
  %v115 = vunpack.c.l.bf16 %v51
  %v116 = vunpack.c.l.bf16 %v52
  %v117 = vunpack.c.l.bf16 %v53
  %v118 = vunpack.c.l.bf16 %v54
  %v119 = vunpack.c.l.bf16 %v55
  %v120 = vunpack.c.l.bf16 %v56
  %v121 = vunpack.c.l.bf16 %v57
  %v122 = vunpack.c.l.bf16 %v58
  %v123 = vunpack.c.l.bf16 %v59
  %v124 = vunpack.c.l.bf16 %v60
  %v125 = vunpack.c.l.bf16 %v61
  %v126 = vunpack.c.l.bf16 %v62
  %v127 = vunpack.c.l.bf16 %v63
  %v128 = vunpack.c.l.bf16 %v64
  %v129 = vunpack.c.l.bf16 %v65
  %v130 = vunpack.c.l.bf16 %v66
  %v131 = vunpack.c.l.bf16 %v67
  %v132 = vunpack.c.l.bf16 %v68
  %v133 = vunpack.c.l.bf16 %v69
  %v134 = vunpack.c.l.bf16 %v70
  %v135 = vunpack.c.l.bf16 %v71
  %v136 = vunpack.c.l.bf16 %v72
  %v137 = vunpack.c.l.bf16 %v73
  %v138 = vunpack.c.l.bf16 %v74
  %v139 = vunpack.c.l.bf16 %v75
  %v140 = vunpack.c.l.bf16 %v76
  %v141 = vunpack.c.l.bf16 %v77
  %v142 = vld [vmem:[%s1] sm:$0x1]
  %v144 = vlaneseq
  %v145 = vshrl.u32 %v144, 7
  %v146 = vsub.s32 0, %v145
  %v147 = vrot.slane %v142, %v146
  %v149 = vmul.f32 %v78, %v147
  %v150 = vmul.f32 %v79, %v147
  %v151 = vmul.f32 %v80, %v147
  %v152 = vmul.f32 %v81, %v147
  %v153 = vmul.f32 %v82, %v147
  %v154 = vmul.f32 %v83, %v147
  %v155 = vmul.f32 %v84, %v147
  %v156 = vmul.f32 %v85, %v147
  %v157 = vmul.f32 %v86, %v147
  %v158 = vmul.f32 %v87, %v147
  %v159 = vmul.f32 %v88, %v147
  %v160 = vmul.f32 %v89, %v147
  %v161 = vmul.f32 %v90, %v147
  %v162 = vmul.f32 %v91, %v147
  %v163 = vmul.f32 %v92, %v147
  %v164 = vmul.f32 %v93, %v147
  %v165 = vmul.f32 %v94, %v147
  %v166 = vmul.f32 %v95, %v147
  %v167 = vmul.f32 %v96, %v147
  %v168 = vmul.f32 %v97, %v147
  %v169 = vmul.f32 %v98, %v147
  %v170 = vmul.f32 %v99, %v147
  %v171 = vmul.f32 %v100, %v147
  %v172 = vmul.f32 %v101, %v147
  %v173 = vmul.f32 %v102, %v147
  %v174 = vmul.f32 %v103, %v147
  %v175 = vmul.f32 %v104, %v147
  %v176 = vmul.f32 %v105, %v147
  %v177 = vmul.f32 %v106, %v147
  %v178 = vmul.f32 %v107, %v147
  %v179 = vmul.f32 %v108, %v147
  %v180 = vmul.f32 %v109, %v147
  %v181 = vmul.f32 %v110, %v147
  %v182 = vmul.f32 %v111, %v147
  %v183 = vmul.f32 %v112, %v147
  %v184 = vmul.f32 %v113, %v147
  %v185 = vmul.f32 %v114, %v147
  %v186 = vmul.f32 %v115, %v147
  %v187 = vmul.f32 %v116, %v147
  %v188 = vmul.f32 %v117, %v147
  %v189 = vmul.f32 %v118, %v147
  %v190 = vmul.f32 %v119, %v147
  %v191 = vmul.f32 %v120, %v147
  %v192 = vmul.f32 %v121, %v147
  %v193 = vmul.f32 %v122, %v147
  %v194 = vmul.f32 %v123, %v147
  %v195 = vmul.f32 %v124, %v147
  %v196 = vmul.f32 %v125, %v147
  %v197 = vmul.f32 %v126, %v147
  %v198 = vmul.f32 %v127, %v147
  %v199 = vmul.f32 %v128, %v147
  %v200 = vmul.f32 %v129, %v147
  %v201 = vmul.f32 %v130, %v147
  %v202 = vmul.f32 %v131, %v147
  %v203 = vmul.f32 %v132, %v147
  %v204 = vmul.f32 %v133, %v147
  %v205 = vmul.f32 %v134, %v147
  %v206 = vmul.f32 %v135, %v147
  %v207 = vmul.f32 %v136, %v147
  %v208 = vmul.f32 %v137, %v147
  %v209 = vmul.f32 %v138, %v147
  %v210 = vmul.f32 %v139, %v147
  %v211 = vmul.f32 %v140, %v147
  %v212 = vmul.f32 %v141, %v147
  %v213 = vld [vmem:[%s2] sm:$0x1]
  %v215 = vlaneseq
  %v216 = vshrl.u32 %v215, 7
  %v217 = vsub.s32 0, %v216
  %v218 = vrot.slane %v213, %v217
  %v220 = vadd.f32 %v149, %v218
  %v221 = vadd.f32 %v150, %v218
  %v222 = vadd.f32 %v151, %v218
  %v223 = vadd.f32 %v152, %v218
  %v224 = vadd.f32 %v153, %v218
  %v225 = vadd.f32 %v154, %v218
  %v226 = vadd.f32 %v155, %v218
  %v227 = vadd.f32 %v156, %v218
  %v228 = vadd.f32 %v157, %v218
  %v229 = vadd.f32 %v158, %v218
  %v230 = vadd.f32 %v159, %v218
  %v231 = vadd.f32 %v160, %v218
  %v232 = vadd.f32 %v161, %v218
  %v233 = vadd.f32 %v162, %v218
  %v234 = vadd.f32 %v163, %v218
  %v235 = vadd.f32 %v164, %v218
  %v236 = vadd.f32 %v165, %v218
  %v237 = vadd.f32 %v166, %v218
  %v238 = vadd.f32 %v167, %v218
  %v239 = vadd.f32 %v168, %v218
  %v240 = vadd.f32 %v169, %v218
  %v241 = vadd.f32 %v170, %v218
  %v242 = vadd.f32 %v171, %v218
  %v243 = vadd.f32 %v172, %v218
  %v244 = vadd.f32 %v173, %v218
  %v245 = vadd.f32 %v174, %v218
  %v246 = vadd.f32 %v175, %v218
  %v247 = vadd.f32 %v176, %v218
  %v248 = vadd.f32 %v177, %v218
  %v249 = vadd.f32 %v178, %v218
  %v250 = vadd.f32 %v179, %v218
  %v251 = vadd.f32 %v180, %v218
  %v252 = vadd.f32 %v181, %v218
  %v253 = vadd.f32 %v182, %v218
  %v254 = vadd.f32 %v183, %v218
  %v255 = vadd.f32 %v184, %v218
  %v256 = vadd.f32 %v185, %v218
  %v257 = vadd.f32 %v186, %v218
  %v258 = vadd.f32 %v187, %v218
  %v259 = vadd.f32 %v188, %v218
  %v260 = vadd.f32 %v189, %v218
  %v261 = vadd.f32 %v190, %v218
  %v262 = vadd.f32 %v191, %v218
  %v263 = vadd.f32 %v192, %v218
  %v264 = vadd.f32 %v193, %v218
  %v265 = vadd.f32 %v194, %v218
  %v266 = vadd.f32 %v195, %v218
  %v267 = vadd.f32 %v196, %v218
  %v268 = vadd.f32 %v197, %v218
  %v269 = vadd.f32 %v198, %v218
  %v270 = vadd.f32 %v199, %v218
  %v271 = vadd.f32 %v200, %v218
  %v272 = vadd.f32 %v201, %v218
  %v273 = vadd.f32 %v202, %v218
  %v274 = vadd.f32 %v203, %v218
  %v275 = vadd.f32 %v204, %v218
  %v276 = vadd.f32 %v205, %v218
  %v277 = vadd.f32 %v206, %v218
  %v278 = vadd.f32 %v207, %v218
  %v279 = vadd.f32 %v208, %v218
  %v280 = vadd.f32 %v209, %v218
  %v281 = vadd.f32 %v210, %v218
  %v282 = vadd.f32 %v211, %v218
  %v283 = vadd.f32 %v212, %v218
  %v284 = vmax.f32 %v220, 0.0
  %v285 = vmax.f32 %v221, 0.0
  %v286 = vmax.f32 %v222, 0.0
  %v287 = vmax.f32 %v223, 0.0
  %v288 = vmax.f32 %v224, 0.0
  %v289 = vmax.f32 %v225, 0.0
  %v290 = vmax.f32 %v226, 0.0
  %v291 = vmax.f32 %v227, 0.0
  %v292 = vmax.f32 %v228, 0.0
  %v293 = vmax.f32 %v229, 0.0
  %v294 = vmax.f32 %v230, 0.0
  %v295 = vmax.f32 %v231, 0.0
  %v296 = vmax.f32 %v232, 0.0
  %v297 = vmax.f32 %v233, 0.0
  %v298 = vmax.f32 %v234, 0.0
  %v299 = vmax.f32 %v235, 0.0
  %v300 = vmax.f32 %v236, 0.0
  %v301 = vmax.f32 %v237, 0.0
  %v302 = vmax.f32 %v238, 0.0
  %v303 = vmax.f32 %v239, 0.0
  %v304 = vmax.f32 %v240, 0.0
  %v305 = vmax.f32 %v241, 0.0
  %v306 = vmax.f32 %v242, 0.0
  %v307 = vmax.f32 %v243, 0.0
  %v308 = vmax.f32 %v244, 0.0
  %v309 = vmax.f32 %v245, 0.0
  %v310 = vmax.f32 %v246, 0.0
  %v311 = vmax.f32 %v247, 0.0
  %v312 = vmax.f32 %v248, 0.0
  %v313 = vmax.f32 %v249, 0.0
  %v314 = vmax.f32 %v250, 0.0
  %v315 = vmax.f32 %v251, 0.0
  %v316 = vmax.f32 %v252, 0.0
  %v317 = vmax.f32 %v253, 0.0
  %v318 = vmax.f32 %v254, 0.0
  %v319 = vmax.f32 %v255, 0.0
  %v320 = vmax.f32 %v256, 0.0
  %v321 = vmax.f32 %v257, 0.0
  %v322 = vmax.f32 %v258, 0.0
  %v323 = vmax.f32 %v259, 0.0
  %v324 = vmax.f32 %v260, 0.0
  %v325 = vmax.f32 %v261, 0.0
  %v326 = vmax.f32 %v262, 0.0
  %v327 = vmax.f32 %v263, 0.0
  %v328 = vmax.f32 %v264, 0.0
  %v329 = vmax.f32 %v265, 0.0
  %v330 = vmax.f32 %v266, 0.0
  %v331 = vmax.f32 %v267, 0.0
  %v332 = vmax.f32 %v268, 0.0
  %v333 = vmax.f32 %v269, 0.0
  %v334 = vmax.f32 %v270, 0.0
  %v335 = vmax.f32 %v271, 0.0
  %v336 = vmax.f32 %v272, 0.0
  %v337 = vmax.f32 %v273, 0.0
  %v338 = vmax.f32 %v274, 0.0
  %v339 = vmax.f32 %v275, 0.0
  %v340 = vmax.f32 %v276, 0.0
  %v341 = vmax.f32 %v277, 0.0
  %v342 = vmax.f32 %v278, 0.0
  %v343 = vmax.f32 %v279, 0.0
  %v344 = vmax.f32 %v280, 0.0
  %v345 = vmax.f32 %v281, 0.0
  %v346 = vmax.f32 %v282, 0.0
  %v347 = vmax.f32 %v283, 0.0
  %v348 = vpack.c.bf16 %v285, %v284
  %v349 = vpack.c.bf16 %v287, %v286
  %v350 = vpack.c.bf16 %v289, %v288
  %v351 = vpack.c.bf16 %v291, %v290
  %v352 = vpack.c.bf16 %v293, %v292
  %v353 = vpack.c.bf16 %v295, %v294
  %v354 = vpack.c.bf16 %v297, %v296
  %v355 = vpack.c.bf16 %v299, %v298
  %v356 = vpack.c.bf16 %v301, %v300
  %v357 = vpack.c.bf16 %v303, %v302
  %v358 = vpack.c.bf16 %v305, %v304
  %v359 = vpack.c.bf16 %v307, %v306
  %v360 = vpack.c.bf16 %v309, %v308
  %v361 = vpack.c.bf16 %v311, %v310
  %v362 = vpack.c.bf16 %v313, %v312
  %v363 = vpack.c.bf16 %v315, %v314
  %v364 = vpack.c.bf16 %v317, %v316
  %v365 = vpack.c.bf16 %v319, %v318
  %v366 = vpack.c.bf16 %v321, %v320
  %v367 = vpack.c.bf16 %v323, %v322
  %v368 = vpack.c.bf16 %v325, %v324
  %v369 = vpack.c.bf16 %v327, %v326
  %v370 = vpack.c.bf16 %v329, %v328
  %v371 = vpack.c.bf16 %v331, %v330
  %v372 = vpack.c.bf16 %v333, %v332
  %v373 = vpack.c.bf16 %v335, %v334
  %v374 = vpack.c.bf16 %v337, %v336
  %v375 = vpack.c.bf16 %v339, %v338
  %v376 = vpack.c.bf16 %v341, %v340
  %v377 = vpack.c.bf16 %v343, %v342
  %v378 = vpack.c.bf16 %v345, %v344
  %v379 = vpack.c.bf16 %v347, %v346
  %v412 = vunpack.c.l.b16 %v348
  %v413 = vunpack.c.h.b16 %v348
  %v414 = vunpack.c.l.b16 %v349
  %v415 = vunpack.c.h.b16 %v349
  %v416 = vunpack.c.l.b16 %v350
  %v417 = vunpack.c.h.b16 %v350
  %v418 = vunpack.c.l.b16 %v351
  %v419 = vunpack.c.h.b16 %v351
  %v420 = vunpack.c.l.b16 %v352
  %v421 = vunpack.c.h.b16 %v352
  %v422 = vunpack.c.l.b16 %v353
  %v423 = vunpack.c.h.b16 %v353
  %v424 = vunpack.c.l.b16 %v354
  %v425 = vunpack.c.h.b16 %v354
  %v426 = vunpack.c.l.b16 %v355
  %v427 = vunpack.c.h.b16 %v355
  %v428 = vunpack.c.l.b16 %v356
  %v429 = vunpack.c.h.b16 %v356
  %v430 = vunpack.c.l.b16 %v357
  %v431 = vunpack.c.h.b16 %v357
  %v432 = vunpack.c.l.b16 %v358
  %v433 = vunpack.c.h.b16 %v358
  %v434 = vunpack.c.l.b16 %v359
  %v435 = vunpack.c.h.b16 %v359
  %v436 = vunpack.c.l.b16 %v360
  %v437 = vunpack.c.h.b16 %v360
  %v438 = vunpack.c.l.b16 %v361
  %v439 = vunpack.c.h.b16 %v361
  %v440 = vunpack.c.l.b16 %v362
  %v441 = vunpack.c.h.b16 %v362
  %v442 = vunpack.c.l.b16 %v363
  %v443 = vunpack.c.h.b16 %v363
  %v444 = vunpack.c.l.b16 %v364
  %v445 = vunpack.c.h.b16 %v364
  %v446 = vunpack.c.l.b16 %v365
  %v447 = vunpack.c.h.b16 %v365
  %v448 = vunpack.c.l.b16 %v366
  %v449 = vunpack.c.h.b16 %v366
  %v450 = vunpack.c.l.b16 %v367
  %v451 = vunpack.c.h.b16 %v367
  %v452 = vunpack.c.l.b16 %v368
  %v453 = vunpack.c.h.b16 %v368
  %v454 = vunpack.c.l.b16 %v369
  %v455 = vunpack.c.h.b16 %v369
  %v456 = vunpack.c.l.b16 %v370
  %v457 = vunpack.c.h.b16 %v370
  %v458 = vunpack.c.l.b16 %v371
  %v459 = vunpack.c.h.b16 %v371
  %v460 = vunpack.c.l.b16 %v372
  %v461 = vunpack.c.h.b16 %v372
  %v462 = vunpack.c.l.b16 %v373
  %v463 = vunpack.c.h.b16 %v373
  %v464 = vunpack.c.l.b16 %v374
  %v465 = vunpack.c.h.b16 %v374
  %v466 = vunpack.c.l.b16 %v375
  %v467 = vunpack.c.h.b16 %v375
  %v468 = vunpack.c.l.b16 %v376
  %v469 = vunpack.c.h.b16 %v376
  %v470 = vunpack.c.l.b16 %v377
  %v471 = vunpack.c.h.b16 %v377
  %v472 = vunpack.c.l.b16 %v378
  %v473 = vunpack.c.h.b16 %v378
  %v474 = vunpack.c.l.b16 %v379
  %v475 = vunpack.c.h.b16 %v379
  %v476 = vpack.c.b16 %v412, %v412
  %v477 = vpack.c.b16 %v413, %v413
  %v478 = vpack.c.b16 %v414, %v414
  %v479 = vpack.c.b16 %v415, %v415
  %v480 = vpack.c.b16 %v416, %v416
  %v481 = vpack.c.b16 %v417, %v417
  %v482 = vpack.c.b16 %v418, %v418
  %v483 = vpack.c.b16 %v419, %v419
  %v484 = vpack.c.b16 %v420, %v420
  %v485 = vpack.c.b16 %v421, %v421
  %v486 = vpack.c.b16 %v422, %v422
  %v487 = vpack.c.b16 %v423, %v423
  %v488 = vpack.c.b16 %v424, %v424
  %v489 = vpack.c.b16 %v425, %v425
  %v490 = vpack.c.b16 %v426, %v426
  %v491 = vpack.c.b16 %v427, %v427
  %v492 = vpack.c.b16 %v428, %v428
  %v493 = vpack.c.b16 %v429, %v429
  %v494 = vpack.c.b16 %v430, %v430
  %v495 = vpack.c.b16 %v431, %v431
  %v496 = vpack.c.b16 %v432, %v432
  %v497 = vpack.c.b16 %v433, %v433
  %v498 = vpack.c.b16 %v434, %v434
  %v499 = vpack.c.b16 %v435, %v435
  %v500 = vpack.c.b16 %v436, %v436
  %v501 = vpack.c.b16 %v437, %v437
  %v502 = vpack.c.b16 %v438, %v438
  %v503 = vpack.c.b16 %v439, %v439
  %v504 = vpack.c.b16 %v440, %v440
  %v505 = vpack.c.b16 %v441, %v441
  %v506 = vpack.c.b16 %v442, %v442
  %v507 = vpack.c.b16 %v443, %v443
  %v508 = vpack.c.b16 %v444, %v444
  %v509 = vpack.c.b16 %v445, %v445
  %v510 = vpack.c.b16 %v446, %v446
  %v511 = vpack.c.b16 %v447, %v447
  %v512 = vpack.c.b16 %v448, %v448
  %v513 = vpack.c.b16 %v449, %v449
  %v514 = vpack.c.b16 %v450, %v450
  %v515 = vpack.c.b16 %v451, %v451
  %v516 = vpack.c.b16 %v452, %v452
  %v517 = vpack.c.b16 %v453, %v453
  %v518 = vpack.c.b16 %v454, %v454
  %v519 = vpack.c.b16 %v455, %v455
  %v520 = vpack.c.b16 %v456, %v456
  %v521 = vpack.c.b16 %v457, %v457
  %v522 = vpack.c.b16 %v458, %v458
  %v523 = vpack.c.b16 %v459, %v459
  %v524 = vpack.c.b16 %v460, %v460
  %v525 = vpack.c.b16 %v461, %v461
  %v526 = vpack.c.b16 %v462, %v462
  %v527 = vpack.c.b16 %v463, %v463
  %v528 = vpack.c.b16 %v464, %v464
  %v529 = vpack.c.b16 %v465, %v465
  %v530 = vpack.c.b16 %v466, %v466
  %v531 = vpack.c.b16 %v467, %v467
  %v532 = vpack.c.b16 %v468, %v468
  %v533 = vpack.c.b16 %v469, %v469
  %v534 = vpack.c.b16 %v470, %v470
  %v535 = vpack.c.b16 %v471, %v471
  %v536 = vpack.c.b16 %v472, %v472
  %v537 = vpack.c.b16 %v473, %v473
  %v538 = vpack.c.b16 %v474, %v474
  %v539 = vpack.c.b16 %v475, %v475
  %604 = vst [vmem:[%s3] sm:$0xf] %v476
  %605 = vst [vmem:[%s3 + $0x4] sm:$0xf] %v477
  %606 = vst [vmem:[%s3 + $0x8] sm:$0xf] %v478
  %607 = vst [vmem:[%s3 + $0xc] sm:$0xf] %v479
  %608 = vst [vmem:[%s3 + $0x10] sm:$0xf] %v480
  %609 = vst [vmem:[%s3 + $0x14] sm:$0xf] %v481
  %610 = vst [vmem:[%s3 + $0x18] sm:$0xf] %v482
  %611 = vst [vmem:[%s3 + $0x1c] sm:$0xf] %v483
  %612 = vst [vmem:[%s3 + $0x20] sm:$0xf] %v484
  %613 = vst [vmem:[%s3 + $0x24] sm:$0xf] %v485
  %614 = vst [vmem:[%s3 + $0x28] sm:$0xf] %v486
  %615 = vst [vmem:[%s3 + $0x2c] sm:$0xf] %v487
  %616 = vst [vmem:[%s3 + $0x30] sm:$0xf] %v488
  %617 = vst [vmem:[%s3 + $0x34] sm:$0xf] %v489
  %618 = vst [vmem:[%s3 + $0x38] sm:$0xf] %v490
  %619 = vst [vmem:[%s3 + $0x3c] sm:$0xf] %v491
  %620 = vst [vmem:[%s3 + $0x40] sm:$0xf] %v492
  %621 = vst [vmem:[%s3 + $0x44] sm:$0xf] %v493
  %622 = vst [vmem:[%s3 + $0x48] sm:$0xf] %v494
  %623 = vst [vmem:[%s3 + $0x4c] sm:$0xf] %v495
  %624 = vst [vmem:[%s3 + $0x50] sm:$0xf] %v496
  %625 = vst [vmem:[%s3 + $0x54] sm:$0xf] %v497
  %626 = vst [vmem:[%s3 + $0x58] sm:$0xf] %v498
  %627 = vst [vmem:[%s3 + $0x5c] sm:$0xf] %v499
  %628 = vst [vmem:[%s3 + $0x60] sm:$0xf] %v500
  %629 = vst [vmem:[%s3 + $0x64] sm:$0xf] %v501
  %630 = vst [vmem:[%s3 + $0x68] sm:$0xf] %v502
  %631 = vst [vmem:[%s3 + $0x6c] sm:$0xf] %v503
  %632 = vst [vmem:[%s3 + $0x70] sm:$0xf] %v504
  %633 = vst [vmem:[%s3 + $0x74] sm:$0xf] %v505
  %634 = vst [vmem:[%s3 + $0x78] sm:$0xf] %v506
  %635 = vst [vmem:[%s3 + $0x7c] sm:$0xf] %v507
  %636 = vst [vmem:[%s3 + $0x80] sm:$0xf] %v508
  %637 = vst [vmem:[%s3 + $0x84] sm:$0xf] %v509
  %638 = vst [vmem:[%s3 + $0x88] sm:$0xf] %v510
  %639 = vst [vmem:[%s3 + $0x8c] sm:$0xf] %v511
  %640 = vst [vmem:[%s3 + $0x90] sm:$0xf] %v512
  %641 = vst [vmem:[%s3 + $0x94] sm:$0xf] %v513
  %642 = vst [vmem:[%s3 + $0x98] sm:$0xf] %v514
  %643 = vst [vmem:[%s3 + $0x9c] sm:$0xf] %v515
  %644 = vst [vmem:[%s3 + $0xa0] sm:$0xf] %v516
  %645 = vst [vmem:[%s3 + $0xa4] sm:$0xf] %v517
  %646 = vst [vmem:[%s3 + $0xa8] sm:$0xf] %v518
  %647 = vst [vmem:[%s3 + $0xac] sm:$0xf] %v519
  %648 = vst [vmem:[%s3 + $0xb0] sm:$0xf] %v520
  %649 = vst [vmem:[%s3 + $0xb4] sm:$0xf] %v521
  %650 = vst [vmem:[%s3 + $0xb8] sm:$0xf] %v522
  %651 = vst [vmem:[%s3 + $0xbc] sm:$0xf] %v523
  %652 = vst [vmem:[%s3 + $0xc0] sm:$0xf] %v524
  %653 = vst [vmem:[%s3 + $0xc4] sm:$0xf] %v525
  %654 = vst [vmem:[%s3 + $0xc8] sm:$0xf] %v526
  %655 = vst [vmem:[%s3 + $0xcc] sm:$0xf] %v527
  %656 = vst [vmem:[%s3 + $0xd0] sm:$0xf] %v528
  %657 = vst [vmem:[%s3 + $0xd4] sm:$0xf] %v529
  %658 = vst [vmem:[%s3 + $0xd8] sm:$0xf] %v530
  %659 = vst [vmem:[%s3 + $0xdc] sm:$0xf] %v531
  %660 = vst [vmem:[%s3 + $0xe0] sm:$0xf] %v532
  %661 = vst [vmem:[%s3 + $0xe4] sm:$0xf] %v533
  %662 = vst [vmem:[%s3 + $0xe8] sm:$0xf] %v534
  %663 = vst [vmem:[%s3 + $0xec] sm:$0xf] %v535
  %664 = vst [vmem:[%s3 + $0xf0] sm:$0xf] %v536
  %665 = vst [vmem:[%s3 + $0xf4] sm:$0xf] %v537
  %666 = vst [vmem:[%s3 + $0xf8] sm:$0xf] %v538
  %667 = vst [vmem:[%s3 + $0xfc] sm:$0xf] %v539
  // Predicated region
  $region14: #{generator_forward.16} parent=0 // pred_check
    _
  $region15: #{generator_forward.16} parent=0 // pred_check_branch
    %669 = sbr.rel (0) target = $region17
  $region16: #{generator_forward.16} parent=0 // pred_region
    _
  $region17: #{generator_forward.16} parent=0 // pred_fallthru
    _
  // Predicated region
  $region18: #{generator_forward.16} parent=0 // pred_check
    _
  $region19: #{generator_forward.16} parent=0 // pred_check_branch
    %671 = sbr.rel (0) target = $region21
  $region20: #{generator_forward.16} parent=0 // pred_region
    _
  $region21: #{generator_forward.16} parent=0 // pred_fallthru
    _

// kernel: generator_forward.17
$region0: #{generator_forward.17}
  #allocation0 [shape = 'u32[]', space=smem, size = 0x4, offset = 0x4, fixed_abs, tag = 'smem constant byte address 0x4 - core index']
  #allocation1 [shape = 'u32[144,128]{1,0:T(1,128)}', space=vmem, size = 0x12000, scoped, tag = 'internal scratch']
  %s0 = inlined_call_operand.vmem [shape: bf16[2048,144], index: 0, kind: input, shape index: {}]
  %s1 = inlined_call_operand.vmem [shape: bf16[144,128], index: 1, kind: input, shape index: {}]
  %s2 = inlined_call_operand.vmem [shape: f32[1,128], index: 2, kind: input, shape index: {}]
  %s3 = inlined_call_operand.vmem [shape: bf16[2048,128], index: 3, kind: output, shape index: {}]
  %s4 = sld [smem:[#allocation0]]
  $region45: #{generator_forward.17} parent=0
    _
  %s6 = ssub.s32 1, %s4
  %s7 = scalar_select 0, %s6, %s4
  loop: start=0, step=1, limit=4
  $region2: #{generator_forward.17} parent=0 // loop_pre_header
    _
  $region3: #{generator_forward.17} parent=0 // loop_header
    %s9 = sphi 0, %s13
    %p10 = scmp.ge.s32.totalorder %s9, 4
    %s16 = sphi 0, %s28
    %s17 = sphi 0, %s24
    %s18 = sphi 0, %s16
    %s19 = sphi 0, %s17
    %s20 = sphi 0, %s18
    %s21 = sphi 0, %s19
    %s31 = sphi 0, %s33
    %s34 = sphi 0, %s31
    %s35 = sphi 0, %s34
    %s51 = sphi 0, %s35
    %s57 = sphi 0, %s59
    %s60 = sphi 0, %s57
    %s61 = sphi 0, %s60
    %s77 = sphi 0, %s61
    %s83 = sphi 0, %s85
    %s86 = sphi 0, %s83
    %s87 = sphi 0, %s86
    %s103 = sphi 0, %s87
    %s111 = sphi 0, %s113
    %s114 = sphi 0, %s111
    %s115 = sphi 0, %s114
    %s131 = sphi 0, %s115
  $region4: #{generator_forward.17} parent=0 // loop_header_branch
    %12 = sbr.rel (%p10) target = $region8
  $region5: #{generator_forward.17} parent=0 // loop_body
    %s14 = ssub.s32 %s9, 1
    %s15 = ssub.s32 %s9, 2
    %s22 = sadd.s32 1, %s17
    %p23 = scmp.ge.s32.totalorder %s22, 1
    %s24 = scalar_select %p23, 0, %s22
    %s25 = sadd.s32 1, %s16
    %s26 = scalar_select %p23, %s25, %s16
    %p27 = scmp.ge.s32.totalorder %s26, 2
    %s28 = scalar_select %p27, 0, %s26
    %s29 = ssub.s32 %s16, %s28
    %p30 = scmp.eq.s32.totalorder %s29, 0
    %s32 = sadd.s32 %s31, 1
    %s33 = scalar_select %p30, %s31, %s32
    %p36 = pneg %p30
    %p37 = scmp.eq.s32.totalorder %s9, 1
    %p38 = por %p36, %p37
    %p39 = scmp.ne.s32.totalorder %s31, %s34
    %p40 = scmp.eq.s32.totalorder %s9, 0
    %p41 = por %p39, %p40
    %p42 = scmp.ne.s32.totalorder %s31, %s34
    %p43 = scmp.eq.s32.totalorder %s14, 1
    %p44 = por %p42, %p43
    %p45 = scmp.ne.s32.totalorder %s34, %s35
    %p46 = scmp.eq.s32.totalorder %s14, 0
    %p47 = por %p45, %p46
    %p48 = scmp.ne.s32.totalorder %s34, %s35
    %p49 = scmp.eq.s32.totalorder %s15, 1
    %p50 = por %p48, %p49
    %p52 = scmp.ne.s32.totalorder %s35, %s51
    %p53 = scmp.eq.s32.totalorder %s15, 0
    %p54 = por %p52, %p53
    %s55 = ssub.s32 %s17, %s24
    %p56 = scmp.eq.s32.totalorder %s55, 0
    %s58 = sadd.s32 %s57, 1
    %s59 = scalar_select %p56, %s57, %s58
    %p62 = pneg %p56
    %p63 = scmp.eq.s32.totalorder %s9, 1
    %p64 = por %p62, %p63
    %p65 = scmp.ne.s32.totalorder %s57, %s60
    %p66 = scmp.eq.s32.totalorder %s9, 0
    %p67 = por %p65, %p66
    %p68 = scmp.ne.s32.totalorder %s57, %s60
    %p69 = scmp.eq.s32.totalorder %s14, 1
    %p70 = por %p68, %p69
    %p71 = scmp.ne.s32.totalorder %s60, %s61
    %p72 = scmp.eq.s32.totalorder %s14, 0
    %p73 = por %p71, %p72
    %p74 = scmp.ne.s32.totalorder %s60, %s61
    %p75 = scmp.eq.s32.totalorder %s15, 1
    %p76 = por %p74, %p75
    %p78 = scmp.ne.s32.totalorder %s61, %s77
    %p79 = scmp.eq.s32.totalorder %s15, 0
    %p80 = por %p78, %p79
    %s81 = ssub.s32 %s17, %s24
    %p82 = scmp.eq.s32.totalorder %s81, 0
    %s84 = sadd.s32 %s83, 1
    %s85 = scalar_select %p82, %s83, %s84
    %p88 = pneg %p82
    %p89 = scmp.eq.s32.totalorder %s9, 1
    %p90 = por %p88, %p89
    %p91 = scmp.ne.s32.totalorder %s83, %s86
    %p92 = scmp.eq.s32.totalorder %s9, 0
    %p93 = por %p91, %p92
    %p94 = scmp.ne.s32.totalorder %s83, %s86
    %p95 = scmp.eq.s32.totalorder %s14, 1
    %p96 = por %p94, %p95
    %p97 = scmp.ne.s32.totalorder %s86, %s87
    %p98 = scmp.eq.s32.totalorder %s14, 0
    %p99 = por %p97, %p98
    %p100 = scmp.ne.s32.totalorder %s86, %s87
    %p101 = scmp.eq.s32.totalorder %s15, 1
    %p102 = por %p100, %p101
    %p104 = scmp.ne.s32.totalorder %s87, %s103
    %p105 = scmp.eq.s32.totalorder %s15, 0
    %p106 = por %p104, %p105
    %s107 = ssub.s32 %s16, %s28
    %s108 = ssub.s32 %s17, %s24
    %s109 = sor.u32 %s107, %s108
    %p110 = scmp.eq.s32.totalorder %s109, 0
    %s112 = sadd.s32 %s111, 1
    %s113 = scalar_select %p110, %s111, %s112
    %p116 = pneg %p110
    %p117 = scmp.eq.s32.totalorder %s9, 1
    %p118 = por %p116, %p117
    %p119 = scmp.ne.s32.totalorder %s111, %s114
    %p120 = scmp.eq.s32.totalorder %s9, 0
    %p121 = por %p119, %p120
    %p122 = scmp.ne.s32.totalorder %s111, %s114
    %p123 = scmp.eq.s32.totalorder %s14, 1
    %p124 = por %p122, %p123
    %p125 = scmp.ne.s32.totalorder %s114, %s115
    %p126 = scmp.eq.s32.totalorder %s14, 0
    %p127 = por %p125, %p126
    %p128 = scmp.ne.s32.totalorder %s114, %s115
    %p129 = scmp.eq.s32.totalorder %s15, 1
    %p130 = por %p128, %p129
    %p132 = scmp.ne.s32.totalorder %s115, %s131
    %p133 = scmp.eq.s32.totalorder %s15, 0
    %p134 = por %p132, %p133
    %p135 = scmp.le.s32.totalorder 1, %s9
    %p136 = scmp.lt.s32.totalorder %s9, 3
    %p137 = pnand %p135, %p136
    %p138 = pneg %p137
    // Predicated region
    $region9: #{generator_forward.17} parent=5 // pred_check
      _
    $region10: #{generator_forward.17} parent=5 // pred_check_branch
      %140 = sbr.rel (%p137) target = $region12
    $region11: #{generator_forward.17} parent=5 // pred_region
      %s141 = ssub.s32 %s9, 1
      // Predicated region
      $region13: #{generator_forward.17} parent=11 // pred_check
        %p142 = pneg %p73
      $region14: #{generator_forward.17} parent=11 // pred_check_branch
        %144 = sbr.rel (%p142) target = $region16
      $region15: #{generator_forward.17} parent=11 // pred_region
        %p145 = scmp.lt.s32.totalorder %s19, 0
        %s146 = scalar_select %p145, %s19, 0
        %s147 = smul.addr %s146, 4
        %s148 = scalar_lea.vmem %s1, %s147
      $region16: #{generator_forward.17} parent=11 // pred_fallthru
        _
      // Predicated region
      $region17: #{generator_forward.17} parent=11 // pred_check
        %p149 = pneg %p99
      $region18: #{generator_forward.17} parent=11 // pred_check_branch
        %151 = sbr.rel (%p149) target = $region20
      $region19: #{generator_forward.17} parent=11 // pred_region
        %p152 = scmp.lt.s32.totalorder %s19, 0
        %s153 = scalar_select %p152, %s19, 0
        %s154 = scalar_lea.vmem %s2, %s153
      $region20: #{generator_forward.17} parent=11 // pred_fallthru
        _
    $region12: #{generator_forward.17} parent=5 // pred_fallthru
      _
    %p155 = scmp.lt.s32.totalorder %s9, 2
    // Predicated region
    $region21: #{generator_forward.17} parent=5 // pred_check
      %p156 = pneg %p155
    $region22: #{generator_forward.17} parent=5 // pred_check_branch
      %158 = sbr.rel (%p156) target = $region24
    $region23: #{generator_forward.17} parent=5 // pred_region
      // Predicated region
      $region25: #{generator_forward.17} parent=23 // pred_check
        %p159 = pneg %p41
      $region26: #{generator_forward.17} parent=23 // pred_check_branch
        %161 = sbr.rel (%p159) target = $region28
      $region27: #{generator_forward.17} parent=23 // pred_region
        %s162 = smul.u32 128, %s16
        %p163 = scmp.lt.s32.totalorder %s162, 255
        %s164 = scalar_select %p163, %s162, 255
        %s165 = smul.addr %s164, 2
        %s166 = smul.addr %s165, 4
        %s167 = scalar_lea.vmem %s0, %s166
        %s168 = smul.u32 128, %s16
      $region28: #{generator_forward.17} parent=23 // pred_fallthru
        _
    $region24: #{generator_forward.17} parent=5 // pred_fallthru
      _
    %p169 = scmp.le.s32.totalorder 1, %s9
    %p170 = scmp.lt.s32.totalorder %s9, 3
    %p171 = pnand %p169, %p170
    %p172 = pneg %p171
    // Predicated region
    $region29: #{generator_forward.17} parent=5 // pred_check
      _
    $region30: #{generator_forward.17} parent=5 // pred_check_branch
      %174 = sbr.rel (%p171) target = $region32
    $region31: #{generator_forward.17} parent=5 // pred_region
      %s175 = ssub.s32 %s9, 1
      %s176 = smul.u32 128, %s18
      %p177 = scmp.lt.s32.totalorder %s176, 255
      %s178 = scalar_select %p177, %s176, 255
      %s179 = smul.addr %s178, 2
      %s180 = smul.addr %s179, 4
      %s181 = scalar_lea.vmem %s0, %s180
      %p182 = pneg %p47
      %p183 = pneg %p44
      %p184 = scmp.lt.s32.totalorder %s19, 0
      %s185 = scalar_select %p184, %s19, 0
      %s186 = smul.addr %s185, 4
      %s187 = scalar_lea.vmem %s1, %s186
      %p188 = pneg %p73
      %p189 = pneg %p70
      %p190 = scmp.lt.s32.totalorder %s19, 0
      %s191 = scalar_select %p190, %s19, 0
      %s192 = scalar_lea.vmem %s2, %s191
      %p193 = pneg %p99
      %p194 = pneg %p96
      %p195 = pneg %p127
      %p196 = pneg %p124
      %s197 = smul.u32 128, %s18
      %p198 = scmp.lt.s32.totalorder %s197, 255
      %s199 = scalar_select %p198, %s197, 255
      %p200 = scmp.lt.s32.totalorder %s19, 0
      %s201 = scalar_select %p200, %s19, 0
      %s202 = sadd.s32 %s201, %s199
      %s203 = smul.addr %s202, 4
      %s204 = scalar_lea.vmem %s3, %s203
      %s205 = smul.u32 128, %s18
      %p206 = scmp.lt.s32.totalorder %s205, 255
      %s207 = scalar_select %p206, %s205, 255
      %s208 = smul.addr %s207, 2
      %s209 = smul.addr %s208, 4
      %s210 = scalar_lea.vmem %s0, %s209
      %s211 = smul.u32 128, %s18
      %p212 = scmp.lt.s32.totalorder %s19, 0
      %s213 = scalar_select %p212, %s19, 0
      %s214 = smul.addr %s213, 4
      %s215 = scalar_lea.vmem %s1, %s214
      %p216 = scmp.lt.s32.totalorder %s19, 0
      %s217 = scalar_select %p216, %s19, 0
      %s218 = scalar_lea.vmem %s2, %s217
      %s219 = smul.u32 128, %s18
      %p220 = scmp.lt.s32.totalorder %s219, 255
      %s221 = scalar_select %p220, %s219, 255
      %p222 = scmp.lt.s32.totalorder %s19, 0
      %s223 = scalar_select %p222, %s19, 0
      %s224 = sadd.s32 %s223, %s221
      %s225 = smul.addr %s224, 4
      %s226 = scalar_lea.vmem %s3, %s225
      %s227 = smul.u32 128, %s18
      %v229 = vld [vmem:[%s210] sm:$0xff]
      %v230 = vld [vmem:[%s210 + $0x8] sm:$0xff]
      %v231 = vld [vmem:[%s210 + $0x10] sm:$0xff]
      %v232 = vld [vmem:[%s210 + $0x18] sm:$0xff]
      %v233 = vld [vmem:[%s210 + $0x20] sm:$0xff]
      %v234 = vld [vmem:[%s210 + $0x28] sm:$0xff]
      %v235 = vld [vmem:[%s210 + $0x30] sm:$0xff]
      %v236 = vld [vmem:[%s210 + $0x38] sm:$0xff]
      %v237 = vld [vmem:[%s210 + $0x40] sm:$0xff]
      %v238 = vld [vmem:[%s210 + $0x48] sm:$0xff]
      %v239 = vld [vmem:[%s210 + $0x50] sm:$0xff]
      %v240 = vld [vmem:[%s210 + $0x58] sm:$0xff]
      %v241 = vld [vmem:[%s210 + $0x60] sm:$0xff]
      %v242 = vld [vmem:[%s210 + $0x68] sm:$0xff]
      %v243 = vld [vmem:[%s210 + $0x70] sm:$0xff]
      %v244 = vld [vmem:[%s210 + $0x78] sm:$0xff]
      %v245 = vld [vmem:[%s210 + $0x80] sm:$0xff]
      %v246 = vld [vmem:[%s210 + $0x88] sm:$0xff]
      %v247 = vld [vmem:[%s210 + $0x90] sm:$0xff]
      %v248 = vld [vmem:[%s210 + $0x98] sm:$0xff]
      %v249 = vld [vmem:[%s210 + $0xa0] sm:$0xff]
      %v250 = vld [vmem:[%s210 + $0xa8] sm:$0xff]
      %v251 = vld [vmem:[%s210 + $0xb0] sm:$0xff]
      %v252 = vld [vmem:[%s210 + $0xb8] sm:$0xff]
      %v253 = vld [vmem:[%s210 + $0xc0] sm:$0xff]
      %v254 = vld [vmem:[%s210 + $0xc8] sm:$0xff]
      %v255 = vld [vmem:[%s210 + $0xd0] sm:$0xff]
      %v256 = vld [vmem:[%s210 + $0xd8] sm:$0xff]
      %v257 = vld [vmem:[%s210 + $0xe0] sm:$0xff]
      %v258 = vld [vmem:[%s210 + $0xe8] sm:$0xff]
      %v259 = vld [vmem:[%s210 + $0xf0] sm:$0xff]
      %v260 = vld [vmem:[%s210 + $0xf8] sm:$0xff]
      %v261 = vld [vmem:[%s210 + $0x100] sm:$0xff]
      %v262 = vld [vmem:[%s210 + $0x108] sm:$0xff]
      %v263 = vld [vmem:[%s210 + $0x110] sm:$0xff]
      %v264 = vld [vmem:[%s210 + $0x118] sm:$0xff]
      %v265 = vld [vmem:[%s210 + $0x120] sm:$0xff]
      %v266 = vld [vmem:[%s210 + $0x128] sm:$0xff]
      %v267 = vld [vmem:[%s210 + $0x130] sm:$0xff]
      %v268 = vld [vmem:[%s210 + $0x138] sm:$0xff]
      %v269 = vld [vmem:[%s210 + $0x140] sm:$0xff]
      %v270 = vld [vmem:[%s210 + $0x148] sm:$0xff]
      %v271 = vld [vmem:[%s210 + $0x150] sm:$0xff]
      %v272 = vld [vmem:[%s210 + $0x158] sm:$0xff]
      %v273 = vld [vmem:[%s210 + $0x160] sm:$0xff]
      %v274 = vld [vmem:[%s210 + $0x168] sm:$0xff]
      %v275 = vld [vmem:[%s210 + $0x170] sm:$0xff]
      %v276 = vld [vmem:[%s210 + $0x178] sm:$0xff]
      %v277 = vld [vmem:[%s210 + $0x180] sm:$0xff]
      %v278 = vld [vmem:[%s210 + $0x188] sm:$0xff]
      %v279 = vld [vmem:[%s210 + $0x190] sm:$0xff]
      %v280 = vld [vmem:[%s210 + $0x198] sm:$0xff]
      %v281 = vld [vmem:[%s210 + $0x1a0] sm:$0xff]
      %v282 = vld [vmem:[%s210 + $0x1a8] sm:$0xff]
      %v283 = vld [vmem:[%s210 + $0x1b0] sm:$0xff]
      %v284 = vld [vmem:[%s210 + $0x1b8] sm:$0xff]
      %v285 = vld [vmem:[%s210 + $0x1c0] sm:$0xff]
      %v286 = vld [vmem:[%s210 + $0x1c8] sm:$0xff]
      %v287 = vld [vmem:[%s210 + $0x1d0] sm:$0xff]
      %v288 = vld [vmem:[%s210 + $0x1d8] sm:$0xff]
      %v289 = vld [vmem:[%s210 + $0x1e0] sm:$0xff]
      %v290 = vld [vmem:[%s210 + $0x1e8] sm:$0xff]
      %v291 = vld [vmem:[%s210 + $0x1f0] sm:$0xff]
      %v292 = vld [vmem:[%s210 + $0x1f8] sm:$0xff]
      %v293 = vld [vmem:[%s210 + $0x200] sm:$0xff]
      %v294 = vld [vmem:[%s210 + $0x208] sm:$0xff]
      %v295 = vld [vmem:[%s210 + $0x210] sm:$0xff]
      %v296 = vld [vmem:[%s210 + $0x218] sm:$0xff]
      %v297 = vld [vmem:[%s210 + $0x220] sm:$0xff]
      %v298 = vld [vmem:[%s210 + $0x228] sm:$0xff]
      %v299 = vld [vmem:[%s210 + $0x230] sm:$0xff]
      %v300 = vld [vmem:[%s210 + $0x238] sm:$0xff]
      %v301 = vld [vmem:[%s210 + $0x240] sm:$0xff]
      %v302 = vld [vmem:[%s210 + $0x248] sm:$0xff]
      %v303 = vld [vmem:[%s210 + $0x250] sm:$0xff]
      %v304 = vld [vmem:[%s210 + $0x258] sm:$0xff]
      %v305 = vld [vmem:[%s210 + $0x260] sm:$0xff]
      %v306 = vld [vmem:[%s210 + $0x268] sm:$0xff]
      %v307 = vld [vmem:[%s210 + $0x270] sm:$0xff]
      %v308 = vld [vmem:[%s210 + $0x278] sm:$0xff]
      %v309 = vld [vmem:[%s210 + $0x280] sm:$0xff]
      %v310 = vld [vmem:[%s210 + $0x288] sm:$0xff]
      %v311 = vld [vmem:[%s210 + $0x290] sm:$0xff]
      %v312 = vld [vmem:[%s210 + $0x298] sm:$0xff]
      %v313 = vld [vmem:[%s210 + $0x2a0] sm:$0xff]
      %v314 = vld [vmem:[%s210 + $0x2a8] sm:$0xff]
      %v315 = vld [vmem:[%s210 + $0x2b0] sm:$0xff]
      %v316 = vld [vmem:[%s210 + $0x2b8] sm:$0xff]
      %v317 = vld [vmem:[%s210 + $0x2c0] sm:$0xff]
      %v318 = vld [vmem:[%s210 + $0x2c8] sm:$0xff]
      %v319 = vld [vmem:[%s210 + $0x2d0] sm:$0xff]
      %v320 = vld [vmem:[%s210 + $0x2d8] sm:$0xff]
      %v321 = vld [vmem:[%s210 + $0x2e0] sm:$0xff]
      %v322 = vld [vmem:[%s210 + $0x2e8] sm:$0xff]
      %v323 = vld [vmem:[%s210 + $0x2f0] sm:$0xff]
      %v324 = vld [vmem:[%s210 + $0x2f8] sm:$0xff]
      %v325 = vld [vmem:[%s210 + $0x300] sm:$0xff]
      %v326 = vld [vmem:[%s210 + $0x308] sm:$0xff]
      %v327 = vld [vmem:[%s210 + $0x310] sm:$0xff]
      %v328 = vld [vmem:[%s210 + $0x318] sm:$0xff]
      %v329 = vld [vmem:[%s210 + $0x320] sm:$0xff]
      %v330 = vld [vmem:[%s210 + $0x328] sm:$0xff]
      %v331 = vld [vmem:[%s210 + $0x330] sm:$0xff]
      %v332 = vld [vmem:[%s210 + $0x338] sm:$0xff]
      %v333 = vld [vmem:[%s210 + $0x340] sm:$0xff]
      %v334 = vld [vmem:[%s210 + $0x348] sm:$0xff]
      %v335 = vld [vmem:[%s210 + $0x350] sm:$0xff]
      %v336 = vld [vmem:[%s210 + $0x358] sm:$0xff]
      %v337 = vld [vmem:[%s210 + $0x360] sm:$0xff]
      %v338 = vld [vmem:[%s210 + $0x368] sm:$0xff]
      %v339 = vld [vmem:[%s210 + $0x370] sm:$0xff]
      %v340 = vld [vmem:[%s210 + $0x378] sm:$0xff]
      %v341 = vld [vmem:[%s210 + $0x380] sm:$0xff]
      %v342 = vld [vmem:[%s210 + $0x388] sm:$0xff]
      %v343 = vld [vmem:[%s210 + $0x390] sm:$0xff]
      %v344 = vld [vmem:[%s210 + $0x398] sm:$0xff]
      %v345 = vld [vmem:[%s210 + $0x3a0] sm:$0xff]
      %v346 = vld [vmem:[%s210 + $0x3a8] sm:$0xff]
      %v347 = vld [vmem:[%s210 + $0x3b0] sm:$0xff]
      %v348 = vld [vmem:[%s210 + $0x3b8] sm:$0xff]
      %v349 = vld [vmem:[%s210 + $0x3c0] sm:$0xff]
      %v350 = vld [vmem:[%s210 + $0x3c8] sm:$0xff]
      %v351 = vld [vmem:[%s210 + $0x3d0] sm:$0xff]
      %v352 = vld [vmem:[%s210 + $0x3d8] sm:$0xff]
      %v353 = vld [vmem:[%s210 + $0x3e0] sm:$0xff]
      %v354 = vld [vmem:[%s210 + $0x3e8] sm:$0xff]
      %v355 = vld [vmem:[%s210 + $0x3f0] sm:$0xff]
      %v356 = vld [vmem:[%s210 + $0x3f8] sm:$0xff]
      %v357 = vld [vmem:[%s215] sm:$0xf]
      %v358 = vld [vmem:[%s215 + $0x4] sm:$0xf]
      %v359 = vld [vmem:[%s215 + $0x8] sm:$0xf]
      %v360 = vld [vmem:[%s215 + $0xc] sm:$0xf]
      %v361 = vld [vmem:[%s215 + $0x10] sm:$0xf]
      %v362 = vld [vmem:[%s215 + $0x14] sm:$0xf]
      %v363 = vld [vmem:[%s215 + $0x18] sm:$0xf]
      %v364 = vld [vmem:[%s215 + $0x1c] sm:$0xf]
      %v365 = vld [vmem:[%s215 + $0x20] sm:$0xf]
      %v366 = vld [vmem:[%s215 + $0x24] sm:$0xf]
      %v367 = vld [vmem:[%s215 + $0x28] sm:$0xf]
      %v368 = vld [vmem:[%s215 + $0x2c] sm:$0xf]
      %v369 = vld [vmem:[%s215 + $0x30] sm:$0xf]
      %v370 = vld [vmem:[%s215 + $0x34] sm:$0xf]
      %v371 = vld [vmem:[%s215 + $0x38] sm:$0xf]
      %v372 = vld [vmem:[%s215 + $0x3c] sm:$0xf]
      %v373 = vld [vmem:[%s215 + $0x40] sm:$0xf]
      %v374 = vld [vmem:[%s215 + $0x44] sm:$0xf]
      %v375 = vld [vmem:[%s218] sm:$0x1]
      %v377 = vlaneseq
      %v378 = vshrl.u32 %v377, 7
      %v379 = vsub.s32 0, %v378
      %v380 = vrot.slane %v375, %v379
      %v510 = vunpack.c.l.b16 %v229
      %v511 = vunpack.c.h.b16 %v229
      %v512 = vunpack.c.l.b16 %v230
      %v513 = vunpack.c.h.b16 %v230
      %v514 = vunpack.c.l.b16 %v231
      %v515 = vunpack.c.h.b16 %v231
      %v516 = vunpack.c.l.b16 %v232
      %v517 = vunpack.c.h.b16 %v232
      %v518 = vunpack.c.l.b16 %v233
      %v519 = vunpack.c.h.b16 %v233
      %v520 = vunpack.c.l.b16 %v234
      %v521 = vunpack.c.h.b16 %v234
      %v522 = vunpack.c.l.b16 %v235
      %v523 = vunpack.c.h.b16 %v235
      %v524 = vunpack.c.l.b16 %v236
      %v525 = vunpack.c.h.b16 %v236
      %v526 = vunpack.c.l.b16 %v237
      %v527 = vunpack.c.h.b16 %v237
      %v528 = vunpack.c.l.b16 %v238
      %v529 = vunpack.c.h.b16 %v238
      %v530 = vunpack.c.l.b16 %v239
      %v531 = vunpack.c.h.b16 %v239
      %v532 = vunpack.c.l.b16 %v240
      %v533 = vunpack.c.h.b16 %v240
      %v534 = vunpack.c.l.b16 %v241
      %v535 = vunpack.c.h.b16 %v241
      %v536 = vunpack.c.l.b16 %v242
      %v537 = vunpack.c.h.b16 %v242
      %v538 = vunpack.c.l.b16 %v243
      %v539 = vunpack.c.h.b16 %v243
      %v540 = vunpack.c.l.b16 %v244
      %v541 = vunpack.c.h.b16 %v244
      %v542 = vunpack.c.l.b16 %v245
      %v543 = vunpack.c.h.b16 %v245
      %v544 = vunpack.c.l.b16 %v246
      %v545 = vunpack.c.h.b16 %v246
      %v546 = vunpack.c.l.b16 %v247
      %v547 = vunpack.c.h.b16 %v247
      %v548 = vunpack.c.l.b16 %v248
      %v549 = vunpack.c.h.b16 %v248
      %v550 = vunpack.c.l.b16 %v249
      %v551 = vunpack.c.h.b16 %v249
      %v552 = vunpack.c.l.b16 %v250
      %v553 = vunpack.c.h.b16 %v250
      %v554 = vunpack.c.l.b16 %v251
      %v555 = vunpack.c.h.b16 %v251
      %v556 = vunpack.c.l.b16 %v252
      %v557 = vunpack.c.h.b16 %v252
      %v558 = vunpack.c.l.b16 %v253
      %v559 = vunpack.c.h.b16 %v253
      %v560 = vunpack.c.l.b16 %v254
      %v561 = vunpack.c.h.b16 %v254
      %v562 = vunpack.c.l.b16 %v255
      %v563 = vunpack.c.h.b16 %v255
      %v564 = vunpack.c.l.b16 %v256
      %v565 = vunpack.c.h.b16 %v256
      %v566 = vunpack.c.l.b16 %v257
      %v567 = vunpack.c.h.b16 %v257
      %v568 = vunpack.c.l.b16 %v258
      %v569 = vunpack.c.h.b16 %v258
      %v570 = vunpack.c.l.b16 %v259
      %v571 = vunpack.c.h.b16 %v259
      %v572 = vunpack.c.l.b16 %v260
      %v573 = vunpack.c.h.b16 %v260
      %v574 = vunpack.c.l.b16 %v261
      %v575 = vunpack.c.h.b16 %v261
      %v576 = vunpack.c.l.b16 %v262
      %v577 = vunpack.c.h.b16 %v262
      %v578 = vunpack.c.l.b16 %v263
      %v579 = vunpack.c.h.b16 %v263
      %v580 = vunpack.c.l.b16 %v264
      %v581 = vunpack.c.h.b16 %v264
      %v582 = vunpack.c.l.b16 %v265
      %v583 = vunpack.c.h.b16 %v265
      %v584 = vunpack.c.l.b16 %v266
      %v585 = vunpack.c.h.b16 %v266
      %v586 = vunpack.c.l.b16 %v267
      %v587 = vunpack.c.h.b16 %v267
      %v588 = vunpack.c.l.b16 %v268
      %v589 = vunpack.c.h.b16 %v268
      %v590 = vunpack.c.l.b16 %v269
      %v591 = vunpack.c.h.b16 %v269
      %v592 = vunpack.c.l.b16 %v270
      %v593 = vunpack.c.h.b16 %v270
      %v594 = vunpack.c.l.b16 %v271
      %v595 = vunpack.c.h.b16 %v271
      %v596 = vunpack.c.l.b16 %v272
      %v597 = vunpack.c.h.b16 %v272
      %v598 = vunpack.c.l.b16 %v273
      %v599 = vunpack.c.h.b16 %v273
      %v600 = vunpack.c.l.b16 %v274
      %v601 = vunpack.c.h.b16 %v274
      %v602 = vunpack.c.l.b16 %v275
      %v603 = vunpack.c.h.b16 %v275
      %v604 = vunpack.c.l.b16 %v276
      %v605 = vunpack.c.h.b16 %v276
      %v606 = vunpack.c.l.b16 %v277
      %v607 = vunpack.c.h.b16 %v277
      %v608 = vunpack.c.l.b16 %v278
      %v609 = vunpack.c.h.b16 %v278
      %v610 = vunpack.c.l.b16 %v279
      %v611 = vunpack.c.h.b16 %v279
      %v612 = vunpack.c.l.b16 %v280
      %v613 = vunpack.c.h.b16 %v280
      %v614 = vunpack.c.l.b16 %v281
      %v615 = vunpack.c.h.b16 %v281
      %v616 = vunpack.c.l.b16 %v282
      %v617 = vunpack.c.h.b16 %v282
      %v618 = vunpack.c.l.b16 %v283
      %v619 = vunpack.c.h.b16 %v283
      %v620 = vunpack.c.l.b16 %v284
      %v621 = vunpack.c.h.b16 %v284
      %v622 = vunpack.c.l.b16 %v285
      %v623 = vunpack.c.h.b16 %v285
      %v624 = vunpack.c.l.b16 %v286
      %v625 = vunpack.c.h.b16 %v286
      %v626 = vunpack.c.l.b16 %v287
      %v627 = vunpack.c.h.b16 %v287
      %v628 = vunpack.c.l.b16 %v288
      %v629 = vunpack.c.h.b16 %v288
      %v630 = vunpack.c.l.b16 %v289
      %v631 = vunpack.c.h.b16 %v289
      %v632 = vunpack.c.l.b16 %v290
      %v633 = vunpack.c.h.b16 %v290
      %v634 = vunpack.c.l.b16 %v291
      %v635 = vunpack.c.h.b16 %v291
      %v636 = vunpack.c.l.b16 %v292
      %v637 = vunpack.c.h.b16 %v292
      %v638 = vunpack.c.l.b16 %v293
      %v639 = vunpack.c.h.b16 %v293
      %v640 = vunpack.c.l.b16 %v294
      %v641 = vunpack.c.h.b16 %v294
      %v642 = vunpack.c.l.b16 %v295
      %v643 = vunpack.c.h.b16 %v295
      %v644 = vunpack.c.l.b16 %v296
      %v645 = vunpack.c.h.b16 %v296
      %v646 = vunpack.c.l.b16 %v297
      %v647 = vunpack.c.h.b16 %v297
      %v648 = vunpack.c.l.b16 %v298
      %v649 = vunpack.c.h.b16 %v298
      %v650 = vunpack.c.l.b16 %v299
      %v651 = vunpack.c.h.b16 %v299
      %v652 = vunpack.c.l.b16 %v300
      %v653 = vunpack.c.h.b16 %v300
      %v654 = vunpack.c.l.b16 %v301
      %v655 = vunpack.c.h.b16 %v301
      %v656 = vunpack.c.l.b16 %v302
      %v657 = vunpack.c.h.b16 %v302
      %v658 = vunpack.c.l.b16 %v303
      %v659 = vunpack.c.h.b16 %v303
      %v660 = vunpack.c.l.b16 %v304
      %v661 = vunpack.c.h.b16 %v304
      %v662 = vunpack.c.l.b16 %v305
      %v663 = vunpack.c.h.b16 %v305
      %v664 = vunpack.c.l.b16 %v306
      %v665 = vunpack.c.h.b16 %v306
      %v666 = vunpack.c.l.b16 %v307
      %v667 = vunpack.c.h.b16 %v307
      %v668 = vunpack.c.l.b16 %v308
      %v669 = vunpack.c.h.b16 %v308
      %v670 = vunpack.c.l.b16 %v309
      %v671 = vunpack.c.h.b16 %v309
      %v672 = vunpack.c.l.b16 %v310
      %v673 = vunpack.c.h.b16 %v310
      %v674 = vunpack.c.l.b16 %v311
      %v675 = vunpack.c.h.b16 %v311
      %v676 = vunpack.c.l.b16 %v312
      %v677 = vunpack.c.h.b16 %v312
      %v678 = vunpack.c.l.b16 %v313
      %v679 = vunpack.c.h.b16 %v313
      %v680 = vunpack.c.l.b16 %v314
      %v681 = vunpack.c.h.b16 %v314
      %v682 = vunpack.c.l.b16 %v315
      %v683 = vunpack.c.h.b16 %v315
      %v684 = vunpack.c.l.b16 %v316
      %v685 = vunpack.c.h.b16 %v316
      %v686 = vunpack.c.l.b16 %v317
      %v687 = vunpack.c.h.b16 %v317
      %v688 = vunpack.c.l.b16 %v318
      %v689 = vunpack.c.h.b16 %v318
      %v690 = vunpack.c.l.b16 %v319
      %v691 = vunpack.c.h.b16 %v319
      %v692 = vunpack.c.l.b16 %v320
      %v693 = vunpack.c.h.b16 %v320
      %v694 = vunpack.c.l.b16 %v321
      %v695 = vunpack.c.h.b16 %v321
      %v696 = vunpack.c.l.b16 %v322
      %v697 = vunpack.c.h.b16 %v322
      %v698 = vunpack.c.l.b16 %v323
      %v699 = vunpack.c.h.b16 %v323
      %v700 = vunpack.c.l.b16 %v324
      %v701 = vunpack.c.h.b16 %v324
      %v702 = vunpack.c.l.b16 %v325
      %v703 = vunpack.c.h.b16 %v325
      %v704 = vunpack.c.l.b16 %v326
      %v705 = vunpack.c.h.b16 %v326
      %v706 = vunpack.c.l.b16 %v327
      %v707 = vunpack.c.h.b16 %v327
      %v708 = vunpack.c.l.b16 %v328
      %v709 = vunpack.c.h.b16 %v328
      %v710 = vunpack.c.l.b16 %v329
      %v711 = vunpack.c.h.b16 %v329
      %v712 = vunpack.c.l.b16 %v330
      %v713 = vunpack.c.h.b16 %v330
      %v714 = vunpack.c.l.b16 %v331
      %v715 = vunpack.c.h.b16 %v331
      %v716 = vunpack.c.l.b16 %v332
      %v717 = vunpack.c.h.b16 %v332
      %v718 = vunpack.c.l.b16 %v333
      %v719 = vunpack.c.h.b16 %v333
      %v720 = vunpack.c.l.b16 %v334
      %v721 = vunpack.c.h.b16 %v334
      %v722 = vunpack.c.l.b16 %v335
      %v723 = vunpack.c.h.b16 %v335
      %v724 = vunpack.c.l.b16 %v336
      %v725 = vunpack.c.h.b16 %v336
      %v726 = vunpack.c.l.b16 %v337
      %v727 = vunpack.c.h.b16 %v337
      %v728 = vunpack.c.l.b16 %v338
      %v729 = vunpack.c.h.b16 %v338
      %v730 = vunpack.c.l.b16 %v339
      %v731 = vunpack.c.h.b16 %v339
      %v732 = vunpack.c.l.b16 %v340
      %v733 = vunpack.c.h.b16 %v340
      %v734 = vunpack.c.l.b16 %v341
      %v735 = vunpack.c.h.b16 %v341
      %v736 = vunpack.c.l.b16 %v342
      %v737 = vunpack.c.h.b16 %v342
      %v738 = vunpack.c.l.b16 %v343
      %v739 = vunpack.c.h.b16 %v343
      %v740 = vunpack.c.l.b16 %v344
      %v741 = vunpack.c.h.b16 %v344
      %v742 = vunpack.c.l.b16 %v345
      %v743 = vunpack.c.h.b16 %v345
      %v744 = vunpack.c.l.b16 %v346
      %v745 = vunpack.c.h.b16 %v346
      %v746 = vunpack.c.l.b16 %v347
      %v747 = vunpack.c.h.b16 %v347
      %v748 = vunpack.c.l.b16 %v348
      %v749 = vunpack.c.h.b16 %v348
      %v750 = vunpack.c.l.b16 %v349
      %v751 = vunpack.c.h.b16 %v349
      %v752 = vunpack.c.l.b16 %v350
      %v753 = vunpack.c.h.b16 %v350
      %v754 = vunpack.c.l.b16 %v351
      %v755 = vunpack.c.h.b16 %v351
      %v756 = vunpack.c.l.b16 %v352
      %v757 = vunpack.c.h.b16 %v352
      %v758 = vunpack.c.l.b16 %v353
      %v759 = vunpack.c.h.b16 %v353
      %v760 = vunpack.c.l.b16 %v354
      %v761 = vunpack.c.h.b16 %v354
      %v762 = vunpack.c.l.b16 %v355
      %v763 = vunpack.c.h.b16 %v355
      %v764 = vunpack.c.l.b16 %v356
      %v765 = vunpack.c.h.b16 %v356
      %v766 = vpack.c.b16 %v512, %v510
      %v767 = vpack.c.b16 %v513, %v511
      %v768 = vpack.c.b16 %v516, %v514
      %v769 = vpack.c.b16 %v517, %v515
      %v770 = vpack.c.b16 %v520, %v518
      %v771 = vpack.c.b16 %v521, %v519
      %v772 = vpack.c.b16 %v524, %v522
      %v773 = vpack.c.b16 %v525, %v523
      %v774 = vpack.c.b16 %v528, %v526
      %v775 = vpack.c.b16 %v529, %v527
      %v776 = vpack.c.b16 %v532, %v530
      %v777 = vpack.c.b16 %v533, %v531
      %v778 = vpack.c.b16 %v536, %v534
      %v779 = vpack.c.b16 %v537, %v535
      %v780 = vpack.c.b16 %v540, %v538
      %v781 = vpack.c.b16 %v541, %v539
      %v782 = vpack.c.b16 %v544, %v542
      %v783 = vpack.c.b16 %v545, %v543
      %v784 = vpack.c.b16 %v548, %v546
      %v785 = vpack.c.b16 %v549, %v547
      %v786 = vpack.c.b16 %v552, %v550
      %v787 = vpack.c.b16 %v553, %v551
      %v788 = vpack.c.b16 %v556, %v554
      %v789 = vpack.c.b16 %v557, %v555
      %v790 = vpack.c.b16 %v560, %v558
      %v791 = vpack.c.b16 %v561, %v559
      %v792 = vpack.c.b16 %v564, %v562
      %v793 = vpack.c.b16 %v565, %v563
      %v794 = vpack.c.b16 %v568, %v566
      %v795 = vpack.c.b16 %v569, %v567
      %v796 = vpack.c.b16 %v572, %v570
      %v797 = vpack.c.b16 %v573, %v571
      %v798 = vpack.c.b16 %v576, %v574
      %v799 = vpack.c.b16 %v577, %v575
      %v800 = vpack.c.b16 %v580, %v578
      %v801 = vpack.c.b16 %v581, %v579
      %v802 = vpack.c.b16 %v584, %v582
      %v803 = vpack.c.b16 %v585, %v583
      %v804 = vpack.c.b16 %v588, %v586
      %v805 = vpack.c.b16 %v589, %v587
      %v806 = vpack.c.b16 %v592, %v590
      %v807 = vpack.c.b16 %v593, %v591
      %v808 = vpack.c.b16 %v596, %v594
      %v809 = vpack.c.b16 %v597, %v595
      %v810 = vpack.c.b16 %v600, %v598
      %v811 = vpack.c.b16 %v601, %v599
      %v812 = vpack.c.b16 %v604, %v602
      %v813 = vpack.c.b16 %v605, %v603
      %v814 = vpack.c.b16 %v608, %v606
      %v815 = vpack.c.b16 %v609, %v607
      %v816 = vpack.c.b16 %v612, %v610
      %v817 = vpack.c.b16 %v613, %v611
      %v818 = vpack.c.b16 %v616, %v614
      %v819 = vpack.c.b16 %v617, %v615
      %v820 = vpack.c.b16 %v620, %v618
      %v821 = vpack.c.b16 %v621, %v619
      %v822 = vpack.c.b16 %v624, %v622
      %v823 = vpack.c.b16 %v625, %v623
      %v824 = vpack.c.b16 %v628, %v626
      %v825 = vpack.c.b16 %v629, %v627
      %v826 = vpack.c.b16 %v632, %v630
      %v827 = vpack.c.b16 %v633, %v631
      %v828 = vpack.c.b16 %v636, %v634
      %v829 = vpack.c.b16 %v637, %v635
      %v830 = vpack.c.b16 %v640, %v638
      %v831 = vpack.c.b16 %v641, %v639
      %v832 = vpack.c.b16 %v644, %v642
      %v833 = vpack.c.b16 %v645, %v643
      %v834 = vpack.c.b16 %v648, %v646
      %v835 = vpack.c.b16 %v649, %v647
      %v836 = vpack.c.b16 %v652, %v650
      %v837 = vpack.c.b16 %v653, %v651
      %v838 = vpack.c.b16 %v656, %v654
      %v839 = vpack.c.b16 %v657, %v655
      %v840 = vpack.c.b16 %v660, %v658
      %v841 = vpack.c.b16 %v661, %v659
      %v842 = vpack.c.b16 %v664, %v662
      %v843 = vpack.c.b16 %v665, %v663
      %v844 = vpack.c.b16 %v668, %v666
      %v845 = vpack.c.b16 %v669, %v667
      %v846 = vpack.c.b16 %v672, %v670
      %v847 = vpack.c.b16 %v673, %v671
      %v848 = vpack.c.b16 %v676, %v674
      %v849 = vpack.c.b16 %v677, %v675
      %v850 = vpack.c.b16 %v680, %v678
      %v851 = vpack.c.b16 %v681, %v679
      %v852 = vpack.c.b16 %v684, %v682
      %v853 = vpack.c.b16 %v685, %v683
      %v854 = vpack.c.b16 %v688, %v686
      %v855 = vpack.c.b16 %v689, %v687
      %v856 = vpack.c.b16 %v692, %v690
      %v857 = vpack.c.b16 %v693, %v691
      %v858 = vpack.c.b16 %v696, %v694
      %v859 = vpack.c.b16 %v697, %v695
      %v860 = vpack.c.b16 %v700, %v698
      %v861 = vpack.c.b16 %v701, %v699
      %v862 = vpack.c.b16 %v704, %v702
      %v863 = vpack.c.b16 %v705, %v703
      %v864 = vpack.c.b16 %v708, %v706
      %v865 = vpack.c.b16 %v709, %v707
      %v866 = vpack.c.b16 %v712, %v710
      %v867 = vpack.c.b16 %v713, %v711
      %v868 = vpack.c.b16 %v716, %v714
      %v869 = vpack.c.b16 %v717, %v715
      %v870 = vpack.c.b16 %v720, %v718
      %v871 = vpack.c.b16 %v721, %v719
      %v872 = vpack.c.b16 %v724, %v722
      %v873 = vpack.c.b16 %v725, %v723
      %v874 = vpack.c.b16 %v728, %v726
      %v875 = vpack.c.b16 %v729, %v727
      %v876 = vpack.c.b16 %v732, %v730
      %v877 = vpack.c.b16 %v733, %v731
      %v878 = vpack.c.b16 %v736, %v734
      %v879 = vpack.c.b16 %v737, %v735
      %v880 = vpack.c.b16 %v740, %v738
      %v881 = vpack.c.b16 %v741, %v739
      %v882 = vpack.c.b16 %v744, %v742
      %v883 = vpack.c.b16 %v745, %v743
      %v884 = vpack.c.b16 %v748, %v746
      %v885 = vpack.c.b16 %v749, %v747
      %v886 = vpack.c.b16 %v752, %v750
      %v887 = vpack.c.b16 %v753, %v751
      %v888 = vpack.c.b16 %v756, %v754
      %v889 = vpack.c.b16 %v757, %v755
      %v890 = vpack.c.b16 %v760, %v758
      %v891 = vpack.c.b16 %v761, %v759
      %v892 = vpack.c.b16 %v764, %v762
      %v893 = vpack.c.b16 %v765, %v763
      %v976 = vunpack.c.l.b16 %v357
      %v977 = vunpack.c.l.b16 %v358
      %v978 = vunpack.c.l.b16 %v359
      %v979 = vunpack.c.l.b16 %v360
      %v980 = vunpack.c.l.b16 %v361
      %v981 = vunpack.c.l.b16 %v362
      %v982 = vunpack.c.l.b16 %v363
      %v983 = vunpack.c.l.b16 %v364
      %v984 = vunpack.c.l.b16 %v365
      %v985 = vunpack.c.l.b16 %v366
      %v986 = vunpack.c.l.b16 %v367
      %v987 = vunpack.c.l.b16 %v368
      %v988 = vunpack.c.l.b16 %v369
      %v989 = vunpack.c.l.b16 %v370
      %v990 = vunpack.c.l.b16 %v371
      %v991 = vunpack.c.l.b16 %v372
      %v992 = vunpack.c.l.b16 %v373
      %v993 = vunpack.c.l.b16 %v374
      %v994 = vpack.c.b16 %v977, %v976
      %v995 = vpack.c.b16 %v979, %v978
      %v996 = vpack.c.b16 %v981, %v980
      %v997 = vpack.c.b16 %v983, %v982
      %v998 = vpack.c.b16 %v985, %v984
      %v999 = vpack.c.b16 %v987, %v986
      %v1000 = vpack.c.b16 %v989, %v988
      %v1001 = vpack.c.b16 %v991, %v990
      %v1002 = vpack.c.b16 %v993, %v992
      %vm1012 = vcmask 130048
      %v1014 = vsel %vm1012, %v767, 0
      %v1017 = vsel %vm1012, %v769, 0
      %v1020 = vsel %vm1012, %v771, 0
      %v1023 = vsel %vm1012, %v773, 0
      %v1026 = vsel %vm1012, %v775, 0
      %v1029 = vsel %vm1012, %v777, 0
      %v1032 = vsel %vm1012, %v779, 0
      %v1035 = vsel %vm1012, %v781, 0
      %v1038 = vsel %vm1012, %v783, 0
      %v1041 = vsel %vm1012, %v785, 0
      %v1044 = vsel %vm1012, %v787, 0
      %v1047 = vsel %vm1012, %v789, 0
      %v1050 = vsel %vm1012, %v791, 0
      %v1053 = vsel %vm1012, %v793, 0
      %v1056 = vsel %vm1012, %v795, 0
      %v1059 = vsel %vm1012, %v797, 0
      %v1062 = vsel %vm1012, %v799, 0
      %v1065 = vsel %vm1012, %v801, 0
      %v1068 = vsel %vm1012, %v803, 0
      %v1071 = vsel %vm1012, %v805, 0
      %v1074 = vsel %vm1012, %v807, 0
      %v1077 = vsel %vm1012, %v809, 0
      %v1080 = vsel %vm1012, %v811, 0
      %v1083 = vsel %vm1012, %v813, 0
      %v1086 = vsel %vm1012, %v815, 0
      %v1089 = vsel %vm1012, %v817, 0
      %v1092 = vsel %vm1012, %v819, 0
      %v1095 = vsel %vm1012, %v821, 0
      %v1098 = vsel %vm1012, %v823, 0
      %v1101 = vsel %vm1012, %v825, 0
      %v1104 = vsel %vm1012, %v827, 0
      %v1107 = vsel %vm1012, %v829, 0
      %v1110 = vsel %vm1012, %v831, 0
      %v1113 = vsel %vm1012, %v833, 0
      %v1116 = vsel %vm1012, %v835, 0
      %v1119 = vsel %vm1012, %v837, 0
      %v1122 = vsel %vm1012, %v839, 0
      %v1125 = vsel %vm1012, %v841, 0
      %v1128 = vsel %vm1012, %v843, 0
      %v1131 = vsel %vm1012, %v845, 0
      %v1134 = vsel %vm1012, %v847, 0
      %v1137 = vsel %vm1012, %v849, 0
      %v1140 = vsel %vm1012, %v851, 0
      %v1143 = vsel %vm1012, %v853, 0
      %v1146 = vsel %vm1012, %v855, 0
      %v1149 = vsel %vm1012, %v857, 0
      %v1152 = vsel %vm1012, %v859, 0
      %v1155 = vsel %vm1012, %v861, 0
      %v1158 = vsel %vm1012, %v863, 0
      %v1161 = vsel %vm1012, %v865, 0
      %v1164 = vsel %vm1012, %v867, 0
      %v1167 = vsel %vm1012, %v869, 0
      %v1170 = vsel %vm1012, %v871, 0
      %v1173 = vsel %vm1012, %v873, 0
      %v1176 = vsel %vm1012, %v875, 0
      %v1179 = vsel %vm1012, %v877, 0
      %v1182 = vsel %vm1012, %v879, 0
      %v1185 = vsel %vm1012, %v881, 0
      %v1188 = vsel %vm1012, %v883, 0
      %v1191 = vsel %vm1012, %v885, 0
      %v1194 = vsel %vm1012, %v887, 0
      %v1197 = vsel %vm1012, %v889, 0
      %v1200 = vsel %vm1012, %v891, 0
      %v1203 = vsel %vm1012, %v893, 0
      %1205 = vmatprep.subr.bf16.mxu0 0
      %1206 = vmatpush1.bf16.msra.mxu0 %v994
      %1207 = vmatprep.subr.bf16.mxu0 0
      %1208 = vmatpush1.bf16.msra.mxu0 %v995
      %1209 = vmatprep.subr.bf16.mxu0 0
      %1210 = vmatpush1.bf16.msra.mxu0 %v996
      %1211 = vmatprep.subr.bf16.mxu0 0
      %1212 = vmatpush1.bf16.msra.mxu0 %v997
      %1213 = vmatprep.subr.bf16.mxu0 0
      %1214 = vmatpush1.bf16.msra.mxu0 %v998
      %1215 = vmatprep.subr.bf16.mxu0 0
      %1216 = vmatpush1.bf16.msra.mxu0 %v999
      %1217 = vmatprep.subr.bf16.mxu0 0
      %1218 = vmatpush1.bf16.msra.mxu0 %v1000
      %1219 = vmatprep.subr.bf16.mxu0 0
      %1220 = vmatpush1.bf16.msra.mxu0 %v1001
      %1221 = vmatprep.subr.bf16.mxu0 0
      %1222 = vmatpush1.bf16.msra.mxu0 %v1002
      %1223 = vmatprep.subr.bf16.mxu0 0
      %1224 = vmatpush1.bf16.msra.mxu0 0
      %1225 = vmatprep.subr.bf16.mxu0 0
      %1226 = vmatpush1.bf16.msra.mxu0 0
      %1227 = vmatprep.subr.bf16.mxu0 0
      %1228 = vmatpush1.bf16.msra.mxu0 0
      %1229 = vmatprep.subr.bf16.mxu0 0
      %1230 = vmatpush1.bf16.msra.mxu0 0
      %1231 = vmatprep.subr.bf16.mxu0 0
      %1232 = vmatpush1.bf16.msra.mxu0 0
      %1233 = vmatprep.subr.bf16.mxu0 0
      %1234 = vmatpush1.bf16.msra.mxu0 0
      %1235 = vmatprep.subr.bf16.mxu0 0
      %1236 = vmatpush1.bf16.msra.mxu0 0
      %1237 = vmatprep.mubr.bf16.mxu0 %v1014
      %1238 = vmatmul.mubr.bf16.gmra.mrb[0].mxu0 %v766
      %v1239 = vpop.f32.mrb[0].mxu0
      %v1240 = vadd.f32 %v380, %v1239
      %v1241 = vpop.f32.mrb[0].mxu0
      %v1242 = vpop.f32.mrb[0].mxu0
      %v1243 = vadd.f32 %v380, %v1242
      %v1244 = vpop.f32.mrb[0].mxu0
      %1245 = vmatprep.mubr.bf16.mxu0 %v1017
      %1246 = vmatmul.mubr.bf16.gmra.mrb[0].mxu0 %v768
      %v1247 = vpop.f32.mrb[0].mxu0
      %v1248 = vadd.f32 %v380, %v1247
      %v1249 = vpop.f32.mrb[0].mxu0
      %v1250 = vpop.f32.mrb[0].mxu0
      %v1251 = vadd.f32 %v380, %v1250
      %v1252 = vpop.f32.mrb[0].mxu0
      %1253 = vmatprep.mubr.bf16.mxu0 %v1020
      %1254 = vmatmul.mubr.bf16.gmra.mrb[0].mxu0 %v770
      %v1255 = vpop.f32.mrb[0].mxu0
      %v1256 = vadd.f32 %v380, %v1255
      %v1257 = vpop.f32.mrb[0].mxu0
      %v1258 = vpop.f32.mrb[0].mxu0
      %v1259 = vadd.f32 %v380, %v1258
      %v1260 = vpop.f32.mrb[0].mxu0
      %1261 = vmatprep.mubr.bf16.mxu0 %v1023
      %1262 = vmatmul.mubr.bf16.gmra.mrb[0].mxu0 %v772
      %v1263 = vpop.f32.mrb[0].mxu0
      %v1264 = vadd.f32 %v380, %v1263
      %v1265 = vpop.f32.mrb[0].mxu0
      %v1266 = vpop.f32.mrb[0].mxu0
      %v1267 = vadd.f32 %v380, %v1266
      %v1268 = vpop.f32.mrb[0].mxu0
      %1269 = vmatprep.mubr.bf16.mxu0 %v1026
      %1270 = vmatmul.mubr.bf16.gmra.mrb[0].mxu0 %v774
      %v1271 = vpop.f32.mrb[0].mxu0
      %v1272 = vadd.f32 %v380, %v1271
      %v1273 = vpop.f32.mrb[0].mxu0
      %v1274 = vpop.f32.mrb[0].mxu0
      %v1275 = vadd.f32 %v380, %v1274
      %v1276 = vpop.f32.mrb[0].mxu0
      %1277 = vmatprep.mubr.bf16.mxu0 %v1029
      %1278 = vmatmul.mubr.bf16.gmra.mrb[0].mxu0 %v776
      %v1279 = vpop.f32.mrb[0].mxu0
      %v1280 = vadd.f32 %v380, %v1279
      %v1281 = vpop.f32.mrb[0].mxu0
      %v1282 = vpop.f32.mrb[0].mxu0
      %v1283 = vadd.f32 %v380, %v1282
      %v1284 = vpop.f32.mrb[0].mxu0
      %1285 = vmatprep.mubr.bf16.mxu0 %v1032
      %1286 = vmatmul.mubr.bf16.gmra.mrb[0].mxu0 %v778
      %v1287 = vpop.f32.mrb[0].mxu0
      %v1288 = vadd.f32 %v380, %v1287
      %v1289 = vpop.f32.mrb[0].mxu0
      %v1290 = vpop.f32.mrb[0].mxu0
      %v1291 = vadd.f32 %v380, %v1290
      %v1292 = vpop.f32.mrb[0].mxu0
      %1293 = vmatprep.mubr.bf16.mxu0 %v1035
      %1294 = vmatmul.mubr.bf16.gmra.mrb[0].mxu0 %v780
      %v1295 = vpop.f32.mrb[0].mxu0
      %v1296 = vadd.f32 %v380, %v1295
      %v1297 = vpop.f32.mrb[0].mxu0
      %v1298 = vpop.f32.mrb[0].mxu0
      %v1299 = vadd.f32 %v380, %v1298
      %v1300 = vpop.f32.mrb[0].mxu0
      %1301 = vmatprep.mubr.bf16.mxu0 %v1038
      %1302 = vmatmul.mubr.bf16.gmra.mrb[0].mxu0 %v782
      %v1303 = vpop.f32.mrb[0].mxu0
      %v1304 = vadd.f32 %v380, %v1303
      %v1305 = vpop.f32.mrb[0].mxu0
      %v1306 = vpop.f32.mrb[0].mxu0
      %v1307 = vadd.f32 %v380, %v1306
      %v1308 = vpop.f32.mrb[0].mxu0
      %1309 = vmatprep.mubr.bf16.mxu0 %v1041
      %1310 = vmatmul.mubr.bf16.gmra.mrb[0].mxu0 %v784
      %v1311 = vpop.f32.mrb[0].mxu0
      %v1312 = vadd.f32 %v380, %v1311
      %v1313 = vpop.f32.mrb[0].mxu0
      %v1314 = vpop.f32.mrb[0].mxu0
      %v1315 = vadd.f32 %v380, %v1314
      %v1316 = vpop.f32.mrb[0].mxu0
      %1317 = vmatprep.mubr.bf16.mxu0 %v1044
      %1318 = vmatmul.mubr.bf16.gmra.mrb[0].mxu0 %v786
      %v1319 = vpop.f32.mrb[0].mxu0
      %v1320 = vadd.f32 %v380, %v1319
      %v1321 = vpop.f32.mrb[0].mxu0
      %v1322 = vpop.f32.mrb[0].mxu0
      %v1323 = vadd.f32 %v380, %v1322
      %v1324 = vpop.f32.mrb[0].mxu0
      %1325 = vmatprep.mubr.bf16.mxu0 %v1047
      %1326 = vmatmul.mubr.bf16.gmra.mrb[0].mxu0 %v788
      %v1327 = vpop.f32.mrb[0].mxu0
      %v1328 = vadd.f32 %v380, %v1327
      %v1329 = vpop.f32.mrb[0].mxu0
      %v1330 = vpop.f32.mrb[0].mxu0
      %v1331 = vadd.f32 %v380, %v1330
      %v1332 = vpop.f32.mrb[0].mxu0
      %1333 = vmatprep.mubr.bf16.mxu0 %v1050
      %1334 = vmatmul.mubr.bf16.gmra.mrb[0].mxu0 %v790
      %v1335 = vpop.f32.mrb[0].mxu0
      %v1336 = vadd.f32 %v380, %v1335
      %v1337 = vpop.f32.mrb[0].mxu0
      %v1338 = vpop.f32.mrb[0].mxu0
      %v1339 = vadd.f32 %v380, %v1338
      %v1340 = vpop.f32.mrb[0].mxu0
      %1341 = vmatprep.mubr.bf16.mxu0 %v1053
      %1342 = vmatmul.mubr.bf16.gmra.mrb[0].mxu0 %v792
      %v1343 = vpop.f32.mrb[0].mxu0
      %v1344 = vadd.f32 %v380, %v1343
      %v1345 = vpop.f32.mrb[0].mxu0
      %v1346 = vpop.f32.mrb[0].mxu0
      %v1347 = vadd.f32 %v380, %v1346
      %v1348 = vpop.f32.mrb[0].mxu0
      %1349 = vmatprep.mubr.bf16.mxu0 %v1056
      %1350 = vmatmul.mubr.bf16.gmra.mrb[0].mxu0 %v794
      %v1351 = vpop.f32.mrb[0].mxu0
      %v1352 = vadd.f32 %v380, %v1351
      %v1353 = vpop.f32.mrb[0].mxu0
      %v1354 = vpop.f32.mrb[0].mxu0
      %v1355 = vadd.f32 %v380, %v1354
      %v1356 = vpop.f32.mrb[0].mxu0
      %1357 = vmatprep.mubr.bf16.mxu0 %v1059
      %1358 = vmatmul.mubr.bf16.gmra.mrb[0].mxu0 %v796
      %v1359 = vpop.f32.mrb[0].mxu0
      %v1360 = vadd.f32 %v380, %v1359
      %v1361 = vpop.f32.mrb[0].mxu0
      %v1362 = vpop.f32.mrb[0].mxu0
      %v1363 = vadd.f32 %v380, %v1362
      %v1364 = vpop.f32.mrb[0].mxu0
      %1365 = vmatprep.mubr.bf16.mxu0 %v1062
      %1366 = vmatmul.mubr.bf16.gmra.mrb[0].mxu0 %v798
      %v1367 = vpop.f32.mrb[0].mxu0
      %v1368 = vadd.f32 %v380, %v1367
      %v1369 = vpop.f32.mrb[0].mxu0
      %v1370 = vpop.f32.mrb[0].mxu0
      %v1371 = vadd.f32 %v380, %v1370
      %v1372 = vpop.f32.mrb[0].mxu0
      %1373 = vmatprep.mubr.bf16.mxu0 %v1065
      %1374 = vmatmul.mubr.bf16.gmra.mrb[0].mxu0 %v800
      %v1375 = vpop.f32.mrb[0].mxu0
      %v1376 = vadd.f32 %v380, %v1375
      %v1377 = vpop.f32.mrb[0].mxu0
      %v1378 = vpop.f32.mrb[0].mxu0
      %v1379 = vadd.f32 %v380, %v1378
      %v1380 = vpop.f32.mrb[0].mxu0
      %1381 = vmatprep.mubr.bf16.mxu0 %v1068
      %1382 = vmatmul.mubr.bf16.gmra.mrb[0].mxu0 %v802
      %v1383 = vpop.f32.mrb[0].mxu0
      %v1384 = vadd.f32 %v380, %v1383
      %v1385 = vpop.f32.mrb[0].mxu0
      %v1386 = vpop.f32.mrb[0].mxu0
      %v1387 = vadd.f32 %v380, %v1386
      %v1388 = vpop.f32.mrb[0].mxu0
      %1389 = vmatprep.mubr.bf16.mxu0 %v1071
      %1390 = vmatmul.mubr.bf16.gmra.mrb[0].mxu0 %v804
      %v1391 = vpop.f32.mrb[0].mxu0
      %v1392 = vadd.f32 %v380, %v1391
      %v1393 = vpop.f32.mrb[0].mxu0
      %v1394 = vpop.f32.mrb[0].mxu0
      %v1395 = vadd.f32 %v380, %v1394
      %v1396 = vpop.f32.mrb[0].mxu0
      %1397 = vmatprep.mubr.bf16.mxu0 %v1074
      %1398 = vmatmul.mubr.bf16.gmra.mrb[0].mxu0 %v806
      %v1399 = vpop.f32.mrb[0].mxu0
      %v1400 = vadd.f32 %v380, %v1399
      %v1401 = vpop.f32.mrb[0].mxu0
      %v1402 = vpop.f32.mrb[0].mxu0
      %v1403 = vadd.f32 %v380, %v1402
      %v1404 = vpop.f32.mrb[0].mxu0
      %1405 = vmatprep.mubr.bf16.mxu0 %v1077
      %1406 = vmatmul.mubr.bf16.gmra.mrb[0].mxu0 %v808
      %v1407 = vpop.f32.mrb[0].mxu0
      %v1408 = vadd.f32 %v380, %v1407
      %v1409 = vpop.f32.mrb[0].mxu0
      %v1410 = vpop.f32.mrb[0].mxu0
      %v1411 = vadd.f32 %v380, %v1410
      %v1412 = vpop.f32.mrb[0].mxu0
      %1413 = vmatprep.mubr.bf16.mxu0 %v1080
      %1414 = vmatmul.mubr.bf16.gmra.mrb[0].mxu0 %v810
      %v1415 = vpop.f32.mrb[0].mxu0
      %v1416 = vadd.f32 %v380, %v1415
      %v1417 = vpop.f32.mrb[0].mxu0
      %v1418 = vpop.f32.mrb[0].mxu0
      %v1419 = vadd.f32 %v380, %v1418
      %v1420 = vpop.f32.mrb[0].mxu0
      %1421 = vmatprep.mubr.bf16.mxu0 %v1083
      %1422 = vmatmul.mubr.bf16.gmra.mrb[0].mxu0 %v812
      %v1423 = vpop.f32.mrb[0].mxu0
      %v1424 = vadd.f32 %v380, %v1423
      %v1425 = vpop.f32.mrb[0].mxu0
      %v1426 = vpop.f32.mrb[0].mxu0
      %v1427 = vadd.f32 %v380, %v1426
      %v1428 = vpop.f32.mrb[0].mxu0
      %1429 = vmatprep.mubr.bf16.mxu0 %v1086
      %1430 = vmatmul.mubr.bf16.gmra.mrb[0].mxu0 %v814
      %v1431 = vpop.f32.mrb[0].mxu0
      %v1432 = vadd.f32 %v380, %v1431
      %v1433 = vpop.f32.mrb[0].mxu0
      %v1434 = vpop.f32.mrb[0].mxu0
      %v1435 = vadd.f32 %v380, %v1434
      %v1436 = vpop.f32.mrb[0].mxu0
      %1437 = vmatprep.mubr.bf16.mxu0 %v1089
      %1438 = vmatmul.mubr.bf16.gmra.mrb[0].mxu0 %v816
      %v1439 = vpop.f32.mrb[0].mxu0
      %v1440 = vadd.f32 %v380, %v1439
      %v1441 = vpop.f32.mrb[0].mxu0
      %v1442 = vpop.f32.mrb[0].mxu0
      %v1443 = vadd.f32 %v380, %v1442
      %v1444 = vpop.f32.mrb[0].mxu0
      %1445 = vmatprep.mubr.bf16.mxu0 %v1092
      %1446 = vmatmul.mubr.bf16.gmra.mrb[0].mxu0 %v818
      %v1447 = vpop.f32.mrb[0].mxu0
      %v1448 = vadd.f32 %v380, %v1447
      %v1449 = vpop.f32.mrb[0].mxu0
      %v1450 = vpop.f32.mrb[0].mxu0
      %v1451 = vadd.f32 %v380, %v1450
      %v1452 = vpop.f32.mrb[0].mxu0
      %1453 = vmatprep.mubr.bf16.mxu0 %v1095
      %1454 = vmatmul.mubr.bf16.gmra.mrb[0].mxu0 %v820
      %v1455 = vpop.f32.mrb[0].mxu0
      %v1456 = vadd.f32 %v380, %v1455
      %v1457 = vpop.f32.mrb[0].mxu0
      %v1458 = vpop.f32.mrb[0].mxu0
      %v1459 = vadd.f32 %v380, %v1458
      %v1460 = vpop.f32.mrb[0].mxu0
      %1461 = vmatprep.mubr.bf16.mxu0 %v1098
      %1462 = vmatmul.mubr.bf16.gmra.mrb[0].mxu0 %v822
      %v1463 = vpop.f32.mrb[0].mxu0
      %v1464 = vadd.f32 %v380, %v1463
      %v1465 = vpop.f32.mrb[0].mxu0
      %v1466 = vpop.f32.mrb[0].mxu0
      %v1467 = vadd.f32 %v380, %v1466
      %v1468 = vpop.f32.mrb[0].mxu0
      %1469 = vmatprep.mubr.bf16.mxu0 %v1101
      %1470 = vmatmul.mubr.bf16.gmra.mrb[0].mxu0 %v824
      %v1471 = vpop.f32.mrb[0].mxu0
      %v1472 = vadd.f32 %v380, %v1471
      %v1473 = vpop.f32.mrb[0].mxu0
      %v1474 = vpop.f32.mrb[0].mxu0
      %v1475 = vadd.f32 %v380, %v1474
      %v1476 = vpop.f32.mrb[0].mxu0
      %1477 = vmatprep.mubr.bf16.mxu0 %v1104
      %1478 = vmatmul.mubr.bf16.gmra.mrb[0].mxu0 %v826
      %v1479 = vpop.f32.mrb[0].mxu0
      %v1480 = vadd.f32 %v380, %v1479
      %v1481 = vpop.f32.mrb[0].mxu0
      %v1482 = vpop.f32.mrb[0].mxu0
      %v1483 = vadd.f32 %v380, %v1482
      %v1484 = vpop.f32.mrb[0].mxu0
      %1485 = vmatprep.mubr.bf16.mxu0 %v1107
      %1486 = vmatmul.mubr.bf16.gmra.mrb[0].mxu0 %v828
      %v1487 = vpop.f32.mrb[0].mxu0
      %v1488 = vadd.f32 %v380, %v1487
      %v1489 = vpop.f32.mrb[0].mxu0
      %v1490 = vpop.f32.mrb[0].mxu0
      %v1491 = vadd.f32 %v380, %v1490
      %v1492 = vpop.f32.mrb[0].mxu0
      %1493 = vmatprep.mubr.bf16.mxu0 %v1110
      %1494 = vmatmul.mubr.bf16.gmra.mrb[0].mxu0 %v830
      %v1495 = vpop.f32.mrb[0].mxu0
      %v1496 = vadd.f32 %v380, %v1495
      %v1497 = vpop.f32.mrb[0].mxu0
      %v1498 = vpop.f32.mrb[0].mxu0
      %v1499 = vadd.f32 %v380, %v1498
      %v1500 = vpop.f32.mrb[0].mxu0
      %1501 = vmatprep.mubr.bf16.mxu0 %v1113
      %1502 = vmatmul.mubr.bf16.gmra.mrb[0].mxu0 %v832
      %v1503 = vpop.f32.mrb[0].mxu0
      %v1504 = vadd.f32 %v380, %v1503
      %v1505 = vpop.f32.mrb[0].mxu0
      %v1506 = vpop.f32.mrb[0].mxu0
      %v1507 = vadd.f32 %v380, %v1506
      %v1508 = vpop.f32.mrb[0].mxu0
      %1509 = vmatprep.mubr.bf16.mxu0 %v1116
      %1510 = vmatmul.mubr.bf16.gmra.mrb[0].mxu0 %v834
      %v1511 = vpop.f32.mrb[0].mxu0
      %v1512 = vadd.f32 %v380, %v1511
      %v1513 = vpop.f32.mrb[0].mxu0
      %v1514 = vpop.f32.mrb[0].mxu0
      %v1515 = vadd.f32 %v380, %v1514
      %v1516 = vpop.f32.mrb[0].mxu0
      %1517 = vmatprep.mubr.bf16.mxu0 %v1119
      %1518 = vmatmul.mubr.bf16.gmra.mrb[0].mxu0 %v836
      %v1519 = vpop.f32.mrb[0].mxu0
      %v1520 = vadd.f32 %v380, %v1519
      %v1521 = vpop.f32.mrb[0].mxu0
      %v1522 = vpop.f32.mrb[0].mxu0
      %v1523 = vadd.f32 %v380, %v1522
      %v1524 = vpop.f32.mrb[0].mxu0
      %1525 = vmatprep.mubr.bf16.mxu0 %v1122
      %1526 = vmatmul.mubr.bf16.gmra.mrb[0].mxu0 %v838
      %v1527 = vpop.f32.mrb[0].mxu0
      %v1528 = vadd.f32 %v380, %v1527
      %v1529 = vpop.f32.mrb[0].mxu0
      %v1530 = vpop.f32.mrb[0].mxu0
      %v1531 = vadd.f32 %v380, %v1530
      %v1532 = vpop.f32.mrb[0].mxu0
      %1533 = vmatprep.mubr.bf16.mxu0 %v1125
      %1534 = vmatmul.mubr.bf16.gmra.mrb[0].mxu0 %v840
      %v1535 = vpop.f32.mrb[0].mxu0
      %v1536 = vadd.f32 %v380, %v1535
      %v1537 = vpop.f32.mrb[0].mxu0
      %v1538 = vpop.f32.mrb[0].mxu0
      %v1539 = vadd.f32 %v380, %v1538
      %v1540 = vpop.f32.mrb[0].mxu0
      %1541 = vmatprep.mubr.bf16.mxu0 %v1128
      %1542 = vmatmul.mubr.bf16.gmra.mrb[0].mxu0 %v842
      %v1543 = vpop.f32.mrb[0].mxu0
      %v1544 = vadd.f32 %v380, %v1543
      %v1545 = vpop.f32.mrb[0].mxu0
      %v1546 = vpop.f32.mrb[0].mxu0
      %v1547 = vadd.f32 %v380, %v1546
      %v1548 = vpop.f32.mrb[0].mxu0
      %1549 = vmatprep.mubr.bf16.mxu0 %v1131
      %1550 = vmatmul.mubr.bf16.gmra.mrb[0].mxu0 %v844
      %v1551 = vpop.f32.mrb[0].mxu0
      %v1552 = vadd.f32 %v380, %v1551
      %v1553 = vpop.f32.mrb[0].mxu0
      %v1554 = vpop.f32.mrb[0].mxu0
      %v1555 = vadd.f32 %v380, %v1554
      %v1556 = vpop.f32.mrb[0].mxu0
      %1557 = vmatprep.mubr.bf16.mxu0 %v1134
      %1558 = vmatmul.mubr.bf16.gmra.mrb[0].mxu0 %v846
      %v1559 = vpop.f32.mrb[0].mxu0
      %v1560 = vadd.f32 %v380, %v1559
      %v1561 = vpop.f32.mrb[0].mxu0
      %v1562 = vpop.f32.mrb[0].mxu0
      %v1563 = vadd.f32 %v380, %v1562
      %v1564 = vpop.f32.mrb[0].mxu0
      %1565 = vmatprep.mubr.bf16.mxu0 %v1137
      %1566 = vmatmul.mubr.bf16.gmra.mrb[0].mxu0 %v848
      %v1567 = vpop.f32.mrb[0].mxu0
      %v1568 = vadd.f32 %v380, %v1567
      %v1569 = vpop.f32.mrb[0].mxu0
      %v1570 = vpop.f32.mrb[0].mxu0
      %v1571 = vadd.f32 %v380, %v1570
      %v1572 = vpop.f32.mrb[0].mxu0
      %1573 = vmatprep.mubr.bf16.mxu0 %v1140
      %1574 = vmatmul.mubr.bf16.gmra.mrb[0].mxu0 %v850
      %v1575 = vpop.f32.mrb[0].mxu0
      %v1576 = vadd.f32 %v380, %v1575
      %v1577 = vpop.f32.mrb[0].mxu0
      %v1578 = vpop.f32.mrb[0].mxu0
      %v1579 = vadd.f32 %v380, %v1578
      %v1580 = vpop.f32.mrb[0].mxu0
      %1581 = vmatprep.mubr.bf16.mxu0 %v1143
      %1582 = vmatmul.mubr.bf16.gmra.mrb[0].mxu0 %v852
      %v1583 = vpop.f32.mrb[0].mxu0
      %v1584 = vadd.f32 %v380, %v1583
      %v1585 = vpop.f32.mrb[0].mxu0
      %v1586 = vpop.f32.mrb[0].mxu0
      %v1587 = vadd.f32 %v380, %v1586
      %v1588 = vpop.f32.mrb[0].mxu0
      %1589 = vmatprep.mubr.bf16.mxu0 %v1146
      %1590 = vmatmul.mubr.bf16.gmra.mrb[0].mxu0 %v854
      %v1591 = vpop.f32.mrb[0].mxu0
      %v1592 = vadd.f32 %v380, %v1591
      %v1593 = vpop.f32.mrb[0].mxu0
      %v1594 = vpop.f32.mrb[0].mxu0
      %v1595 = vadd.f32 %v380, %v1594
      %v1596 = vpop.f32.mrb[0].mxu0
      %1597 = vmatprep.mubr.bf16.mxu0 %v1149
      %1598 = vmatmul.mubr.bf16.gmra.mrb[0].mxu0 %v856
      %v1599 = vpop.f32.mrb[0].mxu0
      %v1600 = vadd.f32 %v380, %v1599
      %v1601 = vpop.f32.mrb[0].mxu0
      %v1602 = vpop.f32.mrb[0].mxu0
      %v1603 = vadd.f32 %v380, %v1602
      %v1604 = vpop.f32.mrb[0].mxu0
      %1605 = vmatprep.mubr.bf16.mxu0 %v1152
      %1606 = vmatmul.mubr.bf16.gmra.mrb[0].mxu0 %v858
      %v1607 = vpop.f32.mrb[0].mxu0
      %v1608 = vadd.f32 %v380, %v1607
      %v1609 = vpop.f32.mrb[0].mxu0
      %v1610 = vpop.f32.mrb[0].mxu0
      %v1611 = vadd.f32 %v380, %v1610
      %v1612 = vpop.f32.mrb[0].mxu0
      %1613 = vmatprep.mubr.bf16.mxu0 %v1155
      %1614 = vmatmul.mubr.bf16.gmra.mrb[0].mxu0 %v860
      %v1615 = vpop.f32.mrb[0].mxu0
      %v1616 = vadd.f32 %v380, %v1615
      %v1617 = vpop.f32.mrb[0].mxu0
      %v1618 = vpop.f32.mrb[0].mxu0
      %v1619 = vadd.f32 %v380, %v1618
      %v1620 = vpop.f32.mrb[0].mxu0
      %1621 = vmatprep.mubr.bf16.mxu0 %v1158
      %1622 = vmatmul.mubr.bf16.gmra.mrb[0].mxu0 %v862
      %v1623 = vpop.f32.mrb[0].mxu0
      %v1624 = vadd.f32 %v380, %v1623
      %v1625 = vpop.f32.mrb[0].mxu0
      %v1626 = vpop.f32.mrb[0].mxu0
      %v1627 = vadd.f32 %v380, %v1626
      %v1628 = vpop.f32.mrb[0].mxu0
      %1629 = vmatprep.mubr.bf16.mxu0 %v1161
      %1630 = vmatmul.mubr.bf16.gmra.mrb[0].mxu0 %v864
      %v1631 = vpop.f32.mrb[0].mxu0
      %v1632 = vadd.f32 %v380, %v1631
      %v1633 = vpop.f32.mrb[0].mxu0
      %v1634 = vpop.f32.mrb[0].mxu0
      %v1635 = vadd.f32 %v380, %v1634
      %v1636 = vpop.f32.mrb[0].mxu0
      %1637 = vmatprep.mubr.bf16.mxu0 %v1164
      %1638 = vmatmul.mubr.bf16.gmra.mrb[0].mxu0 %v866
      %v1639 = vpop.f32.mrb[0].mxu0
      %v1640 = vadd.f32 %v380, %v1639
      %v1641 = vpop.f32.mrb[0].mxu0
      %v1642 = vpop.f32.mrb[0].mxu0
      %v1643 = vadd.f32 %v380, %v1642
      %v1644 = vpop.f32.mrb[0].mxu0
      %1645 = vmatprep.mubr.bf16.mxu0 %v1167
      %1646 = vmatmul.mubr.bf16.gmra.mrb[0].mxu0 %v868
      %v1647 = vpop.f32.mrb[0].mxu0
      %v1648 = vadd.f32 %v380, %v1647
      %v1649 = vpop.f32.mrb[0].mxu0
      %v1650 = vpop.f32.mrb[0].mxu0
      %v1651 = vadd.f32 %v380, %v1650
      %v1652 = vpop.f32.mrb[0].mxu0
      %1653 = vmatprep.mubr.bf16.mxu0 %v1170
      %1654 = vmatmul.mubr.bf16.gmra.mrb[0].mxu0 %v870
      %v1655 = vpop.f32.mrb[0].mxu0
      %v1656 = vadd.f32 %v380, %v1655
      %v1657 = vpop.f32.mrb[0].mxu0
      %v1658 = vpop.f32.mrb[0].mxu0
      %v1659 = vadd.f32 %v380, %v1658
      %v1660 = vpop.f32.mrb[0].mxu0
      %1661 = vmatprep.mubr.bf16.mxu0 %v1173
      %1662 = vmatmul.mubr.bf16.gmra.mrb[0].mxu0 %v872
      %v1663 = vpop.f32.mrb[0].mxu0
      %v1664 = vadd.f32 %v380, %v1663
      %v1665 = vpop.f32.mrb[0].mxu0
      %v1666 = vpop.f32.mrb[0].mxu0
      %v1667 = vadd.f32 %v380, %v1666
      %v1668 = vpop.f32.mrb[0].mxu0
      %1669 = vmatprep.mubr.bf16.mxu0 %v1176
      %1670 = vmatmul.mubr.bf16.gmra.mrb[0].mxu0 %v874
      %v1671 = vpop.f32.mrb[0].mxu0
      %v1672 = vadd.f32 %v380, %v1671
      %v1673 = vpop.f32.mrb[0].mxu0
      %v1674 = vpop.f32.mrb[0].mxu0
      %v1675 = vadd.f32 %v380, %v1674
      %v1676 = vpop.f32.mrb[0].mxu0
      %1677 = vmatprep.mubr.bf16.mxu0 %v1179
      %1678 = vmatmul.mubr.bf16.gmra.mrb[0].mxu0 %v876
      %v1679 = vpop.f32.mrb[0].mxu0
      %v1680 = vadd.f32 %v380, %v1679
      %v1681 = vpop.f32.mrb[0].mxu0
      %v1682 = vpop.f32.mrb[0].mxu0
      %v1683 = vadd.f32 %v380, %v1682
      %v1684 = vpop.f32.mrb[0].mxu0
      %1685 = vmatprep.mubr.bf16.mxu0 %v1182
      %1686 = vmatmul.mubr.bf16.gmra.mrb[0].mxu0 %v878
      %v1687 = vpop.f32.mrb[0].mxu0
      %v1688 = vadd.f32 %v380, %v1687
      %v1689 = vpop.f32.mrb[0].mxu0
      %v1690 = vpop.f32.mrb[0].mxu0
      %v1691 = vadd.f32 %v380, %v1690
      %v1692 = vpop.f32.mrb[0].mxu0
      %1693 = vmatprep.mubr.bf16.mxu0 %v1185
      %1694 = vmatmul.mubr.bf16.gmra.mrb[0].mxu0 %v880
      %v1695 = vpop.f32.mrb[0].mxu0
      %v1696 = vadd.f32 %v380, %v1695
      %v1697 = vpop.f32.mrb[0].mxu0
      %v1698 = vpop.f32.mrb[0].mxu0
      %v1699 = vadd.f32 %v380, %v1698
      %v1700 = vpop.f32.mrb[0].mxu0
      %1701 = vmatprep.mubr.bf16.mxu0 %v1188
      %1702 = vmatmul.mubr.bf16.gmra.mrb[0].mxu0 %v882
      %v1703 = vpop.f32.mrb[0].mxu0
      %v1704 = vadd.f32 %v380, %v1703
      %v1705 = vpop.f32.mrb[0].mxu0
      %v1706 = vpop.f32.mrb[0].mxu0
      %v1707 = vadd.f32 %v380, %v1706
      %v1708 = vpop.f32.mrb[0].mxu0
      %1709 = vmatprep.mubr.bf16.mxu0 %v1191
      %1710 = vmatmul.mubr.bf16.gmra.mrb[0].mxu0 %v884
      %v1711 = vpop.f32.mrb[0].mxu0
      %v1712 = vadd.f32 %v380, %v1711
      %v1713 = vpop.f32.mrb[0].mxu0
      %v1714 = vpop.f32.mrb[0].mxu0
      %v1715 = vadd.f32 %v380, %v1714
      %v1716 = vpop.f32.mrb[0].mxu0
      %1717 = vmatprep.mubr.bf16.mxu0 %v1194
      %1718 = vmatmul.mubr.bf16.gmra.mrb[0].mxu0 %v886
      %v1719 = vpop.f32.mrb[0].mxu0
      %v1720 = vadd.f32 %v380, %v1719
      %v1721 = vpop.f32.mrb[0].mxu0
      %v1722 = vpop.f32.mrb[0].mxu0
      %v1723 = vadd.f32 %v380, %v1722
      %v1724 = vpop.f32.mrb[0].mxu0
      %1725 = vmatprep.mubr.bf16.mxu0 %v1197
      %1726 = vmatmul.mubr.bf16.gmra.mrb[0].mxu0 %v888
      %v1727 = vpop.f32.mrb[0].mxu0
      %v1728 = vadd.f32 %v380, %v1727
      %v1729 = vpop.f32.mrb[0].mxu0
      %v1730 = vpop.f32.mrb[0].mxu0
      %v1731 = vadd.f32 %v380, %v1730
      %v1732 = vpop.f32.mrb[0].mxu0
      %1733 = vmatprep.mubr.bf16.mxu0 %v1200
      %1734 = vmatmul.mubr.bf16.gmra.mrb[0].mxu0 %v890
      %v1735 = vpop.f32.mrb[0].mxu0
      %v1736 = vadd.f32 %v380, %v1735
      %v1737 = vpop.f32.mrb[0].mxu0
      %v1738 = vpop.f32.mrb[0].mxu0
      %v1739 = vadd.f32 %v380, %v1738
      %v1740 = vpop.f32.mrb[0].mxu0
      %1741 = vmatprep.mubr.bf16.mxu0 %v1203
      %1742 = vmatmul.mubr.bf16.gmra.mrb[0].mxu0 %v892
      %v1743 = vpop.f32.mrb[0].mxu0
      %v1744 = vadd.f32 %v380, %v1743
      %v1745 = vpop.f32.mrb[0].mxu0
      %v1746 = vpop.f32.mrb[0].mxu0
      %v1747 = vadd.f32 %v380, %v1746
      %v1748 = vpop.f32.mrb[0].mxu0
      %1749 = vdwg.mxu0
      %v1750 = vtanh.pop %v1240
      %v1751 = vtanh.pop %v1243
      %v1752 = vtanh.pop %v1248
      %v1753 = vtanh.pop %v1251
      %v1754 = vtanh.pop %v1256
      %v1755 = vtanh.pop %v1259
      %v1756 = vtanh.pop %v1264
      %v1757 = vtanh.pop %v1267
      %v1758 = vtanh.pop %v1272
      %v1759 = vtanh.pop %v1275
      %v1760 = vtanh.pop %v1280
      %v1761 = vtanh.pop %v1283
      %v1762 = vtanh.pop %v1288
      %v1763 = vtanh.pop %v1291
      %v1764 = vtanh.pop %v1296
      %v1765 = vtanh.pop %v1299
      %v1766 = vtanh.pop %v1304
      %v1767 = vtanh.pop %v1307
      %v1768 = vtanh.pop %v1312
      %v1769 = vtanh.pop %v1315
      %v1770 = vtanh.pop %v1320
      %v1771 = vtanh.pop %v1323
      %v1772 = vtanh.pop %v1328
      %v1773 = vtanh.pop %v1331
      %v1774 = vtanh.pop %v1336
      %v1775 = vtanh.pop %v1339
      %v1776 = vtanh.pop %v1344
      %v1777 = vtanh.pop %v1347
      %v1778 = vtanh.pop %v1352
      %v1779 = vtanh.pop %v1355
      %v1780 = vtanh.pop %v1360
      %v1781 = vtanh.pop %v1363
      %v1782 = vtanh.pop %v1368
      %v1783 = vtanh.pop %v1371
      %v1784 = vtanh.pop %v1376
      %v1785 = vtanh.pop %v1379
      %v1786 = vtanh.pop %v1384
      %v1787 = vtanh.pop %v1387
      %v1788 = vtanh.pop %v1392
      %v1789 = vtanh.pop %v1395
      %v1790 = vtanh.pop %v1400
      %v1791 = vtanh.pop %v1403
      %v1792 = vtanh.pop %v1408
      %v1793 = vtanh.pop %v1411
      %v1794 = vtanh.pop %v1416
      %v1795 = vtanh.pop %v1419
      %v1796 = vtanh.pop %v1424
      %v1797 = vtanh.pop %v1427
      %v1798 = vtanh.pop %v1432
      %v1799 = vtanh.pop %v1435
      %v1800 = vtanh.pop %v1440
      %v1801 = vtanh.pop %v1443
      %v1802 = vtanh.pop %v1448
      %v1803 = vtanh.pop %v1451
      %v1804 = vtanh.pop %v1456
      %v1805 = vtanh.pop %v1459
      %v1806 = vtanh.pop %v1464
      %v1807 = vtanh.pop %v1467
      %v1808 = vtanh.pop %v1472
      %v1809 = vtanh.pop %v1475
      %v1810 = vtanh.pop %v1480
      %v1811 = vtanh.pop %v1483
      %v1812 = vtanh.pop %v1488
      %v1813 = vtanh.pop %v1491
      %v1814 = vtanh.pop %v1496
      %v1815 = vtanh.pop %v1499
      %v1816 = vtanh.pop %v1504
      %v1817 = vtanh.pop %v1507
      %v1818 = vtanh.pop %v1512
      %v1819 = vtanh.pop %v1515
      %v1820 = vtanh.pop %v1520
      %v1821 = vtanh.pop %v1523
      %v1822 = vtanh.pop %v1528
      %v1823 = vtanh.pop %v1531
      %v1824 = vtanh.pop %v1536
      %v1825 = vtanh.pop %v1539
      %v1826 = vtanh.pop %v1544
      %v1827 = vtanh.pop %v1547
      %v1828 = vtanh.pop %v1552
      %v1829 = vtanh.pop %v1555
      %v1830 = vtanh.pop %v1560
      %v1831 = vtanh.pop %v1563
      %v1832 = vtanh.pop %v1568
      %v1833 = vtanh.pop %v1571
      %v1834 = vtanh.pop %v1576
      %v1835 = vtanh.pop %v1579
      %v1836 = vtanh.pop %v1584
      %v1837 = vtanh.pop %v1587
      %v1838 = vtanh.pop %v1592
      %v1839 = vtanh.pop %v1595
      %v1840 = vtanh.pop %v1600
      %v1841 = vtanh.pop %v1603
      %v1842 = vtanh.pop %v1608
      %v1843 = vtanh.pop %v1611
      %v1844 = vtanh.pop %v1616
      %v1845 = vtanh.pop %v1619
      %v1846 = vtanh.pop %v1624
      %v1847 = vtanh.pop %v1627
      %v1848 = vtanh.pop %v1632
      %v1849 = vtanh.pop %v1635
      %v1850 = vtanh.pop %v1640
      %v1851 = vtanh.pop %v1643
      %v1852 = vtanh.pop %v1648
      %v1853 = vtanh.pop %v1651
      %v1854 = vtanh.pop %v1656
      %v1855 = vtanh.pop %v1659
      %v1856 = vtanh.pop %v1664
      %v1857 = vtanh.pop %v1667
      %v1858 = vtanh.pop %v1672
      %v1859 = vtanh.pop %v1675
      %v1860 = vtanh.pop %v1680
      %v1861 = vtanh.pop %v1683
      %v1862 = vtanh.pop %v1688
      %v1863 = vtanh.pop %v1691
      %v1864 = vtanh.pop %v1696
      %v1865 = vtanh.pop %v1699
      %v1866 = vtanh.pop %v1704
      %v1867 = vtanh.pop %v1707
      %v1868 = vtanh.pop %v1712
      %v1869 = vtanh.pop %v1715
      %v1870 = vtanh.pop %v1720
      %v1871 = vtanh.pop %v1723
      %v1872 = vtanh.pop %v1728
      %v1873 = vtanh.pop %v1731
      %v1874 = vtanh.pop %v1736
      %v1875 = vtanh.pop %v1739
      %v1876 = vtanh.pop %v1744
      %v1877 = vtanh.pop %v1747
      %v1878 = vpack.c.bf16 %v1751, %v1750
      %v1879 = vpack.c.bf16 %v1753, %v1752
      %v1880 = vpack.c.bf16 %v1755, %v1754
      %v1881 = vpack.c.bf16 %v1757, %v1756
      %v1882 = vpack.c.bf16 %v1759, %v1758
      %v1883 = vpack.c.bf16 %v1761, %v1760
      %v1884 = vpack.c.bf16 %v1763, %v1762
      %v1885 = vpack.c.bf16 %v1765, %v1764
      %v1886 = vpack.c.bf16 %v1767, %v1766
      %v1887 = vpack.c.bf16 %v1769, %v1768
      %v1888 = vpack.c.bf16 %v1771, %v1770
      %v1889 = vpack.c.bf16 %v1773, %v1772
      %v1890 = vpack.c.bf16 %v1775, %v1774
      %v1891 = vpack.c.bf16 %v1777, %v1776
      %v1892 = vpack.c.bf16 %v1779, %v1778
      %v1893 = vpack.c.bf16 %v1781, %v1780
      %v1894 = vpack.c.bf16 %v1783, %v1782
      %v1895 = vpack.c.bf16 %v1785, %v1784
      %v1896 = vpack.c.bf16 %v1787, %v1786
      %v1897 = vpack.c.bf16 %v1789, %v1788
      %v1898 = vpack.c.bf16 %v1791, %v1790
      %v1899 = vpack.c.bf16 %v1793, %v1792
      %v1900 = vpack.c.bf16 %v1795, %v1794
      %v1901 = vpack.c.bf16 %v1797, %v1796
      %v1902 = vpack.c.bf16 %v1799, %v1798
      %v1903 = vpack.c.bf16 %v1801, %v1800
      %v1904 = vpack.c.bf16 %v1803, %v1802
      %v1905 = vpack.c.bf16 %v1805, %v1804
      %v1906 = vpack.c.bf16 %v1807, %v1806
      %v1907 = vpack.c.bf16 %v1809, %v1808
      %v1908 = vpack.c.bf16 %v1811, %v1810
      %v1909 = vpack.c.bf16 %v1813, %v1812
      %v1910 = vpack.c.bf16 %v1815, %v1814
      %v1911 = vpack.c.bf16 %v1817, %v1816
      %v1912 = vpack.c.bf16 %v1819, %v1818
      %v1913 = vpack.c.bf16 %v1821, %v1820
      %v1914 = vpack.c.bf16 %v1823, %v1822
      %v1915 = vpack.c.bf16 %v1825, %v1824
      %v1916 = vpack.c.bf16 %v1827, %v1826
      %v1917 = vpack.c.bf16 %v1829, %v1828
      %v1918 = vpack.c.bf16 %v1831, %v1830
      %v1919 = vpack.c.bf16 %v1833, %v1832
      %v1920 = vpack.c.bf16 %v1835, %v1834
      %v1921 = vpack.c.bf16 %v1837, %v1836
      %v1922 = vpack.c.bf16 %v1839, %v1838
      %v1923 = vpack.c.bf16 %v1841, %v1840
      %v1924 = vpack.c.bf16 %v1843, %v1842
      %v1925 = vpack.c.bf16 %v1845, %v1844
      %v1926 = vpack.c.bf16 %v1847, %v1846
      %v1927 = vpack.c.bf16 %v1849, %v1848
      %v1928 = vpack.c.bf16 %v1851, %v1850
      %v1929 = vpack.c.bf16 %v1853, %v1852
      %v1930 = vpack.c.bf16 %v1855, %v1854
      %v1931 = vpack.c.bf16 %v1857, %v1856
      %v1932 = vpack.c.bf16 %v1859, %v1858
      %v1933 = vpack.c.bf16 %v1861, %v1860
      %v1934 = vpack.c.bf16 %v1863, %v1862
      %v1935 = vpack.c.bf16 %v1865, %v1864
      %v1936 = vpack.c.bf16 %v1867, %v1866
      %v1937 = vpack.c.bf16 %v1869, %v1868
      %v1938 = vpack.c.bf16 %v1871, %v1870
      %v1939 = vpack.c.bf16 %v1873, %v1872
      %v1940 = vpack.c.bf16 %v1875, %v1874
      %v1941 = vpack.c.bf16 %v1877, %v1876
      %v2006 = vunpack.c.l.b16 %v1878
      %v2007 = vunpack.c.h.b16 %v1878
      %v2008 = vunpack.c.l.b16 %v1879
      %v2009 = vunpack.c.h.b16 %v1879
      %v2010 = vunpack.c.l.b16 %v1880
      %v2011 = vunpack.c.h.b16 %v1880
      %v2012 = vunpack.c.l.b16 %v1881
      %v2013 = vunpack.c.h.b16 %v1881
      %v2014 = vunpack.c.l.b16 %v1882
      %v2015 = vunpack.c.h.b16 %v1882
      %v2016 = vunpack.c.l.b16 %v1883
      %v2017 = vunpack.c.h.b16 %v1883
      %v2018 = vunpack.c.l.b16 %v1884
      %v2019 = vunpack.c.h.b16 %v1884
      %v2020 = vunpack.c.l.b16 %v1885
      %v2021 = vunpack.c.h.b16 %v1885
      %v2022 = vunpack.c.l.b16 %v1886
      %v2023 = vunpack.c.h.b16 %v1886
      %v2024 = vunpack.c.l.b16 %v1887
      %v2025 = vunpack.c.h.b16 %v1887
      %v2026 = vunpack.c.l.b16 %v1888
      %v2027 = vunpack.c.h.b16 %v1888
      %v2028 = vunpack.c.l.b16 %v1889
      %v2029 = vunpack.c.h.b16 %v1889
      %v2030 = vunpack.c.l.b16 %v1890
      %v2031 = vunpack.c.h.b16 %v1890
      %v2032 = vunpack.c.l.b16 %v1891
      %v2033 = vunpack.c.h.b16 %v1891
      %v2034 = vunpack.c.l.b16 %v1892
      %v2035 = vunpack.c.h.b16 %v1892
      %v2036 = vunpack.c.l.b16 %v1893
      %v2037 = vunpack.c.h.b16 %v1893
      %v2038 = vunpack.c.l.b16 %v1894
      %v2039 = vunpack.c.h.b16 %v1894
      %v2040 = vunpack.c.l.b16 %v1895
      %v2041 = vunpack.c.h.b16 %v1895
      %v2042 = vunpack.c.l.b16 %v1896
      %v2043 = vunpack.c.h.b16 %v1896
      %v2044 = vunpack.c.l.b16 %v1897
      %v2045 = vunpack.c.h.b16 %v1897
      %v2046 = vunpack.c.l.b16 %v1898
      %v2047 = vunpack.c.h.b16 %v1898
      %v2048 = vunpack.c.l.b16 %v1899
      %v2049 = vunpack.c.h.b16 %v1899
      %v2050 = vunpack.c.l.b16 %v1900
      %v2051 = vunpack.c.h.b16 %v1900
      %v2052 = vunpack.c.l.b16 %v1901
      %v2053 = vunpack.c.h.b16 %v1901
      %v2054 = vunpack.c.l.b16 %v1902
      %v2055 = vunpack.c.h.b16 %v1902
      %v2056 = vunpack.c.l.b16 %v1903
      %v2057 = vunpack.c.h.b16 %v1903
      %v2058 = vunpack.c.l.b16 %v1904
      %v2059 = vunpack.c.h.b16 %v1904
      %v2060 = vunpack.c.l.b16 %v1905
      %v2061 = vunpack.c.h.b16 %v1905
      %v2062 = vunpack.c.l.b16 %v1906
      %v2063 = vunpack.c.h.b16 %v1906
      %v2064 = vunpack.c.l.b16 %v1907
      %v2065 = vunpack.c.h.b16 %v1907
      %v2066 = vunpack.c.l.b16 %v1908
      %v2067 = vunpack.c.h.b16 %v1908
      %v2068 = vunpack.c.l.b16 %v1909
      %v2069 = vunpack.c.h.b16 %v1909
      %v2070 = vunpack.c.l.b16 %v1910
      %v2071 = vunpack.c.h.b16 %v1910
      %v2072 = vunpack.c.l.b16 %v1911
      %v2073 = vunpack.c.h.b16 %v1911
      %v2074 = vunpack.c.l.b16 %v1912
      %v2075 = vunpack.c.h.b16 %v1912
      %v2076 = vunpack.c.l.b16 %v1913
      %v2077 = vunpack.c.h.b16 %v1913
      %v2078 = vunpack.c.l.b16 %v1914
      %v2079 = vunpack.c.h.b16 %v1914
      %v2080 = vunpack.c.l.b16 %v1915
      %v2081 = vunpack.c.h.b16 %v1915
      %v2082 = vunpack.c.l.b16 %v1916
      %v2083 = vunpack.c.h.b16 %v1916
      %v2084 = vunpack.c.l.b16 %v1917
      %v2085 = vunpack.c.h.b16 %v1917
      %v2086 = vunpack.c.l.b16 %v1918
      %v2087 = vunpack.c.h.b16 %v1918
      %v2088 = vunpack.c.l.b16 %v1919
      %v2089 = vunpack.c.h.b16 %v1919
      %v2090 = vunpack.c.l.b16 %v1920
      %v2091 = vunpack.c.h.b16 %v1920
      %v2092 = vunpack.c.l.b16 %v1921
      %v2093 = vunpack.c.h.b16 %v1921
      %v2094 = vunpack.c.l.b16 %v1922
      %v2095 = vunpack.c.h.b16 %v1922
      %v2096 = vunpack.c.l.b16 %v1923
      %v2097 = vunpack.c.h.b16 %v1923
      %v2098 = vunpack.c.l.b16 %v1924
      %v2099 = vunpack.c.h.b16 %v1924
      %v2100 = vunpack.c.l.b16 %v1925
      %v2101 = vunpack.c.h.b16 %v1925
      %v2102 = vunpack.c.l.b16 %v1926
      %v2103 = vunpack.c.h.b16 %v1926
      %v2104 = vunpack.c.l.b16 %v1927
      %v2105 = vunpack.c.h.b16 %v1927
      %v2106 = vunpack.c.l.b16 %v1928
      %v2107 = vunpack.c.h.b16 %v1928
      %v2108 = vunpack.c.l.b16 %v1929
      %v2109 = vunpack.c.h.b16 %v1929
      %v2110 = vunpack.c.l.b16 %v1930
      %v2111 = vunpack.c.h.b16 %v1930
      %v2112 = vunpack.c.l.b16 %v1931
      %v2113 = vunpack.c.h.b16 %v1931
      %v2114 = vunpack.c.l.b16 %v1932
      %v2115 = vunpack.c.h.b16 %v1932
      %v2116 = vunpack.c.l.b16 %v1933
      %v2117 = vunpack.c.h.b16 %v1933
      %v2118 = vunpack.c.l.b16 %v1934
      %v2119 = vunpack.c.h.b16 %v1934
      %v2120 = vunpack.c.l.b16 %v1935
      %v2121 = vunpack.c.h.b16 %v1935
      %v2122 = vunpack.c.l.b16 %v1936
      %v2123 = vunpack.c.h.b16 %v1936
      %v2124 = vunpack.c.l.b16 %v1937
      %v2125 = vunpack.c.h.b16 %v1937
      %v2126 = vunpack.c.l.b16 %v1938
      %v2127 = vunpack.c.h.b16 %v1938
      %v2128 = vunpack.c.l.b16 %v1939
      %v2129 = vunpack.c.h.b16 %v1939
      %v2130 = vunpack.c.l.b16 %v1940
      %v2131 = vunpack.c.h.b16 %v1940
      %v2132 = vunpack.c.l.b16 %v1941
      %v2133 = vunpack.c.h.b16 %v1941
      %v2134 = vpack.c.b16 %v2006, %v2006
      %v2135 = vpack.c.b16 %v2007, %v2007
      %v2136 = vpack.c.b16 %v2008, %v2008
      %v2137 = vpack.c.b16 %v2009, %v2009
      %v2138 = vpack.c.b16 %v2010, %v2010
      %v2139 = vpack.c.b16 %v2011, %v2011
      %v2140 = vpack.c.b16 %v2012, %v2012
      %v2141 = vpack.c.b16 %v2013, %v2013
      %v2142 = vpack.c.b16 %v2014, %v2014
      %v2143 = vpack.c.b16 %v2015, %v2015
      %v2144 = vpack.c.b16 %v2016, %v2016
      %v2145 = vpack.c.b16 %v2017, %v2017
      %v2146 = vpack.c.b16 %v2018, %v2018
      %v2147 = vpack.c.b16 %v2019, %v2019
      %v2148 = vpack.c.b16 %v2020, %v2020
      %v2149 = vpack.c.b16 %v2021, %v2021
      %v2150 = vpack.c.b16 %v2022, %v2022
      %v2151 = vpack.c.b16 %v2023, %v2023
      %v2152 = vpack.c.b16 %v2024, %v2024
      %v2153 = vpack.c.b16 %v2025, %v2025
      %v2154 = vpack.c.b16 %v2026, %v2026
      %v2155 = vpack.c.b16 %v2027, %v2027
      %v2156 = vpack.c.b16 %v2028, %v2028
      %v2157 = vpack.c.b16 %v2029, %v2029
      %v2158 = vpack.c.b16 %v2030, %v2030
      %v2159 = vpack.c.b16 %v2031, %v2031
      %v2160 = vpack.c.b16 %v2032, %v2032
      %v2161 = vpack.c.b16 %v2033, %v2033
      %v2162 = vpack.c.b16 %v2034, %v2034
      %v2163 = vpack.c.b16 %v2035, %v2035
      %v2164 = vpack.c.b16 %v2036, %v2036
      %v2165 = vpack.c.b16 %v2037, %v2037
      %v2166 = vpack.c.b16 %v2038, %v2038
      %v2167 = vpack.c.b16 %v2039, %v2039
      %v2168 = vpack.c.b16 %v2040, %v2040
      %v2169 = vpack.c.b16 %v2041, %v2041
      %v2170 = vpack.c.b16 %v2042, %v2042
      %v2171 = vpack.c.b16 %v2043, %v2043
      %v2172 = vpack.c.b16 %v2044, %v2044
      %v2173 = vpack.c.b16 %v2045, %v2045
      %v2174 = vpack.c.b16 %v2046, %v2046
      %v2175 = vpack.c.b16 %v2047, %v2047
      %v2176 = vpack.c.b16 %v2048, %v2048
      %v2177 = vpack.c.b16 %v2049, %v2049
      %v2178 = vpack.c.b16 %v2050, %v2050
      %v2179 = vpack.c.b16 %v2051, %v2051
      %v2180 = vpack.c.b16 %v2052, %v2052
      %v2181 = vpack.c.b16 %v2053, %v2053
      %v2182 = vpack.c.b16 %v2054, %v2054
      %v2183 = vpack.c.b16 %v2055, %v2055
      %v2184 = vpack.c.b16 %v2056, %v2056
      %v2185 = vpack.c.b16 %v2057, %v2057
      %v2186 = vpack.c.b16 %v2058, %v2058
      %v2187 = vpack.c.b16 %v2059, %v2059
      %v2188 = vpack.c.b16 %v2060, %v2060
      %v2189 = vpack.c.b16 %v2061, %v2061
      %v2190 = vpack.c.b16 %v2062, %v2062
      %v2191 = vpack.c.b16 %v2063, %v2063
      %v2192 = vpack.c.b16 %v2064, %v2064
      %v2193 = vpack.c.b16 %v2065, %v2065
      %v2194 = vpack.c.b16 %v2066, %v2066
      %v2195 = vpack.c.b16 %v2067, %v2067
      %v2196 = vpack.c.b16 %v2068, %v2068
      %v2197 = vpack.c.b16 %v2069, %v2069
      %v2198 = vpack.c.b16 %v2070, %v2070
      %v2199 = vpack.c.b16 %v2071, %v2071
      %v2200 = vpack.c.b16 %v2072, %v2072
      %v2201 = vpack.c.b16 %v2073, %v2073
      %v2202 = vpack.c.b16 %v2074, %v2074
      %v2203 = vpack.c.b16 %v2075, %v2075
      %v2204 = vpack.c.b16 %v2076, %v2076
      %v2205 = vpack.c.b16 %v2077, %v2077
      %v2206 = vpack.c.b16 %v2078, %v2078
      %v2207 = vpack.c.b16 %v2079, %v2079
      %v2208 = vpack.c.b16 %v2080, %v2080
      %v2209 = vpack.c.b16 %v2081, %v2081
      %v2210 = vpack.c.b16 %v2082, %v2082
      %v2211 = vpack.c.b16 %v2083, %v2083
      %v2212 = vpack.c.b16 %v2084, %v2084
      %v2213 = vpack.c.b16 %v2085, %v2085
      %v2214 = vpack.c.b16 %v2086, %v2086
      %v2215 = vpack.c.b16 %v2087, %v2087
      %v2216 = vpack.c.b16 %v2088, %v2088
      %v2217 = vpack.c.b16 %v2089, %v2089
      %v2218 = vpack.c.b16 %v2090, %v2090
      %v2219 = vpack.c.b16 %v2091, %v2091
      %v2220 = vpack.c.b16 %v2092, %v2092
      %v2221 = vpack.c.b16 %v2093, %v2093
      %v2222 = vpack.c.b16 %v2094, %v2094
      %v2223 = vpack.c.b16 %v2095, %v2095
      %v2224 = vpack.c.b16 %v2096, %v2096
      %v2225 = vpack.c.b16 %v2097, %v2097
      %v2226 = vpack.c.b16 %v2098, %v2098
      %v2227 = vpack.c.b16 %v2099, %v2099
      %v2228 = vpack.c.b16 %v2100, %v2100
      %v2229 = vpack.c.b16 %v2101, %v2101
      %v2230 = vpack.c.b16 %v2102, %v2102
      %v2231 = vpack.c.b16 %v2103, %v2103
      %v2232 = vpack.c.b16 %v2104, %v2104
      %v2233 = vpack.c.b16 %v2105, %v2105
      %v2234 = vpack.c.b16 %v2106, %v2106
      %v2235 = vpack.c.b16 %v2107, %v2107
      %v2236 = vpack.c.b16 %v2108, %v2108
      %v2237 = vpack.c.b16 %v2109, %v2109
      %v2238 = vpack.c.b16 %v2110, %v2110
      %v2239 = vpack.c.b16 %v2111, %v2111
      %v2240 = vpack.c.b16 %v2112, %v2112
      %v2241 = vpack.c.b16 %v2113, %v2113
      %v2242 = vpack.c.b16 %v2114, %v2114
      %v2243 = vpack.c.b16 %v2115, %v2115
      %v2244 = vpack.c.b16 %v2116, %v2116
      %v2245 = vpack.c.b16 %v2117, %v2117
      %v2246 = vpack.c.b16 %v2118, %v2118
      %v2247 = vpack.c.b16 %v2119, %v2119
      %v2248 = vpack.c.b16 %v2120, %v2120
      %v2249 = vpack.c.b16 %v2121, %v2121
      %v2250 = vpack.c.b16 %v2122, %v2122
      %v2251 = vpack.c.b16 %v2123, %v2123
      %v2252 = vpack.c.b16 %v2124, %v2124
      %v2253 = vpack.c.b16 %v2125, %v2125
      %v2254 = vpack.c.b16 %v2126, %v2126
      %v2255 = vpack.c.b16 %v2127, %v2127
      %v2256 = vpack.c.b16 %v2128, %v2128
      %v2257 = vpack.c.b16 %v2129, %v2129
      %v2258 = vpack.c.b16 %v2130, %v2130
      %v2259 = vpack.c.b16 %v2131, %v2131
      %v2260 = vpack.c.b16 %v2132, %v2132
      %v2261 = vpack.c.b16 %v2133, %v2133
      %2390 = vst [vmem:[%s226] sm:$0xf] %v2134
      %2391 = vst [vmem:[%s226 + $0x4] sm:$0xf] %v2135
      %2392 = vst [vmem:[%s226 + $0x8] sm:$0xf] %v2136
      %2393 = vst [vmem:[%s226 + $0xc] sm:$0xf] %v2137
      %2394 = vst [vmem:[%s226 + $0x10] sm:$0xf] %v2138
      %2395 = vst [vmem:[%s226 + $0x14] sm:$0xf] %v2139
      %2396 = vst [vmem:[%s226 + $0x18] sm:$0xf] %v2140
      %2397 = vst [vmem:[%s226 + $0x1c] sm:$0xf] %v2141
      %2398 = vst [vmem:[%s226 + $0x20] sm:$0xf] %v2142
      %2399 = vst [vmem:[%s226 + $0x24] sm:$0xf] %v2143
      %2400 = vst [vmem:[%s226 + $0x28] sm:$0xf] %v2144
      %2401 = vst [vmem:[%s226 + $0x2c] sm:$0xf] %v2145
      %2402 = vst [vmem:[%s226 + $0x30] sm:$0xf] %v2146
      %2403 = vst [vmem:[%s226 + $0x34] sm:$0xf] %v2147
      %2404 = vst [vmem:[%s226 + $0x38] sm:$0xf] %v2148
      %2405 = vst [vmem:[%s226 + $0x3c] sm:$0xf] %v2149
      %2406 = vst [vmem:[%s226 + $0x40] sm:$0xf] %v2150
      %2407 = vst [vmem:[%s226 + $0x44] sm:$0xf] %v2151
      %2408 = vst [vmem:[%s226 + $0x48] sm:$0xf] %v2152
      %2409 = vst [vmem:[%s226 + $0x4c] sm:$0xf] %v2153
      %2410 = vst [vmem:[%s226 + $0x50] sm:$0xf] %v2154
      %2411 = vst [vmem:[%s226 + $0x54] sm:$0xf] %v2155
      %2412 = vst [vmem:[%s226 + $0x58] sm:$0xf] %v2156
      %2413 = vst [vmem:[%s226 + $0x5c] sm:$0xf] %v2157
      %2414 = vst [vmem:[%s226 + $0x60] sm:$0xf] %v2158
      %2415 = vst [vmem:[%s226 + $0x64] sm:$0xf] %v2159
      %2416 = vst [vmem:[%s226 + $0x68] sm:$0xf] %v2160
      %2417 = vst [vmem:[%s226 + $0x6c] sm:$0xf] %v2161
      %2418 = vst [vmem:[%s226 + $0x70] sm:$0xf] %v2162
      %2419 = vst [vmem:[%s226 + $0x74] sm:$0xf] %v2163
      %2420 = vst [vmem:[%s226 + $0x78] sm:$0xf] %v2164
      %2421 = vst [vmem:[%s226 + $0x7c] sm:$0xf] %v2165
      %2422 = vst [vmem:[%s226 + $0x80] sm:$0xf] %v2166
      %2423 = vst [vmem:[%s226 + $0x84] sm:$0xf] %v2167
      %2424 = vst [vmem:[%s226 + $0x88] sm:$0xf] %v2168
      %2425 = vst [vmem:[%s226 + $0x8c] sm:$0xf] %v2169
      %2426 = vst [vmem:[%s226 + $0x90] sm:$0xf] %v2170
      %2427 = vst [vmem:[%s226 + $0x94] sm:$0xf] %v2171
      %2428 = vst [vmem:[%s226 + $0x98] sm:$0xf] %v2172
      %2429 = vst [vmem:[%s226 + $0x9c] sm:$0xf] %v2173
      %2430 = vst [vmem:[%s226 + $0xa0] sm:$0xf] %v2174
      %2431 = vst [vmem:[%s226 + $0xa4] sm:$0xf] %v2175
      %2432 = vst [vmem:[%s226 + $0xa8] sm:$0xf] %v2176
      %2433 = vst [vmem:[%s226 + $0xac] sm:$0xf] %v2177
      %2434 = vst [vmem:[%s226 + $0xb0] sm:$0xf] %v2178
      %2435 = vst [vmem:[%s226 + $0xb4] sm:$0xf] %v2179
      %2436 = vst [vmem:[%s226 + $0xb8] sm:$0xf] %v2180
      %2437 = vst [vmem:[%s226 + $0xbc] sm:$0xf] %v2181
      %2438 = vst [vmem:[%s226 + $0xc0] sm:$0xf] %v2182
      %2439 = vst [vmem:[%s226 + $0xc4] sm:$0xf] %v2183
      %2440 = vst [vmem:[%s226 + $0xc8] sm:$0xf] %v2184
      %2441 = vst [vmem:[%s226 + $0xcc] sm:$0xf] %v2185
      %2442 = vst [vmem:[%s226 + $0xd0] sm:$0xf] %v2186
      %2443 = vst [vmem:[%s226 + $0xd4] sm:$0xf] %v2187
      %2444 = vst [vmem:[%s226 + $0xd8] sm:$0xf] %v2188
      %2445 = vst [vmem:[%s226 + $0xdc] sm:$0xf] %v2189
      %2446 = vst [vmem:[%s226 + $0xe0] sm:$0xf] %v2190
      %2447 = vst [vmem:[%s226 + $0xe4] sm:$0xf] %v2191
      %2448 = vst [vmem:[%s226 + $0xe8] sm:$0xf] %v2192
      %2449 = vst [vmem:[%s226 + $0xec] sm:$0xf] %v2193
      %2450 = vst [vmem:[%s226 + $0xf0] sm:$0xf] %v2194
      %2451 = vst [vmem:[%s226 + $0xf4] sm:$0xf] %v2195
      %2452 = vst [vmem:[%s226 + $0xf8] sm:$0xf] %v2196
      %2453 = vst [vmem:[%s226 + $0xfc] sm:$0xf] %v2197
      %2454 = vst [vmem:[%s226 + $0x100] sm:$0xf] %v2198
      %2455 = vst [vmem:[%s226 + $0x104] sm:$0xf] %v2199
      %2456 = vst [vmem:[%s226 + $0x108] sm:$0xf] %v2200
      %2457 = vst [vmem:[%s226 + $0x10c] sm:$0xf] %v2201
      %2458 = vst [vmem:[%s226 + $0x110] sm:$0xf] %v2202
      %2459 = vst [vmem:[%s226 + $0x114] sm:$0xf] %v2203
      %2460 = vst [vmem:[%s226 + $0x118] sm:$0xf] %v2204
      %2461 = vst [vmem:[%s226 + $0x11c] sm:$0xf] %v2205
      %2462 = vst [vmem:[%s226 + $0x120] sm:$0xf] %v2206
      %2463 = vst [vmem:[%s226 + $0x124] sm:$0xf] %v2207
      %2464 = vst [vmem:[%s226 + $0x128] sm:$0xf] %v2208
      %2465 = vst [vmem:[%s226 + $0x12c] sm:$0xf] %v2209
      %2466 = vst [vmem:[%s226 + $0x130] sm:$0xf] %v2210
      %2467 = vst [vmem:[%s226 + $0x134] sm:$0xf] %v2211
      %2468 = vst [vmem:[%s226 + $0x138] sm:$0xf] %v2212
      %2469 = vst [vmem:[%s226 + $0x13c] sm:$0xf] %v2213
      %2470 = vst [vmem:[%s226 + $0x140] sm:$0xf] %v2214
      %2471 = vst [vmem:[%s226 + $0x144] sm:$0xf] %v2215
      %2472 = vst [vmem:[%s226 + $0x148] sm:$0xf] %v2216
      %2473 = vst [vmem:[%s226 + $0x14c] sm:$0xf] %v2217
      %2474 = vst [vmem:[%s226 + $0x150] sm:$0xf] %v2218
      %2475 = vst [vmem:[%s226 + $0x154] sm:$0xf] %v2219
      %2476 = vst [vmem:[%s226 + $0x158] sm:$0xf] %v2220
      %2477 = vst [vmem:[%s226 + $0x15c] sm:$0xf] %v2221
      %2478 = vst [vmem:[%s226 + $0x160] sm:$0xf] %v2222
      %2479 = vst [vmem:[%s226 + $0x164] sm:$0xf] %v2223
      %2480 = vst [vmem:[%s226 + $0x168] sm:$0xf] %v2224
      %2481 = vst [vmem:[%s226 + $0x16c] sm:$0xf] %v2225
      %2482 = vst [vmem:[%s226 + $0x170] sm:$0xf] %v2226
      %2483 = vst [vmem:[%s226 + $0x174] sm:$0xf] %v2227
      %2484 = vst [vmem:[%s226 + $0x178] sm:$0xf] %v2228
      %2485 = vst [vmem:[%s226 + $0x17c] sm:$0xf] %v2229
      %2486 = vst [vmem:[%s226 + $0x180] sm:$0xf] %v2230
      %2487 = vst [vmem:[%s226 + $0x184] sm:$0xf] %v2231
      %2488 = vst [vmem:[%s226 + $0x188] sm:$0xf] %v2232
      %2489 = vst [vmem:[%s226 + $0x18c] sm:$0xf] %v2233
      %2490 = vst [vmem:[%s226 + $0x190] sm:$0xf] %v2234
      %2491 = vst [vmem:[%s226 + $0x194] sm:$0xf] %v2235
      %2492 = vst [vmem:[%s226 + $0x198] sm:$0xf] %v2236
      %2493 = vst [vmem:[%s226 + $0x19c] sm:$0xf] %v2237
      %2494 = vst [vmem:[%s226 + $0x1a0] sm:$0xf] %v2238
      %2495 = vst [vmem:[%s226 + $0x1a4] sm:$0xf] %v2239
      %2496 = vst [vmem:[%s226 + $0x1a8] sm:$0xf] %v2240
      %2497 = vst [vmem:[%s226 + $0x1ac] sm:$0xf] %v2241
      %2498 = vst [vmem:[%s226 + $0x1b0] sm:$0xf] %v2242
      %2499 = vst [vmem:[%s226 + $0x1b4] sm:$0xf] %v2243
      %2500 = vst [vmem:[%s226 + $0x1b8] sm:$0xf] %v2244
      %2501 = vst [vmem:[%s226 + $0x1bc] sm:$0xf] %v2245
      %2502 = vst [vmem:[%s226 + $0x1c0] sm:$0xf] %v2246
      %2503 = vst [vmem:[%s226 + $0x1c4] sm:$0xf] %v2247
      %2504 = vst [vmem:[%s226 + $0x1c8] sm:$0xf] %v2248
      %2505 = vst [vmem:[%s226 + $0x1cc] sm:$0xf] %v2249
      %2506 = vst [vmem:[%s226 + $0x1d0] sm:$0xf] %v2250
      %2507 = vst [vmem:[%s226 + $0x1d4] sm:$0xf] %v2251
      %2508 = vst [vmem:[%s226 + $0x1d8] sm:$0xf] %v2252
      %2509 = vst [vmem:[%s226 + $0x1dc] sm:$0xf] %v2253
      %2510 = vst [vmem:[%s226 + $0x1e0] sm:$0xf] %v2254
      %2511 = vst [vmem:[%s226 + $0x1e4] sm:$0xf] %v2255
      %2512 = vst [vmem:[%s226 + $0x1e8] sm:$0xf] %v2256
      %2513 = vst [vmem:[%s226 + $0x1ec] sm:$0xf] %v2257
      %2514 = vst [vmem:[%s226 + $0x1f0] sm:$0xf] %v2258
      %2515 = vst [vmem:[%s226 + $0x1f4] sm:$0xf] %v2259
      %2516 = vst [vmem:[%s226 + $0x1f8] sm:$0xf] %v2260
      %2517 = vst [vmem:[%s226 + $0x1fc] sm:$0xf] %v2261
      %s2518 = smul.u32 128, %s18
      %p2519 = scmp.lt.s32.totalorder %s2518, 255
      %s2520 = scalar_select %p2519, %s2518, 255
      %p2521 = scmp.lt.s32.totalorder %s19, 0
      %s2522 = scalar_select %p2521, %s19, 0
      %s2523 = sadd.s32 %s2522, %s2520
      %s2524 = smul.addr %s2523, 4
      %s2525 = scalar_lea.vmem %s3, %s2524
      // Predicated region
      $region33: #{generator_forward.17} parent=31 // pred_check
        %p2526 = pneg %p124
      $region34: #{generator_forward.17} parent=31 // pred_check_branch
        %2528 = sbr.rel (%p2526) target = $region36
      $region35: #{generator_forward.17} parent=31 // pred_region
        %s2529 = smul.u32 128, %s18
      $region36: #{generator_forward.17} parent=31 // pred_fallthru
        _
    $region32: #{generator_forward.17} parent=5 // pred_fallthru
      _
    %p2530 = scmp.le.s32.totalorder 2, %s9
    // Predicated region
    $region37: #{generator_forward.17} parent=5 // pred_check
      %p2531 = pneg %p2530
    $region38: #{generator_forward.17} parent=5 // pred_check_branch
      %2533 = sbr.rel (%p2531) target = $region40
    $region39: #{generator_forward.17} parent=5 // pred_region
      %s2534 = ssub.s32 %s9, 2
      // Predicated region
      $region41: #{generator_forward.17} parent=39 // pred_check
        %p2535 = pneg %p130
      $region42: #{generator_forward.17} parent=39 // pred_check_branch
        %2537 = sbr.rel (%p2535) target = $region44
      $region43: #{generator_forward.17} parent=39 // pred_region
        %s2538 = smul.u32 128, %s20
        %p2539 = scmp.lt.s32.totalorder %s2538, 255
        %s2540 = scalar_select %p2539, %s2538, 255
        %p2541 = scmp.lt.s32.totalorder %s21, 0
        %s2542 = scalar_select %p2541, %s21, 0
        %s2543 = sadd.s32 %s2542, %s2540
        %s2544 = smul.addr %s2543, 4
        %s2545 = scalar_lea.vmem %s3, %s2544
      $region44: #{generator_forward.17} parent=39 // pred_fallthru
        _
    $region40: #{generator_forward.17} parent=5 // pred_fallthru
      _
  $region6: #{generator_forward.17} parent=0 // loop_footer
    %s13 = sadd.s32 1, %s9
  $region7: #{generator_forward.17} parent=0 // loop_footer_branch
    %8 = sbr.rel target = $region3
  $region8: #{generator_forward.17} parent=0 // loop_exit
    _

</llo_original>
